<compile_context>
chip_gen: v5e
topology: v5e:2x2
jax: 0.10.0
libtpu: 0.0.40
codegen_flags: <defaults>
</compile_context>

<pallas_src>
import functools
import math
import warnings

import jax
import jax.numpy as jnp
from jax import lax
from jax.experimental import pallas as pl
from jax.experimental.pallas import tpu as pltpu

EPS = 1e-5  # PyTorch LayerNorm default eps


def _round_up(a, m):
    return (a + m - 1) // m * m


def _normalize(x, inv_n):
    """LayerNorm core: (x - mean) * rsqrt(var + eps), single elementwise pass."""
    s = jnp.sum(x, axis=-1, keepdims=True)
    ss = jnp.sum(x * x, axis=-1, keepdims=True)
    m = s * inv_n
    var = ss * inv_n - m * m
    return (x - m) * lax.rsqrt(var + EPS)


def _layernorm(x, g, b):
    # two-pass version, used only by the plain-JAX reference
    m = jnp.mean(x, axis=-1, keepdims=True)
    v = jnp.mean((x - m) ** 2, axis=-1, keepdims=True)
    return (x - m) * lax.rsqrt(v + EPS) * g + b


# --------------------------------------------------------------------------- #
# Kernel
# --------------------------------------------------------------------------- #
def cognitive_age_kernel(lane_dense, layers_per_step, dims,
                         x_ref, small_ref, enc_w_ref, wa_ref, w1_ref, w2_ref,
                         lbias_ref, hw1_ref, hw2_ref, out_ref, h_ref):
    Din, H, F, H2, H4 = dims
    inv_h = jnp.float32(1.0 / H)
    l_step = pl.program_id(1)
    last_step = pl.num_programs(1) - 1

    def mm(a, w, b):
        # MXU matmul: operands in the (possibly bf16) weight dtype, f32 accumulate.
        return jnp.dot(a.astype(w.dtype), w,
                       preferred_element_type=jnp.float32) + b

    small = small_ref[...]  # (11, Wmax) f32 — all tiny parameters in one block
    # row layout: 0 enc_b | 1 enc_g | 2 enc_be | 3 pe | 4 h_b1 | 5 h_g | 6 h_be
    #             7 h_b2  | 8 h_w3  | 9 res_w  | 10 [h_b3, res_b]

    # ---- feature_encoder + positional encoding (first layer step only) ------
    @pl.when(l_step == 0)
    def _encode():
        x = x_ref[...]                                          # (TB, Din) f32
        z = mm(x, enc_w_ref[...], small[0:1, :H])
        z = _normalize(z, inv_h) * small[1:2, :H] + small[2:3, :H]
        # PE at position 0: [0, 1, 0, 1, ...]; dropout is an eval no-op
        h_ref[...] = jnp.maximum(z, 0.0) + small[3:4, :H]

    # ---- transformer layers handled by this grid step ------------------------
    # resident mode: layers_per_step == n_layers (statically unrolled, weights
    # DMA'd once).  streamed mode: 1 layer per grid step, weights double-buffered.
    h = h_ref[...]
    for j in range(layers_per_step):
        wa = wa_ref[j]                       # (H, H)  = g1 ⊙ (wv @ wo)
        w1 = w1_ref[j]                       # (H, F)  = g2 ⊙ w1
        w2 = w2_ref[j]                       # (F, H)
        lb = lbias_ref[j]                    # (3, Wf) packed per-layer biases
        # pre-LN attention block (seq_len==1, gains/biases folded host-side)
        h = h + mm(_normalize(h, inv_h), wa, lb[0:1, :H])
        # pre-LN feed-forward block; ReLU output cast once to the matmul dtype
        ff = jnp.maximum(mm(_normalize(h, inv_h), w1, lb[2:3, :F]), 0.0)
        h = h + mm(ff.astype(w2.dtype), w2, lb[1:2, :H])
    h_ref[...] = h

    # ---- prediction head + residual (last layer step only) ------------------
    @pl.when(l_step == last_step)
    def _head():
        inv_h2 = jnp.float32(1.0 / H2)
        p = mm(h, hw1_ref[...], small[4:5, :H2])
        p = jnp.maximum(_normalize(p, inv_h2) * small[5:6, :H2] + small[6:7, :H2], 0.0)
        p = jnp.maximum(mm(p, hw2_ref[...], small[7:8, :H4]), 0.0)
        p = jnp.sum(p * small[8:9, :H4], axis=-1, keepdims=True) + small[10:11, 0:1]
        # residual Linear(input_dim -> 1) on the raw input
        r = (jnp.sum(x_ref[...] * small[9:10, :Din], axis=-1, keepdims=True)
             + small[10:11, 1:2])
        y = p + r                                               # (TB, 1) f32
        if lane_dense:
            out_ref[...] = y.reshape(1, -1)   # batch on the lane axis
        else:
            out_ref[...] = y


# --------------------------------------------------------------------------- #
# Host-side packing / budgeting
# --------------------------------------------------------------------------- #
def _pack_params(params, matmul_dtype):
    f32 = jnp.float32
    Din, H = params["enc_w"].shape
    F = params["w1"].shape[2]
    H2 = params["h_w1"].shape[1]
    H4 = params["h_w2"].shape[1]
    L = params["wv"].shape[0]

    # seq_len==1 attention fold:  LN1(h) @ wv @ wo + (bv@wo + bo)
    # pre-LN gain/bias fold:      (x̂·g + b) @ W == x̂ @ (gᵀ⊙W) + b @ W
    wa = jnp.einsum("lij,ljk->lik", params["wv"], params["wo"])
    ba = (jnp.einsum("lij,ljk->lik", params["ln1b"], wa)
          + jnp.einsum("lij,ljk->lik", params["bv"], params["wo"])
          + params["bo"])
    wa = params["ln1g"].transpose(0, 2, 1) * wa
    b1 = jnp.einsum("lij,ljk->lik", params["ln2b"], params["w1"]) + params["b1"]
    w1 = params["ln2g"].transpose(0, 2, 1) * params["w1"]

    Wf = max(H, F)

    def _lrow(a):  # (L,1,w) -> (L,1,Wf)
        return jnp.pad(a.astype(f32), ((0, 0), (0, 0), (0, Wf - a.shape[-1])))

    lbias = jnp.concatenate([_lrow(ba), _lrow(params["b2"]), _lrow(b1)], axis=1)

    Wmax = max(H, Din, 2)

    def _srow(a):  # (1,w) -> (1,Wmax)
        a = a.reshape(1, -1).astype(f32)
        return jnp.pad(a, ((0, 0), (0, Wmax - a.shape[-1])))

    scalars = jnp.concatenate(
        [params["h_b3"].reshape(1, 1), params["res_b"].reshape(1, 1)], axis=1)
    small = jnp.concatenate([
        _srow(params["enc_b"]), _srow(params["enc_g"]), _srow(params["enc_be"]),
        _srow(params["pe"]),
        _srow(params["h_b1"]), _srow(params["h_g"]), _srow(params["h_be"]),
        _srow(params["h_b2"]), _srow(params["h_w3"]),
        _srow(params["res_w"]), _srow(scalars)], axis=0)

    c = lambda w: w.astype(matmul_dtype)        # MXU (matmul) operands only
    big = dict(small=small,
               enc_w=c(params["enc_w"]),
               wa=c(wa), w1=c(w1), w2=c(params["w2"]), lbias=lbias,
               hw1=c(params["h_w1"]), hw2=c(params["h_w2"]))
    return big, (Din, H, F, H2, H4, L)


def _padded_bytes(shape, dtype, bufs=1):
    """Bytes of one VMEM buffer with (8*(4/itemsize), 128) tile padding."""
    item = jnp.dtype(dtype).itemsize
    sub = 8 * max(1, 4 // item)
    shape = tuple(shape)
    if len(shape) < 2:
        shape = (1,) * (2 - len(shape)) + shape
    lead = math.prod(shape[:-2]) if len(shape) > 2 else 1
    return bufs * lead * _round_up(shape[-2], sub) * _round_up(shape[-1], 128) * item


def _physical_vmem_bytes():
    try:
        return int(pltpu.get_tpu_info().vmem_capacity_bytes)
    except Exception:
        return 64 << 20  # v7x per-core size: conservative on every generation


# --------------------------------------------------------------------------- #
# Wrapper
# --------------------------------------------------------------------------- #
def cognitive_age_transformer(x, params, *, tile_b=512,
                              matmul_dtype=jnp.bfloat16, layer_mode="auto"):
    """Pallas wrapper. x: (B, input_dim) f32 -> (B, 1) f32 (eval mode)."""
    B, Din = x.shape
    big, dims = _pack_params(params, matmul_dtype)
    _, H, F, H2, H4, L = dims
    kdims = dims[:5]

    # ---- batch tiling: 128-aligned tiles, >=2 grid steps when B allows (v7x) -
    if B <= 128:
        tb = _round_up(max(B, 8), 8)
    else:
        tb = min(_round_up(int(tile_b), 128), _round_up(B, 128))
        if pl.cdiv(B, tb) < 2:
            tb = _round_up(pl.cdiv(B, 2), 128)
    num_tiles = pl.cdiv(B, tb)
    Bp = num_tiles * tb
    xp = jnp.pad(x, ((0, Bp - B), (0, 0))) if Bp != B else x

    order = ["small", "enc_w", "wa", "w1", "w2", "lbias", "hw1", "hw2"]
    const_names = ("small", "enc_w", "hw1", "hw2")
    layer_names = ("wa", "w1", "w2", "lbias")

    # ---- VMEM budget (tile-padded, per generation) ---------------------------
    cap = int(_physical_vmem_bytes() * 0.85)
    act = (2 * _padded_bytes((tb, Din), jnp.float32)       # x, double-buffered
           + 2 * _padded_bytes((1, tb), jnp.float32)       # out, double-buffered
           + 4 * _padded_bytes((tb, H), jnp.float32)       # h scratch + live temps
           + _padded_bytes((tb, F), jnp.float32)           # FFN matmul result
           + _padded_bytes((tb, F), matmul_dtype))         # bf16 FFN intermediate

    def _wbytes(names, bufs, per_layer=False):
        tot = 0
        for n in names:
            a = big[n]
            shape = (1,) + a.shape[1:] if per_layer else a.shape
            tot += _padded_bytes(shape, a.dtype, bufs)
        return tot

    def _budget(mode, single_buffer):
        wbuf = 1 if single_buffer else 2
        if mode == "resident":
            w = _wbytes(const_names, wbuf) + _wbytes(layer_names, wbuf)
        else:
            w = _wbytes(const_names, wbuf) + _wbytes(layer_names, 2, per_layer=True)
        return w + act

    if layer_mode == "auto":
        mode = "resident" if _budget("resident", True) + (4 << 20) <= cap else "stream"
    else:
        mode = "resident" if layer_mode == "resident" else "stream"

    layers_per_step = L if mode == "resident" else 1
    n_steps = 1 if mode == "resident" else L

    def _run(single_buffer, lane_dense):
        kw = {"pipeline_mode": pl.Buffered(1)} if single_buffer else {}

        def const_spec(a):
            nd = a.ndim
            return pl.BlockSpec(a.shape, lambda i, l, _n=nd: (0,) * _n, **kw)

        def layer_spec(a):
            if mode == "resident":
                return const_spec(a)
            nd1 = a.ndim - 1
            return pl.BlockSpec((1,) + a.shape[1:],
                                lambda i, l, _n=nd1: (l,) + (0,) * _n)

        spec_of = {n: (layer_spec(big[n]) if n in layer_names else const_spec(big[n]))
                   for n in order}
        in_specs = [pl.BlockSpec((tb, Din), lambda i, l: (i, 0))]
        in_specs += [spec_of[n] for n in order]

        if lane_dense:
            out_shape = jax.ShapeDtypeStruct((1, Bp), jnp.float32)
            out_spec = pl.BlockSpec((1, tb), lambda i, l: (0, i))
        else:
            out_shape = jax.ShapeDtypeStruct((Bp, 1), jnp.float32)
            out_spec = pl.BlockSpec((tb, 1), lambda i, l: (i, 0))

        vmem_limit = int(min(max(int(_budget(mode, single_buffer) * 1.3) + (4 << 20),
                                 16 << 20), cap))

        out = pl.pallas_call(
            functools.partial(cognitive_age_kernel, lane_dense,
                              layers_per_step, kdims),
            out_shape=out_shape,
            grid_spec=pltpu.PrefetchScalarGridSpec(
                num_scalar_prefetch=0,
                grid=(num_tiles, n_steps),
                in_specs=in_specs,
                out_specs=out_spec,
                scratch_shapes=[pltpu.VMEM((tb, H), jnp.float32)]),
            compiler_params=pltpu.CompilerParams(
                dimension_semantics=("parallel", "arbitrary"),
                vmem_limit_bytes=vmem_limit),
        )(xp, *[big[n] for n in order])

        if lane_dense:
            return out.reshape(-1)[:B].reshape(B, 1)
        return out[:B]

    # Preferred config first; every rejection is reported loudly (not silent)
    # before the next still-correct configuration is tried.
    configs = ((True, True, "single-buffered resident weights + lane-dense store"),
               (False, True, "double-buffered weights + lane-dense store"),
               (False, False, "double-buffered weights + column store"))
    last_err = None
    for single_buffer, lane_dense, note in configs:
        try:
            return _run(single_buffer, lane_dense)
        except Exception as err:
            warnings.warn(
                f"cognitive_age_transformer: config '{note}' rejected "
                f"({type(err).__name__}: {str(err)[:200]}); trying next config")
            last_err = err
    raise last_err


# --------------------------------------------------------------------------- #
# Synthetic parameters + plain-JAX reference
# --------------------------------------------------------------------------- #
def init_params(key, input_dim, hidden, n_layers, ff):
    """Deterministic synthetic parameters (shapes match the nn.Module)."""
    h2, h4 = hidden // 2, hidden // 4
    keys = iter(jax.random.split(key, 64))

    def w(shape, scale=0.1):
        return scale * jax.random.normal(next(keys), shape, jnp.float32)

    # pe[0, 0::2] = sin(0) = 0, pe[0, 1::2] = cos(0) = 1
    pe_row = jnp.tile(jnp.array([0.0, 1.0], jnp.float32), hidden // 2)

    return dict(
        enc_w=w((input_dim, hidden)),          # Linear weights pre-transposed (in, out)
        enc_b=w((1, hidden), 0.02),
        enc_g=1.0 + w((1, hidden), 0.02),
        enc_be=w((1, hidden), 0.02),
        pe=pe_row.reshape(1, hidden),
        ln1g=1.0 + w((n_layers, 1, hidden), 0.02),
        ln1b=w((n_layers, 1, hidden), 0.02),
        wv=w((n_layers, hidden, hidden)),      # value projection, transposed
        bv=w((n_layers, 1, hidden), 0.02),
        wo=w((n_layers, hidden, hidden)),      # attention out projection
        bo=w((n_layers, 1, hidden), 0.02),
        ln2g=1.0 + w((n_layers, 1, hidden), 0.02),
        ln2b=w((n_layers, 1, hidden), 0.02),
        w1=w((n_layers, hidden, ff)),          # FFN linear1
        b1=w((n_layers, 1, ff), 0.02),
        w2=w((n_layers, ff, hidden)),          # FFN linear2
        b2=w((n_layers, 1, hidden), 0.02),
        h_w1=w((hidden, h2)),
        h_b1=w((1, h2), 0.02),
        h_g=1.0 + w((1, h2), 0.02),
        h_be=w((1, h2), 0.02),
        h_w2=w((h2, h4)),
        h_b2=w((1, h4), 0.02),
        h_w3=w((1, h4)),                       # final projection, row vector
        h_b3=w((1, 1), 0.02),
        res_w=w((1, input_dim)),               # residual Linear(input_dim -> 1)
        res_b=w((1, 1), 0.02),
    )


def reference_forward(x, p):
    """Plain-JAX f32 reference implementing the same eval-mode forward."""
    h = x @ p["enc_w"] + p["enc_b"]
    h = _layernorm(h, p["enc_g"], p["enc_be"])
    h = jnp.maximum(h, 0.0)
    h = h + p["pe"]
    for l in range(p["wv"].shape[0]):
        h1 = _layernorm(h, p["ln1g"][l], p["ln1b"][l])
        attn = (h1 @ p["wv"][l] + p["bv"][l]) @ p["wo"][l] + p["bo"][l]
        h = h + attn
        h2 = _layernorm(h, p["ln2g"][l], p["ln2b"][l])
        ff = jnp.maximum(h2 @ p["w1"][l] + p["b1"][l], 0.0) @ p["w2"][l] + p["b2"][l]
        h = h + ff
    q = h @ p["h_w1"] + p["h_b1"]
    q = _layernorm(q, p["h_g"], p["h_be"])
    q = jnp.maximum(q, 0.0)
    q = jnp.maximum(q @ p["h_w2"] + p["h_b2"], 0.0)
    q = jnp.sum(q * p["h_w3"], axis=-1, keepdims=True) + p["h_b3"]
    r = jnp.sum(x * p["res_w"], axis=-1, keepdims=True) + p["res_b"]
    return q + r


if __name__ == "__main__":
    INPUT_DIM = 16     # input_dim
    HIDDEN = 32        # hidden_size (scaled down from 256)
    N_LAYERS = 4       # num_hidden_layers
    FF = 128           # intermediate_size (keeps the 4x ratio)
    B = 64             # batch

    key = jax.random.PRNGKey(0)
    kx, kp = jax.random.split(key)
    x = jax.random.normal(kx, (B, INPUT_DIM), jnp.float32)
    params = init_params(kp, INPUT_DIM, HIDDEN, N_LAYERS, FF)
    ref = reference_forward(x, params)

    # f32-matmul path, resident-weight mode: tight match to the reference
    out_f32 = jax.block_until_ready(
        cognitive_age_transformer(x, params, matmul_dtype=jnp.float32))
    assert out_f32.shape == (B, 1)
    assert bool(jnp.all(jnp.isfinite(out_f32)))
    assert bool(jnp.allclose(out_f32, ref, rtol=1e-2, atol=1e-2)), (out_f32, ref)

    # streamed per-layer-weight path (the deep/wide-model / v7x configuration)
    out_stream = jax.block_until_ready(
        cognitive_age_transformer(x, params, matmul_dtype=jnp.float32,
                                  layer_mode="stream"))
    assert bool(jnp.allclose(out_stream, ref, rtol=1e-2, atol=1e-2)), (out_stream, ref)

    # ragged batch: exercises host-side padding + >=2 parallel grid steps
    B2 = 200
    x2 = jax.random.normal(jax.random.PRNGKey(1), (B2, INPUT_DIM), jnp.float32)
    ref2 = reference_forward(x2, params)
    out2 = jax.block_until_ready(
        cognitive_age_transformer(x2, params, matmul_dtype=jnp.float32))
    assert out2.shape == (B2, 1)
    assert bool(jnp.allclose(out2, ref2, rtol=1e-2, atol=1e-2)), (out2, ref2)

    # default (bf16 MXU operand) path: looser tolerance absorbs the cast
    out = jax.block_until_ready(cognitive_age_transformer(x, params))
    assert out.shape == (B, 1)
    assert bool(jnp.all(jnp.isfinite(out)))
    assert bool(jnp.allclose(out, ref, rtol=5e-2, atol=5e-2)), (out, ref)

    print("KERNEL_OK")
</pallas_src>

<mosaic_0001>
module attributes {stable_mosaic.version = 11 : i64} {
  func.func @cognitive_age_kernel(%arg0: i32, %arg1: i32, %arg2: memref<64x16xf32, #tpu.memory_space<vmem>>, %arg3: memref<11x32xf32, #tpu.memory_space<vmem>>, %arg4: memref<16x32xf32, #tpu.memory_space<vmem>>, %arg5: memref<4x32x32xf32, #tpu.memory_space<vmem>>, %arg6: memref<4x32x128xf32, #tpu.memory_space<vmem>>, %arg7: memref<4x128x32xf32, #tpu.memory_space<vmem>>, %arg8: memref<4x3x128xf32, #tpu.memory_space<vmem>>, %arg9: memref<32x16xf32, #tpu.memory_space<vmem>>, %arg10: memref<16x8xf32, #tpu.memory_space<vmem>>, %arg11: memref<1x64xf32, #tpu.memory_space<vmem>>, %arg12: memref<64x32xf32, #tpu.memory_space<vmem>>) attributes {dimension_semantics = [#tpu.dimension_semantics<parallel>, #tpu.dimension_semantics<arbitrary>], iteration_bounds = array<i64: 1, 1>, scalar_prefetch = 0 : i64, scratch_operands = 1 : i64, tpu.core_type = #tpu.core_type<tc>, window_params = [{transform_indices = @transform_0, window_bounds = array<i64: 64, 16>}, {pipeline_mode = #tpu.pipeline_mode<synchronous>, transform_indices = @transform_1, window_bounds = array<i64: 11, 32>}, {pipeline_mode = #tpu.pipeline_mode<synchronous>, transform_indices = @transform_2, window_bounds = array<i64: 16, 32>}, {pipeline_mode = #tpu.pipeline_mode<synchronous>, transform_indices = @transform_3, window_bounds = array<i64: 4, 32, 32>}, {pipeline_mode = #tpu.pipeline_mode<synchronous>, transform_indices = @transform_4, window_bounds = array<i64: 4, 32, 128>}, {pipeline_mode = #tpu.pipeline_mode<synchronous>, transform_indices = @transform_5, window_bounds = array<i64: 4, 128, 32>}, {pipeline_mode = #tpu.pipeline_mode<synchronous>, transform_indices = @transform_6, window_bounds = array<i64: 4, 3, 128>}, {pipeline_mode = #tpu.pipeline_mode<synchronous>, transform_indices = @transform_7, window_bounds = array<i64: 32, 16>}, {pipeline_mode = #tpu.pipeline_mode<synchronous>, transform_indices = @transform_8, window_bounds = array<i64: 16, 8>}, {transform_indices = @transform_9, window_bounds = array<i64: 1, 64>}]} {
    %c0 = arith.constant 0 : index
    %c0_0 = arith.constant 0 : index
    %0 = vector.load %arg3[%c0, %c0_0] : memref<11x32xf32, #tpu.memory_space<vmem>>, vector<11x32xf32>
    %c0_i32 = arith.constant 0 : i32
    %1 = arith.cmpi eq, %arg1, %c0_i32 : i32
    %2 = arith.extui %1 : i1 to i32
    %cst = arith.constant 3.125000e-02 : f32
    %c0_i32_1 = arith.constant 0 : i32
    %3 = arith.cmpi ne, %2, %c0_i32_1 : i32
    scf.if %3 {
      %c0_109 = arith.constant 0 : index
      %c0_110 = arith.constant 0 : index
      %249 = vector.load %arg2[%c0_109, %c0_110] : memref<64x16xf32, #tpu.memory_space<vmem>>, vector<64x16xf32>
      %c0_111 = arith.constant 0 : index
      %c0_112 = arith.constant 0 : index
      %250 = vector.load %arg4[%c0_111, %c0_112] : memref<16x32xf32, #tpu.memory_space<vmem>>, vector<16x32xf32>
      %251 = vector.extract_strided_slice %0 {offsets = [0, 0], sizes = [1, 32], strides = [1, 1]} : vector<11x32xf32> to vector<1x32xf32>
      %cst_113 = arith.constant dense<0.000000e+00> : vector<64x32xf32>
      %252 = tpu.matmul %249, %250, %cst_113 {dimension_numbers = #tpu.dot_dimension_numbers<[1], [0], [0], [1], [0, 0, 1, 1], [], []>} : vector<64x16xf32>, vector<16x32xf32>, vector<64x32xf32> -> vector<64x32xf32>
      %253 = vector.broadcast %251 : vector<1x32xf32> to vector<64x32xf32>
      %254 = arith.addf %252, %253 : vector<64x32xf32>
      %cst_114 = arith.constant dense<0.000000e+00> : vector<64xf32>
      %255 = vector.multi_reduction <add>, %254, %cst_114 [1] : vector<64x32xf32> to vector<64xf32>
      %256 = vector.shape_cast %255 : vector<64xf32> to vector<64x1xf32>
      %257 = arith.mulf %254, %254 : vector<64x32xf32>
      %cst_115 = arith.constant dense<0.000000e+00> : vector<64xf32>
      %258 = vector.multi_reduction <add>, %257, %cst_115 [1] : vector<64x32xf32> to vector<64xf32>
      %259 = vector.shape_cast %258 : vector<64xf32> to vector<64x1xf32>
      %260 = vector.broadcast %cst : f32 to vector<64x1xf32>
      %261 = arith.mulf %256, %260 : vector<64x1xf32>
      %262 = vector.broadcast %cst : f32 to vector<64x1xf32>
      %263 = arith.mulf %259, %262 : vector<64x1xf32>
      %264 = arith.mulf %261, %261 : vector<64x1xf32>
      %265 = arith.subf %263, %264 : vector<64x1xf32>
      %266 = vector.broadcast %261 : vector<64x1xf32> to vector<64x32xf32>
      %267 = arith.subf %254, %266 : vector<64x32xf32>
      %cst_116 = arith.constant 9.99999974E-6 : f32
      %268 = vector.broadcast %cst_116 : f32 to vector<64x1xf32>
      %269 = arith.addf %265, %268 : vector<64x1xf32>
      %270 = math.rsqrt %269 : vector<64x1xf32>
      %271 = vector.broadcast %270 : vector<64x1xf32> to vector<64x32xf32>
      %272 = arith.mulf %267, %271 : vector<64x32xf32>
      %273 = vector.extract_strided_slice %0 {offsets = [1, 0], sizes = [1, 32], strides = [1, 1]} : vector<11x32xf32> to vector<1x32xf32>
      %274 = vector.broadcast %273 : vector<1x32xf32> to vector<64x32xf32>
      %275 = arith.mulf %272, %274 : vector<64x32xf32>
      %276 = vector.extract_strided_slice %0 {offsets = [2, 0], sizes = [1, 32], strides = [1, 1]} : vector<11x32xf32> to vector<1x32xf32>
      %277 = vector.broadcast %276 : vector<1x32xf32> to vector<64x32xf32>
      %278 = arith.addf %275, %277 : vector<64x32xf32>
      %cst_117 = arith.constant 0.000000e+00 : f32
      %279 = vector.broadcast %cst_117 : f32 to vector<64x32xf32>
      %280 = arith.maximumf %278, %279 : vector<64x32xf32>
      %281 = vector.extract_strided_slice %0 {offsets = [3, 0], sizes = [1, 32], strides = [1, 1]} : vector<11x32xf32> to vector<1x32xf32>
      %282 = vector.broadcast %281 : vector<1x32xf32> to vector<64x32xf32>
      %283 = arith.addf %280, %282 : vector<64x32xf32>
      %c0_118 = arith.constant 0 : index
      %c0_119 = arith.constant 0 : index
      %284 = vector.load %arg12[%c0_118, %c0_119] : memref<64x32xf32, #tpu.memory_space<vmem>>, vector<64x32xf32>
      tpu.vector_store %arg12[%c0_118, %c0_119], %283 {strides = array<i32>} : memref<64x32xf32, #tpu.memory_space<vmem>>, vector<64x32xf32>,
    } else {
    }
    %c0_2 = arith.constant 0 : index
    %c0_3 = arith.constant 0 : index
    %4 = vector.load %arg12[%c0_2, %c0_3] : memref<64x32xf32, #tpu.memory_space<vmem>>, vector<64x32xf32>
    %c0_4 = arith.constant 0 : index
    %c0_5 = arith.constant 0 : index
    %c0_6 = arith.constant 0 : index
    %5 = vector.load %arg5[%c0_4, %c0_5, %c0_6] : memref<4x32x32xf32, #tpu.memory_space<vmem>>, vector<1x32x32xf32>
    %6 = vector.shape_cast %5 : vector<1x32x32xf32> to vector<32x32xf32>
    %c0_7 = arith.constant 0 : index
    %c0_8 = arith.constant 0 : index
    %c0_9 = arith.constant 0 : index
    %7 = vector.load %arg6[%c0_7, %c0_8, %c0_9] : memref<4x32x128xf32, #tpu.memory_space<vmem>>, vector<1x32x128xf32>
    %8 = vector.shape_cast %7 : vector<1x32x128xf32> to vector<32x128xf32>
    %c0_10 = arith.constant 0 : index
    %c0_11 = arith.constant 0 : index
    %c0_12 = arith.constant 0 : index
    %9 = vector.load %arg7[%c0_10, %c0_11, %c0_12] : memref<4x128x32xf32, #tpu.memory_space<vmem>>, vector<1x128x32xf32>
    %10 = vector.shape_cast %9 : vector<1x128x32xf32> to vector<128x32xf32>
    %c0_13 = arith.constant 0 : index
    %c0_14 = arith.constant 0 : index
    %c0_15 = arith.constant 0 : index
    %11 = vector.load %arg8[%c0_13, %c0_14, %c0_15] : memref<4x3x128xf32, #tpu.memory_space<vmem>>, vector<1x3x128xf32>
    %12 = vector.shape_cast %11 : vector<1x3x128xf32> to vector<3x128xf32>
    %cst_16 = arith.constant dense<0.000000e+00> : vector<64xf32>
    %13 = vector.multi_reduction <add>, %4, %cst_16 [1] : vector<64x32xf32> to vector<64xf32>
    %14 = vector.shape_cast %13 : vector<64xf32> to vector<64x1xf32>
    %15 = arith.mulf %4, %4 : vector<64x32xf32>
    %cst_17 = arith.constant dense<0.000000e+00> : vector<64xf32>
    %16 = vector.multi_reduction <add>, %15, %cst_17 [1] : vector<64x32xf32> to vector<64xf32>
    %17 = vector.shape_cast %16 : vector<64xf32> to vector<64x1xf32>
    %cst_18 = arith.constant 3.125000e-02 : f32
    %18 = vector.broadcast %cst_18 : f32 to vector<64x1xf32>
    %19 = arith.mulf %14, %18 : vector<64x1xf32>
    %cst_19 = arith.constant 3.125000e-02 : f32
    %20 = vector.broadcast %cst_19 : f32 to vector<64x1xf32>
    %21 = arith.mulf %17, %20 : vector<64x1xf32>
    %22 = arith.mulf %19, %19 : vector<64x1xf32>
    %23 = arith.subf %21, %22 : vector<64x1xf32>
    %24 = vector.broadcast %19 : vector<64x1xf32> to vector<64x32xf32>
    %25 = arith.subf %4, %24 : vector<64x32xf32>
    %cst_20 = arith.constant 9.99999974E-6 : f32
    %26 = vector.broadcast %cst_20 : f32 to vector<64x1xf32>
    %27 = arith.addf %23, %26 : vector<64x1xf32>
    %28 = math.rsqrt %27 : vector<64x1xf32>
    %29 = vector.broadcast %28 : vector<64x1xf32> to vector<64x32xf32>
    %30 = arith.mulf %25, %29 : vector<64x32xf32>
    %31 = vector.extract_strided_slice %12 {offsets = [0, 0], sizes = [1, 32], strides = [1, 1]} : vector<3x128xf32> to vector<1x32xf32>
    %cst_21 = arith.constant dense<0.000000e+00> : vector<64x32xf32>
    %32 = tpu.matmul %30, %6, %cst_21 {dimension_numbers = #tpu.dot_dimension_numbers<[1], [0], [0], [1], [0, 0, 1, 1], [], []>} : vector<64x32xf32>, vector<32x32xf32>, vector<64x32xf32> -> vector<64x32xf32>
    %33 = vector.broadcast %31 : vector<1x32xf32> to vector<64x32xf32>
    %34 = arith.addf %32, %33 : vector<64x32xf32>
    %35 = arith.addf %4, %34 : vector<64x32xf32>
    %cst_22 = arith.constant dense<0.000000e+00> : vector<64xf32>
    %36 = vector.multi_reduction <add>, %35, %cst_22 [1] : vector<64x32xf32> to vector<64xf32>
    %37 = vector.shape_cast %36 : vector<64xf32> to vector<64x1xf32>
    %38 = arith.mulf %35, %35 : vector<64x32xf32>
    %cst_23 = arith.constant dense<0.000000e+00> : vector<64xf32>
    %39 = vector.multi_reduction <add>, %38, %cst_23 [1] : vector<64x32xf32> to vector<64xf32>
    %40 = vector.shape_cast %39 : vector<64xf32> to vector<64x1xf32>
    %cst_24 = arith.constant 3.125000e-02 : f32
    %41 = vector.broadcast %cst_24 : f32 to vector<64x1xf32>
    %42 = arith.mulf %37, %41 : vector<64x1xf32>
    %cst_25 = arith.constant 3.125000e-02 : f32
    %43 = vector.broadcast %cst_25 : f32 to vector<64x1xf32>
    %44 = arith.mulf %40, %43 : vector<64x1xf32>
    %45 = arith.mulf %42, %42 : vector<64x1xf32>
    %46 = arith.subf %44, %45 : vector<64x1xf32>
    %47 = vector.broadcast %42 : vector<64x1xf32> to vector<64x32xf32>
    %48 = arith.subf %35, %47 : vector<64x32xf32>
    %cst_26 = arith.constant 9.99999974E-6 : f32
    %49 = vector.broadcast %cst_26 : f32 to vector<64x1xf32>
    %50 = arith.addf %46, %49 : vector<64x1xf32>
    %51 = math.rsqrt %50 : vector<64x1xf32>
    %52 = vector.broadcast %51 : vector<64x1xf32> to vector<64x32xf32>
    %53 = arith.mulf %48, %52 : vector<64x32xf32>
    %54 = vector.extract_strided_slice %12 {offsets = [2, 0], sizes = [1, 128], strides = [1, 1]} : vector<3x128xf32> to vector<1x128xf32>
    %cst_27 = arith.constant dense<0.000000e+00> : vector<64x128xf32>
    %55 = tpu.matmul %53, %8, %cst_27 {dimension_numbers = #tpu.dot_dimension_numbers<[1], [0], [0], [1], [0, 0, 1, 1], [], []>} : vector<64x32xf32>, vector<32x128xf32>, vector<64x128xf32> -> vector<64x128xf32>
    %56 = vector.broadcast %54 : vector<1x128xf32> to vector<64x128xf32>
    %57 = arith.addf %55, %56 : vector<64x128xf32>
    %cst_28 = arith.constant 0.000000e+00 : f32
    %58 = vector.broadcast %cst_28 : f32 to vector<64x128xf32>
    %59 = arith.maximumf %57, %58 : vector<64x128xf32>
    %60 = vector.extract_strided_slice %12 {offsets = [1, 0], sizes = [1, 32], strides = [1, 1]} : vector<3x128xf32> to vector<1x32xf32>
    %cst_29 = arith.constant dense<0.000000e+00> : vector<64x32xf32>
    %61 = tpu.matmul %59, %10, %cst_29 {dimension_numbers = #tpu.dot_dimension_numbers<[1], [0], [0], [1], [0, 0, 1, 1], [], []>} : vector<64x128xf32>, vector<128x32xf32>, vector<64x32xf32> -> vector<64x32xf32>
    %62 = vector.broadcast %60 : vector<1x32xf32> to vector<64x32xf32>
    %63 = arith.addf %61, %62 : vector<64x32xf32>
    %64 = arith.addf %35, %63 : vector<64x32xf32>
    %c1 = arith.constant 1 : index
    %c0_30 = arith.constant 0 : index
    %c0_31 = arith.constant 0 : index
    %65 = vector.load %arg5[%c1, %c0_30, %c0_31] : memref<4x32x32xf32, #tpu.memory_space<vmem>>, vector<1x32x32xf32>
    %66 = vector.shape_cast %65 : vector<1x32x32xf32> to vector<32x32xf32>
    %c1_32 = arith.constant 1 : index
    %c0_33 = arith.constant 0 : index
    %c0_34 = arith.constant 0 : index
    %67 = vector.load %arg6[%c1_32, %c0_33, %c0_34] : memref<4x32x128xf32, #tpu.memory_space<vmem>>, vector<1x32x128xf32>
    %68 = vector.shape_cast %67 : vector<1x32x128xf32> to vector<32x128xf32>
    %c1_35 = arith.constant 1 : index
    %c0_36 = arith.constant 0 : index
    %c0_37 = arith.constant 0 : index
    %69 = vector.load %arg7[%c1_35, %c0_36, %c0_37] : memref<4x128x32xf32, #tpu.memory_space<vmem>>, vector<1x128x32xf32>
    %70 = vector.shape_cast %69 : vector<1x128x32xf32> to vector<128x32xf32>
    %c1_38 = arith.constant 1 : index
    %c0_39 = arith.constant 0 : index
    %c0_40 = arith.constant 0 : index
    %71 = vector.load %arg8[%c1_38, %c0_39, %c0_40] : memref<4x3x128xf32, #tpu.memory_space<vmem>>, vector<1x3x128xf32>
    %72 = vector.shape_cast %71 : vector<1x3x128xf32> to vector<3x128xf32>
    %cst_41 = arith.constant dense<0.000000e+00> : vector<64xf32>
    %73 = vector.multi_reduction <add>, %64, %cst_41 [1] : vector<64x32xf32> to vector<64xf32>
    %74 = vector.shape_cast %73 : vector<64xf32> to vector<64x1xf32>
    %75 = arith.mulf %64, %64 : vector<64x32xf32>
    %cst_42 = arith.constant dense<0.000000e+00> : vector<64xf32>
    %76 = vector.multi_reduction <add>, %75, %cst_42 [1] : vector<64x32xf32> to vector<64xf32>
    %77 = vector.shape_cast %76 : vector<64xf32> to vector<64x1xf32>
    %cst_43 = arith.constant 3.125000e-02 : f32
    %78 = vector.broadcast %cst_43 : f32 to vector<64x1xf32>
    %79 = arith.mulf %74, %78 : vector<64x1xf32>
    %cst_44 = arith.constant 3.125000e-02 : f32
    %80 = vector.broadcast %cst_44 : f32 to vector<64x1xf32>
    %81 = arith.mulf %77, %80 : vector<64x1xf32>
    %82 = arith.mulf %79, %79 : vector<64x1xf32>
    %83 = arith.subf %81, %82 : vector<64x1xf32>
    %84 = vector.broadcast %79 : vector<64x1xf32> to vector<64x32xf32>
    %85 = arith.subf %64, %84 : vector<64x32xf32>
    %cst_45 = arith.constant 9.99999974E-6 : f32
    %86 = vector.broadcast %cst_45 : f32 to vector<64x1xf32>
    %87 = arith.addf %83, %86 : vector<64x1xf32>
    %88 = math.rsqrt %87 : vector<64x1xf32>
    %89 = vector.broadcast %88 : vector<64x1xf32> to vector<64x32xf32>
    %90 = arith.mulf %85, %89 : vector<64x32xf32>
    %91 = vector.extract_strided_slice %72 {offsets = [0, 0], sizes = [1, 32], strides = [1, 1]} : vector<3x128xf32> to vector<1x32xf32>
    %cst_46 = arith.constant dense<0.000000e+00> : vector<64x32xf32>
    %92 = tpu.matmul %90, %66, %cst_46 {dimension_numbers = #tpu.dot_dimension_numbers<[1], [0], [0], [1], [0, 0, 1, 1], [], []>} : vector<64x32xf32>, vector<32x32xf32>, vector<64x32xf32> -> vector<64x32xf32>
    %93 = vector.broadcast %91 : vector<1x32xf32> to vector<64x32xf32>
    %94 = arith.addf %92, %93 : vector<64x32xf32>
    %95 = arith.addf %64, %94 : vector<64x32xf32>
    %cst_47 = arith.constant dense<0.000000e+00> : vector<64xf32>
    %96 = vector.multi_reduction <add>, %95, %cst_47 [1] : vector<64x32xf32> to vector<64xf32>
    %97 = vector.shape_cast %96 : vector<64xf32> to vector<64x1xf32>
    %98 = arith.mulf %95, %95 : vector<64x32xf32>
    %cst_48 = arith.constant dense<0.000000e+00> : vector<64xf32>
    %99 = vector.multi_reduction <add>, %98, %cst_48 [1] : vector<64x32xf32> to vector<64xf32>
    %100 = vector.shape_cast %99 : vector<64xf32> to vector<64x1xf32>
    %cst_49 = arith.constant 3.125000e-02 : f32
    %101 = vector.broadcast %cst_49 : f32 to vector<64x1xf32>
    %102 = arith.mulf %97, %101 : vector<64x1xf32>
    %cst_50 = arith.constant 3.125000e-02 : f32
    %103 = vector.broadcast %cst_50 : f32 to vector<64x1xf32>
    %104 = arith.mulf %100, %103 : vector<64x1xf32>
    %105 = arith.mulf %102, %102 : vector<64x1xf32>
    %106 = arith.subf %104, %105 : vector<64x1xf32>
    %107 = vector.broadcast %102 : vector<64x1xf32> to vector<64x32xf32>
    %108 = arith.subf %95, %107 : vector<64x32xf32>
    %cst_51 = arith.constant 9.99999974E-6 : f32
    %109 = vector.broadcast %cst_51 : f32 to vector<64x1xf32>
    %110 = arith.addf %106, %109 : vector<64x1xf32>
    %111 = math.rsqrt %110 : vector<64x1xf32>
    %112 = vector.broadcast %111 : vector<64x1xf32> to vector<64x32xf32>
    %113 = arith.mulf %108, %112 : vector<64x32xf32>
    %114 = vector.extract_strided_slice %72 {offsets = [2, 0], sizes = [1, 128], strides = [1, 1]} : vector<3x128xf32> to vector<1x128xf32>
    %cst_52 = arith.constant dense<0.000000e+00> : vector<64x128xf32>
    %115 = tpu.matmul %113, %68, %cst_52 {dimension_numbers = #tpu.dot_dimension_numbers<[1], [0], [0], [1], [0, 0, 1, 1], [], []>} : vector<64x32xf32>, vector<32x128xf32>, vector<64x128xf32> -> vector<64x128xf32>
    %116 = vector.broadcast %114 : vector<1x128xf32> to vector<64x128xf32>
    %117 = arith.addf %115, %116 : vector<64x128xf32>
    %cst_53 = arith.constant 0.000000e+00 : f32
    %118 = vector.broadcast %cst_53 : f32 to vector<64x128xf32>
    %119 = arith.maximumf %117, %118 : vector<64x128xf32>
    %120 = vector.extract_strided_slice %72 {offsets = [1, 0], sizes = [1, 32], strides = [1, 1]} : vector<3x128xf32> to vector<1x32xf32>
    %cst_54 = arith.constant dense<0.000000e+00> : vector<64x32xf32>
    %121 = tpu.matmul %119, %70, %cst_54 {dimension_numbers = #tpu.dot_dimension_numbers<[1], [0], [0], [1], [0, 0, 1, 1], [], []>} : vector<64x128xf32>, vector<128x32xf32>, vector<64x32xf32> -> vector<64x32xf32>
    %122 = vector.broadcast %120 : vector<1x32xf32> to vector<64x32xf32>
    %123 = arith.addf %121, %122 : vector<64x32xf32>
    %124 = arith.addf %95, %123 : vector<64x32xf32>
    %c2 = arith.constant 2 : index
    %c0_55 = arith.constant 0 : index
    %c0_56 = arith.constant 0 : index
    %125 = vector.load %arg5[%c2, %c0_55, %c0_56] : memref<4x32x32xf32, #tpu.memory_space<vmem>>, vector<1x32x32xf32>
    %126 = vector.shape_cast %125 : vector<1x32x32xf32> to vector<32x32xf32>
    %c2_57 = arith.constant 2 : index
    %c0_58 = arith.constant 0 : index
    %c0_59 = arith.constant 0 : index
    %127 = vector.load %arg6[%c2_57, %c0_58, %c0_59] : memref<4x32x128xf32, #tpu.memory_space<vmem>>, vector<1x32x128xf32>
    %128 = vector.shape_cast %127 : vector<1x32x128xf32> to vector<32x128xf32>
    %c2_60 = arith.constant 2 : index
    %c0_61 = arith.constant 0 : index
    %c0_62 = arith.constant 0 : index
    %129 = vector.load %arg7[%c2_60, %c0_61, %c0_62] : memref<4x128x32xf32, #tpu.memory_space<vmem>>, vector<1x128x32xf32>
    %130 = vector.shape_cast %129 : vector<1x128x32xf32> to vector<128x32xf32>
    %c2_63 = arith.constant 2 : index
    %c0_64 = arith.constant 0 : index
    %c0_65 = arith.constant 0 : index
    %131 = vector.load %arg8[%c2_63, %c0_64, %c0_65] : memref<4x3x128xf32, #tpu.memory_space<vmem>>, vector<1x3x128xf32>
    %132 = vector.shape_cast %131 : vector<1x3x128xf32> to vector<3x128xf32>
    %cst_66 = arith.constant dense<0.000000e+00> : vector<64xf32>
    %133 = vector.multi_reduction <add>, %124, %cst_66 [1] : vector<64x32xf32> to vector<64xf32>
    %134 = vector.shape_cast %133 : vector<64xf32> to vector<64x1xf32>
    %135 = arith.mulf %124, %124 : vector<64x32xf32>
    %cst_67 = arith.constant dense<0.000000e+00> : vector<64xf32>
    %136 = vector.multi_reduction <add>, %135, %cst_67 [1] : vector<64x32xf32> to vector<64xf32>
    %137 = vector.shape_cast %136 : vector<64xf32> to vector<64x1xf32>
    %cst_68 = arith.constant 3.125000e-02 : f32
    %138 = vector.broadcast %cst_68 : f32 to vector<64x1xf32>
    %139 = arith.mulf %134, %138 : vector<64x1xf32>
    %cst_69 = arith.constant 3.125000e-02 : f32
    %140 = vector.broadcast %cst_69 : f32 to vector<64x1xf32>
    %141 = arith.mulf %137, %140 : vector<64x1xf32>
    %142 = arith.mulf %139, %139 : vector<64x1xf32>
    %143 = arith.subf %141, %142 : vector<64x1xf32>
    %144 = vector.broadcast %139 : vector<64x1xf32> to vector<64x32xf32>
    %145 = arith.subf %124, %144 : vector<64x32xf32>
    %cst_70 = arith.constant 9.99999974E-6 : f32
    %146 = vector.broadcast %cst_70 : f32 to vector<64x1xf32>
    %147 = arith.addf %143, %146 : vector<64x1xf32>
    %148 = math.rsqrt %147 : vector<64x1xf32>
    %149 = vector.broadcast %148 : vector<64x1xf32> to vector<64x32xf32>
    %150 = arith.mulf %145, %149 : vector<64x32xf32>
    %151 = vector.extract_strided_slice %132 {offsets = [0, 0], sizes = [1, 32], strides = [1, 1]} : vector<3x128xf32> to vector<1x32xf32>
    %cst_71 = arith.constant dense<0.000000e+00> : vector<64x32xf32>
    %152 = tpu.matmul %150, %126, %cst_71 {dimension_numbers = #tpu.dot_dimension_numbers<[1], [0], [0], [1], [0, 0, 1, 1], [], []>} : vector<64x32xf32>, vector<32x32xf32>, vector<64x32xf32> -> vector<64x32xf32>
    %153 = vector.broadcast %151 : vector<1x32xf32> to vector<64x32xf32>
    %154 = arith.addf %152, %153 : vector<64x32xf32>
    %155 = arith.addf %124, %154 : vector<64x32xf32>
    %cst_72 = arith.constant dense<0.000000e+00> : vector<64xf32>
    %156 = vector.multi_reduction <add>, %155, %cst_72 [1] : vector<64x32xf32> to vector<64xf32>
    %157 = vector.shape_cast %156 : vector<64xf32> to vector<64x1xf32>
    %158 = arith.mulf %155, %155 : vector<64x32xf32>
    %cst_73 = arith.constant dense<0.000000e+00> : vector<64xf32>
    %159 = vector.multi_reduction <add>, %158, %cst_73 [1] : vector<64x32xf32> to vector<64xf32>
    %160 = vector.shape_cast %159 : vector<64xf32> to vector<64x1xf32>
    %cst_74 = arith.constant 3.125000e-02 : f32
    %161 = vector.broadcast %cst_74 : f32 to vector<64x1xf32>
    %162 = arith.mulf %157, %161 : vector<64x1xf32>
    %cst_75 = arith.constant 3.125000e-02 : f32
    %163 = vector.broadcast %cst_75 : f32 to vector<64x1xf32>
    %164 = arith.mulf %160, %163 : vector<64x1xf32>
    %165 = arith.mulf %162, %162 : vector<64x1xf32>
    %166 = arith.subf %164, %165 : vector<64x1xf32>
    %167 = vector.broadcast %162 : vector<64x1xf32> to vector<64x32xf32>
    %168 = arith.subf %155, %167 : vector<64x32xf32>
    %cst_76 = arith.constant 9.99999974E-6 : f32
    %169 = vector.broadcast %cst_76 : f32 to vector<64x1xf32>
    %170 = arith.addf %166, %169 : vector<64x1xf32>
    %171 = math.rsqrt %170 : vector<64x1xf32>
    %172 = vector.broadcast %171 : vector<64x1xf32> to vector<64x32xf32>
    %173 = arith.mulf %168, %172 : vector<64x32xf32>
    %174 = vector.extract_strided_slice %132 {offsets = [2, 0], sizes = [1, 128], strides = [1, 1]} : vector<3x128xf32> to vector<1x128xf32>
    %cst_77 = arith.constant dense<0.000000e+00> : vector<64x128xf32>
    %175 = tpu.matmul %173, %128, %cst_77 {dimension_numbers = #tpu.dot_dimension_numbers<[1], [0], [0], [1], [0, 0, 1, 1], [], []>} : vector<64x32xf32>, vector<32x128xf32>, vector<64x128xf32> -> vector<64x128xf32>
    %176 = vector.broadcast %174 : vector<1x128xf32> to vector<64x128xf32>
    %177 = arith.addf %175, %176 : vector<64x128xf32>
    %cst_78 = arith.constant 0.000000e+00 : f32
    %178 = vector.broadcast %cst_78 : f32 to vector<64x128xf32>
    %179 = arith.maximumf %177, %178 : vector<64x128xf32>
    %180 = vector.extract_strided_slice %132 {offsets = [1, 0], sizes = [1, 32], strides = [1, 1]} : vector<3x128xf32> to vector<1x32xf32>
    %cst_79 = arith.constant dense<0.000000e+00> : vector<64x32xf32>
    %181 = tpu.matmul %179, %130, %cst_79 {dimension_numbers = #tpu.dot_dimension_numbers<[1], [0], [0], [1], [0, 0, 1, 1], [], []>} : vector<64x128xf32>, vector<128x32xf32>, vector<64x32xf32> -> vector<64x32xf32>
    %182 = vector.broadcast %180 : vector<1x32xf32> to vector<64x32xf32>
    %183 = arith.addf %181, %182 : vector<64x32xf32>
    %184 = arith.addf %155, %183 : vector<64x32xf32>
    %c3 = arith.constant 3 : index
    %c0_80 = arith.constant 0 : index
    %c0_81 = arith.constant 0 : index
    %185 = vector.load %arg5[%c3, %c0_80, %c0_81] : memref<4x32x32xf32, #tpu.memory_space<vmem>>, vector<1x32x32xf32>
    %186 = vector.shape_cast %185 : vector<1x32x32xf32> to vector<32x32xf32>
    %c3_82 = arith.constant 3 : index
    %c0_83 = arith.constant 0 : index
    %c0_84 = arith.constant 0 : index
    %187 = vector.load %arg6[%c3_82, %c0_83, %c0_84] : memref<4x32x128xf32, #tpu.memory_space<vmem>>, vector<1x32x128xf32>
    %188 = vector.shape_cast %187 : vector<1x32x128xf32> to vector<32x128xf32>
    %c3_85 = arith.constant 3 : index
    %c0_86 = arith.constant 0 : index
    %c0_87 = arith.constant 0 : index
    %189 = vector.load %arg7[%c3_85, %c0_86, %c0_87] : memref<4x128x32xf32, #tpu.memory_space<vmem>>, vector<1x128x32xf32>
    %190 = vector.shape_cast %189 : vector<1x128x32xf32> to vector<128x32xf32>
    %c3_88 = arith.constant 3 : index
    %c0_89 = arith.constant 0 : index
    %c0_90 = arith.constant 0 : index
    %191 = vector.load %arg8[%c3_88, %c0_89, %c0_90] : memref<4x3x128xf32, #tpu.memory_space<vmem>>, vector<1x3x128xf32>
    %192 = vector.shape_cast %191 : vector<1x3x128xf32> to vector<3x128xf32>
    %cst_91 = arith.constant dense<0.000000e+00> : vector<64xf32>
    %193 = vector.multi_reduction <add>, %184, %cst_91 [1] : vector<64x32xf32> to vector<64xf32>
    %194 = vector.shape_cast %193 : vector<64xf32> to vector<64x1xf32>
    %195 = arith.mulf %184, %184 : vector<64x32xf32>
    %cst_92 = arith.constant dense<0.000000e+00> : vector<64xf32>
    %196 = vector.multi_reduction <add>, %195, %cst_92 [1] : vector<64x32xf32> to vector<64xf32>
    %197 = vector.shape_cast %196 : vector<64xf32> to vector<64x1xf32>
    %cst_93 = arith.constant 3.125000e-02 : f32
    %198 = vector.broadcast %cst_93 : f32 to vector<64x1xf32>
    %199 = arith.mulf %194, %198 : vector<64x1xf32>
    %cst_94 = arith.constant 3.125000e-02 : f32
    %200 = vector.broadcast %cst_94 : f32 to vector<64x1xf32>
    %201 = arith.mulf %197, %200 : vector<64x1xf32>
    %202 = arith.mulf %199, %199 : vector<64x1xf32>
    %203 = arith.subf %201, %202 : vector<64x1xf32>
    %204 = vector.broadcast %199 : vector<64x1xf32> to vector<64x32xf32>
    %205 = arith.subf %184, %204 : vector<64x32xf32>
    %cst_95 = arith.constant 9.99999974E-6 : f32
    %206 = vector.broadcast %cst_95 : f32 to vector<64x1xf32>
    %207 = arith.addf %203, %206 : vector<64x1xf32>
    %208 = math.rsqrt %207 : vector<64x1xf32>
    %209 = vector.broadcast %208 : vector<64x1xf32> to vector<64x32xf32>
    %210 = arith.mulf %205, %209 : vector<64x32xf32>
    %211 = vector.extract_strided_slice %192 {offsets = [0, 0], sizes = [1, 32], strides = [1, 1]} : vector<3x128xf32> to vector<1x32xf32>
    %cst_96 = arith.constant dense<0.000000e+00> : vector<64x32xf32>
    %212 = tpu.matmul %210, %186, %cst_96 {dimension_numbers = #tpu.dot_dimension_numbers<[1], [0], [0], [1], [0, 0, 1, 1], [], []>} : vector<64x32xf32>, vector<32x32xf32>, vector<64x32xf32> -> vector<64x32xf32>
    %213 = vector.broadcast %211 : vector<1x32xf32> to vector<64x32xf32>
    %214 = arith.addf %212, %213 : vector<64x32xf32>
    %215 = arith.addf %184, %214 : vector<64x32xf32>
    %cst_97 = arith.constant dense<0.000000e+00> : vector<64xf32>
    %216 = vector.multi_reduction <add>, %215, %cst_97 [1] : vector<64x32xf32> to vector<64xf32>
    %217 = vector.shape_cast %216 : vector<64xf32> to vector<64x1xf32>
    %218 = arith.mulf %215, %215 : vector<64x32xf32>
    %cst_98 = arith.constant dense<0.000000e+00> : vector<64xf32>
    %219 = vector.multi_reduction <add>, %218, %cst_98 [1] : vector<64x32xf32> to vector<64xf32>
    %220 = vector.shape_cast %219 : vector<64xf32> to vector<64x1xf32>
    %cst_99 = arith.constant 3.125000e-02 : f32
    %221 = vector.broadcast %cst_99 : f32 to vector<64x1xf32>
    %222 = arith.mulf %217, %221 : vector<64x1xf32>
    %cst_100 = arith.constant 3.125000e-02 : f32
    %223 = vector.broadcast %cst_100 : f32 to vector<64x1xf32>
    %224 = arith.mulf %220, %223 : vector<64x1xf32>
    %225 = arith.mulf %222, %222 : vector<64x1xf32>
    %226 = arith.subf %224, %225 : vector<64x1xf32>
    %227 = vector.broadcast %222 : vector<64x1xf32> to vector<64x32xf32>
    %228 = arith.subf %215, %227 : vector<64x32xf32>
    %cst_101 = arith.constant 9.99999974E-6 : f32
    %229 = vector.broadcast %cst_101 : f32 to vector<64x1xf32>
    %230 = arith.addf %226, %229 : vector<64x1xf32>
    %231 = math.rsqrt %230 : vector<64x1xf32>
    %232 = vector.broadcast %231 : vector<64x1xf32> to vector<64x32xf32>
    %233 = arith.mulf %228, %232 : vector<64x32xf32>
    %234 = vector.extract_strided_slice %192 {offsets = [2, 0], sizes = [1, 128], strides = [1, 1]} : vector<3x128xf32> to vector<1x128xf32>
    %cst_102 = arith.constant dense<0.000000e+00> : vector<64x128xf32>
    %235 = tpu.matmul %233, %188, %cst_102 {dimension_numbers = #tpu.dot_dimension_numbers<[1], [0], [0], [1], [0, 0, 1, 1], [], []>} : vector<64x32xf32>, vector<32x128xf32>, vector<64x128xf32> -> vector<64x128xf32>
    %236 = vector.broadcast %234 : vector<1x128xf32> to vector<64x128xf32>
    %237 = arith.addf %235, %236 : vector<64x128xf32>
    %cst_103 = arith.constant 0.000000e+00 : f32
    %238 = vector.broadcast %cst_103 : f32 to vector<64x128xf32>
    %239 = arith.maximumf %237, %238 : vector<64x128xf32>
    %240 = vector.extract_strided_slice %192 {offsets = [1, 0], sizes = [1, 32], strides = [1, 1]} : vector<3x128xf32> to vector<1x32xf32>
    %cst_104 = arith.constant dense<0.000000e+00> : vector<64x32xf32>
    %241 = tpu.matmul %239, %190, %cst_104 {dimension_numbers = #tpu.dot_dimension_numbers<[1], [0], [0], [1], [0, 0, 1, 1], [], []>} : vector<64x128xf32>, vector<128x32xf32>, vector<64x32xf32> -> vector<64x32xf32>
    %242 = vector.broadcast %240 : vector<1x32xf32> to vector<64x32xf32>
    %243 = arith.addf %241, %242 : vector<64x32xf32>
    %244 = arith.addf %215, %243 : vector<64x32xf32>
    %c0_105 = arith.constant 0 : index
    %c0_106 = arith.constant 0 : index
    %245 = vector.load %arg12[%c0_105, %c0_106] : memref<64x32xf32, #tpu.memory_space<vmem>>, vector<64x32xf32>
    tpu.vector_store %arg12[%c0_105, %c0_106], %244 {strides = array<i32>} : memref<64x32xf32, #tpu.memory_space<vmem>>, vector<64x32xf32>,
    %c0_i32_107 = arith.constant 0 : i32
    %246 = arith.cmpi eq, %arg1, %c0_i32_107 : i32
    %247 = arith.extui %246 : i1 to i32
    %c0_i32_108 = arith.constant 0 : i32
    %248 = arith.cmpi ne, %247, %c0_i32_108 : i32
    scf.if %248 {
      %c0_109 = arith.constant 0 : index
      %c0_110 = arith.constant 0 : index
      %249 = vector.load %arg9[%c0_109, %c0_110] : memref<32x16xf32, #tpu.memory_space<vmem>>, vector<32x16xf32>
      %250 = vector.extract_strided_slice %0 {offsets = [4, 0], sizes = [1, 16], strides = [1, 1]} : vector<11x32xf32> to vector<1x16xf32>
      %cst_111 = arith.constant dense<0.000000e+00> : vector<64x16xf32>
      %251 = tpu.matmul %244, %249, %cst_111 {dimension_numbers = #tpu.dot_dimension_numbers<[1], [0], [0], [1], [0, 0, 1, 1], [], []>} : vector<64x32xf32>, vector<32x16xf32>, vector<64x16xf32> -> vector<64x16xf32>
      %252 = vector.broadcast %250 : vector<1x16xf32> to vector<64x16xf32>
      %253 = arith.addf %251, %252 : vector<64x16xf32>
      %cst_112 = arith.constant dense<0.000000e+00> : vector<64xf32>
      %254 = vector.multi_reduction <add>, %253, %cst_112 [1] : vector<64x16xf32> to vector<64xf32>
      %255 = vector.shape_cast %254 : vector<64xf32> to vector<64x1xf32>
      %256 = arith.mulf %253, %253 : vector<64x16xf32>
      %cst_113 = arith.constant dense<0.000000e+00> : vector<64xf32>
      %257 = vector.multi_reduction <add>, %256, %cst_113 [1] : vector<64x16xf32> to vector<64xf32>
      %258 = vector.shape_cast %257 : vector<64xf32> to vector<64x1xf32>
      %cst_114 = arith.constant 6.250000e-02 : f32
      %259 = vector.broadcast %cst_114 : f32 to vector<64x1xf32>
      %260 = arith.mulf %255, %259 : vector<64x1xf32>
      %cst_115 = arith.constant 6.250000e-02 : f32
      %261 = vector.broadcast %cst_115 : f32 to vector<64x1xf32>
      %262 = arith.mulf %258, %261 : vector<64x1xf32>
      %263 = arith.mulf %260, %260 : vector<64x1xf32>
      %264 = arith.subf %262, %263 : vector<64x1xf32>
      %265 = vector.broadcast %260 : vector<64x1xf32> to vector<64x16xf32>
      %266 = arith.subf %253, %265 : vector<64x16xf32>
      %cst_116 = arith.constant 9.99999974E-6 : f32
      %267 = vector.broadcast %cst_116 : f32 to vector<64x1xf32>
      %268 = arith.addf %264, %267 : vector<64x1xf32>
      %269 = math.rsqrt %268 : vector<64x1xf32>
      %270 = vector.broadcast %269 : vector<64x1xf32> to vector<64x16xf32>
      %271 = arith.mulf %266, %270 : vector<64x16xf32>
      %272 = vector.extract_strided_slice %0 {offsets = [5, 0], sizes = [1, 16], strides = [1, 1]} : vector<11x32xf32> to vector<1x16xf32>
      %273 = vector.broadcast %272 : vector<1x16xf32> to vector<64x16xf32>
      %274 = arith.mulf %271, %273 : vector<64x16xf32>
      %275 = vector.extract_strided_slice %0 {offsets = [6, 0], sizes = [1, 16], strides = [1, 1]} : vector<11x32xf32> to vector<1x16xf32>
      %276 = vector.broadcast %275 : vector<1x16xf32> to vector<64x16xf32>
      %277 = arith.addf %274, %276 : vector<64x16xf32>
      %cst_117 = arith.constant 0.000000e+00 : f32
      %278 = vector.broadcast %cst_117 : f32 to vector<64x16xf32>
      %279 = arith.maximumf %277, %278 : vector<64x16xf32>
      %c0_118 = arith.constant 0 : index
      %c0_119 = arith.constant 0 : index
      %280 = vector.load %arg10[%c0_118, %c0_119] : memref<16x8xf32, #tpu.memory_space<vmem>>, vector<16x8xf32>
      %281 = vector.extract_strided_slice %0 {offsets = [7, 0], sizes = [1, 8], strides = [1, 1]} : vector<11x32xf32> to vector<1x8xf32>
      %cst_120 = arith.constant dense<0.000000e+00> : vector<64x8xf32>
      %282 = tpu.matmul %279, %280, %cst_120 {dimension_numbers = #tpu.dot_dimension_numbers<[1], [0], [0], [1], [0, 0, 1, 1], [], []>} : vector<64x16xf32>, vector<16x8xf32>, vector<64x8xf32> -> vector<64x8xf32>
      %283 = vector.broadcast %281 : vector<1x8xf32> to vector<64x8xf32>
      %284 = arith.addf %282, %283 : vector<64x8xf32>
      %cst_121 = arith.constant 0.000000e+00 : f32
      %285 = vector.broadcast %cst_121 : f32 to vector<64x8xf32>
      %286 = arith.maximumf %284, %285 : vector<64x8xf32>
      %287 = vector.extract_strided_slice %0 {offsets = [8, 0], sizes = [1, 8], strides = [1, 1]} : vector<11x32xf32> to vector<1x8xf32>
      %288 = vector.broadcast %287 : vector<1x8xf32> to vector<64x8xf32>
      %289 = arith.mulf %286, %288 : vector<64x8xf32>
      %cst_122 = arith.constant dense<0.000000e+00> : vector<64xf32>
      %290 = vector.multi_reduction <add>, %289, %cst_122 [1] : vector<64x8xf32> to vector<64xf32>
      %291 = vector.shape_cast %290 : vector<64xf32> to vector<64x1xf32>
      %292 = vector.extract_strided_slice %0 {offsets = [10, 0], sizes = [1, 1], strides = [1, 1]} : vector<11x32xf32> to vector<1x1xf32>
      %293 = vector.broadcast %292 : vector<1x1xf32> to vector<64x1xf32>
      %294 = arith.addf %291, %293 : vector<64x1xf32>
      %c0_123 = arith.constant 0 : index
      %c0_124 = arith.constant 0 : index
      %295 = vector.load %arg2[%c0_123, %c0_124] : memref<64x16xf32, #tpu.memory_space<vmem>>, vector<64x16xf32>
      %296 = vector.extract_strided_slice %0 {offsets = [9, 0], sizes = [1, 16], strides = [1, 1]} : vector<11x32xf32> to vector<1x16xf32>
      %297 = vector.broadcast %296 : vector<1x16xf32> to vector<64x16xf32>
      %298 = arith.mulf %295, %297 : vector<64x16xf32>
      %cst_125 = arith.constant dense<0.000000e+00> : vector<64xf32>
      %299 = vector.multi_reduction <add>, %298, %cst_125 [1] : vector<64x16xf32> to vector<64xf32>
      %300 = vector.shape_cast %299 : vector<64xf32> to vector<64x1xf32>
      %301 = vector.extract_strided_slice %0 {offsets = [10, 1], sizes = [1, 1], strides = [1, 1]} : vector<11x32xf32> to vector<1x1xf32>
      %302 = vector.broadcast %301 : vector<1x1xf32> to vector<64x1xf32>
      %303 = arith.addf %300, %302 : vector<64x1xf32>
      %304 = arith.addf %294, %303 : vector<64x1xf32>
      %305 = vector.shape_cast %304 : vector<64x1xf32> to vector<1x64xf32>
      %c0_126 = arith.constant 0 : index
      %c0_127 = arith.constant 0 : index
      %306 = vector.load %arg11[%c0_126, %c0_127] : memref<1x64xf32, #tpu.memory_space<vmem>>, vector<1x64xf32>
      tpu.vector_store %arg11[%c0_126, %c0_127], %305 {strides = array<i32>} : memref<1x64xf32, #tpu.memory_space<vmem>>, vector<1x64xf32>,
    } else {
    }
    return
  }
  func.func @transform_0(%arg0: i32, %arg1: i32) -> (i32, i32) {
    %c0_i32 = arith.constant 0 : i32
    %c0_i32_0 = arith.constant 0 : i32
    return %arg0, %c0_i32 : i32, i32
  }
  func.func @transform_1(%arg0: i32, %arg1: i32) -> (i32, i32) {
    %c0_i32 = arith.constant 0 : i32
    %c0_i32_0 = arith.constant 0 : i32
    %c0_i32_1 = arith.constant 0 : i32
    return %c0_i32, %c0_i32_0 : i32, i32
  }
  func.func @transform_2(%arg0: i32, %arg1: i32) -> (i32, i32) {
    %c0_i32 = arith.constant 0 : i32
    %c0_i32_0 = arith.constant 0 : i32
    %c0_i32_1 = arith.constant 0 : i32
    return %c0_i32, %c0_i32_0 : i32, i32
  }
  func.func @transform_3(%arg0: i32, %arg1: i32) -> (i32, i32, i32) {
    %c0_i32 = arith.constant 0 : i32
    %c0_i32_0 = arith.constant 0 : i32
    %c0_i32_1 = arith.constant 0 : i32
    %c0_i32_2 = arith.constant 0 : i32
    return %c0_i32, %c0_i32_0, %c0_i32_1 : i32, i32, i32
  }
  func.func @transform_4(%arg0: i32, %arg1: i32) -> (i32, i32, i32) {
    %c0_i32 = arith.constant 0 : i32
    %c0_i32_0 = arith.constant 0 : i32
    %c0_i32_1 = arith.constant 0 : i32
    %c0_i32_2 = arith.constant 0 : i32
    return %c0_i32, %c0_i32_0, %c0_i32_1 : i32, i32, i32
  }
  func.func @transform_5(%arg0: i32, %arg1: i32) -> (i32, i32, i32) {
    %c0_i32 = arith.constant 0 : i32
    %c0_i32_0 = arith.constant 0 : i32
    %c0_i32_1 = arith.constant 0 : i32
    %c0_i32_2 = arith.constant 0 : i32
    return %c0_i32, %c0_i32_0, %c0_i32_1 : i32, i32, i32
  }
  func.func @transform_6(%arg0: i32, %arg1: i32) -> (i32, i32, i32) {
    %c0_i32 = arith.constant 0 : i32
    %c0_i32_0 = arith.constant 0 : i32
    %c0_i32_1 = arith.constant 0 : i32
    %c0_i32_2 = arith.constant 0 : i32
    return %c0_i32, %c0_i32_0, %c0_i32_1 : i32, i32, i32
  }
  func.func @transform_7(%arg0: i32, %arg1: i32) -> (i32, i32) {
    %c0_i32 = arith.constant 0 : i32
    %c0_i32_0 = arith.constant 0 : i32
    %c0_i32_1 = arith.constant 0 : i32
    return %c0_i32, %c0_i32_0 : i32, i32
  }
  func.func @transform_8(%arg0: i32, %arg1: i32) -> (i32, i32) {
    %c0_i32 = arith.constant 0 : i32
    %c0_i32_0 = arith.constant 0 : i32
    %c0_i32_1 = arith.constant 0 : i32
    return %c0_i32, %c0_i32_0 : i32, i32
  }
  func.func @transform_9(%arg0: i32, %arg1: i32) -> (i32, i32) {
    %c0_i32 = arith.constant 0 : i32
    %c0_i32_0 = arith.constant 0 : i32
    return %c0_i32, %arg0 : i32, i32
  }
}

module attributes {stable_mosaic.version = 11 : i64} {
  func.func @cognitive_age_kernel(%arg0: i32, %arg1: i32, %arg2: memref<64x16xf32, #tpu.memory_space<vmem>>, %arg3: memref<11x32xf32, #tpu.memory_space<vmem>>, %arg4: memref<16x32xf32, #tpu.memory_space<vmem>>, %arg5: memref<4x32x32xf32, #tpu.memory_space<vmem>>, %arg6: memref<4x32x128xf32, #tpu.memory_space<vmem>>, %arg7: memref<4x128x32xf32, #tpu.memory_space<vmem>>, %arg8: memref<4x3x128xf32, #tpu.memory_space<vmem>>, %arg9: memref<32x16xf32, #tpu.memory_space<vmem>>, %arg10: memref<16x8xf32, #tpu.memory_space<vmem>>, %arg11: memref<1x64xf32, #tpu.memory_space<vmem>>, %arg12: memref<64x32xf32, #tpu.memory_space<vmem>>) attributes {dimension_semantics = [#tpu.dimension_semantics<parallel>, #tpu.dimension_semantics<arbitrary>], iteration_bounds = array<i64: 1, 1>, scalar_prefetch = 0 : i64, scratch_operands = 1 : i64, tpu.core_type = #tpu.core_type<tc>, window_params = [{transform_indices = @transform_0, window_bounds = array<i64: 64, 16>}, {pipeline_mode = #tpu.pipeline_mode<synchronous>, transform_indices = @transform_1, window_bounds = array<i64: 11, 32>}, {pipeline_mode = #tpu.pipeline_mode<synchronous>, transform_indices = @transform_2, window_bounds = array<i64: 16, 32>}, {pipeline_mode = #tpu.pipeline_mode<synchronous>, transform_indices = @transform_3, window_bounds = array<i64: 4, 32, 32>}, {pipeline_mode = #tpu.pipeline_mode<synchronous>, transform_indices = @transform_4, window_bounds = array<i64: 4, 32, 128>}, {pipeline_mode = #tpu.pipeline_mode<synchronous>, transform_indices = @transform_5, window_bounds = array<i64: 4, 128, 32>}, {pipeline_mode = #tpu.pipeline_mode<synchronous>, transform_indices = @transform_6, window_bounds = array<i64: 4, 3, 128>}, {pipeline_mode = #tpu.pipeline_mode<synchronous>, transform_indices = @transform_7, window_bounds = array<i64: 32, 16>}, {pipeline_mode = #tpu.pipeline_mode<synchronous>, transform_indices = @transform_8, window_bounds = array<i64: 16, 8>}, {transform_indices = @transform_9, window_bounds = array<i64: 1, 64>}]} {
    %c0 = arith.constant 0 : index
    %c0_0 = arith.constant 0 : index
    %0 = vector.load %arg3[%c0, %c0_0] : memref<11x32xf32, #tpu.memory_space<vmem>>, vector<11x32xf32>
    %c0_i32 = arith.constant 0 : i32
    %1 = arith.cmpi eq, %arg1, %c0_i32 : i32
    %2 = arith.extui %1 : i1 to i32
    %cst = arith.constant 3.125000e-02 : f32
    %c0_i32_1 = arith.constant 0 : i32
    %3 = arith.cmpi ne, %2, %c0_i32_1 : i32
    scf.if %3 {
      %c0_109 = arith.constant 0 : index
      %c0_110 = arith.constant 0 : index
      %249 = vector.load %arg2[%c0_109, %c0_110] : memref<64x16xf32, #tpu.memory_space<vmem>>, vector<64x16xf32>
      %c0_111 = arith.constant 0 : index
      %c0_112 = arith.constant 0 : index
      %250 = vector.load %arg4[%c0_111, %c0_112] : memref<16x32xf32, #tpu.memory_space<vmem>>, vector<16x32xf32>
      %251 = vector.extract_strided_slice %0 {offsets = [0, 0], sizes = [1, 32], strides = [1, 1]} : vector<11x32xf32> to vector<1x32xf32>
      %cst_113 = arith.constant dense<0.000000e+00> : vector<64x32xf32>
      %252 = tpu.matmul %249, %250, %cst_113 {dimension_numbers = #tpu.dot_dimension_numbers<[1], [0], [0], [1], [0, 0, 1, 1], [], []>} : vector<64x16xf32>, vector<16x32xf32>, vector<64x32xf32> -> vector<64x32xf32>
      %253 = vector.broadcast %251 : vector<1x32xf32> to vector<64x32xf32>
      %254 = arith.addf %252, %253 : vector<64x32xf32>
      %cst_114 = arith.constant dense<0.000000e+00> : vector<64xf32>
      %255 = vector.multi_reduction <add>, %254, %cst_114 [1] : vector<64x32xf32> to vector<64xf32>
      %256 = vector.shape_cast %255 : vector<64xf32> to vector<64x1xf32>
      %257 = arith.mulf %254, %254 : vector<64x32xf32>
      %cst_115 = arith.constant dense<0.000000e+00> : vector<64xf32>
      %258 = vector.multi_reduction <add>, %257, %cst_115 [1] : vector<64x32xf32> to vector<64xf32>
      %259 = vector.shape_cast %258 : vector<64xf32> to vector<64x1xf32>
      %260 = vector.broadcast %cst : f32 to vector<64x1xf32>
      %261 = arith.mulf %256, %260 : vector<64x1xf32>
      %262 = vector.broadcast %cst : f32 to vector<64x1xf32>
      %263 = arith.mulf %259, %262 : vector<64x1xf32>
      %264 = arith.mulf %261, %261 : vector<64x1xf32>
      %265 = arith.subf %263, %264 : vector<64x1xf32>
      %266 = vector.broadcast %261 : vector<64x1xf32> to vector<64x32xf32>
      %267 = arith.subf %254, %266 : vector<64x32xf32>
      %cst_116 = arith.constant 9.99999974E-6 : f32
      %268 = vector.broadcast %cst_116 : f32 to vector<64x1xf32>
      %269 = arith.addf %265, %268 : vector<64x1xf32>
      %270 = math.rsqrt %269 : vector<64x1xf32>
      %271 = vector.broadcast %270 : vector<64x1xf32> to vector<64x32xf32>
      %272 = arith.mulf %267, %271 : vector<64x32xf32>
      %273 = vector.extract_strided_slice %0 {offsets = [1, 0], sizes = [1, 32], strides = [1, 1]} : vector<11x32xf32> to vector<1x32xf32>
      %274 = vector.broadcast %273 : vector<1x32xf32> to vector<64x32xf32>
      %275 = arith.mulf %272, %274 : vector<64x32xf32>
      %276 = vector.extract_strided_slice %0 {offsets = [2, 0], sizes = [1, 32], strides = [1, 1]} : vector<11x32xf32> to vector<1x32xf32>
      %277 = vector.broadcast %276 : vector<1x32xf32> to vector<64x32xf32>
      %278 = arith.addf %275, %277 : vector<64x32xf32>
      %cst_117 = arith.constant 0.000000e+00 : f32
      %279 = vector.broadcast %cst_117 : f32 to vector<64x32xf32>
      %280 = arith.maximumf %278, %279 : vector<64x32xf32>
      %281 = vector.extract_strided_slice %0 {offsets = [3, 0], sizes = [1, 32], strides = [1, 1]} : vector<11x32xf32> to vector<1x32xf32>
      %282 = vector.broadcast %281 : vector<1x32xf32> to vector<64x32xf32>
      %283 = arith.addf %280, %282 : vector<64x32xf32>
      %c0_118 = arith.constant 0 : index
      %c0_119 = arith.constant 0 : index
      %284 = vector.load %arg12[%c0_118, %c0_119] : memref<64x32xf32, #tpu.memory_space<vmem>>, vector<64x32xf32>
      tpu.vector_store %arg12[%c0_118, %c0_119], %283 {strides = array<i32>} : memref<64x32xf32, #tpu.memory_space<vmem>>, vector<64x32xf32>,
    } else {
    }
    %c0_2 = arith.constant 0 : index
    %c0_3 = arith.constant 0 : index
    %4 = vector.load %arg12[%c0_2, %c0_3] : memref<64x32xf32, #tpu.memory_space<vmem>>, vector<64x32xf32>
    %c0_4 = arith.constant 0 : index
    %c0_5 = arith.constant 0 : index
    %c0_6 = arith.constant 0 : index
    %5 = vector.load %arg5[%c0_4, %c0_5, %c0_6] : memref<4x32x32xf32, #tpu.memory_space<vmem>>, vector<1x32x32xf32>
    %6 = vector.shape_cast %5 : vector<1x32x32xf32> to vector<32x32xf32>
    %c0_7 = arith.constant 0 : index
    %c0_8 = arith.constant 0 : index
    %c0_9 = arith.constant 0 : index
    %7 = vector.load %arg6[%c0_7, %c0_8, %c0_9] : memref<4x32x128xf32, #tpu.memory_space<vmem>>, vector<1x32x128xf32>
    %8 = vector.shape_cast %7 : vector<1x32x128xf32> to vector<32x128xf32>
    %c0_10 = arith.constant 0 : index
    %c0_11 = arith.constant 0 : index
    %c0_12 = arith.constant 0 : index
    %9 = vector.load %arg7[%c0_10, %c0_11, %c0_12] : memref<4x128x32xf32, #tpu.memory_space<vmem>>, vector<1x128x32xf32>
    %10 = vector.shape_cast %9 : vector<1x128x32xf32> to vector<128x32xf32>
    %c0_13 = arith.constant 0 : index
    %c0_14 = arith.constant 0 : index
    %c0_15 = arith.constant 0 : index
    %11 = vector.load %arg8[%c0_13, %c0_14, %c0_15] : memref<4x3x128xf32, #tpu.memory_space<vmem>>, vector<1x3x128xf32>
    %12 = vector.shape_cast %11 : vector<1x3x128xf32> to vector<3x128xf32>
    %cst_16 = arith.constant dense<0.000000e+00> : vector<64xf32>
    %13 = vector.multi_reduction <add>, %4, %cst_16 [1] : vector<64x32xf32> to vector<64xf32>
    %14 = vector.shape_cast %13 : vector<64xf32> to vector<64x1xf32>
    %15 = arith.mulf %4, %4 : vector<64x32xf32>
    %cst_17 = arith.constant dense<0.000000e+00> : vector<64xf32>
    %16 = vector.multi_reduction <add>, %15, %cst_17 [1] : vector<64x32xf32> to vector<64xf32>
    %17 = vector.shape_cast %16 : vector<64xf32> to vector<64x1xf32>
    %cst_18 = arith.constant 3.125000e-02 : f32
    %18 = vector.broadcast %cst_18 : f32 to vector<64x1xf32>
    %19 = arith.mulf %14, %18 : vector<64x1xf32>
    %cst_19 = arith.constant 3.125000e-02 : f32
    %20 = vector.broadcast %cst_19 : f32 to vector<64x1xf32>
    %21 = arith.mulf %17, %20 : vector<64x1xf32>
    %22 = arith.mulf %19, %19 : vector<64x1xf32>
    %23 = arith.subf %21, %22 : vector<64x1xf32>
    %24 = vector.broadcast %19 : vector<64x1xf32> to vector<64x32xf32>
    %25 = arith.subf %4, %24 : vector<64x32xf32>
    %cst_20 = arith.constant 9.99999974E-6 : f32
    %26 = vector.broadcast %cst_20 : f32 to vector<64x1xf32>
    %27 = arith.addf %23, %26 : vector<64x1xf32>
    %28 = math.rsqrt %27 : vector<64x1xf32>
    %29 = vector.broadcast %28 : vector<64x1xf32> to vector<64x32xf32>
    %30 = arith.mulf %25, %29 : vector<64x32xf32>
    %31 = vector.extract_strided_slice %12 {offsets = [0, 0], sizes = [1, 32], strides = [1, 1]} : vector<3x128xf32> to vector<1x32xf32>
    %cst_21 = arith.constant dense<0.000000e+00> : vector<64x32xf32>
    %32 = tpu.matmul %30, %6, %cst_21 {dimension_numbers = #tpu.dot_dimension_numbers<[1], [0], [0], [1], [0, 0, 1, 1], [], []>} : vector<64x32xf32>, vector<32x32xf32>, vector<64x32xf32> -> vector<64x32xf32>
    %33 = vector.broadcast %31 : vector<1x32xf32> to vector<64x32xf32>
    %34 = arith.addf %32, %33 : vector<64x32xf32>
    %35 = arith.addf %4, %34 : vector<64x32xf32>
    %cst_22 = arith.constant dense<0.000000e+00> : vector<64xf32>
    %36 = vector.multi_reduction <add>, %35, %cst_22 [1] : vector<64x32xf32> to vector<64xf32>
    %37 = vector.shape_cast %36 : vector<64xf32> to vector<64x1xf32>
    %38 = arith.mulf %35, %35 : vector<64x32xf32>
    %cst_23 = arith.constant dense<0.000000e+00> : vector<64xf32>
    %39 = vector.multi_reduction <add>, %38, %cst_23 [1] : vector<64x32xf32> to vector<64xf32>
    %40 = vector.shape_cast %39 : vector<64xf32> to vector<64x1xf32>
    %cst_24 = arith.constant 3.125000e-02 : f32
    %41 = vector.broadcast %cst_24 : f32 to vector<64x1xf32>
    %42 = arith.mulf %37, %41 : vector<64x1xf32>
    %cst_25 = arith.constant 3.125000e-02 : f32
    %43 = vector.broadcast %cst_25 : f32 to vector<64x1xf32>
    %44 = arith.mulf %40, %43 : vector<64x1xf32>
    %45 = arith.mulf %42, %42 : vector<64x1xf32>
    %46 = arith.subf %44, %45 : vector<64x1xf32>
    %47 = vector.broadcast %42 : vector<64x1xf32> to vector<64x32xf32>
    %48 = arith.subf %35, %47 : vector<64x32xf32>
    %cst_26 = arith.constant 9.99999974E-6 : f32
    %49 = vector.broadcast %cst_26 : f32 to vector<64x1xf32>
    %50 = arith.addf %46, %49 : vector<64x1xf32>
    %51 = math.rsqrt %50 : vector<64x1xf32>
    %52 = vector.broadcast %51 : vector<64x1xf32> to vector<64x32xf32>
    %53 = arith.mulf %48, %52 : vector<64x32xf32>
    %54 = vector.extract_strided_slice %12 {offsets = [2, 0], sizes = [1, 128], strides = [1, 1]} : vector<3x128xf32> to vector<1x128xf32>
    %cst_27 = arith.constant dense<0.000000e+00> : vector<64x128xf32>
    %55 = tpu.matmul %53, %8, %cst_27 {dimension_numbers = #tpu.dot_dimension_numbers<[1], [0], [0], [1], [0, 0, 1, 1], [], []>} : vector<64x32xf32>, vector<32x128xf32>, vector<64x128xf32> -> vector<64x128xf32>
    %56 = vector.broadcast %54 : vector<1x128xf32> to vector<64x128xf32>
    %57 = arith.addf %55, %56 : vector<64x128xf32>
    %cst_28 = arith.constant 0.000000e+00 : f32
    %58 = vector.broadcast %cst_28 : f32 to vector<64x128xf32>
    %59 = arith.maximumf %57, %58 : vector<64x128xf32>
    %60 = vector.extract_strided_slice %12 {offsets = [1, 0], sizes = [1, 32], strides = [1, 1]} : vector<3x128xf32> to vector<1x32xf32>
    %cst_29 = arith.constant dense<0.000000e+00> : vector<64x32xf32>
    %61 = tpu.matmul %59, %10, %cst_29 {dimension_numbers = #tpu.dot_dimension_numbers<[1], [0], [0], [1], [0, 0, 1, 1], [], []>} : vector<64x128xf32>, vector<128x32xf32>, vector<64x32xf32> -> vector<64x32xf32>
    %62 = vector.broadcast %60 : vector<1x32xf32> to vector<64x32xf32>
    %63 = arith.addf %61, %62 : vector<64x32xf32>
    %64 = arith.addf %35, %63 : vector<64x32xf32>
    %c1 = arith.constant 1 : index
    %c0_30 = arith.constant 0 : index
    %c0_31 = arith.constant 0 : index
    %65 = vector.load %arg5[%c1, %c0_30, %c0_31] : memref<4x32x32xf32, #tpu.memory_space<vmem>>, vector<1x32x32xf32>
    %66 = vector.shape_cast %65 : vector<1x32x32xf32> to vector<32x32xf32>
    %c1_32 = arith.constant 1 : index
    %c0_33 = arith.constant 0 : index
    %c0_34 = arith.constant 0 : index
    %67 = vector.load %arg6[%c1_32, %c0_33, %c0_34] : memref<4x32x128xf32, #tpu.memory_space<vmem>>, vector<1x32x128xf32>
    %68 = vector.shape_cast %67 : vector<1x32x128xf32> to vector<32x128xf32>
    %c1_35 = arith.constant 1 : index
    %c0_36 = arith.constant 0 : index
    %c0_37 = arith.constant 0 : index
    %69 = vector.load %arg7[%c1_35, %c0_36, %c0_37] : memref<4x128x32xf32, #tpu.memory_space<vmem>>, vector<1x128x32xf32>
    %70 = vector.shape_cast %69 : vector<1x128x32xf32> to vector<128x32xf32>
    %c1_38 = arith.constant 1 : index
    %c0_39 = arith.constant 0 : index
    %c0_40 = arith.constant 0 : index
    %71 = vector.load %arg8[%c1_38, %c0_39, %c0_40] : memref<4x3x128xf32, #tpu.memory_space<vmem>>, vector<1x3x128xf32>
    %72 = vector.shape_cast %71 : vector<1x3x128xf32> to vector<3x128xf32>
    %cst_41 = arith.constant dense<0.000000e+00> : vector<64xf32>
    %73 = vector.multi_reduction <add>, %64, %cst_41 [1] : vector<64x32xf32> to vector<64xf32>
    %74 = vector.shape_cast %73 : vector<64xf32> to vector<64x1xf32>
    %75 = arith.mulf %64, %64 : vector<64x32xf32>
    %cst_42 = arith.constant dense<0.000000e+00> : vector<64xf32>
    %76 = vector.multi_reduction <add>, %75, %cst_42 [1] : vector<64x32xf32> to vector<64xf32>
    %77 = vector.shape_cast %76 : vector<64xf32> to vector<64x1xf32>
    %cst_43 = arith.constant 3.125000e-02 : f32
    %78 = vector.broadcast %cst_43 : f32 to vector<64x1xf32>
    %79 = arith.mulf %74, %78 : vector<64x1xf32>
    %cst_44 = arith.constant 3.125000e-02 : f32
    %80 = vector.broadcast %cst_44 : f32 to vector<64x1xf32>
    %81 = arith.mulf %77, %80 : vector<64x1xf32>
    %82 = arith.mulf %79, %79 : vector<64x1xf32>
    %83 = arith.subf %81, %82 : vector<64x1xf32>
    %84 = vector.broadcast %79 : vector<64x1xf32> to vector<64x32xf32>
    %85 = arith.subf %64, %84 : vector<64x32xf32>
    %cst_45 = arith.constant 9.99999974E-6 : f32
    %86 = vector.broadcast %cst_45 : f32 to vector<64x1xf32>
    %87 = arith.addf %83, %86 : vector<64x1xf32>
    %88 = math.rsqrt %87 : vector<64x1xf32>
    %89 = vector.broadcast %88 : vector<64x1xf32> to vector<64x32xf32>
    %90 = arith.mulf %85, %89 : vector<64x32xf32>
    %91 = vector.extract_strided_slice %72 {offsets = [0, 0], sizes = [1, 32], strides = [1, 1]} : vector<3x128xf32> to vector<1x32xf32>
    %cst_46 = arith.constant dense<0.000000e+00> : vector<64x32xf32>
    %92 = tpu.matmul %90, %66, %cst_46 {dimension_numbers = #tpu.dot_dimension_numbers<[1], [0], [0], [1], [0, 0, 1, 1], [], []>} : vector<64x32xf32>, vector<32x32xf32>, vector<64x32xf32> -> vector<64x32xf32>
    %93 = vector.broadcast %91 : vector<1x32xf32> to vector<64x32xf32>
    %94 = arith.addf %92, %93 : vector<64x32xf32>
    %95 = arith.addf %64, %94 : vector<64x32xf32>
    %cst_47 = arith.constant dense<0.000000e+00> : vector<64xf32>
    %96 = vector.multi_reduction <add>, %95, %cst_47 [1] : vector<64x32xf32> to vector<64xf32>
    %97 = vector.shape_cast %96 : vector<64xf32> to vector<64x1xf32>
    %98 = arith.mulf %95, %95 : vector<64x32xf32>
    %cst_48 = arith.constant dense<0.000000e+00> : vector<64xf32>
    %99 = vector.multi_reduction <add>, %98, %cst_48 [1] : vector<64x32xf32> to vector<64xf32>
    %100 = vector.shape_cast %99 : vector<64xf32> to vector<64x1xf32>
    %cst_49 = arith.constant 3.125000e-02 : f32
    %101 = vector.broadcast %cst_49 : f32 to vector<64x1xf32>
    %102 = arith.mulf %97, %101 : vector<64x1xf32>
    %cst_50 = arith.constant 3.125000e-02 : f32
    %103 = vector.broadcast %cst_50 : f32 to vector<64x1xf32>
    %104 = arith.mulf %100, %103 : vector<64x1xf32>
    %105 = arith.mulf %102, %102 : vector<64x1xf32>
    %106 = arith.subf %104, %105 : vector<64x1xf32>
    %107 = vector.broadcast %102 : vector<64x1xf32> to vector<64x32xf32>
    %108 = arith.subf %95, %107 : vector<64x32xf32>
    %cst_51 = arith.constant 9.99999974E-6 : f32
    %109 = vector.broadcast %cst_51 : f32 to vector<64x1xf32>
    %110 = arith.addf %106, %109 : vector<64x1xf32>
    %111 = math.rsqrt %110 : vector<64x1xf32>
    %112 = vector.broadcast %111 : vector<64x1xf32> to vector<64x32xf32>
    %113 = arith.mulf %108, %112 : vector<64x32xf32>
    %114 = vector.extract_strided_slice %72 {offsets = [2, 0], sizes = [1, 128], strides = [1, 1]} : vector<3x128xf32> to vector<1x128xf32>
    %cst_52 = arith.constant dense<0.000000e+00> : vector<64x128xf32>
    %115 = tpu.matmul %113, %68, %cst_52 {dimension_numbers = #tpu.dot_dimension_numbers<[1], [0], [0], [1], [0, 0, 1, 1], [], []>} : vector<64x32xf32>, vector<32x128xf32>, vector<64x128xf32> -> vector<64x128xf32>
    %116 = vector.broadcast %114 : vector<1x128xf32> to vector<64x128xf32>
    %117 = arith.addf %115, %116 : vector<64x128xf32>
    %cst_53 = arith.constant 0.000000e+00 : f32
    %118 = vector.broadcast %cst_53 : f32 to vector<64x128xf32>
    %119 = arith.maximumf %117, %118 : vector<64x128xf32>
    %120 = vector.extract_strided_slice %72 {offsets = [1, 0], sizes = [1, 32], strides = [1, 1]} : vector<3x128xf32> to vector<1x32xf32>
    %cst_54 = arith.constant dense<0.000000e+00> : vector<64x32xf32>
    %121 = tpu.matmul %119, %70, %cst_54 {dimension_numbers = #tpu.dot_dimension_numbers<[1], [0], [0], [1], [0, 0, 1, 1], [], []>} : vector<64x128xf32>, vector<128x32xf32>, vector<64x32xf32> -> vector<64x32xf32>
    %122 = vector.broadcast %120 : vector<1x32xf32> to vector<64x32xf32>
    %123 = arith.addf %121, %122 : vector<64x32xf32>
    %124 = arith.addf %95, %123 : vector<64x32xf32>
    %c2 = arith.constant 2 : index
    %c0_55 = arith.constant 0 : index
    %c0_56 = arith.constant 0 : index
    %125 = vector.load %arg5[%c2, %c0_55, %c0_56] : memref<4x32x32xf32, #tpu.memory_space<vmem>>, vector<1x32x32xf32>
    %126 = vector.shape_cast %125 : vector<1x32x32xf32> to vector<32x32xf32>
    %c2_57 = arith.constant 2 : index
    %c0_58 = arith.constant 0 : index
    %c0_59 = arith.constant 0 : index
    %127 = vector.load %arg6[%c2_57, %c0_58, %c0_59] : memref<4x32x128xf32, #tpu.memory_space<vmem>>, vector<1x32x128xf32>
    %128 = vector.shape_cast %127 : vector<1x32x128xf32> to vector<32x128xf32>
    %c2_60 = arith.constant 2 : index
    %c0_61 = arith.constant 0 : index
    %c0_62 = arith.constant 0 : index
    %129 = vector.load %arg7[%c2_60, %c0_61, %c0_62] : memref<4x128x32xf32, #tpu.memory_space<vmem>>, vector<1x128x32xf32>
    %130 = vector.shape_cast %129 : vector<1x128x32xf32> to vector<128x32xf32>
    %c2_63 = arith.constant 2 : index
    %c0_64 = arith.constant 0 : index
    %c0_65 = arith.constant 0 : index
    %131 = vector.load %arg8[%c2_63, %c0_64, %c0_65] : memref<4x3x128xf32, #tpu.memory_space<vmem>>, vector<1x3x128xf32>
    %132 = vector.shape_cast %131 : vector<1x3x128xf32> to vector<3x128xf32>
    %cst_66 = arith.constant dense<0.000000e+00> : vector<64xf32>
    %133 = vector.multi_reduction <add>, %124, %cst_66 [1] : vector<64x32xf32> to vector<64xf32>
    %134 = vector.shape_cast %133 : vector<64xf32> to vector<64x1xf32>
    %135 = arith.mulf %124, %124 : vector<64x32xf32>
    %cst_67 = arith.constant dense<0.000000e+00> : vector<64xf32>
    %136 = vector.multi_reduction <add>, %135, %cst_67 [1] : vector<64x32xf32> to vector<64xf32>
    %137 = vector.shape_cast %136 : vector<64xf32> to vector<64x1xf32>
    %cst_68 = arith.constant 3.125000e-02 : f32
    %138 = vector.broadcast %cst_68 : f32 to vector<64x1xf32>
    %139 = arith.mulf %134, %138 : vector<64x1xf32>
    %cst_69 = arith.constant 3.125000e-02 : f32
    %140 = vector.broadcast %cst_69 : f32 to vector<64x1xf32>
    %141 = arith.mulf %137, %140 : vector<64x1xf32>
    %142 = arith.mulf %139, %139 : vector<64x1xf32>
    %143 = arith.subf %141, %142 : vector<64x1xf32>
    %144 = vector.broadcast %139 : vector<64x1xf32> to vector<64x32xf32>
    %145 = arith.subf %124, %144 : vector<64x32xf32>
    %cst_70 = arith.constant 9.99999974E-6 : f32
    %146 = vector.broadcast %cst_70 : f32 to vector<64x1xf32>
    %147 = arith.addf %143, %146 : vector<64x1xf32>
    %148 = math.rsqrt %147 : vector<64x1xf32>
    %149 = vector.broadcast %148 : vector<64x1xf32> to vector<64x32xf32>
    %150 = arith.mulf %145, %149 : vector<64x32xf32>
    %151 = vector.extract_strided_slice %132 {offsets = [0, 0], sizes = [1, 32], strides = [1, 1]} : vector<3x128xf32> to vector<1x32xf32>
    %cst_71 = arith.constant dense<0.000000e+00> : vector<64x32xf32>
    %152 = tpu.matmul %150, %126, %cst_71 {dimension_numbers = #tpu.dot_dimension_numbers<[1], [0], [0], [1], [0, 0, 1, 1], [], []>} : vector<64x32xf32>, vector<32x32xf32>, vector<64x32xf32> -> vector<64x32xf32>
    %153 = vector.broadcast %151 : vector<1x32xf32> to vector<64x32xf32>
    %154 = arith.addf %152, %153 : vector<64x32xf32>
    %155 = arith.addf %124, %154 : vector<64x32xf32>
    %cst_72 = arith.constant dense<0.000000e+00> : vector<64xf32>
    %156 = vector.multi_reduction <add>, %155, %cst_72 [1] : vector<64x32xf32> to vector<64xf32>
    %157 = vector.shape_cast %156 : vector<64xf32> to vector<64x1xf32>
    %158 = arith.mulf %155, %155 : vector<64x32xf32>
    %cst_73 = arith.constant dense<0.000000e+00> : vector<64xf32>
    %159 = vector.multi_reduction <add>, %158, %cst_73 [1] : vector<64x32xf32> to vector<64xf32>
    %160 = vector.shape_cast %159 : vector<64xf32> to vector<64x1xf32>
    %cst_74 = arith.constant 3.125000e-02 : f32
    %161 = vector.broadcast %cst_74 : f32 to vector<64x1xf32>
    %162 = arith.mulf %157, %161 : vector<64x1xf32>
    %cst_75 = arith.constant 3.125000e-02 : f32
    %163 = vector.broadcast %cst_75 : f32 to vector<64x1xf32>
    %164 = arith.mulf %160, %163 : vector<64x1xf32>
    %165 = arith.mulf %162, %162 : vector<64x1xf32>
    %166 = arith.subf %164, %165 : vector<64x1xf32>
    %167 = vector.broadcast %162 : vector<64x1xf32> to vector<64x32xf32>
    %168 = arith.subf %155, %167 : vector<64x32xf32>
    %cst_76 = arith.constant 9.99999974E-6 : f32
    %169 = vector.broadcast %cst_76 : f32 to vector<64x1xf32>
    %170 = arith.addf %166, %169 : vector<64x1xf32>
    %171 = math.rsqrt %170 : vector<64x1xf32>
    %172 = vector.broadcast %171 : vector<64x1xf32> to vector<64x32xf32>
    %173 = arith.mulf %168, %172 : vector<64x32xf32>
    %174 = vector.extract_strided_slice %132 {offsets = [2, 0], sizes = [1, 128], strides = [1, 1]} : vector<3x128xf32> to vector<1x128xf32>
    %cst_77 = arith.constant dense<0.000000e+00> : vector<64x128xf32>
    %175 = tpu.matmul %173, %128, %cst_77 {dimension_numbers = #tpu.dot_dimension_numbers<[1], [0], [0], [1], [0, 0, 1, 1], [], []>} : vector<64x32xf32>, vector<32x128xf32>, vector<64x128xf32> -> vector<64x128xf32>
    %176 = vector.broadcast %174 : vector<1x128xf32> to vector<64x128xf32>
    %177 = arith.addf %175, %176 : vector<64x128xf32>
    %cst_78 = arith.constant 0.000000e+00 : f32
    %178 = vector.broadcast %cst_78 : f32 to vector<64x128xf32>
    %179 = arith.maximumf %177, %178 : vector<64x128xf32>
    %180 = vector.extract_strided_slice %132 {offsets = [1, 0], sizes = [1, 32], strides = [1, 1]} : vector<3x128xf32> to vector<1x32xf32>
    %cst_79 = arith.constant dense<0.000000e+00> : vector<64x32xf32>
    %181 = tpu.matmul %179, %130, %cst_79 {dimension_numbers = #tpu.dot_dimension_numbers<[1], [0], [0], [1], [0, 0, 1, 1], [], []>} : vector<64x128xf32>, vector<128x32xf32>, vector<64x32xf32> -> vector<64x32xf32>
    %182 = vector.broadcast %180 : vector<1x32xf32> to vector<64x32xf32>
    %183 = arith.addf %181, %182 : vector<64x32xf32>
    %184 = arith.addf %155, %183 : vector<64x32xf32>
    %c3 = arith.constant 3 : index
    %c0_80 = arith.constant 0 : index
    %c0_81 = arith.constant 0 : index
    %185 = vector.load %arg5[%c3, %c0_80, %c0_81] : memref<4x32x32xf32, #tpu.memory_space<vmem>>, vector<1x32x32xf32>
    %186 = vector.shape_cast %185 : vector<1x32x32xf32> to vector<32x32xf32>
    %c3_82 = arith.constant 3 : index
    %c0_83 = arith.constant 0 : index
    %c0_84 = arith.constant 0 : index
    %187 = vector.load %arg6[%c3_82, %c0_83, %c0_84] : memref<4x32x128xf32, #tpu.memory_space<vmem>>, vector<1x32x128xf32>
    %188 = vector.shape_cast %187 : vector<1x32x128xf32> to vector<32x128xf32>
    %c3_85 = arith.constant 3 : index
    %c0_86 = arith.constant 0 : index
    %c0_87 = arith.constant 0 : index
    %189 = vector.load %arg7[%c3_85, %c0_86, %c0_87] : memref<4x128x32xf32, #tpu.memory_space<vmem>>, vector<1x128x32xf32>
    %190 = vector.shape_cast %189 : vector<1x128x32xf32> to vector<128x32xf32>
    %c3_88 = arith.constant 3 : index
    %c0_89 = arith.constant 0 : index
    %c0_90 = arith.constant 0 : index
    %191 = vector.load %arg8[%c3_88, %c0_89, %c0_90] : memref<4x3x128xf32, #tpu.memory_space<vmem>>, vector<1x3x128xf32>
    %192 = vector.shape_cast %191 : vector<1x3x128xf32> to vector<3x128xf32>
    %cst_91 = arith.constant dense<0.000000e+00> : vector<64xf32>
    %193 = vector.multi_reduction <add>, %184, %cst_91 [1] : vector<64x32xf32> to vector<64xf32>
    %194 = vector.shape_cast %193 : vector<64xf32> to vector<64x1xf32>
    %195 = arith.mulf %184, %184 : vector<64x32xf32>
    %cst_92 = arith.constant dense<0.000000e+00> : vector<64xf32>
    %196 = vector.multi_reduction <add>, %195, %cst_92 [1] : vector<64x32xf32> to vector<64xf32>
    %197 = vector.shape_cast %196 : vector<64xf32> to vector<64x1xf32>
    %cst_93 = arith.constant 3.125000e-02 : f32
    %198 = vector.broadcast %cst_93 : f32 to vector<64x1xf32>
    %199 = arith.mulf %194, %198 : vector<64x1xf32>
    %cst_94 = arith.constant 3.125000e-02 : f32
    %200 = vector.broadcast %cst_94 : f32 to vector<64x1xf32>
    %201 = arith.mulf %197, %200 : vector<64x1xf32>
    %202 = arith.mulf %199, %199 : vector<64x1xf32>
    %203 = arith.subf %201, %202 : vector<64x1xf32>
    %204 = vector.broadcast %199 : vector<64x1xf32> to vector<64x32xf32>
    %205 = arith.subf %184, %204 : vector<64x32xf32>
    %cst_95 = arith.constant 9.99999974E-6 : f32
    %206 = vector.broadcast %cst_95 : f32 to vector<64x1xf32>
    %207 = arith.addf %203, %206 : vector<64x1xf32>
    %208 = math.rsqrt %207 : vector<64x1xf32>
    %209 = vector.broadcast %208 : vector<64x1xf32> to vector<64x32xf32>
    %210 = arith.mulf %205, %209 : vector<64x32xf32>
    %211 = vector.extract_strided_slice %192 {offsets = [0, 0], sizes = [1, 32], strides = [1, 1]} : vector<3x128xf32> to vector<1x32xf32>
    %cst_96 = arith.constant dense<0.000000e+00> : vector<64x32xf32>
    %212 = tpu.matmul %210, %186, %cst_96 {dimension_numbers = #tpu.dot_dimension_numbers<[1], [0], [0], [1], [0, 0, 1, 1], [], []>} : vector<64x32xf32>, vector<32x32xf32>, vector<64x32xf32> -> vector<64x32xf32>
    %213 = vector.broadcast %211 : vector<1x32xf32> to vector<64x32xf32>
    %214 = arith.addf %212, %213 : vector<64x32xf32>
    %215 = arith.addf %184, %214 : vector<64x32xf32>
    %cst_97 = arith.constant dense<0.000000e+00> : vector<64xf32>
    %216 = vector.multi_reduction <add>, %215, %cst_97 [1] : vector<64x32xf32> to vector<64xf32>
    %217 = vector.shape_cast %216 : vector<64xf32> to vector<64x1xf32>
    %218 = arith.mulf %215, %215 : vector<64x32xf32>
    %cst_98 = arith.constant dense<0.000000e+00> : vector<64xf32>
    %219 = vector.multi_reduction <add>, %218, %cst_98 [1] : vector<64x32xf32> to vector<64xf32>
    %220 = vector.shape_cast %219 : vector<64xf32> to vector<64x1xf32>
    %cst_99 = arith.constant 3.125000e-02 : f32
    %221 = vector.broadcast %cst_99 : f32 to vector<64x1xf32>
    %222 = arith.mulf %217, %221 : vector<64x1xf32>
    %cst_100 = arith.constant 3.125000e-02 : f32
    %223 = vector.broadcast %cst_100 : f32 to vector<64x1xf32>
    %224 = arith.mulf %220, %223 : vector<64x1xf32>
    %225 = arith.mulf %222, %222 : vector<64x1xf32>
    %226 = arith.subf %224, %225 : vector<64x1xf32>
    %227 = vector.broadcast %222 : vector<64x1xf32> to vector<64x32xf32>
    %228 = arith.subf %215, %227 : vector<64x32xf32>
    %cst_101 = arith.constant 9.99999974E-6 : f32
    %229 = vector.broadcast %cst_101 : f32 to vector<64x1xf32>
    %230 = arith.addf %226, %229 : vector<64x1xf32>
    %231 = math.rsqrt %230 : vector<64x1xf32>
    %232 = vector.broadcast %231 : vector<64x1xf32> to vector<64x32xf32>
    %233 = arith.mulf %228, %232 : vector<64x32xf32>
    %234 = vector.extract_strided_slice %192 {offsets = [2, 0], sizes = [1, 128], strides = [1, 1]} : vector<3x128xf32> to vector<1x128xf32>
    %cst_102 = arith.constant dense<0.000000e+00> : vector<64x128xf32>
    %235 = tpu.matmul %233, %188, %cst_102 {dimension_numbers = #tpu.dot_dimension_numbers<[1], [0], [0], [1], [0, 0, 1, 1], [], []>} : vector<64x32xf32>, vector<32x128xf32>, vector<64x128xf32> -> vector<64x128xf32>
    %236 = vector.broadcast %234 : vector<1x128xf32> to vector<64x128xf32>
    %237 = arith.addf %235, %236 : vector<64x128xf32>
    %cst_103 = arith.constant 0.000000e+00 : f32
    %238 = vector.broadcast %cst_103 : f32 to vector<64x128xf32>
    %239 = arith.maximumf %237, %238 : vector<64x128xf32>
    %240 = vector.extract_strided_slice %192 {offsets = [1, 0], sizes = [1, 32], strides = [1, 1]} : vector<3x128xf32> to vector<1x32xf32>
    %cst_104 = arith.constant dense<0.000000e+00> : vector<64x32xf32>
    %241 = tpu.matmul %239, %190, %cst_104 {dimension_numbers = #tpu.dot_dimension_numbers<[1], [0], [0], [1], [0, 0, 1, 1], [], []>} : vector<64x128xf32>, vector<128x32xf32>, vector<64x32xf32> -> vector<64x32xf32>
    %242 = vector.broadcast %240 : vector<1x32xf32> to vector<64x32xf32>
    %243 = arith.addf %241, %242 : vector<64x32xf32>
    %244 = arith.addf %215, %243 : vector<64x32xf32>
    %c0_105 = arith.constant 0 : index
    %c0_106 = arith.constant 0 : index
    %245 = vector.load %arg12[%c0_105, %c0_106] : memref<64x32xf32, #tpu.memory_space<vmem>>, vector<64x32xf32>
    tpu.vector_store %arg12[%c0_105, %c0_106], %244 {strides = array<i32>} : memref<64x32xf32, #tpu.memory_space<vmem>>, vector<64x32xf32>,
    %c0_i32_107 = arith.constant 0 : i32
    %246 = arith.cmpi eq, %arg1, %c0_i32_107 : i32
    %247 = arith.extui %246 : i1 to i32
    %c0_i32_108 = arith.constant 0 : i32
    %248 = arith.cmpi ne, %247, %c0_i32_108 : i32
    scf.if %248 {
      %c0_109 = arith.constant 0 : index
      %c0_110 = arith.constant 0 : index
      %249 = vector.load %arg9[%c0_109, %c0_110] : memref<32x16xf32, #tpu.memory_space<vmem>>, vector<32x16xf32>
      %250 = vector.extract_strided_slice %0 {offsets = [4, 0], sizes = [1, 16], strides = [1, 1]} : vector<11x32xf32> to vector<1x16xf32>
      %cst_111 = arith.constant dense<0.000000e+00> : vector<64x16xf32>
      %251 = tpu.matmul %244, %249, %cst_111 {dimension_numbers = #tpu.dot_dimension_numbers<[1], [0], [0], [1], [0, 0, 1, 1], [], []>} : vector<64x32xf32>, vector<32x16xf32>, vector<64x16xf32> -> vector<64x16xf32>
      %252 = vector.broadcast %250 : vector<1x16xf32> to vector<64x16xf32>
      %253 = arith.addf %251, %252 : vector<64x16xf32>
      %cst_112 = arith.constant dense<0.000000e+00> : vector<64xf32>
      %254 = vector.multi_reduction <add>, %253, %cst_112 [1] : vector<64x16xf32> to vector<64xf32>
      %255 = vector.shape_cast %254 : vector<64xf32> to vector<64x1xf32>
      %256 = arith.mulf %253, %253 : vector<64x16xf32>
      %cst_113 = arith.constant dense<0.000000e+00> : vector<64xf32>
      %257 = vector.multi_reduction <add>, %256, %cst_113 [1] : vector<64x16xf32> to vector<64xf32>
      %258 = vector.shape_cast %257 : vector<64xf32> to vector<64x1xf32>
      %cst_114 = arith.constant 6.250000e-02 : f32
      %259 = vector.broadcast %cst_114 : f32 to vector<64x1xf32>
      %260 = arith.mulf %255, %259 : vector<64x1xf32>
      %cst_115 = arith.constant 6.250000e-02 : f32
      %261 = vector.broadcast %cst_115 : f32 to vector<64x1xf32>
      %262 = arith.mulf %258, %261 : vector<64x1xf32>
      %263 = arith.mulf %260, %260 : vector<64x1xf32>
      %264 = arith.subf %262, %263 : vector<64x1xf32>
      %265 = vector.broadcast %260 : vector<64x1xf32> to vector<64x16xf32>
      %266 = arith.subf %253, %265 : vector<64x16xf32>
      %cst_116 = arith.constant 9.99999974E-6 : f32
      %267 = vector.broadcast %cst_116 : f32 to vector<64x1xf32>
      %268 = arith.addf %264, %267 : vector<64x1xf32>
      %269 = math.rsqrt %268 : vector<64x1xf32>
      %270 = vector.broadcast %269 : vector<64x1xf32> to vector<64x16xf32>
      %271 = arith.mulf %266, %270 : vector<64x16xf32>
      %272 = vector.extract_strided_slice %0 {offsets = [5, 0], sizes = [1, 16], strides = [1, 1]} : vector<11x32xf32> to vector<1x16xf32>
      %273 = vector.broadcast %272 : vector<1x16xf32> to vector<64x16xf32>
      %274 = arith.mulf %271, %273 : vector<64x16xf32>
      %275 = vector.extract_strided_slice %0 {offsets = [6, 0], sizes = [1, 16], strides = [1, 1]} : vector<11x32xf32> to vector<1x16xf32>
      %276 = vector.broadcast %275 : vector<1x16xf32> to vector<64x16xf32>
      %277 = arith.addf %274, %276 : vector<64x16xf32>
      %cst_117 = arith.constant 0.000000e+00 : f32
      %278 = vector.broadcast %cst_117 : f32 to vector<64x16xf32>
      %279 = arith.maximumf %277, %278 : vector<64x16xf32>
      %c0_118 = arith.constant 0 : index
      %c0_119 = arith.constant 0 : index
      %280 = vector.load %arg10[%c0_118, %c0_119] : memref<16x8xf32, #tpu.memory_space<vmem>>, vector<16x8xf32>
      %281 = vector.extract_strided_slice %0 {offsets = [7, 0], sizes = [1, 8], strides = [1, 1]} : vector<11x32xf32> to vector<1x8xf32>
      %cst_120 = arith.constant dense<0.000000e+00> : vector<64x8xf32>
      %282 = tpu.matmul %279, %280, %cst_120 {dimension_numbers = #tpu.dot_dimension_numbers<[1], [0], [0], [1], [0, 0, 1, 1], [], []>} : vector<64x16xf32>, vector<16x8xf32>, vector<64x8xf32> -> vector<64x8xf32>
      %283 = vector.broadcast %281 : vector<1x8xf32> to vector<64x8xf32>
      %284 = arith.addf %282, %283 : vector<64x8xf32>
      %cst_121 = arith.constant 0.000000e+00 : f32
      %285 = vector.broadcast %cst_121 : f32 to vector<64x8xf32>
      %286 = arith.maximumf %284, %285 : vector<64x8xf32>
      %287 = vector.extract_strided_slice %0 {offsets = [8, 0], sizes = [1, 8], strides = [1, 1]} : vector<11x32xf32> to vector<1x8xf32>
      %288 = vector.broadcast %287 : vector<1x8xf32> to vector<64x8xf32>
      %289 = arith.mulf %286, %288 : vector<64x8xf32>
      %cst_122 = arith.constant dense<0.000000e+00> : vector<64xf32>
      %290 = vector.multi_reduction <add>, %289, %cst_122 [1] : vector<64x8xf32> to vector<64xf32>
      %291 = vector.shape_cast %290 : vector<64xf32> to vector<64x1xf32>
      %292 = vector.extract_strided_slice %0 {offsets = [10, 0], sizes = [1, 1], strides = [1, 1]} : vector<11x32xf32> to vector<1x1xf32>
      %293 = vector.broadcast %292 : vector<1x1xf32> to vector<64x1xf32>
      %294 = arith.addf %291, %293 : vector<64x1xf32>
      %c0_123 = arith.constant 0 : index
      %c0_124 = arith.constant 0 : index
      %295 = vector.load %arg2[%c0_123, %c0_124] : memref<64x16xf32, #tpu.memory_space<vmem>>, vector<64x16xf32>
      %296 = vector.extract_strided_slice %0 {offsets = [9, 0], sizes = [1, 16], strides = [1, 1]} : vector<11x32xf32> to vector<1x16xf32>
      %297 = vector.broadcast %296 : vector<1x16xf32> to vector<64x16xf32>
      %298 = arith.mulf %295, %297 : vector<64x16xf32>
      %cst_125 = arith.constant dense<0.000000e+00> : vector<64xf32>
      %299 = vector.multi_reduction <add>, %298, %cst_125 [1] : vector<64x16xf32> to vector<64xf32>
      %300 = vector.shape_cast %299 : vector<64xf32> to vector<64x1xf32>
      %301 = vector.extract_strided_slice %0 {offsets = [10, 1], sizes = [1, 1], strides = [1, 1]} : vector<11x32xf32> to vector<1x1xf32>
      %302 = vector.broadcast %301 : vector<1x1xf32> to vector<64x1xf32>
      %303 = arith.addf %300, %302 : vector<64x1xf32>
      %304 = arith.addf %294, %303 : vector<64x1xf32>
      %305 = vector.shape_cast %304 : vector<64x1xf32> to vector<1x64xf32>
      %c0_126 = arith.constant 0 : index
      %c0_127 = arith.constant 0 : index
      %306 = vector.load %arg11[%c0_126, %c0_127] : memref<1x64xf32, #tpu.memory_space<vmem>>, vector<1x64xf32>
      tpu.vector_store %arg11[%c0_126, %c0_127], %305 {strides = array<i32>} : memref<1x64xf32, #tpu.memory_space<vmem>>, vector<1x64xf32>,
    } else {
    }
    return
  }
  func.func @transform_0(%arg0: i32, %arg1: i32) -> (i32, i32) {
    %c0_i32 = arith.constant 0 : i32
    %c0_i32_0 = arith.constant 0 : i32
    return %arg0, %c0_i32 : i32, i32
  }
  func.func @transform_1(%arg0: i32, %arg1: i32) -> (i32, i32) {
    %c0_i32 = arith.constant 0 : i32
    %c0_i32_0 = arith.constant 0 : i32
    %c0_i32_1 = arith.constant 0 : i32
    return %c0_i32, %c0_i32_0 : i32, i32
  }
  func.func @transform_2(%arg0: i32, %arg1: i32) -> (i32, i32) {
    %c0_i32 = arith.constant 0 : i32
    %c0_i32_0 = arith.constant 0 : i32
    %c0_i32_1 = arith.constant 0 : i32
    return %c0_i32, %c0_i32_0 : i32, i32
  }
  func.func @transform_3(%arg0: i32, %arg1: i32) -> (i32, i32, i32) {
    %c0_i32 = arith.constant 0 : i32
    %c0_i32_0 = arith.constant 0 : i32
    %c0_i32_1 = arith.constant 0 : i32
    %c0_i32_2 = arith.constant 0 : i32
    return %c0_i32, %c0_i32_0, %c0_i32_1 : i32, i32, i32
  }
  func.func @transform_4(%arg0: i32, %arg1: i32) -> (i32, i32, i32) {
    %c0_i32 = arith.constant 0 : i32
    %c0_i32_0 = arith.constant 0 : i32
    %c0_i32_1 = arith.constant 0 : i32
    %c0_i32_2 = arith.constant 0 : i32
    return %c0_i32, %c0_i32_0, %c0_i32_1 : i32, i32, i32
  }
  func.func @transform_5(%arg0: i32, %arg1: i32) -> (i32, i32, i32) {
    %c0_i32 = arith.constant 0 : i32
    %c0_i32_0 = arith.constant 0 : i32
    %c0_i32_1 = arith.constant 0 : i32
    %c0_i32_2 = arith.constant 0 : i32
    return %c0_i32, %c0_i32_0, %c0_i32_1 : i32, i32, i32
  }
  func.func @transform_6(%arg0: i32, %arg1: i32) -> (i32, i32, i32) {
    %c0_i32 = arith.constant 0 : i32
    %c0_i32_0 = arith.constant 0 : i32
    %c0_i32_1 = arith.constant 0 : i32
    %c0_i32_2 = arith.constant 0 : i32
    return %c0_i32, %c0_i32_0, %c0_i32_1 : i32, i32, i32
  }
  func.func @transform_7(%arg0: i32, %arg1: i32) -> (i32, i32) {
    %c0_i32 = arith.constant 0 : i32
    %c0_i32_0 = arith.constant 0 : i32
    %c0_i32_1 = arith.constant 0 : i32
    return %c0_i32, %c0_i32_0 : i32, i32
  }
  func.func @transform_8(%arg0: i32, %arg1: i32) -> (i32, i32) {
    %c0_i32 = arith.constant 0 : i32
    %c0_i32_0 = arith.constant 0 : i32
    %c0_i32_1 = arith.constant 0 : i32
    return %c0_i32, %c0_i32_0 : i32, i32
  }
  func.func @transform_9(%arg0: i32, %arg1: i32) -> (i32, i32) {
    %c0_i32 = arith.constant 0 : i32
    %c0_i32_0 = arith.constant 0 : i32
    return %c0_i32, %arg0 : i32, i32
  }
}

module attributes {stable_mosaic.version = 11 : i64} {
  func.func @cognitive_age_kernel(%arg0: i32, %arg1: i32, %arg2: memref<64x16xf32, #tpu.memory_space<vmem>>, %arg3: memref<11x32xf32, #tpu.memory_space<vmem>>, %arg4: memref<16x32xf32, #tpu.memory_space<vmem>>, %arg5: memref<4x32x32xf32, #tpu.memory_space<vmem>>, %arg6: memref<4x32x128xf32, #tpu.memory_space<vmem>>, %arg7: memref<4x128x32xf32, #tpu.memory_space<vmem>>, %arg8: memref<4x3x128xf32, #tpu.memory_space<vmem>>, %arg9: memref<32x16xf32, #tpu.memory_space<vmem>>, %arg10: memref<16x8xf32, #tpu.memory_space<vmem>>, %arg11: memref<64x1xf32, #tpu.memory_space<vmem>>, %arg12: memref<64x32xf32, #tpu.memory_space<vmem>>) attributes {dimension_semantics = [#tpu.dimension_semantics<parallel>, #tpu.dimension_semantics<arbitrary>], iteration_bounds = array<i64: 1, 1>, scalar_prefetch = 0 : i64, scratch_operands = 1 : i64, tpu.core_type = #tpu.core_type<tc>, window_params = [{transform_indices = @transform_0, window_bounds = array<i64: 64, 16>}, {pipeline_mode = #tpu.pipeline_mode<synchronous>, transform_indices = @transform_1, window_bounds = array<i64: 11, 32>}, {pipeline_mode = #tpu.pipeline_mode<synchronous>, transform_indices = @transform_2, window_bounds = array<i64: 16, 32>}, {pipeline_mode = #tpu.pipeline_mode<synchronous>, transform_indices = @transform_3, window_bounds = array<i64: 4, 32, 32>}, {pipeline_mode = #tpu.pipeline_mode<synchronous>, transform_indices = @transform_4, window_bounds = array<i64: 4, 32, 128>}, {pipeline_mode = #tpu.pipeline_mode<synchronous>, transform_indices = @transform_5, window_bounds = array<i64: 4, 128, 32>}, {pipeline_mode = #tpu.pipeline_mode<synchronous>, transform_indices = @transform_6, window_bounds = array<i64: 4, 3, 128>}, {pipeline_mode = #tpu.pipeline_mode<synchronous>, transform_indices = @transform_7, window_bounds = array<i64: 32, 16>}, {pipeline_mode = #tpu.pipeline_mode<synchronous>, transform_indices = @transform_8, window_bounds = array<i64: 16, 8>}, {transform_indices = @transform_9, window_bounds = array<i64: 64, 1>}]} {
    %c0 = arith.constant 0 : index
    %c0_0 = arith.constant 0 : index
    %0 = vector.load %arg3[%c0, %c0_0] : memref<11x32xf32, #tpu.memory_space<vmem>>, vector<11x32xf32>
    %c0_i32 = arith.constant 0 : i32
    %1 = arith.cmpi eq, %arg1, %c0_i32 : i32
    %2 = arith.extui %1 : i1 to i32
    %cst = arith.constant 3.125000e-02 : f32
    %c0_i32_1 = arith.constant 0 : i32
    %3 = arith.cmpi ne, %2, %c0_i32_1 : i32
    scf.if %3 {
      %c0_109 = arith.constant 0 : index
      %c0_110 = arith.constant 0 : index
      %249 = vector.load %arg2[%c0_109, %c0_110] : memref<64x16xf32, #tpu.memory_space<vmem>>, vector<64x16xf32>
      %c0_111 = arith.constant 0 : index
      %c0_112 = arith.constant 0 : index
      %250 = vector.load %arg4[%c0_111, %c0_112] : memref<16x32xf32, #tpu.memory_space<vmem>>, vector<16x32xf32>
      %251 = vector.extract_strided_slice %0 {offsets = [0, 0], sizes = [1, 32], strides = [1, 1]} : vector<11x32xf32> to vector<1x32xf32>
      %cst_113 = arith.constant dense<0.000000e+00> : vector<64x32xf32>
      %252 = tpu.matmul %249, %250, %cst_113 {dimension_numbers = #tpu.dot_dimension_numbers<[1], [0], [0], [1], [0, 0, 1, 1], [], []>} : vector<64x16xf32>, vector<16x32xf32>, vector<64x32xf32> -> vector<64x32xf32>
      %253 = vector.broadcast %251 : vector<1x32xf32> to vector<64x32xf32>
      %254 = arith.addf %252, %253 : vector<64x32xf32>
      %cst_114 = arith.constant dense<0.000000e+00> : vector<64xf32>
      %255 = vector.multi_reduction <add>, %254, %cst_114 [1] : vector<64x32xf32> to vector<64xf32>
      %256 = vector.shape_cast %255 : vector<64xf32> to vector<64x1xf32>
      %257 = arith.mulf %254, %254 : vector<64x32xf32>
      %cst_115 = arith.constant dense<0.000000e+00> : vector<64xf32>
      %258 = vector.multi_reduction <add>, %257, %cst_115 [1] : vector<64x32xf32> to vector<64xf32>
      %259 = vector.shape_cast %258 : vector<64xf32> to vector<64x1xf32>
      %260 = vector.broadcast %cst : f32 to vector<64x1xf32>
      %261 = arith.mulf %256, %260 : vector<64x1xf32>
      %262 = vector.broadcast %cst : f32 to vector<64x1xf32>
      %263 = arith.mulf %259, %262 : vector<64x1xf32>
      %264 = arith.mulf %261, %261 : vector<64x1xf32>
      %265 = arith.subf %263, %264 : vector<64x1xf32>
      %266 = vector.broadcast %261 : vector<64x1xf32> to vector<64x32xf32>
      %267 = arith.subf %254, %266 : vector<64x32xf32>
      %cst_116 = arith.constant 9.99999974E-6 : f32
      %268 = vector.broadcast %cst_116 : f32 to vector<64x1xf32>
      %269 = arith.addf %265, %268 : vector<64x1xf32>
      %270 = math.rsqrt %269 : vector<64x1xf32>
      %271 = vector.broadcast %270 : vector<64x1xf32> to vector<64x32xf32>
      %272 = arith.mulf %267, %271 : vector<64x32xf32>
      %273 = vector.extract_strided_slice %0 {offsets = [1, 0], sizes = [1, 32], strides = [1, 1]} : vector<11x32xf32> to vector<1x32xf32>
      %274 = vector.broadcast %273 : vector<1x32xf32> to vector<64x32xf32>
      %275 = arith.mulf %272, %274 : vector<64x32xf32>
      %276 = vector.extract_strided_slice %0 {offsets = [2, 0], sizes = [1, 32], strides = [1, 1]} : vector<11x32xf32> to vector<1x32xf32>
      %277 = vector.broadcast %276 : vector<1x32xf32> to vector<64x32xf32>
      %278 = arith.addf %275, %277 : vector<64x32xf32>
      %cst_117 = arith.constant 0.000000e+00 : f32
      %279 = vector.broadcast %cst_117 : f32 to vector<64x32xf32>
      %280 = arith.maximumf %278, %279 : vector<64x32xf32>
      %281 = vector.extract_strided_slice %0 {offsets = [3, 0], sizes = [1, 32], strides = [1, 1]} : vector<11x32xf32> to vector<1x32xf32>
      %282 = vector.broadcast %281 : vector<1x32xf32> to vector<64x32xf32>
      %283 = arith.addf %280, %282 : vector<64x32xf32>
      %c0_118 = arith.constant 0 : index
      %c0_119 = arith.constant 0 : index
      %284 = vector.load %arg12[%c0_118, %c0_119] : memref<64x32xf32, #tpu.memory_space<vmem>>, vector<64x32xf32>
      tpu.vector_store %arg12[%c0_118, %c0_119], %283 {strides = array<i32>} : memref<64x32xf32, #tpu.memory_space<vmem>>, vector<64x32xf32>,
    } else {
    }
    %c0_2 = arith.constant 0 : index
    %c0_3 = arith.constant 0 : index
    %4 = vector.load %arg12[%c0_2, %c0_3] : memref<64x32xf32, #tpu.memory_space<vmem>>, vector<64x32xf32>
    %c0_4 = arith.constant 0 : index
    %c0_5 = arith.constant 0 : index
    %c0_6 = arith.constant 0 : index
    %5 = vector.load %arg5[%c0_4, %c0_5, %c0_6] : memref<4x32x32xf32, #tpu.memory_space<vmem>>, vector<1x32x32xf32>
    %6 = vector.shape_cast %5 : vector<1x32x32xf32> to vector<32x32xf32>
    %c0_7 = arith.constant 0 : index
    %c0_8 = arith.constant 0 : index
    %c0_9 = arith.constant 0 : index
    %7 = vector.load %arg6[%c0_7, %c0_8, %c0_9] : memref<4x32x128xf32, #tpu.memory_space<vmem>>, vector<1x32x128xf32>
    %8 = vector.shape_cast %7 : vector<1x32x128xf32> to vector<32x128xf32>
    %c0_10 = arith.constant 0 : index
    %c0_11 = arith.constant 0 : index
    %c0_12 = arith.constant 0 : index
    %9 = vector.load %arg7[%c0_10, %c0_11, %c0_12] : memref<4x128x32xf32, #tpu.memory_space<vmem>>, vector<1x128x32xf32>
    %10 = vector.shape_cast %9 : vector<1x128x32xf32> to vector<128x32xf32>
    %c0_13 = arith.constant 0 : index
    %c0_14 = arith.constant 0 : index
    %c0_15 = arith.constant 0 : index
    %11 = vector.load %arg8[%c0_13, %c0_14, %c0_15] : memref<4x3x128xf32, #tpu.memory_space<vmem>>, vector<1x3x128xf32>
    %12 = vector.shape_cast %11 : vector<1x3x128xf32> to vector<3x128xf32>
    %cst_16 = arith.constant dense<0.000000e+00> : vector<64xf32>
    %13 = vector.multi_reduction <add>, %4, %cst_16 [1] : vector<64x32xf32> to vector<64xf32>
    %14 = vector.shape_cast %13 : vector<64xf32> to vector<64x1xf32>
    %15 = arith.mulf %4, %4 : vector<64x32xf32>
    %cst_17 = arith.constant dense<0.000000e+00> : vector<64xf32>
    %16 = vector.multi_reduction <add>, %15, %cst_17 [1] : vector<64x32xf32> to vector<64xf32>
    %17 = vector.shape_cast %16 : vector<64xf32> to vector<64x1xf32>
    %cst_18 = arith.constant 3.125000e-02 : f32
    %18 = vector.broadcast %cst_18 : f32 to vector<64x1xf32>
    %19 = arith.mulf %14, %18 : vector<64x1xf32>
    %cst_19 = arith.constant 3.125000e-02 : f32
    %20 = vector.broadcast %cst_19 : f32 to vector<64x1xf32>
    %21 = arith.mulf %17, %20 : vector<64x1xf32>
    %22 = arith.mulf %19, %19 : vector<64x1xf32>
    %23 = arith.subf %21, %22 : vector<64x1xf32>
    %24 = vector.broadcast %19 : vector<64x1xf32> to vector<64x32xf32>
    %25 = arith.subf %4, %24 : vector<64x32xf32>
    %cst_20 = arith.constant 9.99999974E-6 : f32
    %26 = vector.broadcast %cst_20 : f32 to vector<64x1xf32>
    %27 = arith.addf %23, %26 : vector<64x1xf32>
    %28 = math.rsqrt %27 : vector<64x1xf32>
    %29 = vector.broadcast %28 : vector<64x1xf32> to vector<64x32xf32>
    %30 = arith.mulf %25, %29 : vector<64x32xf32>
    %31 = vector.extract_strided_slice %12 {offsets = [0, 0], sizes = [1, 32], strides = [1, 1]} : vector<3x128xf32> to vector<1x32xf32>
    %cst_21 = arith.constant dense<0.000000e+00> : vector<64x32xf32>
    %32 = tpu.matmul %30, %6, %cst_21 {dimension_numbers = #tpu.dot_dimension_numbers<[1], [0], [0], [1], [0, 0, 1, 1], [], []>} : vector<64x32xf32>, vector<32x32xf32>, vector<64x32xf32> -> vector<64x32xf32>
    %33 = vector.broadcast %31 : vector<1x32xf32> to vector<64x32xf32>
    %34 = arith.addf %32, %33 : vector<64x32xf32>
    %35 = arith.addf %4, %34 : vector<64x32xf32>
    %cst_22 = arith.constant dense<0.000000e+00> : vector<64xf32>
    %36 = vector.multi_reduction <add>, %35, %cst_22 [1] : vector<64x32xf32> to vector<64xf32>
    %37 = vector.shape_cast %36 : vector<64xf32> to vector<64x1xf32>
    %38 = arith.mulf %35, %35 : vector<64x32xf32>
    %cst_23 = arith.constant dense<0.000000e+00> : vector<64xf32>
    %39 = vector.multi_reduction <add>, %38, %cst_23 [1] : vector<64x32xf32> to vector<64xf32>
    %40 = vector.shape_cast %39 : vector<64xf32> to vector<64x1xf32>
    %cst_24 = arith.constant 3.125000e-02 : f32
    %41 = vector.broadcast %cst_24 : f32 to vector<64x1xf32>
    %42 = arith.mulf %37, %41 : vector<64x1xf32>
    %cst_25 = arith.constant 3.125000e-02 : f32
    %43 = vector.broadcast %cst_25 : f32 to vector<64x1xf32>
    %44 = arith.mulf %40, %43 : vector<64x1xf32>
    %45 = arith.mulf %42, %42 : vector<64x1xf32>
    %46 = arith.subf %44, %45 : vector<64x1xf32>
    %47 = vector.broadcast %42 : vector<64x1xf32> to vector<64x32xf32>
    %48 = arith.subf %35, %47 : vector<64x32xf32>
    %cst_26 = arith.constant 9.99999974E-6 : f32
    %49 = vector.broadcast %cst_26 : f32 to vector<64x1xf32>
    %50 = arith.addf %46, %49 : vector<64x1xf32>
    %51 = math.rsqrt %50 : vector<64x1xf32>
    %52 = vector.broadcast %51 : vector<64x1xf32> to vector<64x32xf32>
    %53 = arith.mulf %48, %52 : vector<64x32xf32>
    %54 = vector.extract_strided_slice %12 {offsets = [2, 0], sizes = [1, 128], strides = [1, 1]} : vector<3x128xf32> to vector<1x128xf32>
    %cst_27 = arith.constant dense<0.000000e+00> : vector<64x128xf32>
    %55 = tpu.matmul %53, %8, %cst_27 {dimension_numbers = #tpu.dot_dimension_numbers<[1], [0], [0], [1], [0, 0, 1, 1], [], []>} : vector<64x32xf32>, vector<32x128xf32>, vector<64x128xf32> -> vector<64x128xf32>
    %56 = vector.broadcast %54 : vector<1x128xf32> to vector<64x128xf32>
    %57 = arith.addf %55, %56 : vector<64x128xf32>
    %cst_28 = arith.constant 0.000000e+00 : f32
    %58 = vector.broadcast %cst_28 : f32 to vector<64x128xf32>
    %59 = arith.maximumf %57, %58 : vector<64x128xf32>
    %60 = vector.extract_strided_slice %12 {offsets = [1, 0], sizes = [1, 32], strides = [1, 1]} : vector<3x128xf32> to vector<1x32xf32>
    %cst_29 = arith.constant dense<0.000000e+00> : vector<64x32xf32>
    %61 = tpu.matmul %59, %10, %cst_29 {dimension_numbers = #tpu.dot_dimension_numbers<[1], [0], [0], [1], [0, 0, 1, 1], [], []>} : vector<64x128xf32>, vector<128x32xf32>, vector<64x32xf32> -> vector<64x32xf32>
    %62 = vector.broadcast %60 : vector<1x32xf32> to vector<64x32xf32>
    %63 = arith.addf %61, %62 : vector<64x32xf32>
    %64 = arith.addf %35, %63 : vector<64x32xf32>
    %c1 = arith.constant 1 : index
    %c0_30 = arith.constant 0 : index
    %c0_31 = arith.constant 0 : index
    %65 = vector.load %arg5[%c1, %c0_30, %c0_31] : memref<4x32x32xf32, #tpu.memory_space<vmem>>, vector<1x32x32xf32>
    %66 = vector.shape_cast %65 : vector<1x32x32xf32> to vector<32x32xf32>
    %c1_32 = arith.constant 1 : index
    %c0_33 = arith.constant 0 : index
    %c0_34 = arith.constant 0 : index
    %67 = vector.load %arg6[%c1_32, %c0_33, %c0_34] : memref<4x32x128xf32, #tpu.memory_space<vmem>>, vector<1x32x128xf32>
    %68 = vector.shape_cast %67 : vector<1x32x128xf32> to vector<32x128xf32>
    %c1_35 = arith.constant 1 : index
    %c0_36 = arith.constant 0 : index
    %c0_37 = arith.constant 0 : index
    %69 = vector.load %arg7[%c1_35, %c0_36, %c0_37] : memref<4x128x32xf32, #tpu.memory_space<vmem>>, vector<1x128x32xf32>
    %70 = vector.shape_cast %69 : vector<1x128x32xf32> to vector<128x32xf32>
    %c1_38 = arith.constant 1 : index
    %c0_39 = arith.constant 0 : index
    %c0_40 = arith.constant 0 : index
    %71 = vector.load %arg8[%c1_38, %c0_39, %c0_40] : memref<4x3x128xf32, #tpu.memory_space<vmem>>, vector<1x3x128xf32>
    %72 = vector.shape_cast %71 : vector<1x3x128xf32> to vector<3x128xf32>
    %cst_41 = arith.constant dense<0.000000e+00> : vector<64xf32>
    %73 = vector.multi_reduction <add>, %64, %cst_41 [1] : vector<64x32xf32> to vector<64xf32>
    %74 = vector.shape_cast %73 : vector<64xf32> to vector<64x1xf32>
    %75 = arith.mulf %64, %64 : vector<64x32xf32>
    %cst_42 = arith.constant dense<0.000000e+00> : vector<64xf32>
    %76 = vector.multi_reduction <add>, %75, %cst_42 [1] : vector<64x32xf32> to vector<64xf32>
    %77 = vector.shape_cast %76 : vector<64xf32> to vector<64x1xf32>
    %cst_43 = arith.constant 3.125000e-02 : f32
    %78 = vector.broadcast %cst_43 : f32 to vector<64x1xf32>
    %79 = arith.mulf %74, %78 : vector<64x1xf32>
    %cst_44 = arith.constant 3.125000e-02 : f32
    %80 = vector.broadcast %cst_44 : f32 to vector<64x1xf32>
    %81 = arith.mulf %77, %80 : vector<64x1xf32>
    %82 = arith.mulf %79, %79 : vector<64x1xf32>
    %83 = arith.subf %81, %82 : vector<64x1xf32>
    %84 = vector.broadcast %79 : vector<64x1xf32> to vector<64x32xf32>
    %85 = arith.subf %64, %84 : vector<64x32xf32>
    %cst_45 = arith.constant 9.99999974E-6 : f32
    %86 = vector.broadcast %cst_45 : f32 to vector<64x1xf32>
    %87 = arith.addf %83, %86 : vector<64x1xf32>
    %88 = math.rsqrt %87 : vector<64x1xf32>
    %89 = vector.broadcast %88 : vector<64x1xf32> to vector<64x32xf32>
    %90 = arith.mulf %85, %89 : vector<64x32xf32>
    %91 = vector.extract_strided_slice %72 {offsets = [0, 0], sizes = [1, 32], strides = [1, 1]} : vector<3x128xf32> to vector<1x32xf32>
    %cst_46 = arith.constant dense<0.000000e+00> : vector<64x32xf32>
    %92 = tpu.matmul %90, %66, %cst_46 {dimension_numbers = #tpu.dot_dimension_numbers<[1], [0], [0], [1], [0, 0, 1, 1], [], []>} : vector<64x32xf32>, vector<32x32xf32>, vector<64x32xf32> -> vector<64x32xf32>
    %93 = vector.broadcast %91 : vector<1x32xf32> to vector<64x32xf32>
    %94 = arith.addf %92, %93 : vector<64x32xf32>
    %95 = arith.addf %64, %94 : vector<64x32xf32>
    %cst_47 = arith.constant dense<0.000000e+00> : vector<64xf32>
    %96 = vector.multi_reduction <add>, %95, %cst_47 [1] : vector<64x32xf32> to vector<64xf32>
    %97 = vector.shape_cast %96 : vector<64xf32> to vector<64x1xf32>
    %98 = arith.mulf %95, %95 : vector<64x32xf32>
    %cst_48 = arith.constant dense<0.000000e+00> : vector<64xf32>
    %99 = vector.multi_reduction <add>, %98, %cst_48 [1] : vector<64x32xf32> to vector<64xf32>
    %100 = vector.shape_cast %99 : vector<64xf32> to vector<64x1xf32>
    %cst_49 = arith.constant 3.125000e-02 : f32
    %101 = vector.broadcast %cst_49 : f32 to vector<64x1xf32>
    %102 = arith.mulf %97, %101 : vector<64x1xf32>
    %cst_50 = arith.constant 3.125000e-02 : f32
    %103 = vector.broadcast %cst_50 : f32 to vector<64x1xf32>
    %104 = arith.mulf %100, %103 : vector<64x1xf32>
    %105 = arith.mulf %102, %102 : vector<64x1xf32>
    %106 = arith.subf %104, %105 : vector<64x1xf32>
    %107 = vector.broadcast %102 : vector<64x1xf32> to vector<64x32xf32>
    %108 = arith.subf %95, %107 : vector<64x32xf32>
    %cst_51 = arith.constant 9.99999974E-6 : f32
    %109 = vector.broadcast %cst_51 : f32 to vector<64x1xf32>
    %110 = arith.addf %106, %109 : vector<64x1xf32>
    %111 = math.rsqrt %110 : vector<64x1xf32>
    %112 = vector.broadcast %111 : vector<64x1xf32> to vector<64x32xf32>
    %113 = arith.mulf %108, %112 : vector<64x32xf32>
    %114 = vector.extract_strided_slice %72 {offsets = [2, 0], sizes = [1, 128], strides = [1, 1]} : vector<3x128xf32> to vector<1x128xf32>
    %cst_52 = arith.constant dense<0.000000e+00> : vector<64x128xf32>
    %115 = tpu.matmul %113, %68, %cst_52 {dimension_numbers = #tpu.dot_dimension_numbers<[1], [0], [0], [1], [0, 0, 1, 1], [], []>} : vector<64x32xf32>, vector<32x128xf32>, vector<64x128xf32> -> vector<64x128xf32>
    %116 = vector.broadcast %114 : vector<1x128xf32> to vector<64x128xf32>
    %117 = arith.addf %115, %116 : vector<64x128xf32>
    %cst_53 = arith.constant 0.000000e+00 : f32
    %118 = vector.broadcast %cst_53 : f32 to vector<64x128xf32>
    %119 = arith.maximumf %117, %118 : vector<64x128xf32>
    %120 = vector.extract_strided_slice %72 {offsets = [1, 0], sizes = [1, 32], strides = [1, 1]} : vector<3x128xf32> to vector<1x32xf32>
    %cst_54 = arith.constant dense<0.000000e+00> : vector<64x32xf32>
    %121 = tpu.matmul %119, %70, %cst_54 {dimension_numbers = #tpu.dot_dimension_numbers<[1], [0], [0], [1], [0, 0, 1, 1], [], []>} : vector<64x128xf32>, vector<128x32xf32>, vector<64x32xf32> -> vector<64x32xf32>
    %122 = vector.broadcast %120 : vector<1x32xf32> to vector<64x32xf32>
    %123 = arith.addf %121, %122 : vector<64x32xf32>
    %124 = arith.addf %95, %123 : vector<64x32xf32>
    %c2 = arith.constant 2 : index
    %c0_55 = arith.constant 0 : index
    %c0_56 = arith.constant 0 : index
    %125 = vector.load %arg5[%c2, %c0_55, %c0_56] : memref<4x32x32xf32, #tpu.memory_space<vmem>>, vector<1x32x32xf32>
    %126 = vector.shape_cast %125 : vector<1x32x32xf32> to vector<32x32xf32>
    %c2_57 = arith.constant 2 : index
    %c0_58 = arith.constant 0 : index
    %c0_59 = arith.constant 0 : index
    %127 = vector.load %arg6[%c2_57, %c0_58, %c0_59] : memref<4x32x128xf32, #tpu.memory_space<vmem>>, vector<1x32x128xf32>
    %128 = vector.shape_cast %127 : vector<1x32x128xf32> to vector<32x128xf32>
    %c2_60 = arith.constant 2 : index
    %c0_61 = arith.constant 0 : index
    %c0_62 = arith.constant 0 : index
    %129 = vector.load %arg7[%c2_60, %c0_61, %c0_62] : memref<4x128x32xf32, #tpu.memory_space<vmem>>, vector<1x128x32xf32>
    %130 = vector.shape_cast %129 : vector<1x128x32xf32> to vector<128x32xf32>
    %c2_63 = arith.constant 2 : index
    %c0_64 = arith.constant 0 : index
    %c0_65 = arith.constant 0 : index
    %131 = vector.load %arg8[%c2_63, %c0_64, %c0_65] : memref<4x3x128xf32, #tpu.memory_space<vmem>>, vector<1x3x128xf32>
    %132 = vector.shape_cast %131 : vector<1x3x128xf32> to vector<3x128xf32>
    %cst_66 = arith.constant dense<0.000000e+00> : vector<64xf32>
    %133 = vector.multi_reduction <add>, %124, %cst_66 [1] : vector<64x32xf32> to vector<64xf32>
    %134 = vector.shape_cast %133 : vector<64xf32> to vector<64x1xf32>
    %135 = arith.mulf %124, %124 : vector<64x32xf32>
    %cst_67 = arith.constant dense<0.000000e+00> : vector<64xf32>
    %136 = vector.multi_reduction <add>, %135, %cst_67 [1] : vector<64x32xf32> to vector<64xf32>
    %137 = vector.shape_cast %136 : vector<64xf32> to vector<64x1xf32>
    %cst_68 = arith.constant 3.125000e-02 : f32
    %138 = vector.broadcast %cst_68 : f32 to vector<64x1xf32>
    %139 = arith.mulf %134, %138 : vector<64x1xf32>
    %cst_69 = arith.constant 3.125000e-02 : f32
    %140 = vector.broadcast %cst_69 : f32 to vector<64x1xf32>
    %141 = arith.mulf %137, %140 : vector<64x1xf32>
    %142 = arith.mulf %139, %139 : vector<64x1xf32>
    %143 = arith.subf %141, %142 : vector<64x1xf32>
    %144 = vector.broadcast %139 : vector<64x1xf32> to vector<64x32xf32>
    %145 = arith.subf %124, %144 : vector<64x32xf32>
    %cst_70 = arith.constant 9.99999974E-6 : f32
    %146 = vector.broadcast %cst_70 : f32 to vector<64x1xf32>
    %147 = arith.addf %143, %146 : vector<64x1xf32>
    %148 = math.rsqrt %147 : vector<64x1xf32>
    %149 = vector.broadcast %148 : vector<64x1xf32> to vector<64x32xf32>
    %150 = arith.mulf %145, %149 : vector<64x32xf32>
    %151 = vector.extract_strided_slice %132 {offsets = [0, 0], sizes = [1, 32], strides = [1, 1]} : vector<3x128xf32> to vector<1x32xf32>
    %cst_71 = arith.constant dense<0.000000e+00> : vector<64x32xf32>
    %152 = tpu.matmul %150, %126, %cst_71 {dimension_numbers = #tpu.dot_dimension_numbers<[1], [0], [0], [1], [0, 0, 1, 1], [], []>} : vector<64x32xf32>, vector<32x32xf32>, vector<64x32xf32> -> vector<64x32xf32>
    %153 = vector.broadcast %151 : vector<1x32xf32> to vector<64x32xf32>
    %154 = arith.addf %152, %153 : vector<64x32xf32>
    %155 = arith.addf %124, %154 : vector<64x32xf32>
    %cst_72 = arith.constant dense<0.000000e+00> : vector<64xf32>
    %156 = vector.multi_reduction <add>, %155, %cst_72 [1] : vector<64x32xf32> to vector<64xf32>
    %157 = vector.shape_cast %156 : vector<64xf32> to vector<64x1xf32>
    %158 = arith.mulf %155, %155 : vector<64x32xf32>
    %cst_73 = arith.constant dense<0.000000e+00> : vector<64xf32>
    %159 = vector.multi_reduction <add>, %158, %cst_73 [1] : vector<64x32xf32> to vector<64xf32>
    %160 = vector.shape_cast %159 : vector<64xf32> to vector<64x1xf32>
    %cst_74 = arith.constant 3.125000e-02 : f32
    %161 = vector.broadcast %cst_74 : f32 to vector<64x1xf32>
    %162 = arith.mulf %157, %161 : vector<64x1xf32>
    %cst_75 = arith.constant 3.125000e-02 : f32
    %163 = vector.broadcast %cst_75 : f32 to vector<64x1xf32>
    %164 = arith.mulf %160, %163 : vector<64x1xf32>
    %165 = arith.mulf %162, %162 : vector<64x1xf32>
    %166 = arith.subf %164, %165 : vector<64x1xf32>
    %167 = vector.broadcast %162 : vector<64x1xf32> to vector<64x32xf32>
    %168 = arith.subf %155, %167 : vector<64x32xf32>
    %cst_76 = arith.constant 9.99999974E-6 : f32
    %169 = vector.broadcast %cst_76 : f32 to vector<64x1xf32>
    %170 = arith.addf %166, %169 : vector<64x1xf32>
    %171 = math.rsqrt %170 : vector<64x1xf32>
    %172 = vector.broadcast %171 : vector<64x1xf32> to vector<64x32xf32>
    %173 = arith.mulf %168, %172 : vector<64x32xf32>
    %174 = vector.extract_strided_slice %132 {offsets = [2, 0], sizes = [1, 128], strides = [1, 1]} : vector<3x128xf32> to vector<1x128xf32>
    %cst_77 = arith.constant dense<0.000000e+00> : vector<64x128xf32>
    %175 = tpu.matmul %173, %128, %cst_77 {dimension_numbers = #tpu.dot_dimension_numbers<[1], [0], [0], [1], [0, 0, 1, 1], [], []>} : vector<64x32xf32>, vector<32x128xf32>, vector<64x128xf32> -> vector<64x128xf32>
    %176 = vector.broadcast %174 : vector<1x128xf32> to vector<64x128xf32>
    %177 = arith.addf %175, %176 : vector<64x128xf32>
    %cst_78 = arith.constant 0.000000e+00 : f32
    %178 = vector.broadcast %cst_78 : f32 to vector<64x128xf32>
    %179 = arith.maximumf %177, %178 : vector<64x128xf32>
    %180 = vector.extract_strided_slice %132 {offsets = [1, 0], sizes = [1, 32], strides = [1, 1]} : vector<3x128xf32> to vector<1x32xf32>
    %cst_79 = arith.constant dense<0.000000e+00> : vector<64x32xf32>
    %181 = tpu.matmul %179, %130, %cst_79 {dimension_numbers = #tpu.dot_dimension_numbers<[1], [0], [0], [1], [0, 0, 1, 1], [], []>} : vector<64x128xf32>, vector<128x32xf32>, vector<64x32xf32> -> vector<64x32xf32>
    %182 = vector.broadcast %180 : vector<1x32xf32> to vector<64x32xf32>
    %183 = arith.addf %181, %182 : vector<64x32xf32>
    %184 = arith.addf %155, %183 : vector<64x32xf32>
    %c3 = arith.constant 3 : index
    %c0_80 = arith.constant 0 : index
    %c0_81 = arith.constant 0 : index
    %185 = vector.load %arg5[%c3, %c0_80, %c0_81] : memref<4x32x32xf32, #tpu.memory_space<vmem>>, vector<1x32x32xf32>
    %186 = vector.shape_cast %185 : vector<1x32x32xf32> to vector<32x32xf32>
    %c3_82 = arith.constant 3 : index
    %c0_83 = arith.constant 0 : index
    %c0_84 = arith.constant 0 : index
    %187 = vector.load %arg6[%c3_82, %c0_83, %c0_84] : memref<4x32x128xf32, #tpu.memory_space<vmem>>, vector<1x32x128xf32>
    %188 = vector.shape_cast %187 : vector<1x32x128xf32> to vector<32x128xf32>
    %c3_85 = arith.constant 3 : index
    %c0_86 = arith.constant 0 : index
    %c0_87 = arith.constant 0 : index
    %189 = vector.load %arg7[%c3_85, %c0_86, %c0_87] : memref<4x128x32xf32, #tpu.memory_space<vmem>>, vector<1x128x32xf32>
    %190 = vector.shape_cast %189 : vector<1x128x32xf32> to vector<128x32xf32>
    %c3_88 = arith.constant 3 : index
    %c0_89 = arith.constant 0 : index
    %c0_90 = arith.constant 0 : index
    %191 = vector.load %arg8[%c3_88, %c0_89, %c0_90] : memref<4x3x128xf32, #tpu.memory_space<vmem>>, vector<1x3x128xf32>
    %192 = vector.shape_cast %191 : vector<1x3x128xf32> to vector<3x128xf32>
    %cst_91 = arith.constant dense<0.000000e+00> : vector<64xf32>
    %193 = vector.multi_reduction <add>, %184, %cst_91 [1] : vector<64x32xf32> to vector<64xf32>
    %194 = vector.shape_cast %193 : vector<64xf32> to vector<64x1xf32>
    %195 = arith.mulf %184, %184 : vector<64x32xf32>
    %cst_92 = arith.constant dense<0.000000e+00> : vector<64xf32>
    %196 = vector.multi_reduction <add>, %195, %cst_92 [1] : vector<64x32xf32> to vector<64xf32>
    %197 = vector.shape_cast %196 : vector<64xf32> to vector<64x1xf32>
    %cst_93 = arith.constant 3.125000e-02 : f32
    %198 = vector.broadcast %cst_93 : f32 to vector<64x1xf32>
    %199 = arith.mulf %194, %198 : vector<64x1xf32>
    %cst_94 = arith.constant 3.125000e-02 : f32
    %200 = vector.broadcast %cst_94 : f32 to vector<64x1xf32>
    %201 = arith.mulf %197, %200 : vector<64x1xf32>
    %202 = arith.mulf %199, %199 : vector<64x1xf32>
    %203 = arith.subf %201, %202 : vector<64x1xf32>
    %204 = vector.broadcast %199 : vector<64x1xf32> to vector<64x32xf32>
    %205 = arith.subf %184, %204 : vector<64x32xf32>
    %cst_95 = arith.constant 9.99999974E-6 : f32
    %206 = vector.broadcast %cst_95 : f32 to vector<64x1xf32>
    %207 = arith.addf %203, %206 : vector<64x1xf32>
    %208 = math.rsqrt %207 : vector<64x1xf32>
    %209 = vector.broadcast %208 : vector<64x1xf32> to vector<64x32xf32>
    %210 = arith.mulf %205, %209 : vector<64x32xf32>
    %211 = vector.extract_strided_slice %192 {offsets = [0, 0], sizes = [1, 32], strides = [1, 1]} : vector<3x128xf32> to vector<1x32xf32>
    %cst_96 = arith.constant dense<0.000000e+00> : vector<64x32xf32>
    %212 = tpu.matmul %210, %186, %cst_96 {dimension_numbers = #tpu.dot_dimension_numbers<[1], [0], [0], [1], [0, 0, 1, 1], [], []>} : vector<64x32xf32>, vector<32x32xf32>, vector<64x32xf32> -> vector<64x32xf32>
    %213 = vector.broadcast %211 : vector<1x32xf32> to vector<64x32xf32>
    %214 = arith.addf %212, %213 : vector<64x32xf32>
    %215 = arith.addf %184, %214 : vector<64x32xf32>
    %cst_97 = arith.constant dense<0.000000e+00> : vector<64xf32>
    %216 = vector.multi_reduction <add>, %215, %cst_97 [1] : vector<64x32xf32> to vector<64xf32>
    %217 = vector.shape_cast %216 : vector<64xf32> to vector<64x1xf32>
    %218 = arith.mulf %215, %215 : vector<64x32xf32>
    %cst_98 = arith.constant dense<0.000000e+00> : vector<64xf32>
    %219 = vector.multi_reduction <add>, %218, %cst_98 [1] : vector<64x32xf32> to vector<64xf32>
    %220 = vector.shape_cast %219 : vector<64xf32> to vector<64x1xf32>
    %cst_99 = arith.constant 3.125000e-02 : f32
    %221 = vector.broadcast %cst_99 : f32 to vector<64x1xf32>
    %222 = arith.mulf %217, %221 : vector<64x1xf32>
    %cst_100 = arith.constant 3.125000e-02 : f32
    %223 = vector.broadcast %cst_100 : f32 to vector<64x1xf32>
    %224 = arith.mulf %220, %223 : vector<64x1xf32>
    %225 = arith.mulf %222, %222 : vector<64x1xf32>
    %226 = arith.subf %224, %225 : vector<64x1xf32>
    %227 = vector.broadcast %222 : vector<64x1xf32> to vector<64x32xf32>
    %228 = arith.subf %215, %227 : vector<64x32xf32>
    %cst_101 = arith.constant 9.99999974E-6 : f32
    %229 = vector.broadcast %cst_101 : f32 to vector<64x1xf32>
    %230 = arith.addf %226, %229 : vector<64x1xf32>
    %231 = math.rsqrt %230 : vector<64x1xf32>
    %232 = vector.broadcast %231 : vector<64x1xf32> to vector<64x32xf32>
    %233 = arith.mulf %228, %232 : vector<64x32xf32>
    %234 = vector.extract_strided_slice %192 {offsets = [2, 0], sizes = [1, 128], strides = [1, 1]} : vector<3x128xf32> to vector<1x128xf32>
    %cst_102 = arith.constant dense<0.000000e+00> : vector<64x128xf32>
    %235 = tpu.matmul %233, %188, %cst_102 {dimension_numbers = #tpu.dot_dimension_numbers<[1], [0], [0], [1], [0, 0, 1, 1], [], []>} : vector<64x32xf32>, vector<32x128xf32>, vector<64x128xf32> -> vector<64x128xf32>
    %236 = vector.broadcast %234 : vector<1x128xf32> to vector<64x128xf32>
    %237 = arith.addf %235, %236 : vector<64x128xf32>
    %cst_103 = arith.constant 0.000000e+00 : f32
    %238 = vector.broadcast %cst_103 : f32 to vector<64x128xf32>
    %239 = arith.maximumf %237, %238 : vector<64x128xf32>
    %240 = vector.extract_strided_slice %192 {offsets = [1, 0], sizes = [1, 32], strides = [1, 1]} : vector<3x128xf32> to vector<1x32xf32>
    %cst_104 = arith.constant dense<0.000000e+00> : vector<64x32xf32>
    %241 = tpu.matmul %239, %190, %cst_104 {dimension_numbers = #tpu.dot_dimension_numbers<[1], [0], [0], [1], [0, 0, 1, 1], [], []>} : vector<64x128xf32>, vector<128x32xf32>, vector<64x32xf32> -> vector<64x32xf32>
    %242 = vector.broadcast %240 : vector<1x32xf32> to vector<64x32xf32>
    %243 = arith.addf %241, %242 : vector<64x32xf32>
    %244 = arith.addf %215, %243 : vector<64x32xf32>
    %c0_105 = arith.constant 0 : index
    %c0_106 = arith.constant 0 : index
    %245 = vector.load %arg12[%c0_105, %c0_106] : memref<64x32xf32, #tpu.memory_space<vmem>>, vector<64x32xf32>
    tpu.vector_store %arg12[%c0_105, %c0_106], %244 {strides = array<i32>} : memref<64x32xf32, #tpu.memory_space<vmem>>, vector<64x32xf32>,
    %c0_i32_107 = arith.constant 0 : i32
    %246 = arith.cmpi eq, %arg1, %c0_i32_107 : i32
    %247 = arith.extui %246 : i1 to i32
    %c0_i32_108 = arith.constant 0 : i32
    %248 = arith.cmpi ne, %247, %c0_i32_108 : i32
    scf.if %248 {
      %c0_109 = arith.constant 0 : index
      %c0_110 = arith.constant 0 : index
      %249 = vector.load %arg9[%c0_109, %c0_110] : memref<32x16xf32, #tpu.memory_space<vmem>>, vector<32x16xf32>
      %250 = vector.extract_strided_slice %0 {offsets = [4, 0], sizes = [1, 16], strides = [1, 1]} : vector<11x32xf32> to vector<1x16xf32>
      %cst_111 = arith.constant dense<0.000000e+00> : vector<64x16xf32>
      %251 = tpu.matmul %244, %249, %cst_111 {dimension_numbers = #tpu.dot_dimension_numbers<[1], [0], [0], [1], [0, 0, 1, 1], [], []>} : vector<64x32xf32>, vector<32x16xf32>, vector<64x16xf32> -> vector<64x16xf32>
      %252 = vector.broadcast %250 : vector<1x16xf32> to vector<64x16xf32>
      %253 = arith.addf %251, %252 : vector<64x16xf32>
      %cst_112 = arith.constant dense<0.000000e+00> : vector<64xf32>
      %254 = vector.multi_reduction <add>, %253, %cst_112 [1] : vector<64x16xf32> to vector<64xf32>
      %255 = vector.shape_cast %254 : vector<64xf32> to vector<64x1xf32>
      %256 = arith.mulf %253, %253 : vector<64x16xf32>
      %cst_113 = arith.constant dense<0.000000e+00> : vector<64xf32>
      %257 = vector.multi_reduction <add>, %256, %cst_113 [1] : vector<64x16xf32> to vector<64xf32>
      %258 = vector.shape_cast %257 : vector<64xf32> to vector<64x1xf32>
      %cst_114 = arith.constant 6.250000e-02 : f32
      %259 = vector.broadcast %cst_114 : f32 to vector<64x1xf32>
      %260 = arith.mulf %255, %259 : vector<64x1xf32>
      %cst_115 = arith.constant 6.250000e-02 : f32
      %261 = vector.broadcast %cst_115 : f32 to vector<64x1xf32>
      %262 = arith.mulf %258, %261 : vector<64x1xf32>
      %263 = arith.mulf %260, %260 : vector<64x1xf32>
      %264 = arith.subf %262, %263 : vector<64x1xf32>
      %265 = vector.broadcast %260 : vector<64x1xf32> to vector<64x16xf32>
      %266 = arith.subf %253, %265 : vector<64x16xf32>
      %cst_116 = arith.constant 9.99999974E-6 : f32
      %267 = vector.broadcast %cst_116 : f32 to vector<64x1xf32>
      %268 = arith.addf %264, %267 : vector<64x1xf32>
      %269 = math.rsqrt %268 : vector<64x1xf32>
      %270 = vector.broadcast %269 : vector<64x1xf32> to vector<64x16xf32>
      %271 = arith.mulf %266, %270 : vector<64x16xf32>
      %272 = vector.extract_strided_slice %0 {offsets = [5, 0], sizes = [1, 16], strides = [1, 1]} : vector<11x32xf32> to vector<1x16xf32>
      %273 = vector.broadcast %272 : vector<1x16xf32> to vector<64x16xf32>
      %274 = arith.mulf %271, %273 : vector<64x16xf32>
      %275 = vector.extract_strided_slice %0 {offsets = [6, 0], sizes = [1, 16], strides = [1, 1]} : vector<11x32xf32> to vector<1x16xf32>
      %276 = vector.broadcast %275 : vector<1x16xf32> to vector<64x16xf32>
      %277 = arith.addf %274, %276 : vector<64x16xf32>
      %cst_117 = arith.constant 0.000000e+00 : f32
      %278 = vector.broadcast %cst_117 : f32 to vector<64x16xf32>
      %279 = arith.maximumf %277, %278 : vector<64x16xf32>
      %c0_118 = arith.constant 0 : index
      %c0_119 = arith.constant 0 : index
      %280 = vector.load %arg10[%c0_118, %c0_119] : memref<16x8xf32, #tpu.memory_space<vmem>>, vector<16x8xf32>
      %281 = vector.extract_strided_slice %0 {offsets = [7, 0], sizes = [1, 8], strides = [1, 1]} : vector<11x32xf32> to vector<1x8xf32>
      %cst_120 = arith.constant dense<0.000000e+00> : vector<64x8xf32>
      %282 = tpu.matmul %279, %280, %cst_120 {dimension_numbers = #tpu.dot_dimension_numbers<[1], [0], [0], [1], [0, 0, 1, 1], [], []>} : vector<64x16xf32>, vector<16x8xf32>, vector<64x8xf32> -> vector<64x8xf32>
      %283 = vector.broadcast %281 : vector<1x8xf32> to vector<64x8xf32>
      %284 = arith.addf %282, %283 : vector<64x8xf32>
      %cst_121 = arith.constant 0.000000e+00 : f32
      %285 = vector.broadcast %cst_121 : f32 to vector<64x8xf32>
      %286 = arith.maximumf %284, %285 : vector<64x8xf32>
      %287 = vector.extract_strided_slice %0 {offsets = [8, 0], sizes = [1, 8], strides = [1, 1]} : vector<11x32xf32> to vector<1x8xf32>
      %288 = vector.broadcast %287 : vector<1x8xf32> to vector<64x8xf32>
      %289 = arith.mulf %286, %288 : vector<64x8xf32>
      %cst_122 = arith.constant dense<0.000000e+00> : vector<64xf32>
      %290 = vector.multi_reduction <add>, %289, %cst_122 [1] : vector<64x8xf32> to vector<64xf32>
      %291 = vector.shape_cast %290 : vector<64xf32> to vector<64x1xf32>
      %292 = vector.extract_strided_slice %0 {offsets = [10, 0], sizes = [1, 1], strides = [1, 1]} : vector<11x32xf32> to vector<1x1xf32>
      %293 = vector.broadcast %292 : vector<1x1xf32> to vector<64x1xf32>
      %294 = arith.addf %291, %293 : vector<64x1xf32>
      %c0_123 = arith.constant 0 : index
      %c0_124 = arith.constant 0 : index
      %295 = vector.load %arg2[%c0_123, %c0_124] : memref<64x16xf32, #tpu.memory_space<vmem>>, vector<64x16xf32>
      %296 = vector.extract_strided_slice %0 {offsets = [9, 0], sizes = [1, 16], strides = [1, 1]} : vector<11x32xf32> to vector<1x16xf32>
      %297 = vector.broadcast %296 : vector<1x16xf32> to vector<64x16xf32>
      %298 = arith.mulf %295, %297 : vector<64x16xf32>
      %cst_125 = arith.constant dense<0.000000e+00> : vector<64xf32>
      %299 = vector.multi_reduction <add>, %298, %cst_125 [1] : vector<64x16xf32> to vector<64xf32>
      %300 = vector.shape_cast %299 : vector<64xf32> to vector<64x1xf32>
      %301 = vector.extract_strided_slice %0 {offsets = [10, 1], sizes = [1, 1], strides = [1, 1]} : vector<11x32xf32> to vector<1x1xf32>
      %302 = vector.broadcast %301 : vector<1x1xf32> to vector<64x1xf32>
      %303 = arith.addf %300, %302 : vector<64x1xf32>
      %304 = arith.addf %294, %303 : vector<64x1xf32>
      %c0_126 = arith.constant 0 : index
      %c0_127 = arith.constant 0 : index
      %305 = vector.load %arg11[%c0_126, %c0_127] : memref<64x1xf32, #tpu.memory_space<vmem>>, vector<64x1xf32>
      tpu.vector_store %arg11[%c0_126, %c0_127], %304 {strides = array<i32>} : memref<64x1xf32, #tpu.memory_space<vmem>>, vector<64x1xf32>,
    } else {
    }
    return
  }
  func.func @transform_0(%arg0: i32, %arg1: i32) -> (i32, i32) {
    %c0_i32 = arith.constant 0 : i32
    %c0_i32_0 = arith.constant 0 : i32
    return %arg0, %c0_i32 : i32, i32
  }
  func.func @transform_1(%arg0: i32, %arg1: i32) -> (i32, i32) {
    %c0_i32 = arith.constant 0 : i32
    %c0_i32_0 = arith.constant 0 : i32
    %c0_i32_1 = arith.constant 0 : i32
    return %c0_i32, %c0_i32_0 : i32, i32
  }
  func.func @transform_2(%arg0: i32, %arg1: i32) -> (i32, i32) {
    %c0_i32 = arith.constant 0 : i32
    %c0_i32_0 = arith.constant 0 : i32
    %c0_i32_1 = arith.constant 0 : i32
    return %c0_i32, %c0_i32_0 : i32, i32
  }
  func.func @transform_3(%arg0: i32, %arg1: i32) -> (i32, i32, i32) {
    %c0_i32 = arith.constant 0 : i32
    %c0_i32_0 = arith.constant 0 : i32
    %c0_i32_1 = arith.constant 0 : i32
    %c0_i32_2 = arith.constant 0 : i32
    return %c0_i32, %c0_i32_0, %c0_i32_1 : i32, i32, i32
  }
  func.func @transform_4(%arg0: i32, %arg1: i32) -> (i32, i32, i32) {
    %c0_i32 = arith.constant 0 : i32
    %c0_i32_0 = arith.constant 0 : i32
    %c0_i32_1 = arith.constant 0 : i32
    %c0_i32_2 = arith.constant 0 : i32
    return %c0_i32, %c0_i32_0, %c0_i32_1 : i32, i32, i32
  }
  func.func @transform_5(%arg0: i32, %arg1: i32) -> (i32, i32, i32) {
    %c0_i32 = arith.constant 0 : i32
    %c0_i32_0 = arith.constant 0 : i32
    %c0_i32_1 = arith.constant 0 : i32
    %c0_i32_2 = arith.constant 0 : i32
    return %c0_i32, %c0_i32_0, %c0_i32_1 : i32, i32, i32
  }
  func.func @transform_6(%arg0: i32, %arg1: i32) -> (i32, i32, i32) {
    %c0_i32 = arith.constant 0 : i32
    %c0_i32_0 = arith.constant 0 : i32
    %c0_i32_1 = arith.constant 0 : i32
    %c0_i32_2 = arith.constant 0 : i32
    return %c0_i32, %c0_i32_0, %c0_i32_1 : i32, i32, i32
  }
  func.func @transform_7(%arg0: i32, %arg1: i32) -> (i32, i32) {
    %c0_i32 = arith.constant 0 : i32
    %c0_i32_0 = arith.constant 0 : i32
    %c0_i32_1 = arith.constant 0 : i32
    return %c0_i32, %c0_i32_0 : i32, i32
  }
  func.func @transform_8(%arg0: i32, %arg1: i32) -> (i32, i32) {
    %c0_i32 = arith.constant 0 : i32
    %c0_i32_0 = arith.constant 0 : i32
    %c0_i32_1 = arith.constant 0 : i32
    return %c0_i32, %c0_i32_0 : i32, i32
  }
  func.func @transform_9(%arg0: i32, %arg1: i32) -> (i32, i32) {
    %c0_i32 = arith.constant 0 : i32
    %c0_i32_0 = arith.constant 0 : i32
    return %arg0, %c0_i32 : i32, i32
  }
}

</mosaic_0001>

<llo_original>
// kernel: tpu_custom_call.1
$region0: #{tpu_custom_call.1}
  #allocation0 [shape = 'u32[]', space=smem, size = 0x4, offset = 0x4, fixed_abs, tag = 'smem constant byte address 0x4 - core index']
  #allocation1 [shape = 'u32[72,128]{1,0:T(1,128)}', space=vmem, size = 0x9000, scoped, tag = 'internal scratch']
  #allocation2 [shape = 'f32[64,32]{1,0:T(8,128)}', space=vmem, size = 0x8000, scoped, tag = 'scratch operand']
  %s0 = inlined_call_operand.vmem [shape: f32[64,16], index: 0, kind: input, shape index: {}]
  %s1 = inlined_call_operand.vmem [shape: f32[11,32], index: 1, kind: input, shape index: {}]
  %s2 = inlined_call_operand.vmem [shape: f32[16,32], index: 2, kind: input, shape index: {}]
  %s3 = inlined_call_operand.vmem [shape: f32[4,32,32], index: 3, kind: input, shape index: {}]
  %s4 = inlined_call_operand.vmem [shape: f32[4,32,128], index: 4, kind: input, shape index: {}]
  %s5 = inlined_call_operand.vmem [shape: f32[4,128,32], index: 5, kind: input, shape index: {}]
  %s6 = inlined_call_operand.vmem [shape: f32[4,3,128], index: 6, kind: input, shape index: {}]
  %s7 = inlined_call_operand.vmem [shape: f32[32,16], index: 7, kind: input, shape index: {}]
  %s8 = inlined_call_operand.vmem [shape: f32[16,8], index: 8, kind: input, shape index: {}]
  %s9 = inlined_call_operand.hbm [shape: f32[1,64], index: 9, kind: output, shape index: {}]
  %s10 = sld [smem:[#allocation0]]
  $region54: #{tpu_custom_call.1} parent=0
    _
  %s12 = ssub.s32 1, %s10
  %s13 = scalar_select 0, %s12, %s10
  $region1: #{tpu_custom_call.1} parent=0
    #allocation3 [shape = 'u8[512]{0}', space=vmem, size = 0x400, scoped, tag = 'output window, operand 0, single buffered']
    #allocation4 [shape = 's32[1]{0}', space=sflag, size = 0x4, scoped, tag = 'scoped memory for tpu_custom_call.1']
    %14 = vsyncpa [#allocation4], 0
    // Predicated region
    $region2: #{tpu_custom_call.1} parent=1 // pred_check
      _
    $region3: #{tpu_custom_call.1} parent=1 // pred_check_branch
      %16 = sbr.rel (0) target = $region5
    $region4: #{tpu_custom_call.1} parent=1 // pred_region
      _
    $region5: #{tpu_custom_call.1} parent=1 // pred_fallthru
      _
    // Predicated region
    $region6: #{tpu_custom_call.1} parent=1 // pred_check
      _
    $region7: #{tpu_custom_call.1} parent=1 // pred_check_branch
      %18 = sbr.rel (0) target = $region9
    $region8: #{tpu_custom_call.1} parent=1 // pred_region
      _
    $region9: #{tpu_custom_call.1} parent=1 // pred_fallthru
      _
    // Predicated region
    $region10: #{tpu_custom_call.1} parent=1 // pred_check
      _
    $region11: #{tpu_custom_call.1} parent=1 // pred_check_branch
      %20 = sbr.rel (0) target = $region13
    $region12: #{tpu_custom_call.1} parent=1 // pred_region
      _
    $region13: #{tpu_custom_call.1} parent=1 // pred_fallthru
      _
    // Predicated region
    $region14: #{tpu_custom_call.1} parent=1 // pred_check
      _
    $region15: #{tpu_custom_call.1} parent=1 // pred_check_branch
      %22 = sbr.rel (0) target = $region17
    $region16: #{tpu_custom_call.1} parent=1 // pred_region
      _
    $region17: #{tpu_custom_call.1} parent=1 // pred_fallthru
      _
    // Predicated region
    $region18: #{tpu_custom_call.1} parent=1 // pred_check
      _
    $region19: #{tpu_custom_call.1} parent=1 // pred_check_branch
      %24 = sbr.rel (0) target = $region21
    $region20: #{tpu_custom_call.1} parent=1 // pred_region
      _
    $region21: #{tpu_custom_call.1} parent=1 // pred_fallthru
      _
    // Predicated region
    $region22: #{tpu_custom_call.1} parent=1 // pred_check
      _
    $region23: #{tpu_custom_call.1} parent=1 // pred_check_branch
      %26 = sbr.rel (0) target = $region25
    $region24: #{tpu_custom_call.1} parent=1 // pred_region
      _
    $region25: #{tpu_custom_call.1} parent=1 // pred_fallthru
      _
    // Predicated region
    $region26: #{tpu_custom_call.1} parent=1 // pred_check
      _
    $region27: #{tpu_custom_call.1} parent=1 // pred_check_branch
      %28 = sbr.rel (0) target = $region29
    $region28: #{tpu_custom_call.1} parent=1 // pred_region
      _
    $region29: #{tpu_custom_call.1} parent=1 // pred_fallthru
      _
    // Predicated region
    $region30: #{tpu_custom_call.1} parent=1 // pred_check
      _
    $region31: #{tpu_custom_call.1} parent=1 // pred_check_branch
      %30 = sbr.rel (0) target = $region33
    $region32: #{tpu_custom_call.1} parent=1 // pred_region
      _
    $region33: #{tpu_custom_call.1} parent=1 // pred_fallthru
      _
    // Predicated region
    $region34: #{tpu_custom_call.1} parent=1 // pred_check
      _
    $region35: #{tpu_custom_call.1} parent=1 // pred_check_branch
      %32 = sbr.rel (0) target = $region37
    $region36: #{tpu_custom_call.1} parent=1 // pred_region
      _
    $region37: #{tpu_custom_call.1} parent=1 // pred_fallthru
      _
    %v33 = vld [vmem:[%s1] sm:$0xff]
    %v34 = vld [vmem:[%s1 + $0x8] sm:$0x7]
    %p35 = scmp.eq.s32.totalorder 0, 0
    // Predicated region
    $region38: #{tpu_custom_call.1} parent=1 // pred_check
      %p36 = pneg %p35
    $region39: #{tpu_custom_call.1} parent=1 // pred_check_branch
      %38 = sbr.rel (%p36) target = $region41
    $region40: #{tpu_custom_call.1} parent=1 // pred_region
      %v39 = vld [vmem:[%s0] sm:$0xff]
      %v40 = vld [vmem:[%s0 + $0x8] sm:$0xff]
      %v41 = vld [vmem:[%s0 + $0x10] sm:$0xff]
      %v42 = vld [vmem:[%s0 + $0x18] sm:$0xff]
      %v43 = vld [vmem:[%s0 + $0x20] sm:$0xff]
      %v44 = vld [vmem:[%s0 + $0x28] sm:$0xff]
      %v45 = vld [vmem:[%s0 + $0x30] sm:$0xff]
      %v46 = vld [vmem:[%s0 + $0x38] sm:$0xff]
      %v47 = vld [vmem:[%s2] sm:$0xff]
      %v48 = vld [vmem:[%s2 + $0x8] sm:$0xff]
      %v49 = vperm.slane %v33, 0
      %vm50 = vcmask 130048
      %v52 = vsel %vm50, %v39, 0
      %v55 = vsel %vm50, %v40, 0
      %v58 = vsel %vm50, %v41, 0
      %v61 = vsel %vm50, %v42, 0
      %v64 = vsel %vm50, %v43, 0
      %v67 = vsel %vm50, %v44, 0
      %v70 = vsel %vm50, %v45, 0
      %v73 = vsel %vm50, %v46, 0
      %75 = vmatpush.msra.mxu0 0.0
      %76 = vmatpush.msra.mxu0 0.0
      %77 = vmatpush.msra.mxu0 0.0
      %78 = vmatpush.msra.mxu0 0.0
      %79 = vmatpush.msra.mxu0 0.0
      %80 = vmatpush.msra.mxu0 0.0
      %81 = vmatpush.msra.mxu0 0.0
      %82 = vmatpush.msra.mxu0 0.0
      %83 = vmatpush.msra.mxu0 0.0
      %84 = vmatpush.msra.mxu0 0.0
      %85 = vmatpush.msra.mxu0 0.0
      %86 = vmatpush.msra.mxu0 0.0
      %87 = vmatpush.msra.mxu0 0.0
      %88 = vmatpush.msra.mxu0 0.0
      %89 = vmatpush.msra.mxu0 %v48
      %90 = vmatpush.msra.mxu0 %v47
      %91 = vmatmul.f32.gmra.mxu0 %v52
      %v92 = vpop.f32.mrf.mxu0
      %v93 = vadd.f32 %v49, %v92
      %94 = vmatmul.f32.gmra.mxu0 %v55
      %v95 = vpop.f32.mrf.mxu0
      %v96 = vadd.f32 %v49, %v95
      %97 = vmatmul.f32.gmra.mxu0 %v58
      %v98 = vpop.f32.mrf.mxu0
      %v99 = vadd.f32 %v49, %v98
      %100 = vmatmul.f32.gmra.mxu0 %v61
      %v101 = vpop.f32.mrf.mxu0
      %v102 = vadd.f32 %v49, %v101
      %103 = vmatmul.f32.gmra.mxu0 %v64
      %v104 = vpop.f32.mrf.mxu0
      %v105 = vadd.f32 %v49, %v104
      %106 = vmatmul.f32.gmra.mxu0 %v67
      %v107 = vpop.f32.mrf.mxu0
      %v108 = vadd.f32 %v49, %v107
      %109 = vmatmul.f32.gmra.mxu0 %v70
      %v110 = vpop.f32.mrf.mxu0
      %v111 = vadd.f32 %v49, %v110
      %112 = vmatmul.f32.gmra.mxu0 %v73
      %v113 = vpop.f32.mrf.mxu0
      %v114 = vadd.f32 %v49, %v113
      %115 = vdwg.mxu0
      %vm116 = vcmask 261120
      %v117 = vsel %vm116, %v93, 0.0
      %118 = vadd.xlane.f32.xlu0 %v117
      %v119 = vpop.xlane.xlu0 %118
      %v120 = vsel %vm116, %v96, 0.0
      %121 = vadd.xlane.f32.xlu0 %v120
      %v122 = vpop.xlane.xlu0 %121
      %v123 = vsel %vm116, %v99, 0.0
      %124 = vadd.xlane.f32.xlu0 %v123
      %v125 = vpop.xlane.xlu0 %124
      %v126 = vsel %vm116, %v102, 0.0
      %127 = vadd.xlane.f32.xlu0 %v126
      %v128 = vpop.xlane.xlu0 %127
      %v129 = vsel %vm116, %v105, 0.0
      %130 = vadd.xlane.f32.xlu0 %v129
      %v131 = vpop.xlane.xlu0 %130
      %v132 = vsel %vm116, %v108, 0.0
      %133 = vadd.xlane.f32.xlu0 %v132
      %v134 = vpop.xlane.xlu0 %133
      %v135 = vsel %vm116, %v111, 0.0
      %136 = vadd.xlane.f32.xlu0 %v135
      %v137 = vpop.xlane.xlu0 %136
      %v138 = vsel %vm116, %v114, 0.0
      %139 = vadd.xlane.f32.xlu0 %v138
      %v140 = vpop.xlane.xlu0 %139
      %v141 = vmul.f32 %v93, %v93
      %v142 = vmul.f32 %v96, %v96
      %v143 = vmul.f32 %v99, %v99
      %v144 = vmul.f32 %v102, %v102
      %v145 = vmul.f32 %v105, %v105
      %v146 = vmul.f32 %v108, %v108
      %v147 = vmul.f32 %v111, %v111
      %v148 = vmul.f32 %v114, %v114
      %v149 = vsel %vm116, %v141, 0.0
      %150 = vadd.xlane.f32.xlu0 %v149
      %v151 = vpop.xlane.xlu0 %150
      %v152 = vsel %vm116, %v142, 0.0
      %153 = vadd.xlane.f32.xlu0 %v152
      %v154 = vpop.xlane.xlu0 %153
      %v155 = vsel %vm116, %v143, 0.0
      %156 = vadd.xlane.f32.xlu0 %v155
      %v157 = vpop.xlane.xlu0 %156
      %v158 = vsel %vm116, %v144, 0.0
      %159 = vadd.xlane.f32.xlu0 %v158
      %v160 = vpop.xlane.xlu0 %159
      %v161 = vsel %vm116, %v145, 0.0
      %162 = vadd.xlane.f32.xlu0 %v161
      %v163 = vpop.xlane.xlu0 %162
      %v164 = vsel %vm116, %v146, 0.0
      %165 = vadd.xlane.f32.xlu0 %v164
      %v166 = vpop.xlane.xlu0 %165
      %v167 = vsel %vm116, %v147, 0.0
      %168 = vadd.xlane.f32.xlu0 %v167
      %v169 = vpop.xlane.xlu0 %168
      %v170 = vsel %vm116, %v148, 0.0
      %171 = vadd.xlane.f32.xlu0 %v170
      %v172 = vpop.xlane.xlu0 %171
      %v173 = vmul.f32 %v119, 0.03125
      %v174 = vmul.f32 %v122, 0.03125
      %v175 = vmul.f32 %v125, 0.03125
      %v176 = vmul.f32 %v128, 0.03125
      %v177 = vmul.f32 %v131, 0.03125
      %v178 = vmul.f32 %v134, 0.03125
      %v179 = vmul.f32 %v137, 0.03125
      %v180 = vmul.f32 %v140, 0.03125
      %v181 = vmul.f32 %v151, 0.03125
      %v182 = vmul.f32 %v154, 0.03125
      %v183 = vmul.f32 %v157, 0.03125
      %v184 = vmul.f32 %v160, 0.03125
      %v185 = vmul.f32 %v163, 0.03125
      %v186 = vmul.f32 %v166, 0.03125
      %v187 = vmul.f32 %v169, 0.03125
      %v188 = vmul.f32 %v172, 0.03125
      %v189 = vmul.f32 %v173, %v173
      %v190 = vmul.f32 %v174, %v174
      %v191 = vmul.f32 %v175, %v175
      %v192 = vmul.f32 %v176, %v176
      %v193 = vmul.f32 %v177, %v177
      %v194 = vmul.f32 %v178, %v178
      %v195 = vmul.f32 %v179, %v179
      %v196 = vmul.f32 %v180, %v180
      %v197 = vsub.f32 %v181, %v189
      %v198 = vsub.f32 %v182, %v190
      %v199 = vsub.f32 %v183, %v191
      %v200 = vsub.f32 %v184, %v192
      %v201 = vsub.f32 %v185, %v193
      %v202 = vsub.f32 %v186, %v194
      %v203 = vsub.f32 %v187, %v195
      %v204 = vsub.f32 %v188, %v196
      %v205 = vsub.f32 %v93, %v173
      %v206 = vsub.f32 %v96, %v174
      %v207 = vsub.f32 %v99, %v175
      %v208 = vsub.f32 %v102, %v176
      %v209 = vsub.f32 %v105, %v177
      %v210 = vsub.f32 %v108, %v178
      %v211 = vsub.f32 %v111, %v179
      %v212 = vsub.f32 %v114, %v180
      %v213 = vadd.f32 %v197, 1e-05
      %v214 = vadd.f32 %v198, 1e-05
      %v215 = vadd.f32 %v199, 1e-05
      %v216 = vadd.f32 %v200, 1e-05
      %v217 = vadd.f32 %v201, 1e-05
      %v218 = vadd.f32 %v202, 1e-05
      %v219 = vadd.f32 %v203, 1e-05
      %v220 = vadd.f32 %v204, 1e-05
      %v221 = vrsqrt.pop %v213
      %v222 = vmul.f32 %v221, %v213
      %v223 = vmul.f32 %v222, %v221
      %v224 = vmul.f32 0.5, %v223
      %v225 = vsub.f32 1.5, %v224
      %v226 = vmul.f32 %v221, %v225
      %vm227 = vweird.f32 %v213
      %vm228 = vweird.f32 %v221
      %vm229 = vmor %vm227, %vm228
      %v230 = vsel %vm229, %v221, %v226
      %v231 = vrsqrt.pop %v214
      %v232 = vmul.f32 %v231, %v214
      %v233 = vmul.f32 %v232, %v231
      %v234 = vmul.f32 0.5, %v233
      %v235 = vsub.f32 1.5, %v234
      %v236 = vmul.f32 %v231, %v235
      %vm237 = vweird.f32 %v214
      %vm238 = vweird.f32 %v231
      %vm239 = vmor %vm237, %vm238
      %v240 = vsel %vm239, %v231, %v236
      %v241 = vrsqrt.pop %v215
      %v242 = vmul.f32 %v241, %v215
      %v243 = vmul.f32 %v242, %v241
      %v244 = vmul.f32 0.5, %v243
      %v245 = vsub.f32 1.5, %v244
      %v246 = vmul.f32 %v241, %v245
      %vm247 = vweird.f32 %v215
      %vm248 = vweird.f32 %v241
      %vm249 = vmor %vm247, %vm248
      %v250 = vsel %vm249, %v241, %v246
      %v251 = vrsqrt.pop %v216
      %v252 = vmul.f32 %v251, %v216
      %v253 = vmul.f32 %v252, %v251
      %v254 = vmul.f32 0.5, %v253
      %v255 = vsub.f32 1.5, %v254
      %v256 = vmul.f32 %v251, %v255
      %vm257 = vweird.f32 %v216
      %vm258 = vweird.f32 %v251
      %vm259 = vmor %vm257, %vm258
      %v260 = vsel %vm259, %v251, %v256
      %v261 = vrsqrt.pop %v217
      %v262 = vmul.f32 %v261, %v217
      %v263 = vmul.f32 %v262, %v261
      %v264 = vmul.f32 0.5, %v263
      %v265 = vsub.f32 1.5, %v264
      %v266 = vmul.f32 %v261, %v265
      %vm267 = vweird.f32 %v217
      %vm268 = vweird.f32 %v261
      %vm269 = vmor %vm267, %vm268
      %v270 = vsel %vm269, %v261, %v266
      %v271 = vrsqrt.pop %v218
      %v272 = vmul.f32 %v271, %v218
      %v273 = vmul.f32 %v272, %v271
      %v274 = vmul.f32 0.5, %v273
      %v275 = vsub.f32 1.5, %v274
      %v276 = vmul.f32 %v271, %v275
      %vm277 = vweird.f32 %v218
      %vm278 = vweird.f32 %v271
      %vm279 = vmor %vm277, %vm278
      %v280 = vsel %vm279, %v271, %v276
      %v281 = vrsqrt.pop %v219
      %v282 = vmul.f32 %v281, %v219
      %v283 = vmul.f32 %v282, %v281
      %v284 = vmul.f32 0.5, %v283
      %v285 = vsub.f32 1.5, %v284
      %v286 = vmul.f32 %v281, %v285
      %vm287 = vweird.f32 %v219
      %vm288 = vweird.f32 %v281
      %vm289 = vmor %vm287, %vm288
      %v290 = vsel %vm289, %v281, %v286
      %v291 = vrsqrt.pop %v220
      %v292 = vmul.f32 %v291, %v220
      %v293 = vmul.f32 %v292, %v291
      %v294 = vmul.f32 0.5, %v293
      %v295 = vsub.f32 1.5, %v294
      %v296 = vmul.f32 %v291, %v295
      %vm297 = vweird.f32 %v220
      %vm298 = vweird.f32 %v291
      %vm299 = vmor %vm297, %vm298
      %v300 = vsel %vm299, %v291, %v296
      %v301 = vmul.f32 %v205, %v230
      %v302 = vmul.f32 %v206, %v240
      %v303 = vmul.f32 %v207, %v250
      %v304 = vmul.f32 %v208, %v260
      %v305 = vmul.f32 %v209, %v270
      %v306 = vmul.f32 %v210, %v280
      %v307 = vmul.f32 %v211, %v290
      %v308 = vmul.f32 %v212, %v300
      %v309 = vperm.slane %v33, 1
      %v310 = vmul.f32 %v301, %v309
      %v311 = vmul.f32 %v302, %v309
      %v312 = vmul.f32 %v303, %v309
      %v313 = vmul.f32 %v304, %v309
      %v314 = vmul.f32 %v305, %v309
      %v315 = vmul.f32 %v306, %v309
      %v316 = vmul.f32 %v307, %v309
      %v317 = vmul.f32 %v308, %v309
      %v318 = vperm.slane %v33, 2
      %v319 = vadd.f32 %v310, %v318
      %v320 = vadd.f32 %v311, %v318
      %v321 = vadd.f32 %v312, %v318
      %v322 = vadd.f32 %v313, %v318
      %v323 = vadd.f32 %v314, %v318
      %v324 = vadd.f32 %v315, %v318
      %v325 = vadd.f32 %v316, %v318
      %v326 = vadd.f32 %v317, %v318
      %v327 = vmax.f32 %v319, 0.0
      %v328 = vmax.f32 %v320, 0.0
      %v329 = vmax.f32 %v321, 0.0
      %v330 = vmax.f32 %v322, 0.0
      %v331 = vmax.f32 %v323, 0.0
      %v332 = vmax.f32 %v324, 0.0
      %v333 = vmax.f32 %v325, 0.0
      %v334 = vmax.f32 %v326, 0.0
      %v335 = vperm.slane %v33, 3
      %v336 = vadd.f32 %v327, %v335
      %v337 = vadd.f32 %v328, %v335
      %v338 = vadd.f32 %v329, %v335
      %v339 = vadd.f32 %v330, %v335
      %v340 = vadd.f32 %v331, %v335
      %v341 = vadd.f32 %v332, %v335
      %v342 = vadd.f32 %v333, %v335
      %v343 = vadd.f32 %v334, %v335
      %344 = vst.msk [vmem:[#allocation2] sm:$0xff] %vm116, %v336
      %345 = vst.msk [vmem:[#allocation2 + $0x8] sm:$0xff] %vm116, %v337
      %346 = vst.msk [vmem:[#allocation2 + $0x10] sm:$0xff] %vm116, %v338
      %347 = vst.msk [vmem:[#allocation2 + $0x18] sm:$0xff] %vm116, %v339
      %348 = vst.msk [vmem:[#allocation2 + $0x20] sm:$0xff] %vm116, %v340
      %349 = vst.msk [vmem:[#allocation2 + $0x28] sm:$0xff] %vm116, %v341
      %350 = vst.msk [vmem:[#allocation2 + $0x30] sm:$0xff] %vm116, %v342
      %351 = vst.msk [vmem:[#allocation2 + $0x38] sm:$0xff] %vm116, %v343
    $region41: #{tpu_custom_call.1} parent=1 // pred_fallthru
      _
    %v352 = vld [vmem:[#allocation2] sm:$0xff]
    %v353 = vld [vmem:[#allocation2 + $0x8] sm:$0xff]
    %v354 = vld [vmem:[#allocation2 + $0x10] sm:$0xff]
    %v355 = vld [vmem:[#allocation2 + $0x18] sm:$0xff]
    %v356 = vld [vmem:[#allocation2 + $0x20] sm:$0xff]
    %v357 = vld [vmem:[#allocation2 + $0x28] sm:$0xff]
    %v358 = vld [vmem:[#allocation2 + $0x30] sm:$0xff]
    %v359 = vld [vmem:[#allocation2 + $0x38] sm:$0xff]
    %v360 = vld [vmem:[%s3] sm:$0xff]
    %v361 = vld [vmem:[%s3 + $0x8] sm:$0xff]
    %v362 = vld [vmem:[%s3 + $0x10] sm:$0xff]
    %v363 = vld [vmem:[%s3 + $0x18] sm:$0xff]
    %v364 = vld [vmem:[%s4] sm:$0xff]
    %v365 = vld [vmem:[%s4 + $0x8] sm:$0xff]
    %v366 = vld [vmem:[%s4 + $0x10] sm:$0xff]
    %v367 = vld [vmem:[%s4 + $0x18] sm:$0xff]
    %v368 = vld [vmem:[%s5] sm:$0xff]
    %v369 = vld [vmem:[%s5 + $0x8] sm:$0xff]
    %v370 = vld [vmem:[%s5 + $0x10] sm:$0xff]
    %v371 = vld [vmem:[%s5 + $0x18] sm:$0xff]
    %v372 = vld [vmem:[%s5 + $0x20] sm:$0xff]
    %v373 = vld [vmem:[%s5 + $0x28] sm:$0xff]
    %v374 = vld [vmem:[%s5 + $0x30] sm:$0xff]
    %v375 = vld [vmem:[%s5 + $0x38] sm:$0xff]
    %v376 = vld [vmem:[%s5 + $0x40] sm:$0xff]
    %v377 = vld [vmem:[%s5 + $0x48] sm:$0xff]
    %v378 = vld [vmem:[%s5 + $0x50] sm:$0xff]
    %v379 = vld [vmem:[%s5 + $0x58] sm:$0xff]
    %v380 = vld [vmem:[%s5 + $0x60] sm:$0xff]
    %v381 = vld [vmem:[%s5 + $0x68] sm:$0xff]
    %v382 = vld [vmem:[%s5 + $0x70] sm:$0xff]
    %v383 = vld [vmem:[%s5 + $0x78] sm:$0xff]
    %v384 = vld [vmem:[%s6] sm:$0x7]
    %vm385 = vcmask 261120
    %v386 = vsel %vm385, %v352, 0.0
    %387 = vadd.xlane.f32.xlu0 %v386
    %v388 = vpop.xlane.xlu0 %387
    %v389 = vsel %vm385, %v353, 0.0
    %390 = vadd.xlane.f32.xlu0 %v389
    %v391 = vpop.xlane.xlu0 %390
    %v392 = vsel %vm385, %v354, 0.0
    %393 = vadd.xlane.f32.xlu0 %v392
    %v394 = vpop.xlane.xlu0 %393
    %v395 = vsel %vm385, %v355, 0.0
    %396 = vadd.xlane.f32.xlu0 %v395
    %v397 = vpop.xlane.xlu0 %396
    %v398 = vsel %vm385, %v356, 0.0
    %399 = vadd.xlane.f32.xlu0 %v398
    %v400 = vpop.xlane.xlu0 %399
    %v401 = vsel %vm385, %v357, 0.0
    %402 = vadd.xlane.f32.xlu0 %v401
    %v403 = vpop.xlane.xlu0 %402
    %v404 = vsel %vm385, %v358, 0.0
    %405 = vadd.xlane.f32.xlu0 %v404
    %v406 = vpop.xlane.xlu0 %405
    %v407 = vsel %vm385, %v359, 0.0
    %408 = vadd.xlane.f32.xlu0 %v407
    %v409 = vpop.xlane.xlu0 %408
    %v410 = vmul.f32 %v352, %v352
    %v411 = vmul.f32 %v353, %v353
    %v412 = vmul.f32 %v354, %v354
    %v413 = vmul.f32 %v355, %v355
    %v414 = vmul.f32 %v356, %v356
    %v415 = vmul.f32 %v357, %v357
    %v416 = vmul.f32 %v358, %v358
    %v417 = vmul.f32 %v359, %v359
    %v418 = vsel %vm385, %v410, 0.0
    %419 = vadd.xlane.f32.xlu0 %v418
    %v420 = vpop.xlane.xlu0 %419
    %v421 = vsel %vm385, %v411, 0.0
    %422 = vadd.xlane.f32.xlu0 %v421
    %v423 = vpop.xlane.xlu0 %422
    %v424 = vsel %vm385, %v412, 0.0
    %425 = vadd.xlane.f32.xlu0 %v424
    %v426 = vpop.xlane.xlu0 %425
    %v427 = vsel %vm385, %v413, 0.0
    %428 = vadd.xlane.f32.xlu0 %v427
    %v429 = vpop.xlane.xlu0 %428
    %v430 = vsel %vm385, %v414, 0.0
    %431 = vadd.xlane.f32.xlu0 %v430
    %v432 = vpop.xlane.xlu0 %431
    %v433 = vsel %vm385, %v415, 0.0
    %434 = vadd.xlane.f32.xlu0 %v433
    %v435 = vpop.xlane.xlu0 %434
    %v436 = vsel %vm385, %v416, 0.0
    %437 = vadd.xlane.f32.xlu0 %v436
    %v438 = vpop.xlane.xlu0 %437
    %v439 = vsel %vm385, %v417, 0.0
    %440 = vadd.xlane.f32.xlu0 %v439
    %v441 = vpop.xlane.xlu0 %440
    %v442 = vmul.f32 %v388, 0.03125
    %v443 = vmul.f32 %v391, 0.03125
    %v444 = vmul.f32 %v394, 0.03125
    %v445 = vmul.f32 %v397, 0.03125
    %v446 = vmul.f32 %v400, 0.03125
    %v447 = vmul.f32 %v403, 0.03125
    %v448 = vmul.f32 %v406, 0.03125
    %v449 = vmul.f32 %v409, 0.03125
    %v450 = vmul.f32 %v420, 0.03125
    %v451 = vmul.f32 %v423, 0.03125
    %v452 = vmul.f32 %v426, 0.03125
    %v453 = vmul.f32 %v429, 0.03125
    %v454 = vmul.f32 %v432, 0.03125
    %v455 = vmul.f32 %v435, 0.03125
    %v456 = vmul.f32 %v438, 0.03125
    %v457 = vmul.f32 %v441, 0.03125
    %v458 = vmul.f32 %v442, %v442
    %v459 = vmul.f32 %v443, %v443
    %v460 = vmul.f32 %v444, %v444
    %v461 = vmul.f32 %v445, %v445
    %v462 = vmul.f32 %v446, %v446
    %v463 = vmul.f32 %v447, %v447
    %v464 = vmul.f32 %v448, %v448
    %v465 = vmul.f32 %v449, %v449
    %v466 = vsub.f32 %v450, %v458
    %v467 = vsub.f32 %v451, %v459
    %v468 = vsub.f32 %v452, %v460
    %v469 = vsub.f32 %v453, %v461
    %v470 = vsub.f32 %v454, %v462
    %v471 = vsub.f32 %v455, %v463
    %v472 = vsub.f32 %v456, %v464
    %v473 = vsub.f32 %v457, %v465
    %v474 = vsub.f32 %v352, %v442
    %v475 = vsub.f32 %v353, %v443
    %v476 = vsub.f32 %v354, %v444
    %v477 = vsub.f32 %v355, %v445
    %v478 = vsub.f32 %v356, %v446
    %v479 = vsub.f32 %v357, %v447
    %v480 = vsub.f32 %v358, %v448
    %v481 = vsub.f32 %v359, %v449
    %v482 = vadd.f32 %v466, 1e-05
    %v483 = vadd.f32 %v467, 1e-05
    %v484 = vadd.f32 %v468, 1e-05
    %v485 = vadd.f32 %v469, 1e-05
    %v486 = vadd.f32 %v470, 1e-05
    %v487 = vadd.f32 %v471, 1e-05
    %v488 = vadd.f32 %v472, 1e-05
    %v489 = vadd.f32 %v473, 1e-05
    %v490 = vrsqrt.pop %v482
    %v491 = vmul.f32 %v490, %v482
    %v492 = vmul.f32 %v491, %v490
    %v493 = vmul.f32 0.5, %v492
    %v494 = vsub.f32 1.5, %v493
    %v495 = vmul.f32 %v490, %v494
    %vm496 = vweird.f32 %v482
    %vm497 = vweird.f32 %v490
    %vm498 = vmor %vm496, %vm497
    %v499 = vsel %vm498, %v490, %v495
    %v500 = vrsqrt.pop %v483
    %v501 = vmul.f32 %v500, %v483
    %v502 = vmul.f32 %v501, %v500
    %v503 = vmul.f32 0.5, %v502
    %v504 = vsub.f32 1.5, %v503
    %v505 = vmul.f32 %v500, %v504
    %vm506 = vweird.f32 %v483
    %vm507 = vweird.f32 %v500
    %vm508 = vmor %vm506, %vm507
    %v509 = vsel %vm508, %v500, %v505
    %v510 = vrsqrt.pop %v484
    %v511 = vmul.f32 %v510, %v484
    %v512 = vmul.f32 %v511, %v510
    %v513 = vmul.f32 0.5, %v512
    %v514 = vsub.f32 1.5, %v513
    %v515 = vmul.f32 %v510, %v514
    %vm516 = vweird.f32 %v484
    %vm517 = vweird.f32 %v510
    %vm518 = vmor %vm516, %vm517
    %v519 = vsel %vm518, %v510, %v515
    %v520 = vrsqrt.pop %v485
    %v521 = vmul.f32 %v520, %v485
    %v522 = vmul.f32 %v521, %v520
    %v523 = vmul.f32 0.5, %v522
    %v524 = vsub.f32 1.5, %v523
    %v525 = vmul.f32 %v520, %v524
    %vm526 = vweird.f32 %v485
    %vm527 = vweird.f32 %v520
    %vm528 = vmor %vm526, %vm527
    %v529 = vsel %vm528, %v520, %v525
    %v530 = vrsqrt.pop %v486
    %v531 = vmul.f32 %v530, %v486
    %v532 = vmul.f32 %v531, %v530
    %v533 = vmul.f32 0.5, %v532
    %v534 = vsub.f32 1.5, %v533
    %v535 = vmul.f32 %v530, %v534
    %vm536 = vweird.f32 %v486
    %vm537 = vweird.f32 %v530
    %vm538 = vmor %vm536, %vm537
    %v539 = vsel %vm538, %v530, %v535
    %v540 = vrsqrt.pop %v487
    %v541 = vmul.f32 %v540, %v487
    %v542 = vmul.f32 %v541, %v540
    %v543 = vmul.f32 0.5, %v542
    %v544 = vsub.f32 1.5, %v543
    %v545 = vmul.f32 %v540, %v544
    %vm546 = vweird.f32 %v487
    %vm547 = vweird.f32 %v540
    %vm548 = vmor %vm546, %vm547
    %v549 = vsel %vm548, %v540, %v545
    %v550 = vrsqrt.pop %v488
    %v551 = vmul.f32 %v550, %v488
    %v552 = vmul.f32 %v551, %v550
    %v553 = vmul.f32 0.5, %v552
    %v554 = vsub.f32 1.5, %v553
    %v555 = vmul.f32 %v550, %v554
    %vm556 = vweird.f32 %v488
    %vm557 = vweird.f32 %v550
    %vm558 = vmor %vm556, %vm557
    %v559 = vsel %vm558, %v550, %v555
    %v560 = vrsqrt.pop %v489
    %v561 = vmul.f32 %v560, %v489
    %v562 = vmul.f32 %v561, %v560
    %v563 = vmul.f32 0.5, %v562
    %v564 = vsub.f32 1.5, %v563
    %v565 = vmul.f32 %v560, %v564
    %vm566 = vweird.f32 %v489
    %vm567 = vweird.f32 %v560
    %vm568 = vmor %vm566, %vm567
    %v569 = vsel %vm568, %v560, %v565
    %v570 = vmul.f32 %v474, %v499
    %v571 = vmul.f32 %v475, %v509
    %v572 = vmul.f32 %v476, %v519
    %v573 = vmul.f32 %v477, %v529
    %v574 = vmul.f32 %v478, %v539
    %v575 = vmul.f32 %v479, %v549
    %v576 = vmul.f32 %v480, %v559
    %v577 = vmul.f32 %v481, %v569
    %v578 = vperm.slane %v384, 0
    %v580 = vsel %vm385, %v570, 0
    %v583 = vsel %vm385, %v571, 0
    %v586 = vsel %vm385, %v572, 0
    %v589 = vsel %vm385, %v573, 0
    %v592 = vsel %vm385, %v574, 0
    %v595 = vsel %vm385, %v575, 0
    %v598 = vsel %vm385, %v576, 0
    %v601 = vsel %vm385, %v577, 0
    %603 = vmatpush.msra.mxu0 0.0
    %604 = vmatpush.msra.mxu0 0.0
    %605 = vmatpush.msra.mxu0 0.0
    %606 = vmatpush.msra.mxu0 0.0
    %607 = vmatpush.msra.mxu0 0.0
    %608 = vmatpush.msra.mxu0 0.0
    %609 = vmatpush.msra.mxu0 0.0
    %610 = vmatpush.msra.mxu0 0.0
    %611 = vmatpush.msra.mxu0 0.0
    %612 = vmatpush.msra.mxu0 0.0
    %613 = vmatpush.msra.mxu0 0.0
    %614 = vmatpush.msra.mxu0 0.0
    %615 = vmatpush.msra.mxu0 %v363
    %616 = vmatpush.msra.mxu0 %v362
    %617 = vmatpush.msra.mxu0 %v361
    %618 = vmatpush.msra.mxu0 %v360
    %619 = vmatmul.f32.gmra.mxu0 %v580
    %v620 = vpop.f32.mrf.mxu0
    %v621 = vadd.f32 %v578, %v620
    %622 = vmatmul.f32.gmra.mxu0 %v583
    %v623 = vpop.f32.mrf.mxu0
    %v624 = vadd.f32 %v578, %v623
    %625 = vmatmul.f32.gmra.mxu0 %v586
    %v626 = vpop.f32.mrf.mxu0
    %v627 = vadd.f32 %v578, %v626
    %628 = vmatmul.f32.gmra.mxu0 %v589
    %v629 = vpop.f32.mrf.mxu0
    %v630 = vadd.f32 %v578, %v629
    %631 = vmatmul.f32.gmra.mxu0 %v592
    %v632 = vpop.f32.mrf.mxu0
    %v633 = vadd.f32 %v578, %v632
    %634 = vmatmul.f32.gmra.mxu0 %v595
    %v635 = vpop.f32.mrf.mxu0
    %v636 = vadd.f32 %v578, %v635
    %637 = vmatmul.f32.gmra.mxu0 %v598
    %v638 = vpop.f32.mrf.mxu0
    %v639 = vadd.f32 %v578, %v638
    %640 = vmatmul.f32.gmra.mxu0 %v601
    %v641 = vpop.f32.mrf.mxu0
    %v642 = vadd.f32 %v578, %v641
    %643 = vdwg.mxu0
    %v644 = vadd.f32 %v352, %v621
    %v645 = vadd.f32 %v353, %v624
    %v646 = vadd.f32 %v354, %v627
    %v647 = vadd.f32 %v355, %v630
    %v648 = vadd.f32 %v356, %v633
    %v649 = vadd.f32 %v357, %v636
    %v650 = vadd.f32 %v358, %v639
    %v651 = vadd.f32 %v359, %v642
    %v652 = vsel %vm385, %v644, 0.0
    %653 = vadd.xlane.f32.xlu0 %v652
    %v654 = vpop.xlane.xlu0 %653
    %v655 = vsel %vm385, %v645, 0.0
    %656 = vadd.xlane.f32.xlu0 %v655
    %v657 = vpop.xlane.xlu0 %656
    %v658 = vsel %vm385, %v646, 0.0
    %659 = vadd.xlane.f32.xlu0 %v658
    %v660 = vpop.xlane.xlu0 %659
    %v661 = vsel %vm385, %v647, 0.0
    %662 = vadd.xlane.f32.xlu0 %v661
    %v663 = vpop.xlane.xlu0 %662
    %v664 = vsel %vm385, %v648, 0.0
    %665 = vadd.xlane.f32.xlu0 %v664
    %v666 = vpop.xlane.xlu0 %665
    %v667 = vsel %vm385, %v649, 0.0
    %668 = vadd.xlane.f32.xlu0 %v667
    %v669 = vpop.xlane.xlu0 %668
    %v670 = vsel %vm385, %v650, 0.0
    %671 = vadd.xlane.f32.xlu0 %v670
    %v672 = vpop.xlane.xlu0 %671
    %v673 = vsel %vm385, %v651, 0.0
    %674 = vadd.xlane.f32.xlu0 %v673
    %v675 = vpop.xlane.xlu0 %674
    %v676 = vmul.f32 %v644, %v644
    %v677 = vmul.f32 %v645, %v645
    %v678 = vmul.f32 %v646, %v646
    %v679 = vmul.f32 %v647, %v647
    %v680 = vmul.f32 %v648, %v648
    %v681 = vmul.f32 %v649, %v649
    %v682 = vmul.f32 %v650, %v650
    %v683 = vmul.f32 %v651, %v651
    %v684 = vsel %vm385, %v676, 0.0
    %685 = vadd.xlane.f32.xlu0 %v684
    %v686 = vpop.xlane.xlu0 %685
    %v687 = vsel %vm385, %v677, 0.0
    %688 = vadd.xlane.f32.xlu0 %v687
    %v689 = vpop.xlane.xlu0 %688
    %v690 = vsel %vm385, %v678, 0.0
    %691 = vadd.xlane.f32.xlu0 %v690
    %v692 = vpop.xlane.xlu0 %691
    %v693 = vsel %vm385, %v679, 0.0
    %694 = vadd.xlane.f32.xlu0 %v693
    %v695 = vpop.xlane.xlu0 %694
    %v696 = vsel %vm385, %v680, 0.0
    %697 = vadd.xlane.f32.xlu0 %v696
    %v698 = vpop.xlane.xlu0 %697
    %v699 = vsel %vm385, %v681, 0.0
    %700 = vadd.xlane.f32.xlu0 %v699
    %v701 = vpop.xlane.xlu0 %700
    %v702 = vsel %vm385, %v682, 0.0
    %703 = vadd.xlane.f32.xlu0 %v702
    %v704 = vpop.xlane.xlu0 %703
    %v705 = vsel %vm385, %v683, 0.0
    %706 = vadd.xlane.f32.xlu0 %v705
    %v707 = vpop.xlane.xlu0 %706
    %v708 = vmul.f32 %v654, 0.03125
    %v709 = vmul.f32 %v657, 0.03125
    %v710 = vmul.f32 %v660, 0.03125
    %v711 = vmul.f32 %v663, 0.03125
    %v712 = vmul.f32 %v666, 0.03125
    %v713 = vmul.f32 %v669, 0.03125
    %v714 = vmul.f32 %v672, 0.03125
    %v715 = vmul.f32 %v675, 0.03125
    %v716 = vmul.f32 %v686, 0.03125
    %v717 = vmul.f32 %v689, 0.03125
    %v718 = vmul.f32 %v692, 0.03125
    %v719 = vmul.f32 %v695, 0.03125
    %v720 = vmul.f32 %v698, 0.03125
    %v721 = vmul.f32 %v701, 0.03125
    %v722 = vmul.f32 %v704, 0.03125
    %v723 = vmul.f32 %v707, 0.03125
    %v724 = vmul.f32 %v708, %v708
    %v725 = vmul.f32 %v709, %v709
    %v726 = vmul.f32 %v710, %v710
    %v727 = vmul.f32 %v711, %v711
    %v728 = vmul.f32 %v712, %v712
    %v729 = vmul.f32 %v713, %v713
    %v730 = vmul.f32 %v714, %v714
    %v731 = vmul.f32 %v715, %v715
    %v732 = vsub.f32 %v716, %v724
    %v733 = vsub.f32 %v717, %v725
    %v734 = vsub.f32 %v718, %v726
    %v735 = vsub.f32 %v719, %v727
    %v736 = vsub.f32 %v720, %v728
    %v737 = vsub.f32 %v721, %v729
    %v738 = vsub.f32 %v722, %v730
    %v739 = vsub.f32 %v723, %v731
    %v740 = vsub.f32 %v644, %v708
    %v741 = vsub.f32 %v645, %v709
    %v742 = vsub.f32 %v646, %v710
    %v743 = vsub.f32 %v647, %v711
    %v744 = vsub.f32 %v648, %v712
    %v745 = vsub.f32 %v649, %v713
    %v746 = vsub.f32 %v650, %v714
    %v747 = vsub.f32 %v651, %v715
    %v748 = vadd.f32 %v732, 1e-05
    %v749 = vadd.f32 %v733, 1e-05
    %v750 = vadd.f32 %v734, 1e-05
    %v751 = vadd.f32 %v735, 1e-05
    %v752 = vadd.f32 %v736, 1e-05
    %v753 = vadd.f32 %v737, 1e-05
    %v754 = vadd.f32 %v738, 1e-05
    %v755 = vadd.f32 %v739, 1e-05
    %v756 = vrsqrt.pop %v748
    %v757 = vmul.f32 %v756, %v748
    %v758 = vmul.f32 %v757, %v756
    %v759 = vmul.f32 0.5, %v758
    %v760 = vsub.f32 1.5, %v759
    %v761 = vmul.f32 %v756, %v760
    %vm762 = vweird.f32 %v748
    %vm763 = vweird.f32 %v756
    %vm764 = vmor %vm762, %vm763
    %v765 = vsel %vm764, %v756, %v761
    %v766 = vrsqrt.pop %v749
    %v767 = vmul.f32 %v766, %v749
    %v768 = vmul.f32 %v767, %v766
    %v769 = vmul.f32 0.5, %v768
    %v770 = vsub.f32 1.5, %v769
    %v771 = vmul.f32 %v766, %v770
    %vm772 = vweird.f32 %v749
    %vm773 = vweird.f32 %v766
    %vm774 = vmor %vm772, %vm773
    %v775 = vsel %vm774, %v766, %v771
    %v776 = vrsqrt.pop %v750
    %v777 = vmul.f32 %v776, %v750
    %v778 = vmul.f32 %v777, %v776
    %v779 = vmul.f32 0.5, %v778
    %v780 = vsub.f32 1.5, %v779
    %v781 = vmul.f32 %v776, %v780
    %vm782 = vweird.f32 %v750
    %vm783 = vweird.f32 %v776
    %vm784 = vmor %vm782, %vm783
    %v785 = vsel %vm784, %v776, %v781
    %v786 = vrsqrt.pop %v751
    %v787 = vmul.f32 %v786, %v751
    %v788 = vmul.f32 %v787, %v786
    %v789 = vmul.f32 0.5, %v788
    %v790 = vsub.f32 1.5, %v789
    %v791 = vmul.f32 %v786, %v790
    %vm792 = vweird.f32 %v751
    %vm793 = vweird.f32 %v786
    %vm794 = vmor %vm792, %vm793
    %v795 = vsel %vm794, %v786, %v791
    %v796 = vrsqrt.pop %v752
    %v797 = vmul.f32 %v796, %v752
    %v798 = vmul.f32 %v797, %v796
    %v799 = vmul.f32 0.5, %v798
    %v800 = vsub.f32 1.5, %v799
    %v801 = vmul.f32 %v796, %v800
    %vm802 = vweird.f32 %v752
    %vm803 = vweird.f32 %v796
    %vm804 = vmor %vm802, %vm803
    %v805 = vsel %vm804, %v796, %v801
    %v806 = vrsqrt.pop %v753
    %v807 = vmul.f32 %v806, %v753
    %v808 = vmul.f32 %v807, %v806
    %v809 = vmul.f32 0.5, %v808
    %v810 = vsub.f32 1.5, %v809
    %v811 = vmul.f32 %v806, %v810
    %vm812 = vweird.f32 %v753
    %vm813 = vweird.f32 %v806
    %vm814 = vmor %vm812, %vm813
    %v815 = vsel %vm814, %v806, %v811
    %v816 = vrsqrt.pop %v754
    %v817 = vmul.f32 %v816, %v754
    %v818 = vmul.f32 %v817, %v816
    %v819 = vmul.f32 0.5, %v818
    %v820 = vsub.f32 1.5, %v819
    %v821 = vmul.f32 %v816, %v820
    %vm822 = vweird.f32 %v754
    %vm823 = vweird.f32 %v816
    %vm824 = vmor %vm822, %vm823
    %v825 = vsel %vm824, %v816, %v821
    %v826 = vrsqrt.pop %v755
    %v827 = vmul.f32 %v826, %v755
    %v828 = vmul.f32 %v827, %v826
    %v829 = vmul.f32 0.5, %v828
    %v830 = vsub.f32 1.5, %v829
    %v831 = vmul.f32 %v826, %v830
    %vm832 = vweird.f32 %v755
    %vm833 = vweird.f32 %v826
    %vm834 = vmor %vm832, %vm833
    %v835 = vsel %vm834, %v826, %v831
    %v836 = vmul.f32 %v740, %v765
    %v837 = vmul.f32 %v741, %v775
    %v838 = vmul.f32 %v742, %v785
    %v839 = vmul.f32 %v743, %v795
    %v840 = vmul.f32 %v744, %v805
    %v841 = vmul.f32 %v745, %v815
    %v842 = vmul.f32 %v746, %v825
    %v843 = vmul.f32 %v747, %v835
    %v844 = vperm.slane %v384, 2
    %v846 = vsel %vm385, %v836, 0
    %v849 = vsel %vm385, %v837, 0
    %v852 = vsel %vm385, %v838, 0
    %v855 = vsel %vm385, %v839, 0
    %v858 = vsel %vm385, %v840, 0
    %v861 = vsel %vm385, %v841, 0
    %v864 = vsel %vm385, %v842, 0
    %v867 = vsel %vm385, %v843, 0
    %869 = vmatpush.msra.mxu0 0.0
    %870 = vmatpush.msra.mxu0 0.0
    %871 = vmatpush.msra.mxu0 0.0
    %872 = vmatpush.msra.mxu0 0.0
    %873 = vmatpush.msra.mxu0 0.0
    %874 = vmatpush.msra.mxu0 0.0
    %875 = vmatpush.msra.mxu0 0.0
    %876 = vmatpush.msra.mxu0 0.0
    %877 = vmatpush.msra.mxu0 0.0
    %878 = vmatpush.msra.mxu0 0.0
    %879 = vmatpush.msra.mxu0 0.0
    %880 = vmatpush.msra.mxu0 0.0
    %881 = vmatpush.msra.mxu0 %v367
    %882 = vmatpush.msra.mxu0 %v366
    %883 = vmatpush.msra.mxu0 %v365
    %884 = vmatpush.msra.mxu0 %v364
    %885 = vmatmul.f32.gmra.mxu0 %v846
    %v886 = vpop.f32.mrf.mxu0
    %v887 = vadd.f32 %v844, %v886
    %888 = vmatmul.f32.gmra.mxu0 %v849
    %v889 = vpop.f32.mrf.mxu0
    %v890 = vadd.f32 %v844, %v889
    %891 = vmatmul.f32.gmra.mxu0 %v852
    %v892 = vpop.f32.mrf.mxu0
    %v893 = vadd.f32 %v844, %v892
    %894 = vmatmul.f32.gmra.mxu0 %v855
    %v895 = vpop.f32.mrf.mxu0
    %v896 = vadd.f32 %v844, %v895
    %897 = vmatmul.f32.gmra.mxu0 %v858
    %v898 = vpop.f32.mrf.mxu0
    %v899 = vadd.f32 %v844, %v898
    %900 = vmatmul.f32.gmra.mxu0 %v861
    %v901 = vpop.f32.mrf.mxu0
    %v902 = vadd.f32 %v844, %v901
    %903 = vmatmul.f32.gmra.mxu0 %v864
    %v904 = vpop.f32.mrf.mxu0
    %v905 = vadd.f32 %v844, %v904
    %906 = vmatmul.f32.gmra.mxu0 %v867
    %v907 = vpop.f32.mrf.mxu0
    %v908 = vadd.f32 %v844, %v907
    %909 = vdwg.mxu0
    %v910 = vmax.f32 %v887, 0.0
    %v911 = vmax.f32 %v890, 0.0
    %v912 = vmax.f32 %v893, 0.0
    %v913 = vmax.f32 %v896, 0.0
    %v914 = vmax.f32 %v899, 0.0
    %v915 = vmax.f32 %v902, 0.0
    %v916 = vmax.f32 %v905, 0.0
    %v917 = vmax.f32 %v908, 0.0
    %v918 = vperm.slane %v384, 1
    %919 = vmatpush.msra.mxu0 %v383
    %920 = vmatpush.msra.mxu0 %v382
    %921 = vmatpush.msra.mxu0 %v381
    %922 = vmatpush.msra.mxu0 %v380
    %923 = vmatpush.msra.mxu0 %v379
    %924 = vmatpush.msra.mxu0 %v378
    %925 = vmatpush.msra.mxu0 %v377
    %926 = vmatpush.msra.mxu0 %v376
    %927 = vmatpush.msra.mxu0 %v375
    %928 = vmatpush.msra.mxu0 %v374
    %929 = vmatpush.msra.mxu0 %v373
    %930 = vmatpush.msra.mxu0 %v372
    %931 = vmatpush.msra.mxu0 %v371
    %932 = vmatpush.msra.mxu0 %v370
    %933 = vmatpush.msra.mxu0 %v369
    %934 = vmatpush.msra.mxu0 %v368
    %935 = vmatmul.f32.gmra.mxu0 %v910
    %v936 = vpop.f32.mrf.mxu0
    %v937 = vadd.f32 %v918, %v936
    %938 = vmatmul.f32.gmra.mxu0 %v911
    %v939 = vpop.f32.mrf.mxu0
    %v940 = vadd.f32 %v918, %v939
    %941 = vmatmul.f32.gmra.mxu0 %v912
    %v942 = vpop.f32.mrf.mxu0
    %v943 = vadd.f32 %v918, %v942
    %944 = vmatmul.f32.gmra.mxu0 %v913
    %v945 = vpop.f32.mrf.mxu0
    %v946 = vadd.f32 %v918, %v945
    %947 = vmatmul.f32.gmra.mxu0 %v914
    %v948 = vpop.f32.mrf.mxu0
    %v949 = vadd.f32 %v918, %v948
    %950 = vmatmul.f32.gmra.mxu0 %v915
    %v951 = vpop.f32.mrf.mxu0
    %v952 = vadd.f32 %v918, %v951
    %953 = vmatmul.f32.gmra.mxu0 %v916
    %v954 = vpop.f32.mrf.mxu0
    %v955 = vadd.f32 %v918, %v954
    %956 = vmatmul.f32.gmra.mxu0 %v917
    %v957 = vpop.f32.mrf.mxu0
    %v958 = vadd.f32 %v918, %v957
    %959 = vdwg.mxu0
    %v960 = vadd.f32 %v644, %v937
    %v961 = vadd.f32 %v645, %v940
    %v962 = vadd.f32 %v646, %v943
    %v963 = vadd.f32 %v647, %v946
    %v964 = vadd.f32 %v648, %v949
    %v965 = vadd.f32 %v649, %v952
    %v966 = vadd.f32 %v650, %v955
    %v967 = vadd.f32 %v651, %v958
    %s968 = scalar_lea.vmem %s3, 32
    %v969 = vld [vmem:[%s968] sm:$0xff]
    %v970 = vld [vmem:[%s968 + $0x8] sm:$0xff]
    %v971 = vld [vmem:[%s968 + $0x10] sm:$0xff]
    %v972 = vld [vmem:[%s968 + $0x18] sm:$0xff]
    %s973 = scalar_lea.vmem %s4, 32
    %v974 = vld [vmem:[%s973] sm:$0xff]
    %v975 = vld [vmem:[%s973 + $0x8] sm:$0xff]
    %v976 = vld [vmem:[%s973 + $0x10] sm:$0xff]
    %v977 = vld [vmem:[%s973 + $0x18] sm:$0xff]
    %s978 = scalar_lea.vmem %s5, 128
    %v979 = vld [vmem:[%s978] sm:$0xff]
    %v980 = vld [vmem:[%s978 + $0x8] sm:$0xff]
    %v981 = vld [vmem:[%s978 + $0x10] sm:$0xff]
    %v982 = vld [vmem:[%s978 + $0x18] sm:$0xff]
    %v983 = vld [vmem:[%s978 + $0x20] sm:$0xff]
    %v984 = vld [vmem:[%s978 + $0x28] sm:$0xff]
    %v985 = vld [vmem:[%s978 + $0x30] sm:$0xff]
    %v986 = vld [vmem:[%s978 + $0x38] sm:$0xff]
    %v987 = vld [vmem:[%s978 + $0x40] sm:$0xff]
    %v988 = vld [vmem:[%s978 + $0x48] sm:$0xff]
    %v989 = vld [vmem:[%s978 + $0x50] sm:$0xff]
    %v990 = vld [vmem:[%s978 + $0x58] sm:$0xff]
    %v991 = vld [vmem:[%s978 + $0x60] sm:$0xff]
    %v992 = vld [vmem:[%s978 + $0x68] sm:$0xff]
    %v993 = vld [vmem:[%s978 + $0x70] sm:$0xff]
    %v994 = vld [vmem:[%s978 + $0x78] sm:$0xff]
    %s995 = scalar_lea.vmem %s6, 4
    %v996 = vld [vmem:[%s995] sm:$0x7]
    %v997 = vsel %vm385, %v960, 0.0
    %998 = vadd.xlane.f32.xlu0 %v997
    %v999 = vpop.xlane.xlu0 %998
    %v1000 = vsel %vm385, %v961, 0.0
    %1001 = vadd.xlane.f32.xlu0 %v1000
    %v1002 = vpop.xlane.xlu0 %1001
    %v1003 = vsel %vm385, %v962, 0.0
    %1004 = vadd.xlane.f32.xlu0 %v1003
    %v1005 = vpop.xlane.xlu0 %1004
    %v1006 = vsel %vm385, %v963, 0.0
    %1007 = vadd.xlane.f32.xlu0 %v1006
    %v1008 = vpop.xlane.xlu0 %1007
    %v1009 = vsel %vm385, %v964, 0.0
    %1010 = vadd.xlane.f32.xlu0 %v1009
    %v1011 = vpop.xlane.xlu0 %1010
    %v1012 = vsel %vm385, %v965, 0.0
    %1013 = vadd.xlane.f32.xlu0 %v1012
    %v1014 = vpop.xlane.xlu0 %1013
    %v1015 = vsel %vm385, %v966, 0.0
    %1016 = vadd.xlane.f32.xlu0 %v1015
    %v1017 = vpop.xlane.xlu0 %1016
    %v1018 = vsel %vm385, %v967, 0.0
    %1019 = vadd.xlane.f32.xlu0 %v1018
    %v1020 = vpop.xlane.xlu0 %1019
    %v1021 = vmul.f32 %v960, %v960
    %v1022 = vmul.f32 %v961, %v961
    %v1023 = vmul.f32 %v962, %v962
    %v1024 = vmul.f32 %v963, %v963
    %v1025 = vmul.f32 %v964, %v964
    %v1026 = vmul.f32 %v965, %v965
    %v1027 = vmul.f32 %v966, %v966
    %v1028 = vmul.f32 %v967, %v967
    %v1029 = vsel %vm385, %v1021, 0.0
    %1030 = vadd.xlane.f32.xlu0 %v1029
    %v1031 = vpop.xlane.xlu0 %1030
    %v1032 = vsel %vm385, %v1022, 0.0
    %1033 = vadd.xlane.f32.xlu0 %v1032
    %v1034 = vpop.xlane.xlu0 %1033
    %v1035 = vsel %vm385, %v1023, 0.0
    %1036 = vadd.xlane.f32.xlu0 %v1035
    %v1037 = vpop.xlane.xlu0 %1036
    %v1038 = vsel %vm385, %v1024, 0.0
    %1039 = vadd.xlane.f32.xlu0 %v1038
    %v1040 = vpop.xlane.xlu0 %1039
    %v1041 = vsel %vm385, %v1025, 0.0
    %1042 = vadd.xlane.f32.xlu0 %v1041
    %v1043 = vpop.xlane.xlu0 %1042
    %v1044 = vsel %vm385, %v1026, 0.0
    %1045 = vadd.xlane.f32.xlu0 %v1044
    %v1046 = vpop.xlane.xlu0 %1045
    %v1047 = vsel %vm385, %v1027, 0.0
    %1048 = vadd.xlane.f32.xlu0 %v1047
    %v1049 = vpop.xlane.xlu0 %1048
    %v1050 = vsel %vm385, %v1028, 0.0
    %1051 = vadd.xlane.f32.xlu0 %v1050
    %v1052 = vpop.xlane.xlu0 %1051
    %v1053 = vmul.f32 %v999, 0.03125
    %v1054 = vmul.f32 %v1002, 0.03125
    %v1055 = vmul.f32 %v1005, 0.03125
    %v1056 = vmul.f32 %v1008, 0.03125
    %v1057 = vmul.f32 %v1011, 0.03125
    %v1058 = vmul.f32 %v1014, 0.03125
    %v1059 = vmul.f32 %v1017, 0.03125
    %v1060 = vmul.f32 %v1020, 0.03125
    %v1061 = vmul.f32 %v1031, 0.03125
    %v1062 = vmul.f32 %v1034, 0.03125
    %v1063 = vmul.f32 %v1037, 0.03125
    %v1064 = vmul.f32 %v1040, 0.03125
    %v1065 = vmul.f32 %v1043, 0.03125
    %v1066 = vmul.f32 %v1046, 0.03125
    %v1067 = vmul.f32 %v1049, 0.03125
    %v1068 = vmul.f32 %v1052, 0.03125
    %v1069 = vmul.f32 %v1053, %v1053
    %v1070 = vmul.f32 %v1054, %v1054
    %v1071 = vmul.f32 %v1055, %v1055
    %v1072 = vmul.f32 %v1056, %v1056
    %v1073 = vmul.f32 %v1057, %v1057
    %v1074 = vmul.f32 %v1058, %v1058
    %v1075 = vmul.f32 %v1059, %v1059
    %v1076 = vmul.f32 %v1060, %v1060
    %v1077 = vsub.f32 %v1061, %v1069
    %v1078 = vsub.f32 %v1062, %v1070
    %v1079 = vsub.f32 %v1063, %v1071
    %v1080 = vsub.f32 %v1064, %v1072
    %v1081 = vsub.f32 %v1065, %v1073
    %v1082 = vsub.f32 %v1066, %v1074
    %v1083 = vsub.f32 %v1067, %v1075
    %v1084 = vsub.f32 %v1068, %v1076
    %v1085 = vsub.f32 %v960, %v1053
    %v1086 = vsub.f32 %v961, %v1054
    %v1087 = vsub.f32 %v962, %v1055
    %v1088 = vsub.f32 %v963, %v1056
    %v1089 = vsub.f32 %v964, %v1057
    %v1090 = vsub.f32 %v965, %v1058
    %v1091 = vsub.f32 %v966, %v1059
    %v1092 = vsub.f32 %v967, %v1060
    %v1093 = vadd.f32 %v1077, 1e-05
    %v1094 = vadd.f32 %v1078, 1e-05
    %v1095 = vadd.f32 %v1079, 1e-05
    %v1096 = vadd.f32 %v1080, 1e-05
    %v1097 = vadd.f32 %v1081, 1e-05
    %v1098 = vadd.f32 %v1082, 1e-05
    %v1099 = vadd.f32 %v1083, 1e-05
    %v1100 = vadd.f32 %v1084, 1e-05
    %v1101 = vrsqrt.pop %v1093
    %v1102 = vmul.f32 %v1101, %v1093
    %v1103 = vmul.f32 %v1102, %v1101
    %v1104 = vmul.f32 0.5, %v1103
    %v1105 = vsub.f32 1.5, %v1104
    %v1106 = vmul.f32 %v1101, %v1105
    %vm1107 = vweird.f32 %v1093
    %vm1108 = vweird.f32 %v1101
    %vm1109 = vmor %vm1107, %vm1108
    %v1110 = vsel %vm1109, %v1101, %v1106
    %v1111 = vrsqrt.pop %v1094
    %v1112 = vmul.f32 %v1111, %v1094
    %v1113 = vmul.f32 %v1112, %v1111
    %v1114 = vmul.f32 0.5, %v1113
    %v1115 = vsub.f32 1.5, %v1114
    %v1116 = vmul.f32 %v1111, %v1115
    %vm1117 = vweird.f32 %v1094
    %vm1118 = vweird.f32 %v1111
    %vm1119 = vmor %vm1117, %vm1118
    %v1120 = vsel %vm1119, %v1111, %v1116
    %v1121 = vrsqrt.pop %v1095
    %v1122 = vmul.f32 %v1121, %v1095
    %v1123 = vmul.f32 %v1122, %v1121
    %v1124 = vmul.f32 0.5, %v1123
    %v1125 = vsub.f32 1.5, %v1124
    %v1126 = vmul.f32 %v1121, %v1125
    %vm1127 = vweird.f32 %v1095
    %vm1128 = vweird.f32 %v1121
    %vm1129 = vmor %vm1127, %vm1128
    %v1130 = vsel %vm1129, %v1121, %v1126
    %v1131 = vrsqrt.pop %v1096
    %v1132 = vmul.f32 %v1131, %v1096
    %v1133 = vmul.f32 %v1132, %v1131
    %v1134 = vmul.f32 0.5, %v1133
    %v1135 = vsub.f32 1.5, %v1134
    %v1136 = vmul.f32 %v1131, %v1135
    %vm1137 = vweird.f32 %v1096
    %vm1138 = vweird.f32 %v1131
    %vm1139 = vmor %vm1137, %vm1138
    %v1140 = vsel %vm1139, %v1131, %v1136
    %v1141 = vrsqrt.pop %v1097
    %v1142 = vmul.f32 %v1141, %v1097
    %v1143 = vmul.f32 %v1142, %v1141
    %v1144 = vmul.f32 0.5, %v1143
    %v1145 = vsub.f32 1.5, %v1144
    %v1146 = vmul.f32 %v1141, %v1145
    %vm1147 = vweird.f32 %v1097
    %vm1148 = vweird.f32 %v1141
    %vm1149 = vmor %vm1147, %vm1148
    %v1150 = vsel %vm1149, %v1141, %v1146
    %v1151 = vrsqrt.pop %v1098
    %v1152 = vmul.f32 %v1151, %v1098
    %v1153 = vmul.f32 %v1152, %v1151
    %v1154 = vmul.f32 0.5, %v1153
    %v1155 = vsub.f32 1.5, %v1154
    %v1156 = vmul.f32 %v1151, %v1155
    %vm1157 = vweird.f32 %v1098
    %vm1158 = vweird.f32 %v1151
    %vm1159 = vmor %vm1157, %vm1158
    %v1160 = vsel %vm1159, %v1151, %v1156
    %v1161 = vrsqrt.pop %v1099
    %v1162 = vmul.f32 %v1161, %v1099
    %v1163 = vmul.f32 %v1162, %v1161
    %v1164 = vmul.f32 0.5, %v1163
    %v1165 = vsub.f32 1.5, %v1164
    %v1166 = vmul.f32 %v1161, %v1165
    %vm1167 = vweird.f32 %v1099
    %vm1168 = vweird.f32 %v1161
    %vm1169 = vmor %vm1167, %vm1168
    %v1170 = vsel %vm1169, %v1161, %v1166
    %v1171 = vrsqrt.pop %v1100
    %v1172 = vmul.f32 %v1171, %v1100
    %v1173 = vmul.f32 %v1172, %v1171
    %v1174 = vmul.f32 0.5, %v1173
    %v1175 = vsub.f32 1.5, %v1174
    %v1176 = vmul.f32 %v1171, %v1175
    %vm1177 = vweird.f32 %v1100
    %vm1178 = vweird.f32 %v1171
    %vm1179 = vmor %vm1177, %vm1178
    %v1180 = vsel %vm1179, %v1171, %v1176
    %v1181 = vmul.f32 %v1085, %v1110
    %v1182 = vmul.f32 %v1086, %v1120
    %v1183 = vmul.f32 %v1087, %v1130
    %v1184 = vmul.f32 %v1088, %v1140
    %v1185 = vmul.f32 %v1089, %v1150
    %v1186 = vmul.f32 %v1090, %v1160
    %v1187 = vmul.f32 %v1091, %v1170
    %v1188 = vmul.f32 %v1092, %v1180
    %v1189 = vperm.slane %v996, 0
    %v1191 = vsel %vm385, %v1181, 0
    %v1194 = vsel %vm385, %v1182, 0
    %v1197 = vsel %vm385, %v1183, 0
    %v1200 = vsel %vm385, %v1184, 0
    %v1203 = vsel %vm385, %v1185, 0
    %v1206 = vsel %vm385, %v1186, 0
    %v1209 = vsel %vm385, %v1187, 0
    %v1212 = vsel %vm385, %v1188, 0
    %1214 = vmatpush.msra.mxu0 0.0
    %1215 = vmatpush.msra.mxu0 0.0
    %1216 = vmatpush.msra.mxu0 0.0
    %1217 = vmatpush.msra.mxu0 0.0
    %1218 = vmatpush.msra.mxu0 0.0
    %1219 = vmatpush.msra.mxu0 0.0
    %1220 = vmatpush.msra.mxu0 0.0
    %1221 = vmatpush.msra.mxu0 0.0
    %1222 = vmatpush.msra.mxu0 0.0
    %1223 = vmatpush.msra.mxu0 0.0
    %1224 = vmatpush.msra.mxu0 0.0
    %1225 = vmatpush.msra.mxu0 0.0
    %1226 = vmatpush.msra.mxu0 %v972
    %1227 = vmatpush.msra.mxu0 %v971
    %1228 = vmatpush.msra.mxu0 %v970
    %1229 = vmatpush.msra.mxu0 %v969
    %1230 = vmatmul.f32.gmra.mxu0 %v1191
    %v1231 = vpop.f32.mrf.mxu0
    %v1232 = vadd.f32 %v1189, %v1231
    %1233 = vmatmul.f32.gmra.mxu0 %v1194
    %v1234 = vpop.f32.mrf.mxu0
    %v1235 = vadd.f32 %v1189, %v1234
    %1236 = vmatmul.f32.gmra.mxu0 %v1197
    %v1237 = vpop.f32.mrf.mxu0
    %v1238 = vadd.f32 %v1189, %v1237
    %1239 = vmatmul.f32.gmra.mxu0 %v1200
    %v1240 = vpop.f32.mrf.mxu0
    %v1241 = vadd.f32 %v1189, %v1240
    %1242 = vmatmul.f32.gmra.mxu0 %v1203
    %v1243 = vpop.f32.mrf.mxu0
    %v1244 = vadd.f32 %v1189, %v1243
    %1245 = vmatmul.f32.gmra.mxu0 %v1206
    %v1246 = vpop.f32.mrf.mxu0
    %v1247 = vadd.f32 %v1189, %v1246
    %1248 = vmatmul.f32.gmra.mxu0 %v1209
    %v1249 = vpop.f32.mrf.mxu0
    %v1250 = vadd.f32 %v1189, %v1249
    %1251 = vmatmul.f32.gmra.mxu0 %v1212
    %v1252 = vpop.f32.mrf.mxu0
    %v1253 = vadd.f32 %v1189, %v1252
    %1254 = vdwg.mxu0
    %v1255 = vadd.f32 %v960, %v1232
    %v1256 = vadd.f32 %v961, %v1235
    %v1257 = vadd.f32 %v962, %v1238
    %v1258 = vadd.f32 %v963, %v1241
    %v1259 = vadd.f32 %v964, %v1244
    %v1260 = vadd.f32 %v965, %v1247
    %v1261 = vadd.f32 %v966, %v1250
    %v1262 = vadd.f32 %v967, %v1253
    %v1263 = vsel %vm385, %v1255, 0.0
    %1264 = vadd.xlane.f32.xlu0 %v1263
    %v1265 = vpop.xlane.xlu0 %1264
    %v1266 = vsel %vm385, %v1256, 0.0
    %1267 = vadd.xlane.f32.xlu0 %v1266
    %v1268 = vpop.xlane.xlu0 %1267
    %v1269 = vsel %vm385, %v1257, 0.0
    %1270 = vadd.xlane.f32.xlu0 %v1269
    %v1271 = vpop.xlane.xlu0 %1270
    %v1272 = vsel %vm385, %v1258, 0.0
    %1273 = vadd.xlane.f32.xlu0 %v1272
    %v1274 = vpop.xlane.xlu0 %1273
    %v1275 = vsel %vm385, %v1259, 0.0
    %1276 = vadd.xlane.f32.xlu0 %v1275
    %v1277 = vpop.xlane.xlu0 %1276
    %v1278 = vsel %vm385, %v1260, 0.0
    %1279 = vadd.xlane.f32.xlu0 %v1278
    %v1280 = vpop.xlane.xlu0 %1279
    %v1281 = vsel %vm385, %v1261, 0.0
    %1282 = vadd.xlane.f32.xlu0 %v1281
    %v1283 = vpop.xlane.xlu0 %1282
    %v1284 = vsel %vm385, %v1262, 0.0
    %1285 = vadd.xlane.f32.xlu0 %v1284
    %v1286 = vpop.xlane.xlu0 %1285
    %v1287 = vmul.f32 %v1255, %v1255
    %v1288 = vmul.f32 %v1256, %v1256
    %v1289 = vmul.f32 %v1257, %v1257
    %v1290 = vmul.f32 %v1258, %v1258
    %v1291 = vmul.f32 %v1259, %v1259
    %v1292 = vmul.f32 %v1260, %v1260
    %v1293 = vmul.f32 %v1261, %v1261
    %v1294 = vmul.f32 %v1262, %v1262
    %v1295 = vsel %vm385, %v1287, 0.0
    %1296 = vadd.xlane.f32.xlu0 %v1295
    %v1297 = vpop.xlane.xlu0 %1296
    %v1298 = vsel %vm385, %v1288, 0.0
    %1299 = vadd.xlane.f32.xlu0 %v1298
    %v1300 = vpop.xlane.xlu0 %1299
    %v1301 = vsel %vm385, %v1289, 0.0
    %1302 = vadd.xlane.f32.xlu0 %v1301
    %v1303 = vpop.xlane.xlu0 %1302
    %v1304 = vsel %vm385, %v1290, 0.0
    %1305 = vadd.xlane.f32.xlu0 %v1304
    %v1306 = vpop.xlane.xlu0 %1305
    %v1307 = vsel %vm385, %v1291, 0.0
    %1308 = vadd.xlane.f32.xlu0 %v1307
    %v1309 = vpop.xlane.xlu0 %1308
    %v1310 = vsel %vm385, %v1292, 0.0
    %1311 = vadd.xlane.f32.xlu0 %v1310
    %v1312 = vpop.xlane.xlu0 %1311
    %v1313 = vsel %vm385, %v1293, 0.0
    %1314 = vadd.xlane.f32.xlu0 %v1313
    %v1315 = vpop.xlane.xlu0 %1314
    %v1316 = vsel %vm385, %v1294, 0.0
    %1317 = vadd.xlane.f32.xlu0 %v1316
    %v1318 = vpop.xlane.xlu0 %1317
    %v1319 = vmul.f32 %v1265, 0.03125
    %v1320 = vmul.f32 %v1268, 0.03125
    %v1321 = vmul.f32 %v1271, 0.03125
    %v1322 = vmul.f32 %v1274, 0.03125
    %v1323 = vmul.f32 %v1277, 0.03125
    %v1324 = vmul.f32 %v1280, 0.03125
    %v1325 = vmul.f32 %v1283, 0.03125
    %v1326 = vmul.f32 %v1286, 0.03125
    %v1327 = vmul.f32 %v1297, 0.03125
    %v1328 = vmul.f32 %v1300, 0.03125
    %v1329 = vmul.f32 %v1303, 0.03125
    %v1330 = vmul.f32 %v1306, 0.03125
    %v1331 = vmul.f32 %v1309, 0.03125
    %v1332 = vmul.f32 %v1312, 0.03125
    %v1333 = vmul.f32 %v1315, 0.03125
    %v1334 = vmul.f32 %v1318, 0.03125
    %v1335 = vmul.f32 %v1319, %v1319
    %v1336 = vmul.f32 %v1320, %v1320
    %v1337 = vmul.f32 %v1321, %v1321
    %v1338 = vmul.f32 %v1322, %v1322
    %v1339 = vmul.f32 %v1323, %v1323
    %v1340 = vmul.f32 %v1324, %v1324
    %v1341 = vmul.f32 %v1325, %v1325
    %v1342 = vmul.f32 %v1326, %v1326
    %v1343 = vsub.f32 %v1327, %v1335
    %v1344 = vsub.f32 %v1328, %v1336
    %v1345 = vsub.f32 %v1329, %v1337
    %v1346 = vsub.f32 %v1330, %v1338
    %v1347 = vsub.f32 %v1331, %v1339
    %v1348 = vsub.f32 %v1332, %v1340
    %v1349 = vsub.f32 %v1333, %v1341
    %v1350 = vsub.f32 %v1334, %v1342
    %v1351 = vsub.f32 %v1255, %v1319
    %v1352 = vsub.f32 %v1256, %v1320
    %v1353 = vsub.f32 %v1257, %v1321
    %v1354 = vsub.f32 %v1258, %v1322
    %v1355 = vsub.f32 %v1259, %v1323
    %v1356 = vsub.f32 %v1260, %v1324
    %v1357 = vsub.f32 %v1261, %v1325
    %v1358 = vsub.f32 %v1262, %v1326
    %v1359 = vadd.f32 %v1343, 1e-05
    %v1360 = vadd.f32 %v1344, 1e-05
    %v1361 = vadd.f32 %v1345, 1e-05
    %v1362 = vadd.f32 %v1346, 1e-05
    %v1363 = vadd.f32 %v1347, 1e-05
    %v1364 = vadd.f32 %v1348, 1e-05
    %v1365 = vadd.f32 %v1349, 1e-05
    %v1366 = vadd.f32 %v1350, 1e-05
    %v1367 = vrsqrt.pop %v1359
    %v1368 = vmul.f32 %v1367, %v1359
    %v1369 = vmul.f32 %v1368, %v1367
    %v1370 = vmul.f32 0.5, %v1369
    %v1371 = vsub.f32 1.5, %v1370
    %v1372 = vmul.f32 %v1367, %v1371
    %vm1373 = vweird.f32 %v1359
    %vm1374 = vweird.f32 %v1367
    %vm1375 = vmor %vm1373, %vm1374
    %v1376 = vsel %vm1375, %v1367, %v1372
    %v1377 = vrsqrt.pop %v1360
    %v1378 = vmul.f32 %v1377, %v1360
    %v1379 = vmul.f32 %v1378, %v1377
    %v1380 = vmul.f32 0.5, %v1379
    %v1381 = vsub.f32 1.5, %v1380
    %v1382 = vmul.f32 %v1377, %v1381
    %vm1383 = vweird.f32 %v1360
    %vm1384 = vweird.f32 %v1377
    %vm1385 = vmor %vm1383, %vm1384
    %v1386 = vsel %vm1385, %v1377, %v1382
    %v1387 = vrsqrt.pop %v1361
    %v1388 = vmul.f32 %v1387, %v1361
    %v1389 = vmul.f32 %v1388, %v1387
    %v1390 = vmul.f32 0.5, %v1389
    %v1391 = vsub.f32 1.5, %v1390
    %v1392 = vmul.f32 %v1387, %v1391
    %vm1393 = vweird.f32 %v1361
    %vm1394 = vweird.f32 %v1387
    %vm1395 = vmor %vm1393, %vm1394
    %v1396 = vsel %vm1395, %v1387, %v1392
    %v1397 = vrsqrt.pop %v1362
    %v1398 = vmul.f32 %v1397, %v1362
    %v1399 = vmul.f32 %v1398, %v1397
    %v1400 = vmul.f32 0.5, %v1399
    %v1401 = vsub.f32 1.5, %v1400
    %v1402 = vmul.f32 %v1397, %v1401
    %vm1403 = vweird.f32 %v1362
    %vm1404 = vweird.f32 %v1397
    %vm1405 = vmor %vm1403, %vm1404
    %v1406 = vsel %vm1405, %v1397, %v1402
    %v1407 = vrsqrt.pop %v1363
    %v1408 = vmul.f32 %v1407, %v1363
    %v1409 = vmul.f32 %v1408, %v1407
    %v1410 = vmul.f32 0.5, %v1409
    %v1411 = vsub.f32 1.5, %v1410
    %v1412 = vmul.f32 %v1407, %v1411
    %vm1413 = vweird.f32 %v1363
    %vm1414 = vweird.f32 %v1407
    %vm1415 = vmor %vm1413, %vm1414
    %v1416 = vsel %vm1415, %v1407, %v1412
    %v1417 = vrsqrt.pop %v1364
    %v1418 = vmul.f32 %v1417, %v1364
    %v1419 = vmul.f32 %v1418, %v1417
    %v1420 = vmul.f32 0.5, %v1419
    %v1421 = vsub.f32 1.5, %v1420
    %v1422 = vmul.f32 %v1417, %v1421
    %vm1423 = vweird.f32 %v1364
    %vm1424 = vweird.f32 %v1417
    %vm1425 = vmor %vm1423, %vm1424
    %v1426 = vsel %vm1425, %v1417, %v1422
    %v1427 = vrsqrt.pop %v1365
    %v1428 = vmul.f32 %v1427, %v1365
    %v1429 = vmul.f32 %v1428, %v1427
    %v1430 = vmul.f32 0.5, %v1429
    %v1431 = vsub.f32 1.5, %v1430
    %v1432 = vmul.f32 %v1427, %v1431
    %vm1433 = vweird.f32 %v1365
    %vm1434 = vweird.f32 %v1427
    %vm1435 = vmor %vm1433, %vm1434
    %v1436 = vsel %vm1435, %v1427, %v1432
    %v1437 = vrsqrt.pop %v1366
    %v1438 = vmul.f32 %v1437, %v1366
    %v1439 = vmul.f32 %v1438, %v1437
    %v1440 = vmul.f32 0.5, %v1439
    %v1441 = vsub.f32 1.5, %v1440
    %v1442 = vmul.f32 %v1437, %v1441
    %vm1443 = vweird.f32 %v1366
    %vm1444 = vweird.f32 %v1437
    %vm1445 = vmor %vm1443, %vm1444
    %v1446 = vsel %vm1445, %v1437, %v1442
    %v1447 = vmul.f32 %v1351, %v1376
    %v1448 = vmul.f32 %v1352, %v1386
    %v1449 = vmul.f32 %v1353, %v1396
    %v1450 = vmul.f32 %v1354, %v1406
    %v1451 = vmul.f32 %v1355, %v1416
    %v1452 = vmul.f32 %v1356, %v1426
    %v1453 = vmul.f32 %v1357, %v1436
    %v1454 = vmul.f32 %v1358, %v1446
    %v1455 = vperm.slane %v996, 2
    %v1457 = vsel %vm385, %v1447, 0
    %v1460 = vsel %vm385, %v1448, 0
    %v1463 = vsel %vm385, %v1449, 0
    %v1466 = vsel %vm385, %v1450, 0
    %v1469 = vsel %vm385, %v1451, 0
    %v1472 = vsel %vm385, %v1452, 0
    %v1475 = vsel %vm385, %v1453, 0
    %v1478 = vsel %vm385, %v1454, 0
    %1480 = vmatpush.msra.mxu0 0.0
    %1481 = vmatpush.msra.mxu0 0.0
    %1482 = vmatpush.msra.mxu0 0.0
    %1483 = vmatpush.msra.mxu0 0.0
    %1484 = vmatpush.msra.mxu0 0.0
    %1485 = vmatpush.msra.mxu0 0.0
    %1486 = vmatpush.msra.mxu0 0.0
    %1487 = vmatpush.msra.mxu0 0.0
    %1488 = vmatpush.msra.mxu0 0.0
    %1489 = vmatpush.msra.mxu0 0.0
    %1490 = vmatpush.msra.mxu0 0.0
    %1491 = vmatpush.msra.mxu0 0.0
    %1492 = vmatpush.msra.mxu0 %v977
    %1493 = vmatpush.msra.mxu0 %v976
    %1494 = vmatpush.msra.mxu0 %v975
    %1495 = vmatpush.msra.mxu0 %v974
    %1496 = vmatmul.f32.gmra.mxu0 %v1457
    %v1497 = vpop.f32.mrf.mxu0
    %v1498 = vadd.f32 %v1455, %v1497
    %1499 = vmatmul.f32.gmra.mxu0 %v1460
    %v1500 = vpop.f32.mrf.mxu0
    %v1501 = vadd.f32 %v1455, %v1500
    %1502 = vmatmul.f32.gmra.mxu0 %v1463
    %v1503 = vpop.f32.mrf.mxu0
    %v1504 = vadd.f32 %v1455, %v1503
    %1505 = vmatmul.f32.gmra.mxu0 %v1466
    %v1506 = vpop.f32.mrf.mxu0
    %v1507 = vadd.f32 %v1455, %v1506
    %1508 = vmatmul.f32.gmra.mxu0 %v1469
    %v1509 = vpop.f32.mrf.mxu0
    %v1510 = vadd.f32 %v1455, %v1509
    %1511 = vmatmul.f32.gmra.mxu0 %v1472
    %v1512 = vpop.f32.mrf.mxu0
    %v1513 = vadd.f32 %v1455, %v1512
    %1514 = vmatmul.f32.gmra.mxu0 %v1475
    %v1515 = vpop.f32.mrf.mxu0
    %v1516 = vadd.f32 %v1455, %v1515
    %1517 = vmatmul.f32.gmra.mxu0 %v1478
    %v1518 = vpop.f32.mrf.mxu0
    %v1519 = vadd.f32 %v1455, %v1518
    %1520 = vdwg.mxu0
    %v1521 = vmax.f32 %v1498, 0.0
    %v1522 = vmax.f32 %v1501, 0.0
    %v1523 = vmax.f32 %v1504, 0.0
    %v1524 = vmax.f32 %v1507, 0.0
    %v1525 = vmax.f32 %v1510, 0.0
    %v1526 = vmax.f32 %v1513, 0.0
    %v1527 = vmax.f32 %v1516, 0.0
    %v1528 = vmax.f32 %v1519, 0.0
    %v1529 = vperm.slane %v996, 1
    %1530 = vmatpush.msra.mxu0 %v994
    %1531 = vmatpush.msra.mxu0 %v993
    %1532 = vmatpush.msra.mxu0 %v992
    %1533 = vmatpush.msra.mxu0 %v991
    %1534 = vmatpush.msra.mxu0 %v990
    %1535 = vmatpush.msra.mxu0 %v989
    %1536 = vmatpush.msra.mxu0 %v988
    %1537 = vmatpush.msra.mxu0 %v987
    %1538 = vmatpush.msra.mxu0 %v986
    %1539 = vmatpush.msra.mxu0 %v985
    %1540 = vmatpush.msra.mxu0 %v984
    %1541 = vmatpush.msra.mxu0 %v983
    %1542 = vmatpush.msra.mxu0 %v982
    %1543 = vmatpush.msra.mxu0 %v981
    %1544 = vmatpush.msra.mxu0 %v980
    %1545 = vmatpush.msra.mxu0 %v979
    %1546 = vmatmul.f32.gmra.mxu0 %v1521
    %v1547 = vpop.f32.mrf.mxu0
    %v1548 = vadd.f32 %v1529, %v1547
    %1549 = vmatmul.f32.gmra.mxu0 %v1522
    %v1550 = vpop.f32.mrf.mxu0
    %v1551 = vadd.f32 %v1529, %v1550
    %1552 = vmatmul.f32.gmra.mxu0 %v1523
    %v1553 = vpop.f32.mrf.mxu0
    %v1554 = vadd.f32 %v1529, %v1553
    %1555 = vmatmul.f32.gmra.mxu0 %v1524
    %v1556 = vpop.f32.mrf.mxu0
    %v1557 = vadd.f32 %v1529, %v1556
    %1558 = vmatmul.f32.gmra.mxu0 %v1525
    %v1559 = vpop.f32.mrf.mxu0
    %v1560 = vadd.f32 %v1529, %v1559
    %1561 = vmatmul.f32.gmra.mxu0 %v1526
    %v1562 = vpop.f32.mrf.mxu0
    %v1563 = vadd.f32 %v1529, %v1562
    %1564 = vmatmul.f32.gmra.mxu0 %v1527
    %v1565 = vpop.f32.mrf.mxu0
    %v1566 = vadd.f32 %v1529, %v1565
    %1567 = vmatmul.f32.gmra.mxu0 %v1528
    %v1568 = vpop.f32.mrf.mxu0
    %v1569 = vadd.f32 %v1529, %v1568
    %1570 = vdwg.mxu0
    %v1571 = vadd.f32 %v1255, %v1548
    %v1572 = vadd.f32 %v1256, %v1551
    %v1573 = vadd.f32 %v1257, %v1554
    %v1574 = vadd.f32 %v1258, %v1557
    %v1575 = vadd.f32 %v1259, %v1560
    %v1576 = vadd.f32 %v1260, %v1563
    %v1577 = vadd.f32 %v1261, %v1566
    %v1578 = vadd.f32 %v1262, %v1569
    %s1579 = scalar_lea.vmem %s3, 64
    %v1580 = vld [vmem:[%s1579] sm:$0xff]
    %v1581 = vld [vmem:[%s1579 + $0x8] sm:$0xff]
    %v1582 = vld [vmem:[%s1579 + $0x10] sm:$0xff]
    %v1583 = vld [vmem:[%s1579 + $0x18] sm:$0xff]
    %s1584 = scalar_lea.vmem %s4, 64
    %v1585 = vld [vmem:[%s1584] sm:$0xff]
    %v1586 = vld [vmem:[%s1584 + $0x8] sm:$0xff]
    %v1587 = vld [vmem:[%s1584 + $0x10] sm:$0xff]
    %v1588 = vld [vmem:[%s1584 + $0x18] sm:$0xff]
    %s1589 = scalar_lea.vmem %s5, 256
    %v1590 = vld [vmem:[%s1589] sm:$0xff]
    %v1591 = vld [vmem:[%s1589 + $0x8] sm:$0xff]
    %v1592 = vld [vmem:[%s1589 + $0x10] sm:$0xff]
    %v1593 = vld [vmem:[%s1589 + $0x18] sm:$0xff]
    %v1594 = vld [vmem:[%s1589 + $0x20] sm:$0xff]
    %v1595 = vld [vmem:[%s1589 + $0x28] sm:$0xff]
    %v1596 = vld [vmem:[%s1589 + $0x30] sm:$0xff]
    %v1597 = vld [vmem:[%s1589 + $0x38] sm:$0xff]
    %v1598 = vld [vmem:[%s1589 + $0x40] sm:$0xff]
    %v1599 = vld [vmem:[%s1589 + $0x48] sm:$0xff]
    %v1600 = vld [vmem:[%s1589 + $0x50] sm:$0xff]
    %v1601 = vld [vmem:[%s1589 + $0x58] sm:$0xff]
    %v1602 = vld [vmem:[%s1589 + $0x60] sm:$0xff]
    %v1603 = vld [vmem:[%s1589 + $0x68] sm:$0xff]
    %v1604 = vld [vmem:[%s1589 + $0x70] sm:$0xff]
    %v1605 = vld [vmem:[%s1589 + $0x78] sm:$0xff]
    %s1606 = scalar_lea.vmem %s6, 8
    %v1607 = vld [vmem:[%s1606] sm:$0x7]
    %v1608 = vsel %vm385, %v1571, 0.0
    %1609 = vadd.xlane.f32.xlu0 %v1608
    %v1610 = vpop.xlane.xlu0 %1609
    %v1611 = vsel %vm385, %v1572, 0.0
    %1612 = vadd.xlane.f32.xlu0 %v1611
    %v1613 = vpop.xlane.xlu0 %1612
    %v1614 = vsel %vm385, %v1573, 0.0
    %1615 = vadd.xlane.f32.xlu0 %v1614
    %v1616 = vpop.xlane.xlu0 %1615
    %v1617 = vsel %vm385, %v1574, 0.0
    %1618 = vadd.xlane.f32.xlu0 %v1617
    %v1619 = vpop.xlane.xlu0 %1618
    %v1620 = vsel %vm385, %v1575, 0.0
    %1621 = vadd.xlane.f32.xlu0 %v1620
    %v1622 = vpop.xlane.xlu0 %1621
    %v1623 = vsel %vm385, %v1576, 0.0
    %1624 = vadd.xlane.f32.xlu0 %v1623
    %v1625 = vpop.xlane.xlu0 %1624
    %v1626 = vsel %vm385, %v1577, 0.0
    %1627 = vadd.xlane.f32.xlu0 %v1626
    %v1628 = vpop.xlane.xlu0 %1627
    %v1629 = vsel %vm385, %v1578, 0.0
    %1630 = vadd.xlane.f32.xlu0 %v1629
    %v1631 = vpop.xlane.xlu0 %1630
    %v1632 = vmul.f32 %v1571, %v1571
    %v1633 = vmul.f32 %v1572, %v1572
    %v1634 = vmul.f32 %v1573, %v1573
    %v1635 = vmul.f32 %v1574, %v1574
    %v1636 = vmul.f32 %v1575, %v1575
    %v1637 = vmul.f32 %v1576, %v1576
    %v1638 = vmul.f32 %v1577, %v1577
    %v1639 = vmul.f32 %v1578, %v1578
    %v1640 = vsel %vm385, %v1632, 0.0
    %1641 = vadd.xlane.f32.xlu0 %v1640
    %v1642 = vpop.xlane.xlu0 %1641
    %v1643 = vsel %vm385, %v1633, 0.0
    %1644 = vadd.xlane.f32.xlu0 %v1643
    %v1645 = vpop.xlane.xlu0 %1644
    %v1646 = vsel %vm385, %v1634, 0.0
    %1647 = vadd.xlane.f32.xlu0 %v1646
    %v1648 = vpop.xlane.xlu0 %1647
    %v1649 = vsel %vm385, %v1635, 0.0
    %1650 = vadd.xlane.f32.xlu0 %v1649
    %v1651 = vpop.xlane.xlu0 %1650
    %v1652 = vsel %vm385, %v1636, 0.0
    %1653 = vadd.xlane.f32.xlu0 %v1652
    %v1654 = vpop.xlane.xlu0 %1653
    %v1655 = vsel %vm385, %v1637, 0.0
    %1656 = vadd.xlane.f32.xlu0 %v1655
    %v1657 = vpop.xlane.xlu0 %1656
    %v1658 = vsel %vm385, %v1638, 0.0
    %1659 = vadd.xlane.f32.xlu0 %v1658
    %v1660 = vpop.xlane.xlu0 %1659
    %v1661 = vsel %vm385, %v1639, 0.0
    %1662 = vadd.xlane.f32.xlu0 %v1661
    %v1663 = vpop.xlane.xlu0 %1662
    %v1664 = vmul.f32 %v1610, 0.03125
    %v1665 = vmul.f32 %v1613, 0.03125
    %v1666 = vmul.f32 %v1616, 0.03125
    %v1667 = vmul.f32 %v1619, 0.03125
    %v1668 = vmul.f32 %v1622, 0.03125
    %v1669 = vmul.f32 %v1625, 0.03125
    %v1670 = vmul.f32 %v1628, 0.03125
    %v1671 = vmul.f32 %v1631, 0.03125
    %v1672 = vmul.f32 %v1642, 0.03125
    %v1673 = vmul.f32 %v1645, 0.03125
    %v1674 = vmul.f32 %v1648, 0.03125
    %v1675 = vmul.f32 %v1651, 0.03125
    %v1676 = vmul.f32 %v1654, 0.03125
    %v1677 = vmul.f32 %v1657, 0.03125
    %v1678 = vmul.f32 %v1660, 0.03125
    %v1679 = vmul.f32 %v1663, 0.03125
    %v1680 = vmul.f32 %v1664, %v1664
    %v1681 = vmul.f32 %v1665, %v1665
    %v1682 = vmul.f32 %v1666, %v1666
    %v1683 = vmul.f32 %v1667, %v1667
    %v1684 = vmul.f32 %v1668, %v1668
    %v1685 = vmul.f32 %v1669, %v1669
    %v1686 = vmul.f32 %v1670, %v1670
    %v1687 = vmul.f32 %v1671, %v1671
    %v1688 = vsub.f32 %v1672, %v1680
    %v1689 = vsub.f32 %v1673, %v1681
    %v1690 = vsub.f32 %v1674, %v1682
    %v1691 = vsub.f32 %v1675, %v1683
    %v1692 = vsub.f32 %v1676, %v1684
    %v1693 = vsub.f32 %v1677, %v1685
    %v1694 = vsub.f32 %v1678, %v1686
    %v1695 = vsub.f32 %v1679, %v1687
    %v1696 = vsub.f32 %v1571, %v1664
    %v1697 = vsub.f32 %v1572, %v1665
    %v1698 = vsub.f32 %v1573, %v1666
    %v1699 = vsub.f32 %v1574, %v1667
    %v1700 = vsub.f32 %v1575, %v1668
    %v1701 = vsub.f32 %v1576, %v1669
    %v1702 = vsub.f32 %v1577, %v1670
    %v1703 = vsub.f32 %v1578, %v1671
    %v1704 = vadd.f32 %v1688, 1e-05
    %v1705 = vadd.f32 %v1689, 1e-05
    %v1706 = vadd.f32 %v1690, 1e-05
    %v1707 = vadd.f32 %v1691, 1e-05
    %v1708 = vadd.f32 %v1692, 1e-05
    %v1709 = vadd.f32 %v1693, 1e-05
    %v1710 = vadd.f32 %v1694, 1e-05
    %v1711 = vadd.f32 %v1695, 1e-05
    %v1712 = vrsqrt.pop %v1704
    %v1713 = vmul.f32 %v1712, %v1704
    %v1714 = vmul.f32 %v1713, %v1712
    %v1715 = vmul.f32 0.5, %v1714
    %v1716 = vsub.f32 1.5, %v1715
    %v1717 = vmul.f32 %v1712, %v1716
    %vm1718 = vweird.f32 %v1704
    %vm1719 = vweird.f32 %v1712
    %vm1720 = vmor %vm1718, %vm1719
    %v1721 = vsel %vm1720, %v1712, %v1717
    %v1722 = vrsqrt.pop %v1705
    %v1723 = vmul.f32 %v1722, %v1705
    %v1724 = vmul.f32 %v1723, %v1722
    %v1725 = vmul.f32 0.5, %v1724
    %v1726 = vsub.f32 1.5, %v1725
    %v1727 = vmul.f32 %v1722, %v1726
    %vm1728 = vweird.f32 %v1705
    %vm1729 = vweird.f32 %v1722
    %vm1730 = vmor %vm1728, %vm1729
    %v1731 = vsel %vm1730, %v1722, %v1727
    %v1732 = vrsqrt.pop %v1706
    %v1733 = vmul.f32 %v1732, %v1706
    %v1734 = vmul.f32 %v1733, %v1732
    %v1735 = vmul.f32 0.5, %v1734
    %v1736 = vsub.f32 1.5, %v1735
    %v1737 = vmul.f32 %v1732, %v1736
    %vm1738 = vweird.f32 %v1706
    %vm1739 = vweird.f32 %v1732
    %vm1740 = vmor %vm1738, %vm1739
    %v1741 = vsel %vm1740, %v1732, %v1737
    %v1742 = vrsqrt.pop %v1707
    %v1743 = vmul.f32 %v1742, %v1707
    %v1744 = vmul.f32 %v1743, %v1742
    %v1745 = vmul.f32 0.5, %v1744
    %v1746 = vsub.f32 1.5, %v1745
    %v1747 = vmul.f32 %v1742, %v1746
    %vm1748 = vweird.f32 %v1707
    %vm1749 = vweird.f32 %v1742
    %vm1750 = vmor %vm1748, %vm1749
    %v1751 = vsel %vm1750, %v1742, %v1747
    %v1752 = vrsqrt.pop %v1708
    %v1753 = vmul.f32 %v1752, %v1708
    %v1754 = vmul.f32 %v1753, %v1752
    %v1755 = vmul.f32 0.5, %v1754
    %v1756 = vsub.f32 1.5, %v1755
    %v1757 = vmul.f32 %v1752, %v1756
    %vm1758 = vweird.f32 %v1708
    %vm1759 = vweird.f32 %v1752
    %vm1760 = vmor %vm1758, %vm1759
    %v1761 = vsel %vm1760, %v1752, %v1757
    %v1762 = vrsqrt.pop %v1709
    %v1763 = vmul.f32 %v1762, %v1709
    %v1764 = vmul.f32 %v1763, %v1762
    %v1765 = vmul.f32 0.5, %v1764
    %v1766 = vsub.f32 1.5, %v1765
    %v1767 = vmul.f32 %v1762, %v1766
    %vm1768 = vweird.f32 %v1709
    %vm1769 = vweird.f32 %v1762
    %vm1770 = vmor %vm1768, %vm1769
    %v1771 = vsel %vm1770, %v1762, %v1767
    %v1772 = vrsqrt.pop %v1710
    %v1773 = vmul.f32 %v1772, %v1710
    %v1774 = vmul.f32 %v1773, %v1772
    %v1775 = vmul.f32 0.5, %v1774
    %v1776 = vsub.f32 1.5, %v1775
    %v1777 = vmul.f32 %v1772, %v1776
    %vm1778 = vweird.f32 %v1710
    %vm1779 = vweird.f32 %v1772
    %vm1780 = vmor %vm1778, %vm1779
    %v1781 = vsel %vm1780, %v1772, %v1777
    %v1782 = vrsqrt.pop %v1711
    %v1783 = vmul.f32 %v1782, %v1711
    %v1784 = vmul.f32 %v1783, %v1782
    %v1785 = vmul.f32 0.5, %v1784
    %v1786 = vsub.f32 1.5, %v1785
    %v1787 = vmul.f32 %v1782, %v1786
    %vm1788 = vweird.f32 %v1711
    %vm1789 = vweird.f32 %v1782
    %vm1790 = vmor %vm1788, %vm1789
    %v1791 = vsel %vm1790, %v1782, %v1787
    %v1792 = vmul.f32 %v1696, %v1721
    %v1793 = vmul.f32 %v1697, %v1731
    %v1794 = vmul.f32 %v1698, %v1741
    %v1795 = vmul.f32 %v1699, %v1751
    %v1796 = vmul.f32 %v1700, %v1761
    %v1797 = vmul.f32 %v1701, %v1771
    %v1798 = vmul.f32 %v1702, %v1781
    %v1799 = vmul.f32 %v1703, %v1791
    %v1800 = vperm.slane %v1607, 0
    %v1802 = vsel %vm385, %v1792, 0
    %v1805 = vsel %vm385, %v1793, 0
    %v1808 = vsel %vm385, %v1794, 0
    %v1811 = vsel %vm385, %v1795, 0
    %v1814 = vsel %vm385, %v1796, 0
    %v1817 = vsel %vm385, %v1797, 0
    %v1820 = vsel %vm385, %v1798, 0
    %v1823 = vsel %vm385, %v1799, 0
    %1825 = vmatpush.msra.mxu0 0.0
    %1826 = vmatpush.msra.mxu0 0.0
    %1827 = vmatpush.msra.mxu0 0.0
    %1828 = vmatpush.msra.mxu0 0.0
    %1829 = vmatpush.msra.mxu0 0.0
    %1830 = vmatpush.msra.mxu0 0.0
    %1831 = vmatpush.msra.mxu0 0.0
    %1832 = vmatpush.msra.mxu0 0.0
    %1833 = vmatpush.msra.mxu0 0.0
    %1834 = vmatpush.msra.mxu0 0.0
    %1835 = vmatpush.msra.mxu0 0.0
    %1836 = vmatpush.msra.mxu0 0.0
    %1837 = vmatpush.msra.mxu0 %v1583
    %1838 = vmatpush.msra.mxu0 %v1582
    %1839 = vmatpush.msra.mxu0 %v1581
    %1840 = vmatpush.msra.mxu0 %v1580
    %1841 = vmatmul.f32.gmra.mxu0 %v1802
    %v1842 = vpop.f32.mrf.mxu0
    %v1843 = vadd.f32 %v1800, %v1842
    %1844 = vmatmul.f32.gmra.mxu0 %v1805
    %v1845 = vpop.f32.mrf.mxu0
    %v1846 = vadd.f32 %v1800, %v1845
    %1847 = vmatmul.f32.gmra.mxu0 %v1808
    %v1848 = vpop.f32.mrf.mxu0
    %v1849 = vadd.f32 %v1800, %v1848
    %1850 = vmatmul.f32.gmra.mxu0 %v1811
    %v1851 = vpop.f32.mrf.mxu0
    %v1852 = vadd.f32 %v1800, %v1851
    %1853 = vmatmul.f32.gmra.mxu0 %v1814
    %v1854 = vpop.f32.mrf.mxu0
    %v1855 = vadd.f32 %v1800, %v1854
    %1856 = vmatmul.f32.gmra.mxu0 %v1817
    %v1857 = vpop.f32.mrf.mxu0
    %v1858 = vadd.f32 %v1800, %v1857
    %1859 = vmatmul.f32.gmra.mxu0 %v1820
    %v1860 = vpop.f32.mrf.mxu0
    %v1861 = vadd.f32 %v1800, %v1860
    %1862 = vmatmul.f32.gmra.mxu0 %v1823
    %v1863 = vpop.f32.mrf.mxu0
    %v1864 = vadd.f32 %v1800, %v1863
    %1865 = vdwg.mxu0
    %v1866 = vadd.f32 %v1571, %v1843
    %v1867 = vadd.f32 %v1572, %v1846
    %v1868 = vadd.f32 %v1573, %v1849
    %v1869 = vadd.f32 %v1574, %v1852
    %v1870 = vadd.f32 %v1575, %v1855
    %v1871 = vadd.f32 %v1576, %v1858
    %v1872 = vadd.f32 %v1577, %v1861
    %v1873 = vadd.f32 %v1578, %v1864
    %v1874 = vsel %vm385, %v1866, 0.0
    %1875 = vadd.xlane.f32.xlu0 %v1874
    %v1876 = vpop.xlane.xlu0 %1875
    %v1877 = vsel %vm385, %v1867, 0.0
    %1878 = vadd.xlane.f32.xlu0 %v1877
    %v1879 = vpop.xlane.xlu0 %1878
    %v1880 = vsel %vm385, %v1868, 0.0
    %1881 = vadd.xlane.f32.xlu0 %v1880
    %v1882 = vpop.xlane.xlu0 %1881
    %v1883 = vsel %vm385, %v1869, 0.0
    %1884 = vadd.xlane.f32.xlu0 %v1883
    %v1885 = vpop.xlane.xlu0 %1884
    %v1886 = vsel %vm385, %v1870, 0.0
    %1887 = vadd.xlane.f32.xlu0 %v1886
    %v1888 = vpop.xlane.xlu0 %1887
    %v1889 = vsel %vm385, %v1871, 0.0
    %1890 = vadd.xlane.f32.xlu0 %v1889
    %v1891 = vpop.xlane.xlu0 %1890
    %v1892 = vsel %vm385, %v1872, 0.0
    %1893 = vadd.xlane.f32.xlu0 %v1892
    %v1894 = vpop.xlane.xlu0 %1893
    %v1895 = vsel %vm385, %v1873, 0.0
    %1896 = vadd.xlane.f32.xlu0 %v1895
    %v1897 = vpop.xlane.xlu0 %1896
    %v1898 = vmul.f32 %v1866, %v1866
    %v1899 = vmul.f32 %v1867, %v1867
    %v1900 = vmul.f32 %v1868, %v1868
    %v1901 = vmul.f32 %v1869, %v1869
    %v1902 = vmul.f32 %v1870, %v1870
    %v1903 = vmul.f32 %v1871, %v1871
    %v1904 = vmul.f32 %v1872, %v1872
    %v1905 = vmul.f32 %v1873, %v1873
    %v1906 = vsel %vm385, %v1898, 0.0
    %1907 = vadd.xlane.f32.xlu0 %v1906
    %v1908 = vpop.xlane.xlu0 %1907
    %v1909 = vsel %vm385, %v1899, 0.0
    %1910 = vadd.xlane.f32.xlu0 %v1909
    %v1911 = vpop.xlane.xlu0 %1910
    %v1912 = vsel %vm385, %v1900, 0.0
    %1913 = vadd.xlane.f32.xlu0 %v1912
    %v1914 = vpop.xlane.xlu0 %1913
    %v1915 = vsel %vm385, %v1901, 0.0
    %1916 = vadd.xlane.f32.xlu0 %v1915
    %v1917 = vpop.xlane.xlu0 %1916
    %v1918 = vsel %vm385, %v1902, 0.0
    %1919 = vadd.xlane.f32.xlu0 %v1918
    %v1920 = vpop.xlane.xlu0 %1919
    %v1921 = vsel %vm385, %v1903, 0.0
    %1922 = vadd.xlane.f32.xlu0 %v1921
    %v1923 = vpop.xlane.xlu0 %1922
    %v1924 = vsel %vm385, %v1904, 0.0
    %1925 = vadd.xlane.f32.xlu0 %v1924
    %v1926 = vpop.xlane.xlu0 %1925
    %v1927 = vsel %vm385, %v1905, 0.0
    %1928 = vadd.xlane.f32.xlu0 %v1927
    %v1929 = vpop.xlane.xlu0 %1928
    %v1930 = vmul.f32 %v1876, 0.03125
    %v1931 = vmul.f32 %v1879, 0.03125
    %v1932 = vmul.f32 %v1882, 0.03125
    %v1933 = vmul.f32 %v1885, 0.03125
    %v1934 = vmul.f32 %v1888, 0.03125
    %v1935 = vmul.f32 %v1891, 0.03125
    %v1936 = vmul.f32 %v1894, 0.03125
    %v1937 = vmul.f32 %v1897, 0.03125
    %v1938 = vmul.f32 %v1908, 0.03125
    %v1939 = vmul.f32 %v1911, 0.03125
    %v1940 = vmul.f32 %v1914, 0.03125
    %v1941 = vmul.f32 %v1917, 0.03125
    %v1942 = vmul.f32 %v1920, 0.03125
    %v1943 = vmul.f32 %v1923, 0.03125
    %v1944 = vmul.f32 %v1926, 0.03125
    %v1945 = vmul.f32 %v1929, 0.03125
    %v1946 = vmul.f32 %v1930, %v1930
    %v1947 = vmul.f32 %v1931, %v1931
    %v1948 = vmul.f32 %v1932, %v1932
    %v1949 = vmul.f32 %v1933, %v1933
    %v1950 = vmul.f32 %v1934, %v1934
    %v1951 = vmul.f32 %v1935, %v1935
    %v1952 = vmul.f32 %v1936, %v1936
    %v1953 = vmul.f32 %v1937, %v1937
    %v1954 = vsub.f32 %v1938, %v1946
    %v1955 = vsub.f32 %v1939, %v1947
    %v1956 = vsub.f32 %v1940, %v1948
    %v1957 = vsub.f32 %v1941, %v1949
    %v1958 = vsub.f32 %v1942, %v1950
    %v1959 = vsub.f32 %v1943, %v1951
    %v1960 = vsub.f32 %v1944, %v1952
    %v1961 = vsub.f32 %v1945, %v1953
    %v1962 = vsub.f32 %v1866, %v1930
    %v1963 = vsub.f32 %v1867, %v1931
    %v1964 = vsub.f32 %v1868, %v1932
    %v1965 = vsub.f32 %v1869, %v1933
    %v1966 = vsub.f32 %v1870, %v1934
    %v1967 = vsub.f32 %v1871, %v1935
    %v1968 = vsub.f32 %v1872, %v1936
    %v1969 = vsub.f32 %v1873, %v1937
    %v1970 = vadd.f32 %v1954, 1e-05
    %v1971 = vadd.f32 %v1955, 1e-05
    %v1972 = vadd.f32 %v1956, 1e-05
    %v1973 = vadd.f32 %v1957, 1e-05
    %v1974 = vadd.f32 %v1958, 1e-05
    %v1975 = vadd.f32 %v1959, 1e-05
    %v1976 = vadd.f32 %v1960, 1e-05
    %v1977 = vadd.f32 %v1961, 1e-05
    %v1978 = vrsqrt.pop %v1970
    %v1979 = vmul.f32 %v1978, %v1970
    %v1980 = vmul.f32 %v1979, %v1978
    %v1981 = vmul.f32 0.5, %v1980
    %v1982 = vsub.f32 1.5, %v1981
    %v1983 = vmul.f32 %v1978, %v1982
    %vm1984 = vweird.f32 %v1970
    %vm1985 = vweird.f32 %v1978
    %vm1986 = vmor %vm1984, %vm1985
    %v1987 = vsel %vm1986, %v1978, %v1983
    %v1988 = vrsqrt.pop %v1971
    %v1989 = vmul.f32 %v1988, %v1971
    %v1990 = vmul.f32 %v1989, %v1988
    %v1991 = vmul.f32 0.5, %v1990
    %v1992 = vsub.f32 1.5, %v1991
    %v1993 = vmul.f32 %v1988, %v1992
    %vm1994 = vweird.f32 %v1971
    %vm1995 = vweird.f32 %v1988
    %vm1996 = vmor %vm1994, %vm1995
    %v1997 = vsel %vm1996, %v1988, %v1993
    %v1998 = vrsqrt.pop %v1972
    %v1999 = vmul.f32 %v1998, %v1972
    %v2000 = vmul.f32 %v1999, %v1998
    %v2001 = vmul.f32 0.5, %v2000
    %v2002 = vsub.f32 1.5, %v2001
    %v2003 = vmul.f32 %v1998, %v2002
    %vm2004 = vweird.f32 %v1972
    %vm2005 = vweird.f32 %v1998
    %vm2006 = vmor %vm2004, %vm2005
    %v2007 = vsel %vm2006, %v1998, %v2003
    %v2008 = vrsqrt.pop %v1973
    %v2009 = vmul.f32 %v2008, %v1973
    %v2010 = vmul.f32 %v2009, %v2008
    %v2011 = vmul.f32 0.5, %v2010
    %v2012 = vsub.f32 1.5, %v2011
    %v2013 = vmul.f32 %v2008, %v2012
    %vm2014 = vweird.f32 %v1973
    %vm2015 = vweird.f32 %v2008
    %vm2016 = vmor %vm2014, %vm2015
    %v2017 = vsel %vm2016, %v2008, %v2013
    %v2018 = vrsqrt.pop %v1974
    %v2019 = vmul.f32 %v2018, %v1974
    %v2020 = vmul.f32 %v2019, %v2018
    %v2021 = vmul.f32 0.5, %v2020
    %v2022 = vsub.f32 1.5, %v2021
    %v2023 = vmul.f32 %v2018, %v2022
    %vm2024 = vweird.f32 %v1974
    %vm2025 = vweird.f32 %v2018
    %vm2026 = vmor %vm2024, %vm2025
    %v2027 = vsel %vm2026, %v2018, %v2023
    %v2028 = vrsqrt.pop %v1975
    %v2029 = vmul.f32 %v2028, %v1975
    %v2030 = vmul.f32 %v2029, %v2028
    %v2031 = vmul.f32 0.5, %v2030
    %v2032 = vsub.f32 1.5, %v2031
    %v2033 = vmul.f32 %v2028, %v2032
    %vm2034 = vweird.f32 %v1975
    %vm2035 = vweird.f32 %v2028
    %vm2036 = vmor %vm2034, %vm2035
    %v2037 = vsel %vm2036, %v2028, %v2033
    %v2038 = vrsqrt.pop %v1976
    %v2039 = vmul.f32 %v2038, %v1976
    %v2040 = vmul.f32 %v2039, %v2038
    %v2041 = vmul.f32 0.5, %v2040
    %v2042 = vsub.f32 1.5, %v2041
    %v2043 = vmul.f32 %v2038, %v2042
    %vm2044 = vweird.f32 %v1976
    %vm2045 = vweird.f32 %v2038
    %vm2046 = vmor %vm2044, %vm2045
    %v2047 = vsel %vm2046, %v2038, %v2043
    %v2048 = vrsqrt.pop %v1977
    %v2049 = vmul.f32 %v2048, %v1977
    %v2050 = vmul.f32 %v2049, %v2048
    %v2051 = vmul.f32 0.5, %v2050
    %v2052 = vsub.f32 1.5, %v2051
    %v2053 = vmul.f32 %v2048, %v2052
    %vm2054 = vweird.f32 %v1977
    %vm2055 = vweird.f32 %v2048
    %vm2056 = vmor %vm2054, %vm2055
    %v2057 = vsel %vm2056, %v2048, %v2053
    %v2058 = vmul.f32 %v1962, %v1987
    %v2059 = vmul.f32 %v1963, %v1997
    %v2060 = vmul.f32 %v1964, %v2007
    %v2061 = vmul.f32 %v1965, %v2017
    %v2062 = vmul.f32 %v1966, %v2027
    %v2063 = vmul.f32 %v1967, %v2037
    %v2064 = vmul.f32 %v1968, %v2047
    %v2065 = vmul.f32 %v1969, %v2057
    %v2066 = vperm.slane %v1607, 2
    %v2068 = vsel %vm385, %v2058, 0
    %v2071 = vsel %vm385, %v2059, 0
    %v2074 = vsel %vm385, %v2060, 0
    %v2077 = vsel %vm385, %v2061, 0
    %v2080 = vsel %vm385, %v2062, 0
    %v2083 = vsel %vm385, %v2063, 0
    %v2086 = vsel %vm385, %v2064, 0
    %v2089 = vsel %vm385, %v2065, 0
    %2091 = vmatpush.msra.mxu0 0.0
    %2092 = vmatpush.msra.mxu0 0.0
    %2093 = vmatpush.msra.mxu0 0.0
    %2094 = vmatpush.msra.mxu0 0.0
    %2095 = vmatpush.msra.mxu0 0.0
    %2096 = vmatpush.msra.mxu0 0.0
    %2097 = vmatpush.msra.mxu0 0.0
    %2098 = vmatpush.msra.mxu0 0.0
    %2099 = vmatpush.msra.mxu0 0.0
    %2100 = vmatpush.msra.mxu0 0.0
    %2101 = vmatpush.msra.mxu0 0.0
    %2102 = vmatpush.msra.mxu0 0.0
    %2103 = vmatpush.msra.mxu0 %v1588
    %2104 = vmatpush.msra.mxu0 %v1587
    %2105 = vmatpush.msra.mxu0 %v1586
    %2106 = vmatpush.msra.mxu0 %v1585
    %2107 = vmatmul.f32.gmra.mxu0 %v2068
    %v2108 = vpop.f32.mrf.mxu0
    %v2109 = vadd.f32 %v2066, %v2108
    %2110 = vmatmul.f32.gmra.mxu0 %v2071
    %v2111 = vpop.f32.mrf.mxu0
    %v2112 = vadd.f32 %v2066, %v2111
    %2113 = vmatmul.f32.gmra.mxu0 %v2074
    %v2114 = vpop.f32.mrf.mxu0
    %v2115 = vadd.f32 %v2066, %v2114
    %2116 = vmatmul.f32.gmra.mxu0 %v2077
    %v2117 = vpop.f32.mrf.mxu0
    %v2118 = vadd.f32 %v2066, %v2117
    %2119 = vmatmul.f32.gmra.mxu0 %v2080
    %v2120 = vpop.f32.mrf.mxu0
    %v2121 = vadd.f32 %v2066, %v2120
    %2122 = vmatmul.f32.gmra.mxu0 %v2083
    %v2123 = vpop.f32.mrf.mxu0
    %v2124 = vadd.f32 %v2066, %v2123
    %2125 = vmatmul.f32.gmra.mxu0 %v2086
    %v2126 = vpop.f32.mrf.mxu0
    %v2127 = vadd.f32 %v2066, %v2126
    %2128 = vmatmul.f32.gmra.mxu0 %v2089
    %v2129 = vpop.f32.mrf.mxu0
    %v2130 = vadd.f32 %v2066, %v2129
    %2131 = vdwg.mxu0
    %v2132 = vmax.f32 %v2109, 0.0
    %v2133 = vmax.f32 %v2112, 0.0
    %v2134 = vmax.f32 %v2115, 0.0
    %v2135 = vmax.f32 %v2118, 0.0
    %v2136 = vmax.f32 %v2121, 0.0
    %v2137 = vmax.f32 %v2124, 0.0
    %v2138 = vmax.f32 %v2127, 0.0
    %v2139 = vmax.f32 %v2130, 0.0
    %v2140 = vperm.slane %v1607, 1
    %2141 = vmatpush.msra.mxu0 %v1605
    %2142 = vmatpush.msra.mxu0 %v1604
    %2143 = vmatpush.msra.mxu0 %v1603
    %2144 = vmatpush.msra.mxu0 %v1602
    %2145 = vmatpush.msra.mxu0 %v1601
    %2146 = vmatpush.msra.mxu0 %v1600
    %2147 = vmatpush.msra.mxu0 %v1599
    %2148 = vmatpush.msra.mxu0 %v1598
    %2149 = vmatpush.msra.mxu0 %v1597
    %2150 = vmatpush.msra.mxu0 %v1596
    %2151 = vmatpush.msra.mxu0 %v1595
    %2152 = vmatpush.msra.mxu0 %v1594
    %2153 = vmatpush.msra.mxu0 %v1593
    %2154 = vmatpush.msra.mxu0 %v1592
    %2155 = vmatpush.msra.mxu0 %v1591
    %2156 = vmatpush.msra.mxu0 %v1590
    %2157 = vmatmul.f32.gmra.mxu0 %v2132
    %v2158 = vpop.f32.mrf.mxu0
    %v2159 = vadd.f32 %v2140, %v2158
    %2160 = vmatmul.f32.gmra.mxu0 %v2133
    %v2161 = vpop.f32.mrf.mxu0
    %v2162 = vadd.f32 %v2140, %v2161
    %2163 = vmatmul.f32.gmra.mxu0 %v2134
    %v2164 = vpop.f32.mrf.mxu0
    %v2165 = vadd.f32 %v2140, %v2164
    %2166 = vmatmul.f32.gmra.mxu0 %v2135
    %v2167 = vpop.f32.mrf.mxu0
    %v2168 = vadd.f32 %v2140, %v2167
    %2169 = vmatmul.f32.gmra.mxu0 %v2136
    %v2170 = vpop.f32.mrf.mxu0
    %v2171 = vadd.f32 %v2140, %v2170
    %2172 = vmatmul.f32.gmra.mxu0 %v2137
    %v2173 = vpop.f32.mrf.mxu0
    %v2174 = vadd.f32 %v2140, %v2173
    %2175 = vmatmul.f32.gmra.mxu0 %v2138
    %v2176 = vpop.f32.mrf.mxu0
    %v2177 = vadd.f32 %v2140, %v2176
    %2178 = vmatmul.f32.gmra.mxu0 %v2139
    %v2179 = vpop.f32.mrf.mxu0
    %v2180 = vadd.f32 %v2140, %v2179
    %2181 = vdwg.mxu0
    %v2182 = vadd.f32 %v1866, %v2159
    %v2183 = vadd.f32 %v1867, %v2162
    %v2184 = vadd.f32 %v1868, %v2165
    %v2185 = vadd.f32 %v1869, %v2168
    %v2186 = vadd.f32 %v1870, %v2171
    %v2187 = vadd.f32 %v1871, %v2174
    %v2188 = vadd.f32 %v1872, %v2177
    %v2189 = vadd.f32 %v1873, %v2180
    %s2190 = scalar_lea.vmem %s3, 96
    %v2191 = vld [vmem:[%s2190] sm:$0xff]
    %v2192 = vld [vmem:[%s2190 + $0x8] sm:$0xff]
    %v2193 = vld [vmem:[%s2190 + $0x10] sm:$0xff]
    %v2194 = vld [vmem:[%s2190 + $0x18] sm:$0xff]
    %s2195 = scalar_lea.vmem %s4, 96
    %v2196 = vld [vmem:[%s2195] sm:$0xff]
    %v2197 = vld [vmem:[%s2195 + $0x8] sm:$0xff]
    %v2198 = vld [vmem:[%s2195 + $0x10] sm:$0xff]
    %v2199 = vld [vmem:[%s2195 + $0x18] sm:$0xff]
    %s2200 = scalar_lea.vmem %s5, 384
    %v2201 = vld [vmem:[%s2200] sm:$0xff]
    %v2202 = vld [vmem:[%s2200 + $0x8] sm:$0xff]
    %v2203 = vld [vmem:[%s2200 + $0x10] sm:$0xff]
    %v2204 = vld [vmem:[%s2200 + $0x18] sm:$0xff]
    %v2205 = vld [vmem:[%s2200 + $0x20] sm:$0xff]
    %v2206 = vld [vmem:[%s2200 + $0x28] sm:$0xff]
    %v2207 = vld [vmem:[%s2200 + $0x30] sm:$0xff]
    %v2208 = vld [vmem:[%s2200 + $0x38] sm:$0xff]
    %v2209 = vld [vmem:[%s2200 + $0x40] sm:$0xff]
    %v2210 = vld [vmem:[%s2200 + $0x48] sm:$0xff]
    %v2211 = vld [vmem:[%s2200 + $0x50] sm:$0xff]
    %v2212 = vld [vmem:[%s2200 + $0x58] sm:$0xff]
    %v2213 = vld [vmem:[%s2200 + $0x60] sm:$0xff]
    %v2214 = vld [vmem:[%s2200 + $0x68] sm:$0xff]
    %v2215 = vld [vmem:[%s2200 + $0x70] sm:$0xff]
    %v2216 = vld [vmem:[%s2200 + $0x78] sm:$0xff]
    %s2217 = scalar_lea.vmem %s6, 12
    %v2218 = vld [vmem:[%s2217] sm:$0x7]
    %v2219 = vsel %vm385, %v2182, 0.0
    %2220 = vadd.xlane.f32.xlu0 %v2219
    %v2221 = vpop.xlane.xlu0 %2220
    %v2222 = vsel %vm385, %v2183, 0.0
    %2223 = vadd.xlane.f32.xlu0 %v2222
    %v2224 = vpop.xlane.xlu0 %2223
    %v2225 = vsel %vm385, %v2184, 0.0
    %2226 = vadd.xlane.f32.xlu0 %v2225
    %v2227 = vpop.xlane.xlu0 %2226
    %v2228 = vsel %vm385, %v2185, 0.0
    %2229 = vadd.xlane.f32.xlu0 %v2228
    %v2230 = vpop.xlane.xlu0 %2229
    %v2231 = vsel %vm385, %v2186, 0.0
    %2232 = vadd.xlane.f32.xlu0 %v2231
    %v2233 = vpop.xlane.xlu0 %2232
    %v2234 = vsel %vm385, %v2187, 0.0
    %2235 = vadd.xlane.f32.xlu0 %v2234
    %v2236 = vpop.xlane.xlu0 %2235
    %v2237 = vsel %vm385, %v2188, 0.0
    %2238 = vadd.xlane.f32.xlu0 %v2237
    %v2239 = vpop.xlane.xlu0 %2238
    %v2240 = vsel %vm385, %v2189, 0.0
    %2241 = vadd.xlane.f32.xlu0 %v2240
    %v2242 = vpop.xlane.xlu0 %2241
    %v2243 = vmul.f32 %v2182, %v2182
    %v2244 = vmul.f32 %v2183, %v2183
    %v2245 = vmul.f32 %v2184, %v2184
    %v2246 = vmul.f32 %v2185, %v2185
    %v2247 = vmul.f32 %v2186, %v2186
    %v2248 = vmul.f32 %v2187, %v2187
    %v2249 = vmul.f32 %v2188, %v2188
    %v2250 = vmul.f32 %v2189, %v2189
    %v2251 = vsel %vm385, %v2243, 0.0
    %2252 = vadd.xlane.f32.xlu0 %v2251
    %v2253 = vpop.xlane.xlu0 %2252
    %v2254 = vsel %vm385, %v2244, 0.0
    %2255 = vadd.xlane.f32.xlu0 %v2254
    %v2256 = vpop.xlane.xlu0 %2255
    %v2257 = vsel %vm385, %v2245, 0.0
    %2258 = vadd.xlane.f32.xlu0 %v2257
    %v2259 = vpop.xlane.xlu0 %2258
    %v2260 = vsel %vm385, %v2246, 0.0
    %2261 = vadd.xlane.f32.xlu0 %v2260
    %v2262 = vpop.xlane.xlu0 %2261
    %v2263 = vsel %vm385, %v2247, 0.0
    %2264 = vadd.xlane.f32.xlu0 %v2263
    %v2265 = vpop.xlane.xlu0 %2264
    %v2266 = vsel %vm385, %v2248, 0.0
    %2267 = vadd.xlane.f32.xlu0 %v2266
    %v2268 = vpop.xlane.xlu0 %2267
    %v2269 = vsel %vm385, %v2249, 0.0
    %2270 = vadd.xlane.f32.xlu0 %v2269
    %v2271 = vpop.xlane.xlu0 %2270
    %v2272 = vsel %vm385, %v2250, 0.0
    %2273 = vadd.xlane.f32.xlu0 %v2272
    %v2274 = vpop.xlane.xlu0 %2273
    %v2275 = vmul.f32 %v2221, 0.03125
    %v2276 = vmul.f32 %v2224, 0.03125
    %v2277 = vmul.f32 %v2227, 0.03125
    %v2278 = vmul.f32 %v2230, 0.03125
    %v2279 = vmul.f32 %v2233, 0.03125
    %v2280 = vmul.f32 %v2236, 0.03125
    %v2281 = vmul.f32 %v2239, 0.03125
    %v2282 = vmul.f32 %v2242, 0.03125
    %v2283 = vmul.f32 %v2253, 0.03125
    %v2284 = vmul.f32 %v2256, 0.03125
    %v2285 = vmul.f32 %v2259, 0.03125
    %v2286 = vmul.f32 %v2262, 0.03125
    %v2287 = vmul.f32 %v2265, 0.03125
    %v2288 = vmul.f32 %v2268, 0.03125
    %v2289 = vmul.f32 %v2271, 0.03125
    %v2290 = vmul.f32 %v2274, 0.03125
    %v2291 = vmul.f32 %v2275, %v2275
    %v2292 = vmul.f32 %v2276, %v2276
    %v2293 = vmul.f32 %v2277, %v2277
    %v2294 = vmul.f32 %v2278, %v2278
    %v2295 = vmul.f32 %v2279, %v2279
    %v2296 = vmul.f32 %v2280, %v2280
    %v2297 = vmul.f32 %v2281, %v2281
    %v2298 = vmul.f32 %v2282, %v2282
    %v2299 = vsub.f32 %v2283, %v2291
    %v2300 = vsub.f32 %v2284, %v2292
    %v2301 = vsub.f32 %v2285, %v2293
    %v2302 = vsub.f32 %v2286, %v2294
    %v2303 = vsub.f32 %v2287, %v2295
    %v2304 = vsub.f32 %v2288, %v2296
    %v2305 = vsub.f32 %v2289, %v2297
    %v2306 = vsub.f32 %v2290, %v2298
    %v2307 = vsub.f32 %v2182, %v2275
    %v2308 = vsub.f32 %v2183, %v2276
    %v2309 = vsub.f32 %v2184, %v2277
    %v2310 = vsub.f32 %v2185, %v2278
    %v2311 = vsub.f32 %v2186, %v2279
    %v2312 = vsub.f32 %v2187, %v2280
    %v2313 = vsub.f32 %v2188, %v2281
    %v2314 = vsub.f32 %v2189, %v2282
    %v2315 = vadd.f32 %v2299, 1e-05
    %v2316 = vadd.f32 %v2300, 1e-05
    %v2317 = vadd.f32 %v2301, 1e-05
    %v2318 = vadd.f32 %v2302, 1e-05
    %v2319 = vadd.f32 %v2303, 1e-05
    %v2320 = vadd.f32 %v2304, 1e-05
    %v2321 = vadd.f32 %v2305, 1e-05
    %v2322 = vadd.f32 %v2306, 1e-05
    %v2323 = vrsqrt.pop %v2315
    %v2324 = vmul.f32 %v2323, %v2315
    %v2325 = vmul.f32 %v2324, %v2323
    %v2326 = vmul.f32 0.5, %v2325
    %v2327 = vsub.f32 1.5, %v2326
    %v2328 = vmul.f32 %v2323, %v2327
    %vm2329 = vweird.f32 %v2315
    %vm2330 = vweird.f32 %v2323
    %vm2331 = vmor %vm2329, %vm2330
    %v2332 = vsel %vm2331, %v2323, %v2328
    %v2333 = vrsqrt.pop %v2316
    %v2334 = vmul.f32 %v2333, %v2316
    %v2335 = vmul.f32 %v2334, %v2333
    %v2336 = vmul.f32 0.5, %v2335
    %v2337 = vsub.f32 1.5, %v2336
    %v2338 = vmul.f32 %v2333, %v2337
    %vm2339 = vweird.f32 %v2316
    %vm2340 = vweird.f32 %v2333
    %vm2341 = vmor %vm2339, %vm2340
    %v2342 = vsel %vm2341, %v2333, %v2338
    %v2343 = vrsqrt.pop %v2317
    %v2344 = vmul.f32 %v2343, %v2317
    %v2345 = vmul.f32 %v2344, %v2343
    %v2346 = vmul.f32 0.5, %v2345
    %v2347 = vsub.f32 1.5, %v2346
    %v2348 = vmul.f32 %v2343, %v2347
    %vm2349 = vweird.f32 %v2317
    %vm2350 = vweird.f32 %v2343
    %vm2351 = vmor %vm2349, %vm2350
    %v2352 = vsel %vm2351, %v2343, %v2348
    %v2353 = vrsqrt.pop %v2318
    %v2354 = vmul.f32 %v2353, %v2318
    %v2355 = vmul.f32 %v2354, %v2353
    %v2356 = vmul.f32 0.5, %v2355
    %v2357 = vsub.f32 1.5, %v2356
    %v2358 = vmul.f32 %v2353, %v2357
    %vm2359 = vweird.f32 %v2318
    %vm2360 = vweird.f32 %v2353
    %vm2361 = vmor %vm2359, %vm2360
    %v2362 = vsel %vm2361, %v2353, %v2358
    %v2363 = vrsqrt.pop %v2319
    %v2364 = vmul.f32 %v2363, %v2319
    %v2365 = vmul.f32 %v2364, %v2363
    %v2366 = vmul.f32 0.5, %v2365
    %v2367 = vsub.f32 1.5, %v2366
    %v2368 = vmul.f32 %v2363, %v2367
    %vm2369 = vweird.f32 %v2319
    %vm2370 = vweird.f32 %v2363
    %vm2371 = vmor %vm2369, %vm2370
    %v2372 = vsel %vm2371, %v2363, %v2368
    %v2373 = vrsqrt.pop %v2320
    %v2374 = vmul.f32 %v2373, %v2320
    %v2375 = vmul.f32 %v2374, %v2373
    %v2376 = vmul.f32 0.5, %v2375
    %v2377 = vsub.f32 1.5, %v2376
    %v2378 = vmul.f32 %v2373, %v2377
    %vm2379 = vweird.f32 %v2320
    %vm2380 = vweird.f32 %v2373
    %vm2381 = vmor %vm2379, %vm2380
    %v2382 = vsel %vm2381, %v2373, %v2378
    %v2383 = vrsqrt.pop %v2321
    %v2384 = vmul.f32 %v2383, %v2321
    %v2385 = vmul.f32 %v2384, %v2383
    %v2386 = vmul.f32 0.5, %v2385
    %v2387 = vsub.f32 1.5, %v2386
    %v2388 = vmul.f32 %v2383, %v2387
    %vm2389 = vweird.f32 %v2321
    %vm2390 = vweird.f32 %v2383
    %vm2391 = vmor %vm2389, %vm2390
    %v2392 = vsel %vm2391, %v2383, %v2388
    %v2393 = vrsqrt.pop %v2322
    %v2394 = vmul.f32 %v2393, %v2322
    %v2395 = vmul.f32 %v2394, %v2393
    %v2396 = vmul.f32 0.5, %v2395
    %v2397 = vsub.f32 1.5, %v2396
    %v2398 = vmul.f32 %v2393, %v2397
    %vm2399 = vweird.f32 %v2322
    %vm2400 = vweird.f32 %v2393
    %vm2401 = vmor %vm2399, %vm2400
    %v2402 = vsel %vm2401, %v2393, %v2398
    %v2403 = vmul.f32 %v2307, %v2332
    %v2404 = vmul.f32 %v2308, %v2342
    %v2405 = vmul.f32 %v2309, %v2352
    %v2406 = vmul.f32 %v2310, %v2362
    %v2407 = vmul.f32 %v2311, %v2372
    %v2408 = vmul.f32 %v2312, %v2382
    %v2409 = vmul.f32 %v2313, %v2392
    %v2410 = vmul.f32 %v2314, %v2402
    %v2411 = vperm.slane %v2218, 0
    %v2413 = vsel %vm385, %v2403, 0
    %v2416 = vsel %vm385, %v2404, 0
    %v2419 = vsel %vm385, %v2405, 0
    %v2422 = vsel %vm385, %v2406, 0
    %v2425 = vsel %vm385, %v2407, 0
    %v2428 = vsel %vm385, %v2408, 0
    %v2431 = vsel %vm385, %v2409, 0
    %v2434 = vsel %vm385, %v2410, 0
    %2436 = vmatpush.msra.mxu0 0.0
    %2437 = vmatpush.msra.mxu0 0.0
    %2438 = vmatpush.msra.mxu0 0.0
    %2439 = vmatpush.msra.mxu0 0.0
    %2440 = vmatpush.msra.mxu0 0.0
    %2441 = vmatpush.msra.mxu0 0.0
    %2442 = vmatpush.msra.mxu0 0.0
    %2443 = vmatpush.msra.mxu0 0.0
    %2444 = vmatpush.msra.mxu0 0.0
    %2445 = vmatpush.msra.mxu0 0.0
    %2446 = vmatpush.msra.mxu0 0.0
    %2447 = vmatpush.msra.mxu0 0.0
    %2448 = vmatpush.msra.mxu0 %v2194
    %2449 = vmatpush.msra.mxu0 %v2193
    %2450 = vmatpush.msra.mxu0 %v2192
    %2451 = vmatpush.msra.mxu0 %v2191
    %2452 = vmatmul.f32.gmra.mxu0 %v2413
    %v2453 = vpop.f32.mrf.mxu0
    %v2454 = vadd.f32 %v2411, %v2453
    %2455 = vmatmul.f32.gmra.mxu0 %v2416
    %v2456 = vpop.f32.mrf.mxu0
    %v2457 = vadd.f32 %v2411, %v2456
    %2458 = vmatmul.f32.gmra.mxu0 %v2419
    %v2459 = vpop.f32.mrf.mxu0
    %v2460 = vadd.f32 %v2411, %v2459
    %2461 = vmatmul.f32.gmra.mxu0 %v2422
    %v2462 = vpop.f32.mrf.mxu0
    %v2463 = vadd.f32 %v2411, %v2462
    %2464 = vmatmul.f32.gmra.mxu0 %v2425
    %v2465 = vpop.f32.mrf.mxu0
    %v2466 = vadd.f32 %v2411, %v2465
    %2467 = vmatmul.f32.gmra.mxu0 %v2428
    %v2468 = vpop.f32.mrf.mxu0
    %v2469 = vadd.f32 %v2411, %v2468
    %2470 = vmatmul.f32.gmra.mxu0 %v2431
    %v2471 = vpop.f32.mrf.mxu0
    %v2472 = vadd.f32 %v2411, %v2471
    %2473 = vmatmul.f32.gmra.mxu0 %v2434
    %v2474 = vpop.f32.mrf.mxu0
    %v2475 = vadd.f32 %v2411, %v2474
    %2476 = vdwg.mxu0
    %v2477 = vadd.f32 %v2182, %v2454
    %v2478 = vadd.f32 %v2183, %v2457
    %v2479 = vadd.f32 %v2184, %v2460
    %v2480 = vadd.f32 %v2185, %v2463
    %v2481 = vadd.f32 %v2186, %v2466
    %v2482 = vadd.f32 %v2187, %v2469
    %v2483 = vadd.f32 %v2188, %v2472
    %v2484 = vadd.f32 %v2189, %v2475
    %v2485 = vsel %vm385, %v2477, 0.0
    %2486 = vadd.xlane.f32.xlu0 %v2485
    %v2487 = vpop.xlane.xlu0 %2486
    %v2488 = vsel %vm385, %v2478, 0.0
    %2489 = vadd.xlane.f32.xlu0 %v2488
    %v2490 = vpop.xlane.xlu0 %2489
    %v2491 = vsel %vm385, %v2479, 0.0
    %2492 = vadd.xlane.f32.xlu0 %v2491
    %v2493 = vpop.xlane.xlu0 %2492
    %v2494 = vsel %vm385, %v2480, 0.0
    %2495 = vadd.xlane.f32.xlu0 %v2494
    %v2496 = vpop.xlane.xlu0 %2495
    %v2497 = vsel %vm385, %v2481, 0.0
    %2498 = vadd.xlane.f32.xlu0 %v2497
    %v2499 = vpop.xlane.xlu0 %2498
    %v2500 = vsel %vm385, %v2482, 0.0
    %2501 = vadd.xlane.f32.xlu0 %v2500
    %v2502 = vpop.xlane.xlu0 %2501
    %v2503 = vsel %vm385, %v2483, 0.0
    %2504 = vadd.xlane.f32.xlu0 %v2503
    %v2505 = vpop.xlane.xlu0 %2504
    %v2506 = vsel %vm385, %v2484, 0.0
    %2507 = vadd.xlane.f32.xlu0 %v2506
    %v2508 = vpop.xlane.xlu0 %2507
    %v2509 = vmul.f32 %v2477, %v2477
    %v2510 = vmul.f32 %v2478, %v2478
    %v2511 = vmul.f32 %v2479, %v2479
    %v2512 = vmul.f32 %v2480, %v2480
    %v2513 = vmul.f32 %v2481, %v2481
    %v2514 = vmul.f32 %v2482, %v2482
    %v2515 = vmul.f32 %v2483, %v2483
    %v2516 = vmul.f32 %v2484, %v2484
    %v2517 = vsel %vm385, %v2509, 0.0
    %2518 = vadd.xlane.f32.xlu0 %v2517
    %v2519 = vpop.xlane.xlu0 %2518
    %v2520 = vsel %vm385, %v2510, 0.0
    %2521 = vadd.xlane.f32.xlu0 %v2520
    %v2522 = vpop.xlane.xlu0 %2521
    %v2523 = vsel %vm385, %v2511, 0.0
    %2524 = vadd.xlane.f32.xlu0 %v2523
    %v2525 = vpop.xlane.xlu0 %2524
    %v2526 = vsel %vm385, %v2512, 0.0
    %2527 = vadd.xlane.f32.xlu0 %v2526
    %v2528 = vpop.xlane.xlu0 %2527
    %v2529 = vsel %vm385, %v2513, 0.0
    %2530 = vadd.xlane.f32.xlu0 %v2529
    %v2531 = vpop.xlane.xlu0 %2530
    %v2532 = vsel %vm385, %v2514, 0.0
    %2533 = vadd.xlane.f32.xlu0 %v2532
    %v2534 = vpop.xlane.xlu0 %2533
    %v2535 = vsel %vm385, %v2515, 0.0
    %2536 = vadd.xlane.f32.xlu0 %v2535
    %v2537 = vpop.xlane.xlu0 %2536
    %v2538 = vsel %vm385, %v2516, 0.0
    %2539 = vadd.xlane.f32.xlu0 %v2538
    %v2540 = vpop.xlane.xlu0 %2539
    %v2541 = vmul.f32 %v2487, 0.03125
    %v2542 = vmul.f32 %v2490, 0.03125
    %v2543 = vmul.f32 %v2493, 0.03125
    %v2544 = vmul.f32 %v2496, 0.03125
    %v2545 = vmul.f32 %v2499, 0.03125
    %v2546 = vmul.f32 %v2502, 0.03125
    %v2547 = vmul.f32 %v2505, 0.03125
    %v2548 = vmul.f32 %v2508, 0.03125
    %v2549 = vmul.f32 %v2519, 0.03125
    %v2550 = vmul.f32 %v2522, 0.03125
    %v2551 = vmul.f32 %v2525, 0.03125
    %v2552 = vmul.f32 %v2528, 0.03125
    %v2553 = vmul.f32 %v2531, 0.03125
    %v2554 = vmul.f32 %v2534, 0.03125
    %v2555 = vmul.f32 %v2537, 0.03125
    %v2556 = vmul.f32 %v2540, 0.03125
    %v2557 = vmul.f32 %v2541, %v2541
    %v2558 = vmul.f32 %v2542, %v2542
    %v2559 = vmul.f32 %v2543, %v2543
    %v2560 = vmul.f32 %v2544, %v2544
    %v2561 = vmul.f32 %v2545, %v2545
    %v2562 = vmul.f32 %v2546, %v2546
    %v2563 = vmul.f32 %v2547, %v2547
    %v2564 = vmul.f32 %v2548, %v2548
    %v2565 = vsub.f32 %v2549, %v2557
    %v2566 = vsub.f32 %v2550, %v2558
    %v2567 = vsub.f32 %v2551, %v2559
    %v2568 = vsub.f32 %v2552, %v2560
    %v2569 = vsub.f32 %v2553, %v2561
    %v2570 = vsub.f32 %v2554, %v2562
    %v2571 = vsub.f32 %v2555, %v2563
    %v2572 = vsub.f32 %v2556, %v2564
    %v2573 = vsub.f32 %v2477, %v2541
    %v2574 = vsub.f32 %v2478, %v2542
    %v2575 = vsub.f32 %v2479, %v2543
    %v2576 = vsub.f32 %v2480, %v2544
    %v2577 = vsub.f32 %v2481, %v2545
    %v2578 = vsub.f32 %v2482, %v2546
    %v2579 = vsub.f32 %v2483, %v2547
    %v2580 = vsub.f32 %v2484, %v2548
    %v2581 = vadd.f32 %v2565, 1e-05
    %v2582 = vadd.f32 %v2566, 1e-05
    %v2583 = vadd.f32 %v2567, 1e-05
    %v2584 = vadd.f32 %v2568, 1e-05
    %v2585 = vadd.f32 %v2569, 1e-05
    %v2586 = vadd.f32 %v2570, 1e-05
    %v2587 = vadd.f32 %v2571, 1e-05
    %v2588 = vadd.f32 %v2572, 1e-05
    %v2589 = vrsqrt.pop %v2581
    %v2590 = vmul.f32 %v2589, %v2581
    %v2591 = vmul.f32 %v2590, %v2589
    %v2592 = vmul.f32 0.5, %v2591
    %v2593 = vsub.f32 1.5, %v2592
    %v2594 = vmul.f32 %v2589, %v2593
    %vm2595 = vweird.f32 %v2581
    %vm2596 = vweird.f32 %v2589
    %vm2597 = vmor %vm2595, %vm2596
    %v2598 = vsel %vm2597, %v2589, %v2594
    %v2599 = vrsqrt.pop %v2582
    %v2600 = vmul.f32 %v2599, %v2582
    %v2601 = vmul.f32 %v2600, %v2599
    %v2602 = vmul.f32 0.5, %v2601
    %v2603 = vsub.f32 1.5, %v2602
    %v2604 = vmul.f32 %v2599, %v2603
    %vm2605 = vweird.f32 %v2582
    %vm2606 = vweird.f32 %v2599
    %vm2607 = vmor %vm2605, %vm2606
    %v2608 = vsel %vm2607, %v2599, %v2604
    %v2609 = vrsqrt.pop %v2583
    %v2610 = vmul.f32 %v2609, %v2583
    %v2611 = vmul.f32 %v2610, %v2609
    %v2612 = vmul.f32 0.5, %v2611
    %v2613 = vsub.f32 1.5, %v2612
    %v2614 = vmul.f32 %v2609, %v2613
    %vm2615 = vweird.f32 %v2583
    %vm2616 = vweird.f32 %v2609
    %vm2617 = vmor %vm2615, %vm2616
    %v2618 = vsel %vm2617, %v2609, %v2614
    %v2619 = vrsqrt.pop %v2584
    %v2620 = vmul.f32 %v2619, %v2584
    %v2621 = vmul.f32 %v2620, %v2619
    %v2622 = vmul.f32 0.5, %v2621
    %v2623 = vsub.f32 1.5, %v2622
    %v2624 = vmul.f32 %v2619, %v2623
    %vm2625 = vweird.f32 %v2584
    %vm2626 = vweird.f32 %v2619
    %vm2627 = vmor %vm2625, %vm2626
    %v2628 = vsel %vm2627, %v2619, %v2624
    %v2629 = vrsqrt.pop %v2585
    %v2630 = vmul.f32 %v2629, %v2585
    %v2631 = vmul.f32 %v2630, %v2629
    %v2632 = vmul.f32 0.5, %v2631
    %v2633 = vsub.f32 1.5, %v2632
    %v2634 = vmul.f32 %v2629, %v2633
    %vm2635 = vweird.f32 %v2585
    %vm2636 = vweird.f32 %v2629
    %vm2637 = vmor %vm2635, %vm2636
    %v2638 = vsel %vm2637, %v2629, %v2634
    %v2639 = vrsqrt.pop %v2586
    %v2640 = vmul.f32 %v2639, %v2586
    %v2641 = vmul.f32 %v2640, %v2639
    %v2642 = vmul.f32 0.5, %v2641
    %v2643 = vsub.f32 1.5, %v2642
    %v2644 = vmul.f32 %v2639, %v2643
    %vm2645 = vweird.f32 %v2586
    %vm2646 = vweird.f32 %v2639
    %vm2647 = vmor %vm2645, %vm2646
    %v2648 = vsel %vm2647, %v2639, %v2644
    %v2649 = vrsqrt.pop %v2587
    %v2650 = vmul.f32 %v2649, %v2587
    %v2651 = vmul.f32 %v2650, %v2649
    %v2652 = vmul.f32 0.5, %v2651
    %v2653 = vsub.f32 1.5, %v2652
    %v2654 = vmul.f32 %v2649, %v2653
    %vm2655 = vweird.f32 %v2587
    %vm2656 = vweird.f32 %v2649
    %vm2657 = vmor %vm2655, %vm2656
    %v2658 = vsel %vm2657, %v2649, %v2654
    %v2659 = vrsqrt.pop %v2588
    %v2660 = vmul.f32 %v2659, %v2588
    %v2661 = vmul.f32 %v2660, %v2659
    %v2662 = vmul.f32 0.5, %v2661
    %v2663 = vsub.f32 1.5, %v2662
    %v2664 = vmul.f32 %v2659, %v2663
    %vm2665 = vweird.f32 %v2588
    %vm2666 = vweird.f32 %v2659
    %vm2667 = vmor %vm2665, %vm2666
    %v2668 = vsel %vm2667, %v2659, %v2664
    %v2669 = vmul.f32 %v2573, %v2598
    %v2670 = vmul.f32 %v2574, %v2608
    %v2671 = vmul.f32 %v2575, %v2618
    %v2672 = vmul.f32 %v2576, %v2628
    %v2673 = vmul.f32 %v2577, %v2638
    %v2674 = vmul.f32 %v2578, %v2648
    %v2675 = vmul.f32 %v2579, %v2658
    %v2676 = vmul.f32 %v2580, %v2668
    %v2677 = vperm.slane %v2218, 2
    %v2679 = vsel %vm385, %v2669, 0
    %v2682 = vsel %vm385, %v2670, 0
    %v2685 = vsel %vm385, %v2671, 0
    %v2688 = vsel %vm385, %v2672, 0
    %v2691 = vsel %vm385, %v2673, 0
    %v2694 = vsel %vm385, %v2674, 0
    %v2697 = vsel %vm385, %v2675, 0
    %v2700 = vsel %vm385, %v2676, 0
    %2702 = vmatpush.msra.mxu0 0.0
    %2703 = vmatpush.msra.mxu0 0.0
    %2704 = vmatpush.msra.mxu0 0.0
    %2705 = vmatpush.msra.mxu0 0.0
    %2706 = vmatpush.msra.mxu0 0.0
    %2707 = vmatpush.msra.mxu0 0.0
    %2708 = vmatpush.msra.mxu0 0.0
    %2709 = vmatpush.msra.mxu0 0.0
    %2710 = vmatpush.msra.mxu0 0.0
    %2711 = vmatpush.msra.mxu0 0.0
    %2712 = vmatpush.msra.mxu0 0.0
    %2713 = vmatpush.msra.mxu0 0.0
    %2714 = vmatpush.msra.mxu0 %v2199
    %2715 = vmatpush.msra.mxu0 %v2198
    %2716 = vmatpush.msra.mxu0 %v2197
    %2717 = vmatpush.msra.mxu0 %v2196
    %2718 = vmatmul.f32.gmra.mxu0 %v2679
    %v2719 = vpop.f32.mrf.mxu0
    %v2720 = vadd.f32 %v2677, %v2719
    %2721 = vmatmul.f32.gmra.mxu0 %v2682
    %v2722 = vpop.f32.mrf.mxu0
    %v2723 = vadd.f32 %v2677, %v2722
    %2724 = vmatmul.f32.gmra.mxu0 %v2685
    %v2725 = vpop.f32.mrf.mxu0
    %v2726 = vadd.f32 %v2677, %v2725
    %2727 = vmatmul.f32.gmra.mxu0 %v2688
    %v2728 = vpop.f32.mrf.mxu0
    %v2729 = vadd.f32 %v2677, %v2728
    %2730 = vmatmul.f32.gmra.mxu0 %v2691
    %v2731 = vpop.f32.mrf.mxu0
    %v2732 = vadd.f32 %v2677, %v2731
    %2733 = vmatmul.f32.gmra.mxu0 %v2694
    %v2734 = vpop.f32.mrf.mxu0
    %v2735 = vadd.f32 %v2677, %v2734
    %2736 = vmatmul.f32.gmra.mxu0 %v2697
    %v2737 = vpop.f32.mrf.mxu0
    %v2738 = vadd.f32 %v2677, %v2737
    %2739 = vmatmul.f32.gmra.mxu0 %v2700
    %v2740 = vpop.f32.mrf.mxu0
    %v2741 = vadd.f32 %v2677, %v2740
    %2742 = vdwg.mxu0
    %v2743 = vmax.f32 %v2720, 0.0
    %v2744 = vmax.f32 %v2723, 0.0
    %v2745 = vmax.f32 %v2726, 0.0
    %v2746 = vmax.f32 %v2729, 0.0
    %v2747 = vmax.f32 %v2732, 0.0
    %v2748 = vmax.f32 %v2735, 0.0
    %v2749 = vmax.f32 %v2738, 0.0
    %v2750 = vmax.f32 %v2741, 0.0
    %v2751 = vperm.slane %v2218, 1
    %2752 = vmatpush.msra.mxu0 %v2216
    %2753 = vmatpush.msra.mxu0 %v2215
    %2754 = vmatpush.msra.mxu0 %v2214
    %2755 = vmatpush.msra.mxu0 %v2213
    %2756 = vmatpush.msra.mxu0 %v2212
    %2757 = vmatpush.msra.mxu0 %v2211
    %2758 = vmatpush.msra.mxu0 %v2210
    %2759 = vmatpush.msra.mxu0 %v2209
    %2760 = vmatpush.msra.mxu0 %v2208
    %2761 = vmatpush.msra.mxu0 %v2207
    %2762 = vmatpush.msra.mxu0 %v2206
    %2763 = vmatpush.msra.mxu0 %v2205
    %2764 = vmatpush.msra.mxu0 %v2204
    %2765 = vmatpush.msra.mxu0 %v2203
    %2766 = vmatpush.msra.mxu0 %v2202
    %2767 = vmatpush.msra.mxu0 %v2201
    %2768 = vmatmul.f32.gmra.mxu0 %v2743
    %v2769 = vpop.f32.mrf.mxu0
    %v2770 = vadd.f32 %v2751, %v2769
    %2771 = vmatmul.f32.gmra.mxu0 %v2744
    %v2772 = vpop.f32.mrf.mxu0
    %v2773 = vadd.f32 %v2751, %v2772
    %2774 = vmatmul.f32.gmra.mxu0 %v2745
    %v2775 = vpop.f32.mrf.mxu0
    %v2776 = vadd.f32 %v2751, %v2775
    %2777 = vmatmul.f32.gmra.mxu0 %v2746
    %v2778 = vpop.f32.mrf.mxu0
    %v2779 = vadd.f32 %v2751, %v2778
    %2780 = vmatmul.f32.gmra.mxu0 %v2747
    %v2781 = vpop.f32.mrf.mxu0
    %v2782 = vadd.f32 %v2751, %v2781
    %2783 = vmatmul.f32.gmra.mxu0 %v2748
    %v2784 = vpop.f32.mrf.mxu0
    %v2785 = vadd.f32 %v2751, %v2784
    %2786 = vmatmul.f32.gmra.mxu0 %v2749
    %v2787 = vpop.f32.mrf.mxu0
    %v2788 = vadd.f32 %v2751, %v2787
    %2789 = vmatmul.f32.gmra.mxu0 %v2750
    %v2790 = vpop.f32.mrf.mxu0
    %v2791 = vadd.f32 %v2751, %v2790
    %2792 = vdwg.mxu0
    %v2793 = vadd.f32 %v2477, %v2770
    %v2794 = vadd.f32 %v2478, %v2773
    %v2795 = vadd.f32 %v2479, %v2776
    %v2796 = vadd.f32 %v2480, %v2779
    %v2797 = vadd.f32 %v2481, %v2782
    %v2798 = vadd.f32 %v2482, %v2785
    %v2799 = vadd.f32 %v2483, %v2788
    %v2800 = vadd.f32 %v2484, %v2791
    %2801 = vst.msk [vmem:[#allocation2] sm:$0xff] %vm385, %v2793
    %2802 = vst.msk [vmem:[#allocation2 + $0x8] sm:$0xff] %vm385, %v2794
    %2803 = vst.msk [vmem:[#allocation2 + $0x10] sm:$0xff] %vm385, %v2795
    %2804 = vst.msk [vmem:[#allocation2 + $0x18] sm:$0xff] %vm385, %v2796
    %2805 = vst.msk [vmem:[#allocation2 + $0x20] sm:$0xff] %vm385, %v2797
    %2806 = vst.msk [vmem:[#allocation2 + $0x28] sm:$0xff] %vm385, %v2798
    %2807 = vst.msk [vmem:[#allocation2 + $0x30] sm:$0xff] %vm385, %v2799
    %2808 = vst.msk [vmem:[#allocation2 + $0x38] sm:$0xff] %vm385, %v2800
    // Predicated region
    $region42: #{tpu_custom_call.1} parent=1 // pred_check
      %p2809 = pneg %p35
    $region43: #{tpu_custom_call.1} parent=1 // pred_check_branch
      %2811 = sbr.rel (%p2809) target = $region45
    $region44: #{tpu_custom_call.1} parent=1 // pred_region
      %v2812 = vld [vmem:[%s7] sm:$0xff]
      %v2813 = vld [vmem:[%s7 + $0x8] sm:$0xff]
      %v2814 = vld [vmem:[%s7 + $0x10] sm:$0xff]
      %v2815 = vld [vmem:[%s7 + $0x18] sm:$0xff]
      %v2816 = vperm.slane %v33, 4
      %v2818 = vsel %vm385, %v2793, 0
      %v2821 = vsel %vm385, %v2794, 0
      %v2824 = vsel %vm385, %v2795, 0
      %v2827 = vsel %vm385, %v2796, 0
      %v2830 = vsel %vm385, %v2797, 0
      %v2833 = vsel %vm385, %v2798, 0
      %v2836 = vsel %vm385, %v2799, 0
      %v2839 = vsel %vm385, %v2800, 0
      %2841 = vmatpush.msra.mxu0 0.0
      %2842 = vmatpush.msra.mxu0 0.0
      %2843 = vmatpush.msra.mxu0 0.0
      %2844 = vmatpush.msra.mxu0 0.0
      %2845 = vmatpush.msra.mxu0 0.0
      %2846 = vmatpush.msra.mxu0 0.0
      %2847 = vmatpush.msra.mxu0 0.0
      %2848 = vmatpush.msra.mxu0 0.0
      %2849 = vmatpush.msra.mxu0 0.0
      %2850 = vmatpush.msra.mxu0 0.0
      %2851 = vmatpush.msra.mxu0 0.0
      %2852 = vmatpush.msra.mxu0 0.0
      %2853 = vmatpush.msra.mxu0 %v2815
      %2854 = vmatpush.msra.mxu0 %v2814
      %2855 = vmatpush.msra.mxu0 %v2813
      %2856 = vmatpush.msra.mxu0 %v2812
      %2857 = vmatmul.f32.gmra.mxu0 %v2818
      %v2858 = vpop.f32.mrf.mxu0
      %v2859 = vadd.f32 %v2816, %v2858
      %2860 = vmatmul.f32.gmra.mxu0 %v2821
      %v2861 = vpop.f32.mrf.mxu0
      %v2862 = vadd.f32 %v2816, %v2861
      %2863 = vmatmul.f32.gmra.mxu0 %v2824
      %v2864 = vpop.f32.mrf.mxu0
      %v2865 = vadd.f32 %v2816, %v2864
      %2866 = vmatmul.f32.gmra.mxu0 %v2827
      %v2867 = vpop.f32.mrf.mxu0
      %v2868 = vadd.f32 %v2816, %v2867
      %2869 = vmatmul.f32.gmra.mxu0 %v2830
      %v2870 = vpop.f32.mrf.mxu0
      %v2871 = vadd.f32 %v2816, %v2870
      %2872 = vmatmul.f32.gmra.mxu0 %v2833
      %v2873 = vpop.f32.mrf.mxu0
      %v2874 = vadd.f32 %v2816, %v2873
      %2875 = vmatmul.f32.gmra.mxu0 %v2836
      %v2876 = vpop.f32.mrf.mxu0
      %v2877 = vadd.f32 %v2816, %v2876
      %2878 = vmatmul.f32.gmra.mxu0 %v2839
      %v2879 = vpop.f32.mrf.mxu0
      %v2880 = vadd.f32 %v2816, %v2879
      %2881 = vdwg.mxu0
      %vm2882 = vcmask 130048
      %v2883 = vsel %vm2882, %v2859, 0.0
      %2884 = vadd.xlane.f32.xlu0 %v2883
      %v2885 = vpop.xlane.xlu0 %2884
      %v2886 = vsel %vm2882, %v2862, 0.0
      %2887 = vadd.xlane.f32.xlu0 %v2886
      %v2888 = vpop.xlane.xlu0 %2887
      %v2889 = vsel %vm2882, %v2865, 0.0
      %2890 = vadd.xlane.f32.xlu0 %v2889
      %v2891 = vpop.xlane.xlu0 %2890
      %v2892 = vsel %vm2882, %v2868, 0.0
      %2893 = vadd.xlane.f32.xlu0 %v2892
      %v2894 = vpop.xlane.xlu0 %2893
      %v2895 = vsel %vm2882, %v2871, 0.0
      %2896 = vadd.xlane.f32.xlu0 %v2895
      %v2897 = vpop.xlane.xlu0 %2896
      %v2898 = vsel %vm2882, %v2874, 0.0
      %2899 = vadd.xlane.f32.xlu0 %v2898
      %v2900 = vpop.xlane.xlu0 %2899
      %v2901 = vsel %vm2882, %v2877, 0.0
      %2902 = vadd.xlane.f32.xlu0 %v2901
      %v2903 = vpop.xlane.xlu0 %2902
      %v2904 = vsel %vm2882, %v2880, 0.0
      %2905 = vadd.xlane.f32.xlu0 %v2904
      %v2906 = vpop.xlane.xlu0 %2905
      %v2907 = vmul.f32 %v2859, %v2859
      %v2908 = vmul.f32 %v2862, %v2862
      %v2909 = vmul.f32 %v2865, %v2865
      %v2910 = vmul.f32 %v2868, %v2868
      %v2911 = vmul.f32 %v2871, %v2871
      %v2912 = vmul.f32 %v2874, %v2874
      %v2913 = vmul.f32 %v2877, %v2877
      %v2914 = vmul.f32 %v2880, %v2880
      %v2915 = vsel %vm2882, %v2907, 0.0
      %2916 = vadd.xlane.f32.xlu0 %v2915
      %v2917 = vpop.xlane.xlu0 %2916
      %v2918 = vsel %vm2882, %v2908, 0.0
      %2919 = vadd.xlane.f32.xlu0 %v2918
      %v2920 = vpop.xlane.xlu0 %2919
      %v2921 = vsel %vm2882, %v2909, 0.0
      %2922 = vadd.xlane.f32.xlu0 %v2921
      %v2923 = vpop.xlane.xlu0 %2922
      %v2924 = vsel %vm2882, %v2910, 0.0
      %2925 = vadd.xlane.f32.xlu0 %v2924
      %v2926 = vpop.xlane.xlu0 %2925
      %v2927 = vsel %vm2882, %v2911, 0.0
      %2928 = vadd.xlane.f32.xlu0 %v2927
      %v2929 = vpop.xlane.xlu0 %2928
      %v2930 = vsel %vm2882, %v2912, 0.0
      %2931 = vadd.xlane.f32.xlu0 %v2930
      %v2932 = vpop.xlane.xlu0 %2931
      %v2933 = vsel %vm2882, %v2913, 0.0
      %2934 = vadd.xlane.f32.xlu0 %v2933
      %v2935 = vpop.xlane.xlu0 %2934
      %v2936 = vsel %vm2882, %v2914, 0.0
      %2937 = vadd.xlane.f32.xlu0 %v2936
      %v2938 = vpop.xlane.xlu0 %2937
      %v2939 = vmul.f32 %v2885, 0.0625
      %v2940 = vmul.f32 %v2888, 0.0625
      %v2941 = vmul.f32 %v2891, 0.0625
      %v2942 = vmul.f32 %v2894, 0.0625
      %v2943 = vmul.f32 %v2897, 0.0625
      %v2944 = vmul.f32 %v2900, 0.0625
      %v2945 = vmul.f32 %v2903, 0.0625
      %v2946 = vmul.f32 %v2906, 0.0625
      %v2947 = vmul.f32 %v2917, 0.0625
      %v2948 = vmul.f32 %v2920, 0.0625
      %v2949 = vmul.f32 %v2923, 0.0625
      %v2950 = vmul.f32 %v2926, 0.0625
      %v2951 = vmul.f32 %v2929, 0.0625
      %v2952 = vmul.f32 %v2932, 0.0625
      %v2953 = vmul.f32 %v2935, 0.0625
      %v2954 = vmul.f32 %v2938, 0.0625
      %v2955 = vmul.f32 %v2939, %v2939
      %v2956 = vmul.f32 %v2940, %v2940
      %v2957 = vmul.f32 %v2941, %v2941
      %v2958 = vmul.f32 %v2942, %v2942
      %v2959 = vmul.f32 %v2943, %v2943
      %v2960 = vmul.f32 %v2944, %v2944
      %v2961 = vmul.f32 %v2945, %v2945
      %v2962 = vmul.f32 %v2946, %v2946
      %v2963 = vsub.f32 %v2947, %v2955
      %v2964 = vsub.f32 %v2948, %v2956
      %v2965 = vsub.f32 %v2949, %v2957
      %v2966 = vsub.f32 %v2950, %v2958
      %v2967 = vsub.f32 %v2951, %v2959
      %v2968 = vsub.f32 %v2952, %v2960
      %v2969 = vsub.f32 %v2953, %v2961
      %v2970 = vsub.f32 %v2954, %v2962
      %v2971 = vsub.f32 %v2859, %v2939
      %v2972 = vsub.f32 %v2862, %v2940
      %v2973 = vsub.f32 %v2865, %v2941
      %v2974 = vsub.f32 %v2868, %v2942
      %v2975 = vsub.f32 %v2871, %v2943
      %v2976 = vsub.f32 %v2874, %v2944
      %v2977 = vsub.f32 %v2877, %v2945
      %v2978 = vsub.f32 %v2880, %v2946
      %v2979 = vadd.f32 %v2963, 1e-05
      %v2980 = vadd.f32 %v2964, 1e-05
      %v2981 = vadd.f32 %v2965, 1e-05
      %v2982 = vadd.f32 %v2966, 1e-05
      %v2983 = vadd.f32 %v2967, 1e-05
      %v2984 = vadd.f32 %v2968, 1e-05
      %v2985 = vadd.f32 %v2969, 1e-05
      %v2986 = vadd.f32 %v2970, 1e-05
      %v2987 = vrsqrt.pop %v2979
      %v2988 = vmul.f32 %v2987, %v2979
      %v2989 = vmul.f32 %v2988, %v2987
      %v2990 = vmul.f32 0.5, %v2989
      %v2991 = vsub.f32 1.5, %v2990
      %v2992 = vmul.f32 %v2987, %v2991
      %vm2993 = vweird.f32 %v2979
      %vm2994 = vweird.f32 %v2987
      %vm2995 = vmor %vm2993, %vm2994
      %v2996 = vsel %vm2995, %v2987, %v2992
      %v2997 = vrsqrt.pop %v2980
      %v2998 = vmul.f32 %v2997, %v2980
      %v2999 = vmul.f32 %v2998, %v2997
      %v3000 = vmul.f32 0.5, %v2999
      %v3001 = vsub.f32 1.5, %v3000
      %v3002 = vmul.f32 %v2997, %v3001
      %vm3003 = vweird.f32 %v2980
      %vm3004 = vweird.f32 %v2997
      %vm3005 = vmor %vm3003, %vm3004
      %v3006 = vsel %vm3005, %v2997, %v3002
      %v3007 = vrsqrt.pop %v2981
      %v3008 = vmul.f32 %v3007, %v2981
      %v3009 = vmul.f32 %v3008, %v3007
      %v3010 = vmul.f32 0.5, %v3009
      %v3011 = vsub.f32 1.5, %v3010
      %v3012 = vmul.f32 %v3007, %v3011
      %vm3013 = vweird.f32 %v2981
      %vm3014 = vweird.f32 %v3007
      %vm3015 = vmor %vm3013, %vm3014
      %v3016 = vsel %vm3015, %v3007, %v3012
      %v3017 = vrsqrt.pop %v2982
      %v3018 = vmul.f32 %v3017, %v2982
      %v3019 = vmul.f32 %v3018, %v3017
      %v3020 = vmul.f32 0.5, %v3019
      %v3021 = vsub.f32 1.5, %v3020
      %v3022 = vmul.f32 %v3017, %v3021
      %vm3023 = vweird.f32 %v2982
      %vm3024 = vweird.f32 %v3017
      %vm3025 = vmor %vm3023, %vm3024
      %v3026 = vsel %vm3025, %v3017, %v3022
      %v3027 = vrsqrt.pop %v2983
      %v3028 = vmul.f32 %v3027, %v2983
      %v3029 = vmul.f32 %v3028, %v3027
      %v3030 = vmul.f32 0.5, %v3029
      %v3031 = vsub.f32 1.5, %v3030
      %v3032 = vmul.f32 %v3027, %v3031
      %vm3033 = vweird.f32 %v2983
      %vm3034 = vweird.f32 %v3027
      %vm3035 = vmor %vm3033, %vm3034
      %v3036 = vsel %vm3035, %v3027, %v3032
      %v3037 = vrsqrt.pop %v2984
      %v3038 = vmul.f32 %v3037, %v2984
      %v3039 = vmul.f32 %v3038, %v3037
      %v3040 = vmul.f32 0.5, %v3039
      %v3041 = vsub.f32 1.5, %v3040
      %v3042 = vmul.f32 %v3037, %v3041
      %vm3043 = vweird.f32 %v2984
      %vm3044 = vweird.f32 %v3037
      %vm3045 = vmor %vm3043, %vm3044
      %v3046 = vsel %vm3045, %v3037, %v3042
      %v3047 = vrsqrt.pop %v2985
      %v3048 = vmul.f32 %v3047, %v2985
      %v3049 = vmul.f32 %v3048, %v3047
      %v3050 = vmul.f32 0.5, %v3049
      %v3051 = vsub.f32 1.5, %v3050
      %v3052 = vmul.f32 %v3047, %v3051
      %vm3053 = vweird.f32 %v2985
      %vm3054 = vweird.f32 %v3047
      %vm3055 = vmor %vm3053, %vm3054
      %v3056 = vsel %vm3055, %v3047, %v3052
      %v3057 = vrsqrt.pop %v2986
      %v3058 = vmul.f32 %v3057, %v2986
      %v3059 = vmul.f32 %v3058, %v3057
      %v3060 = vmul.f32 0.5, %v3059
      %v3061 = vsub.f32 1.5, %v3060
      %v3062 = vmul.f32 %v3057, %v3061
      %vm3063 = vweird.f32 %v2986
      %vm3064 = vweird.f32 %v3057
      %vm3065 = vmor %vm3063, %vm3064
      %v3066 = vsel %vm3065, %v3057, %v3062
      %v3067 = vmul.f32 %v2971, %v2996
      %v3068 = vmul.f32 %v2972, %v3006
      %v3069 = vmul.f32 %v2973, %v3016
      %v3070 = vmul.f32 %v2974, %v3026
      %v3071 = vmul.f32 %v2975, %v3036
      %v3072 = vmul.f32 %v2976, %v3046
      %v3073 = vmul.f32 %v2977, %v3056
      %v3074 = vmul.f32 %v2978, %v3066
      %v3075 = vperm.slane %v33, 5
      %v3076 = vmul.f32 %v3067, %v3075
      %v3077 = vmul.f32 %v3068, %v3075
      %v3078 = vmul.f32 %v3069, %v3075
      %v3079 = vmul.f32 %v3070, %v3075
      %v3080 = vmul.f32 %v3071, %v3075
      %v3081 = vmul.f32 %v3072, %v3075
      %v3082 = vmul.f32 %v3073, %v3075
      %v3083 = vmul.f32 %v3074, %v3075
      %v3084 = vperm.slane %v33, 6
      %v3085 = vadd.f32 %v3076, %v3084
      %v3086 = vadd.f32 %v3077, %v3084
      %v3087 = vadd.f32 %v3078, %v3084
      %v3088 = vadd.f32 %v3079, %v3084
      %v3089 = vadd.f32 %v3080, %v3084
      %v3090 = vadd.f32 %v3081, %v3084
      %v3091 = vadd.f32 %v3082, %v3084
      %v3092 = vadd.f32 %v3083, %v3084
      %v3093 = vmax.f32 %v3085, 0.0
      %v3094 = vmax.f32 %v3086, 0.0
      %v3095 = vmax.f32 %v3087, 0.0
      %v3096 = vmax.f32 %v3088, 0.0
      %v3097 = vmax.f32 %v3089, 0.0
      %v3098 = vmax.f32 %v3090, 0.0
      %v3099 = vmax.f32 %v3091, 0.0
      %v3100 = vmax.f32 %v3092, 0.0
      %v3101 = vld [vmem:[%s8] sm:$0xff]
      %v3102 = vld [vmem:[%s8 + $0x8] sm:$0xff]
      %v3103 = vperm.slane %v33, 7
      %v3105 = vsel %vm2882, %v3093, 0
      %v3108 = vsel %vm2882, %v3094, 0
      %v3111 = vsel %vm2882, %v3095, 0
      %v3114 = vsel %vm2882, %v3096, 0
      %v3117 = vsel %vm2882, %v3097, 0
      %v3120 = vsel %vm2882, %v3098, 0
      %v3123 = vsel %vm2882, %v3099, 0
      %v3126 = vsel %vm2882, %v3100, 0
      %3128 = vmatpush.msra.mxu0 0.0
      %3129 = vmatpush.msra.mxu0 0.0
      %3130 = vmatpush.msra.mxu0 0.0
      %3131 = vmatpush.msra.mxu0 0.0
      %3132 = vmatpush.msra.mxu0 0.0
      %3133 = vmatpush.msra.mxu0 0.0
      %3134 = vmatpush.msra.mxu0 0.0
      %3135 = vmatpush.msra.mxu0 0.0
      %3136 = vmatpush.msra.mxu0 0.0
      %3137 = vmatpush.msra.mxu0 0.0
      %3138 = vmatpush.msra.mxu0 0.0
      %3139 = vmatpush.msra.mxu0 0.0
      %3140 = vmatpush.msra.mxu0 0.0
      %3141 = vmatpush.msra.mxu0 0.0
      %3142 = vmatpush.msra.mxu0 %v3102
      %3143 = vmatpush.msra.mxu0 %v3101
      %3144 = vmatmul.f32.gmra.mxu0 %v3105
      %v3145 = vpop.f32.mrf.mxu0
      %v3146 = vadd.f32 %v3103, %v3145
      %3147 = vmatmul.f32.gmra.mxu0 %v3108
      %v3148 = vpop.f32.mrf.mxu0
      %v3149 = vadd.f32 %v3103, %v3148
      %3150 = vmatmul.f32.gmra.mxu0 %v3111
      %v3151 = vpop.f32.mrf.mxu0
      %v3152 = vadd.f32 %v3103, %v3151
      %3153 = vmatmul.f32.gmra.mxu0 %v3114
      %v3154 = vpop.f32.mrf.mxu0
      %v3155 = vadd.f32 %v3103, %v3154
      %3156 = vmatmul.f32.gmra.mxu0 %v3117
      %v3157 = vpop.f32.mrf.mxu0
      %v3158 = vadd.f32 %v3103, %v3157
      %3159 = vmatmul.f32.gmra.mxu0 %v3120
      %v3160 = vpop.f32.mrf.mxu0
      %v3161 = vadd.f32 %v3103, %v3160
      %3162 = vmatmul.f32.gmra.mxu0 %v3123
      %v3163 = vpop.f32.mrf.mxu0
      %v3164 = vadd.f32 %v3103, %v3163
      %3165 = vmatmul.f32.gmra.mxu0 %v3126
      %v3166 = vpop.f32.mrf.mxu0
      %v3167 = vadd.f32 %v3103, %v3166
      %3168 = vdwg.mxu0
      %v3169 = vmax.f32 %v3146, 0.0
      %v3170 = vmax.f32 %v3149, 0.0
      %v3171 = vmax.f32 %v3152, 0.0
      %v3172 = vmax.f32 %v3155, 0.0
      %v3173 = vmax.f32 %v3158, 0.0
      %v3174 = vmax.f32 %v3161, 0.0
      %v3175 = vmax.f32 %v3164, 0.0
      %v3176 = vmax.f32 %v3167, 0.0
      %v3177 = vperm.slane %v34, 0
      %v3178 = vmul.f32 %v3169, %v3177
      %v3179 = vmul.f32 %v3170, %v3177
      %v3180 = vmul.f32 %v3171, %v3177
      %v3181 = vmul.f32 %v3172, %v3177
      %v3182 = vmul.f32 %v3173, %v3177
      %v3183 = vmul.f32 %v3174, %v3177
      %v3184 = vmul.f32 %v3175, %v3177
      %v3185 = vmul.f32 %v3176, %v3177
      %vm3186 = vcmask 64512
      %v3187 = vsel %vm3186, %v3178, 0.0
      %3188 = vadd.xlane.f32.xlu0 %v3187
      %v3189 = vpop.xlane.xlu0 %3188
      %v3190 = vsel %vm3186, %v3179, 0.0
      %3191 = vadd.xlane.f32.xlu0 %v3190
      %v3192 = vpop.xlane.xlu0 %3191
      %v3193 = vsel %vm3186, %v3180, 0.0
      %3194 = vadd.xlane.f32.xlu0 %v3193
      %v3195 = vpop.xlane.xlu0 %3194
      %v3196 = vsel %vm3186, %v3181, 0.0
      %3197 = vadd.xlane.f32.xlu0 %v3196
      %v3198 = vpop.xlane.xlu0 %3197
      %v3199 = vsel %vm3186, %v3182, 0.0
      %3200 = vadd.xlane.f32.xlu0 %v3199
      %v3201 = vpop.xlane.xlu0 %3200
      %v3202 = vsel %vm3186, %v3183, 0.0
      %3203 = vadd.xlane.f32.xlu0 %v3202
      %v3204 = vpop.xlane.xlu0 %3203
      %v3205 = vsel %vm3186, %v3184, 0.0
      %3206 = vadd.xlane.f32.xlu0 %v3205
      %v3207 = vpop.xlane.xlu0 %3206
      %v3208 = vsel %vm3186, %v3185, 0.0
      %3209 = vadd.xlane.f32.xlu0 %v3208
      %v3210 = vpop.xlane.xlu0 %3209
      %v3211 = vperm.slane %v34, 2
      %v3212 = vadd.f32 %v3189, %v3211
      %v3213 = vadd.f32 %v3192, %v3211
      %v3214 = vadd.f32 %v3195, %v3211
      %v3215 = vadd.f32 %v3198, %v3211
      %v3216 = vadd.f32 %v3201, %v3211
      %v3217 = vadd.f32 %v3204, %v3211
      %v3218 = vadd.f32 %v3207, %v3211
      %v3219 = vadd.f32 %v3210, %v3211
      %v3220 = vld [vmem:[%s0] sm:$0xff]
      %v3221 = vld [vmem:[%s0 + $0x8] sm:$0xff]
      %v3222 = vld [vmem:[%s0 + $0x10] sm:$0xff]
      %v3223 = vld [vmem:[%s0 + $0x18] sm:$0xff]
      %v3224 = vld [vmem:[%s0 + $0x20] sm:$0xff]
      %v3225 = vld [vmem:[%s0 + $0x28] sm:$0xff]
      %v3226 = vld [vmem:[%s0 + $0x30] sm:$0xff]
      %v3227 = vld [vmem:[%s0 + $0x38] sm:$0xff]
      %v3228 = vperm.slane %v34, 1
      %v3229 = vmul.f32 %v3220, %v3228
      %v3230 = vmul.f32 %v3221, %v3228
      %v3231 = vmul.f32 %v3222, %v3228
      %v3232 = vmul.f32 %v3223, %v3228
      %v3233 = vmul.f32 %v3224, %v3228
      %v3234 = vmul.f32 %v3225, %v3228
      %v3235 = vmul.f32 %v3226, %v3228
      %v3236 = vmul.f32 %v3227, %v3228
      %v3237 = vsel %vm2882, %v3229, 0.0
      %3238 = vadd.xlane.f32.xlu0 %v3237
      %v3239 = vpop.xlane.xlu0 %3238
      %v3240 = vsel %vm2882, %v3230, 0.0
      %3241 = vadd.xlane.f32.xlu0 %v3240
      %v3242 = vpop.xlane.xlu0 %3241
      %v3243 = vsel %vm2882, %v3231, 0.0
      %3244 = vadd.xlane.f32.xlu0 %v3243
      %v3245 = vpop.xlane.xlu0 %3244
      %v3246 = vsel %vm2882, %v3232, 0.0
      %3247 = vadd.xlane.f32.xlu0 %v3246
      %v3248 = vpop.xlane.xlu0 %3247
      %v3249 = vsel %vm2882, %v3233, 0.0
      %3250 = vadd.xlane.f32.xlu0 %v3249
      %v3251 = vpop.xlane.xlu0 %3250
      %v3252 = vsel %vm2882, %v3234, 0.0
      %3253 = vadd.xlane.f32.xlu0 %v3252
      %v3254 = vpop.xlane.xlu0 %3253
      %v3255 = vsel %vm2882, %v3235, 0.0
      %3256 = vadd.xlane.f32.xlu0 %v3255
      %v3257 = vpop.xlane.xlu0 %3256
      %v3258 = vsel %vm2882, %v3236, 0.0
      %3259 = vadd.xlane.f32.xlu0 %v3258
      %v3260 = vpop.xlane.xlu0 %3259
      %v3261 = vadd.f32 %v3239, %v3211
      %v3262 = vadd.f32 %v3242, %v3211
      %v3263 = vadd.f32 %v3245, %v3211
      %v3264 = vadd.f32 %v3248, %v3211
      %v3265 = vadd.f32 %v3251, %v3211
      %v3266 = vadd.f32 %v3254, %v3211
      %v3267 = vadd.f32 %v3257, %v3211
      %v3268 = vadd.f32 %v3260, %v3211
      %3277 = vrot.lane.b32.xlu0 %v3261, 127
      %v3278 = vpop.permute.xlu0 %3277
      %3279 = vrot.lane.b32.xlu0 %v3262, 127
      %v3280 = vpop.permute.xlu0 %3279
      %3281 = vrot.lane.b32.xlu0 %v3263, 127
      %v3282 = vpop.permute.xlu0 %3281
      %3283 = vrot.lane.b32.xlu0 %v3264, 127
      %v3284 = vpop.permute.xlu0 %3283
      %3285 = vrot.lane.b32.xlu0 %v3265, 127
      %v3286 = vpop.permute.xlu0 %3285
      %3287 = vrot.lane.b32.xlu0 %v3266, 127
      %v3288 = vpop.permute.xlu0 %3287
      %3289 = vrot.lane.b32.xlu0 %v3267, 127
      %v3290 = vpop.permute.xlu0 %3289
      %3291 = vrot.lane.b32.xlu0 %v3268, 127
      %v3292 = vpop.permute.xlu0 %3291
      %v3301 = vadd.f32 %v3212, %v3278
      %v3302 = vadd.f32 %v3213, %v3280
      %v3303 = vadd.f32 %v3214, %v3282
      %v3304 = vadd.f32 %v3215, %v3284
      %v3305 = vadd.f32 %v3216, %v3286
      %v3306 = vadd.f32 %v3217, %v3288
      %v3307 = vadd.f32 %v3218, %v3290
      %v3308 = vadd.f32 %v3219, %v3292
      %3317 = vset.pattern.permute.xlu0 0
      %3318 = vperm.xlu0 %3317, %v3301
      %v3319 = vpop.permute.xlu0 %3318
      %3320 = vset.pattern.permute.xlu0 0
      %3321 = vperm.xlu0 %3320, %v3302
      %v3322 = vpop.permute.xlu0 %3321
      %3323 = vset.pattern.permute.xlu0 0
      %3324 = vperm.xlu0 %3323, %v3303
      %v3325 = vpop.permute.xlu0 %3324
      %3326 = vset.pattern.permute.xlu0 0
      %3327 = vperm.xlu0 %3326, %v3304
      %v3328 = vpop.permute.xlu0 %3327
      %3329 = vset.pattern.permute.xlu0 0
      %3330 = vperm.xlu0 %3329, %v3305
      %v3331 = vpop.permute.xlu0 %3330
      %3332 = vset.pattern.permute.xlu0 0
      %3333 = vperm.xlu0 %3332, %v3306
      %v3334 = vpop.permute.xlu0 %3333
      %3335 = vset.pattern.permute.xlu0 0
      %3336 = vperm.xlu0 %3335, %v3307
      %v3337 = vpop.permute.xlu0 %3336
      %3338 = vset.pattern.permute.xlu0 0
      %3339 = vperm.xlu0 %3338, %v3308
      %v3340 = vpop.permute.xlu0 %3339
      %v3341 = vlaneseq
      %v3342 = vand.u32 %v3341, 127
      %v3343 = vperm.slane %v3319, %v3342
      %v3344 = vadd.s32 %v3342, 4294967288
      %v3345 = vperm.slane %v3322, %v3344
      %vm3346 = vcmask 130112
      %v3347 = vsel %vm3346, %v3345, %v3343
      %v3348 = vadd.s32 %v3342, 4294967280
      %v3349 = vperm.slane %v3325, %v3348
      %vm3350 = vcmask 195712
      %v3351 = vsel %vm3350, %v3349, %v3347
      %v3352 = vadd.s32 %v3342, 4294967272
      %v3353 = vperm.slane %v3328, %v3352
      %vm3354 = vcmask 261312
      %v3355 = vsel %vm3354, %v3353, %v3351
      %v3356 = vadd.s32 %v3342, 4294967264
      %v3357 = vperm.slane %v3331, %v3356
      %vm3358 = vcmask 326912
      %v3359 = vsel %vm3358, %v3357, %v3355
      %v3360 = vadd.s32 %v3342, 4294967256
      %v3361 = vperm.slane %v3334, %v3360
      %vm3362 = vcmask 392512
      %v3363 = vsel %vm3362, %v3361, %v3359
      %v3364 = vadd.s32 %v3342, 4294967248
      %v3365 = vperm.slane %v3337, %v3364
      %vm3366 = vcmask 458112
      %v3367 = vsel %vm3366, %v3365, %v3363
      %v3368 = vadd.s32 %v3342, 4294967240
      %v3369 = vperm.slane %v3340, %v3368
      %vm3370 = vcmask 523712
      %v3371 = vsel %vm3370, %v3369, %v3367
      %vm3373 = vcmask 516096
      %3374 = vst.msk [vmem:[#allocation3] sm:$0x1] %vm3373, %v3371
    $region45: #{tpu_custom_call.1} parent=1 // pred_fallthru
      _
    // Predicated region
    $region46: #{tpu_custom_call.1} parent=1 // pred_check
      _
    $region47: #{tpu_custom_call.1} parent=1 // pred_check_branch
      %3376 = sbr.rel (0) target = $region49
    $region48: #{tpu_custom_call.1} parent=1 // pred_region
      %3378 = vsyncadd [#allocation4], 0
      %s3380 = sshll.u32 [#allocation3], 4
      %s3381 = int_to_ptr.vmem [resolvable:$true] %s3380
      %s3382 = sshll.u32 %s9, 4
      %s3383 = int_to_ptr.hbm [resolvable:$true] %s3382
      %3385 = dma.vmem_to_hbm [thread:$0]  %s3381, 16, %s3383, [#allocation4]
    $region49: #{tpu_custom_call.1} parent=1 // pred_fallthru
      _
    // Predicated region
    $region50: #{tpu_custom_call.1} parent=1 // pred_check
      _
    $region51: #{tpu_custom_call.1} parent=1 // pred_check_branch
      %3387 = sbr.rel (0) target = $region53
    $region52: #{tpu_custom_call.1} parent=1 // pred_region
      %3389 = dma.done [#allocation4], 16
    $region53: #{tpu_custom_call.1} parent=1 // pred_fallthru
      _
    %3390 = vsyncpa [#allocation4], 1

// kernel: tpu_custom_call.1
$region0: #{tpu_custom_call.1}
  #allocation0 [shape = 'u32[]', space=smem, size = 0x4, offset = 0x4, fixed_abs, tag = 'smem constant byte address 0x4 - core index']
  #allocation1 [shape = 'u32[72,128]{1,0:T(1,128)}', space=vmem, size = 0x9000, scoped, tag = 'internal scratch']
  #allocation2 [shape = 'f32[64,32]{1,0:T(8,128)}', space=vmem, size = 0x8000, scoped, tag = 'scratch operand']
  %s0 = inlined_call_operand.vmem [shape: f32[64,16], index: 0, kind: input, shape index: {}]
  %s1 = inlined_call_operand.vmem [shape: f32[11,32], index: 1, kind: input, shape index: {}]
  %s2 = inlined_call_operand.vmem [shape: f32[16,32], index: 2, kind: input, shape index: {}]
  %s3 = inlined_call_operand.vmem [shape: f32[4,32,32], index: 3, kind: input, shape index: {}]
  %s4 = inlined_call_operand.vmem [shape: f32[4,32,128], index: 4, kind: input, shape index: {}]
  %s5 = inlined_call_operand.vmem [shape: f32[4,128,32], index: 5, kind: input, shape index: {}]
  %s6 = inlined_call_operand.vmem [shape: f32[4,3,128], index: 6, kind: input, shape index: {}]
  %s7 = inlined_call_operand.vmem [shape: f32[32,16], index: 7, kind: input, shape index: {}]
  %s8 = inlined_call_operand.vmem [shape: f32[16,8], index: 8, kind: input, shape index: {}]
  %s9 = inlined_call_operand.hbm [shape: f32[1,64], index: 9, kind: output, shape index: {}]
  %s10 = sld [smem:[#allocation0]]
  $region54: #{tpu_custom_call.1} parent=0
    _
  %s12 = ssub.s32 1, %s10
  %s13 = scalar_select 0, %s12, %s10
  $region1: #{tpu_custom_call.1} parent=0
    #allocation3 [shape = 'u8[512]{0}', space=vmem, size = 0x400, scoped, tag = 'output window, operand 0, single buffered']
    #allocation4 [shape = 's32[1]{0}', space=sflag, size = 0x4, scoped, tag = 'scoped memory for tpu_custom_call.1']
    %14 = vsyncpa [#allocation4], 0
    // Predicated region
    $region2: #{tpu_custom_call.1} parent=1 // pred_check
      _
    $region3: #{tpu_custom_call.1} parent=1 // pred_check_branch
      %16 = sbr.rel (0) target = $region5
    $region4: #{tpu_custom_call.1} parent=1 // pred_region
      _
    $region5: #{tpu_custom_call.1} parent=1 // pred_fallthru
      _
    // Predicated region
    $region6: #{tpu_custom_call.1} parent=1 // pred_check
      _
    $region7: #{tpu_custom_call.1} parent=1 // pred_check_branch
      %18 = sbr.rel (0) target = $region9
    $region8: #{tpu_custom_call.1} parent=1 // pred_region
      _
    $region9: #{tpu_custom_call.1} parent=1 // pred_fallthru
      _
    // Predicated region
    $region10: #{tpu_custom_call.1} parent=1 // pred_check
      _
    $region11: #{tpu_custom_call.1} parent=1 // pred_check_branch
      %20 = sbr.rel (0) target = $region13
    $region12: #{tpu_custom_call.1} parent=1 // pred_region
      _
    $region13: #{tpu_custom_call.1} parent=1 // pred_fallthru
      _
    // Predicated region
    $region14: #{tpu_custom_call.1} parent=1 // pred_check
      _
    $region15: #{tpu_custom_call.1} parent=1 // pred_check_branch
      %22 = sbr.rel (0) target = $region17
    $region16: #{tpu_custom_call.1} parent=1 // pred_region
      _
    $region17: #{tpu_custom_call.1} parent=1 // pred_fallthru
      _
    // Predicated region
    $region18: #{tpu_custom_call.1} parent=1 // pred_check
      _
    $region19: #{tpu_custom_call.1} parent=1 // pred_check_branch
      %24 = sbr.rel (0) target = $region21
    $region20: #{tpu_custom_call.1} parent=1 // pred_region
      _
    $region21: #{tpu_custom_call.1} parent=1 // pred_fallthru
      _
    // Predicated region
    $region22: #{tpu_custom_call.1} parent=1 // pred_check
      _
    $region23: #{tpu_custom_call.1} parent=1 // pred_check_branch
      %26 = sbr.rel (0) target = $region25
    $region24: #{tpu_custom_call.1} parent=1 // pred_region
      _
    $region25: #{tpu_custom_call.1} parent=1 // pred_fallthru
      _
    // Predicated region
    $region26: #{tpu_custom_call.1} parent=1 // pred_check
      _
    $region27: #{tpu_custom_call.1} parent=1 // pred_check_branch
      %28 = sbr.rel (0) target = $region29
    $region28: #{tpu_custom_call.1} parent=1 // pred_region
      _
    $region29: #{tpu_custom_call.1} parent=1 // pred_fallthru
      _
    // Predicated region
    $region30: #{tpu_custom_call.1} parent=1 // pred_check
      _
    $region31: #{tpu_custom_call.1} parent=1 // pred_check_branch
      %30 = sbr.rel (0) target = $region33
    $region32: #{tpu_custom_call.1} parent=1 // pred_region
      _
    $region33: #{tpu_custom_call.1} parent=1 // pred_fallthru
      _
    // Predicated region
    $region34: #{tpu_custom_call.1} parent=1 // pred_check
      _
    $region35: #{tpu_custom_call.1} parent=1 // pred_check_branch
      %32 = sbr.rel (0) target = $region37
    $region36: #{tpu_custom_call.1} parent=1 // pred_region
      _
    $region37: #{tpu_custom_call.1} parent=1 // pred_fallthru
      _
    %v33 = vld [vmem:[%s1] sm:$0xff]
    %v34 = vld [vmem:[%s1 + $0x8] sm:$0x7]
    %p35 = scmp.eq.s32.totalorder 0, 0
    // Predicated region
    $region38: #{tpu_custom_call.1} parent=1 // pred_check
      %p36 = pneg %p35
    $region39: #{tpu_custom_call.1} parent=1 // pred_check_branch
      %38 = sbr.rel (%p36) target = $region41
    $region40: #{tpu_custom_call.1} parent=1 // pred_region
      %v39 = vld [vmem:[%s0] sm:$0xff]
      %v40 = vld [vmem:[%s0 + $0x8] sm:$0xff]
      %v41 = vld [vmem:[%s0 + $0x10] sm:$0xff]
      %v42 = vld [vmem:[%s0 + $0x18] sm:$0xff]
      %v43 = vld [vmem:[%s0 + $0x20] sm:$0xff]
      %v44 = vld [vmem:[%s0 + $0x28] sm:$0xff]
      %v45 = vld [vmem:[%s0 + $0x30] sm:$0xff]
      %v46 = vld [vmem:[%s0 + $0x38] sm:$0xff]
      %v47 = vld [vmem:[%s2] sm:$0xff]
      %v48 = vld [vmem:[%s2 + $0x8] sm:$0xff]
      %v49 = vperm.slane %v33, 0
      %vm50 = vcmask 130048
      %v52 = vsel %vm50, %v39, 0
      %v55 = vsel %vm50, %v40, 0
      %v58 = vsel %vm50, %v41, 0
      %v61 = vsel %vm50, %v42, 0
      %v64 = vsel %vm50, %v43, 0
      %v67 = vsel %vm50, %v44, 0
      %v70 = vsel %vm50, %v45, 0
      %v73 = vsel %vm50, %v46, 0
      %75 = vmatpush.msra.mxu0 0.0
      %76 = vmatpush.msra.mxu0 0.0
      %77 = vmatpush.msra.mxu0 0.0
      %78 = vmatpush.msra.mxu0 0.0
      %79 = vmatpush.msra.mxu0 0.0
      %80 = vmatpush.msra.mxu0 0.0
      %81 = vmatpush.msra.mxu0 0.0
      %82 = vmatpush.msra.mxu0 0.0
      %83 = vmatpush.msra.mxu0 0.0
      %84 = vmatpush.msra.mxu0 0.0
      %85 = vmatpush.msra.mxu0 0.0
      %86 = vmatpush.msra.mxu0 0.0
      %87 = vmatpush.msra.mxu0 0.0
      %88 = vmatpush.msra.mxu0 0.0
      %89 = vmatpush.msra.mxu0 %v48
      %90 = vmatpush.msra.mxu0 %v47
      %91 = vmatmul.f32.gmra.mxu0 %v52
      %v92 = vpop.f32.mrf.mxu0
      %v93 = vadd.f32 %v49, %v92
      %94 = vmatmul.f32.gmra.mxu0 %v55
      %v95 = vpop.f32.mrf.mxu0
      %v96 = vadd.f32 %v49, %v95
      %97 = vmatmul.f32.gmra.mxu0 %v58
      %v98 = vpop.f32.mrf.mxu0
      %v99 = vadd.f32 %v49, %v98
      %100 = vmatmul.f32.gmra.mxu0 %v61
      %v101 = vpop.f32.mrf.mxu0
      %v102 = vadd.f32 %v49, %v101
      %103 = vmatmul.f32.gmra.mxu0 %v64
      %v104 = vpop.f32.mrf.mxu0
      %v105 = vadd.f32 %v49, %v104
      %106 = vmatmul.f32.gmra.mxu0 %v67
      %v107 = vpop.f32.mrf.mxu0
      %v108 = vadd.f32 %v49, %v107
      %109 = vmatmul.f32.gmra.mxu0 %v70
      %v110 = vpop.f32.mrf.mxu0
      %v111 = vadd.f32 %v49, %v110
      %112 = vmatmul.f32.gmra.mxu0 %v73
      %v113 = vpop.f32.mrf.mxu0
      %v114 = vadd.f32 %v49, %v113
      %115 = vdwg.mxu0
      %vm116 = vcmask 261120
      %v117 = vsel %vm116, %v93, 0.0
      %118 = vadd.xlane.f32.xlu0 %v117
      %v119 = vpop.xlane.xlu0 %118
      %v120 = vsel %vm116, %v96, 0.0
      %121 = vadd.xlane.f32.xlu0 %v120
      %v122 = vpop.xlane.xlu0 %121
      %v123 = vsel %vm116, %v99, 0.0
      %124 = vadd.xlane.f32.xlu0 %v123
      %v125 = vpop.xlane.xlu0 %124
      %v126 = vsel %vm116, %v102, 0.0
      %127 = vadd.xlane.f32.xlu0 %v126
      %v128 = vpop.xlane.xlu0 %127
      %v129 = vsel %vm116, %v105, 0.0
      %130 = vadd.xlane.f32.xlu0 %v129
      %v131 = vpop.xlane.xlu0 %130
      %v132 = vsel %vm116, %v108, 0.0
      %133 = vadd.xlane.f32.xlu0 %v132
      %v134 = vpop.xlane.xlu0 %133
      %v135 = vsel %vm116, %v111, 0.0
      %136 = vadd.xlane.f32.xlu0 %v135
      %v137 = vpop.xlane.xlu0 %136
      %v138 = vsel %vm116, %v114, 0.0
      %139 = vadd.xlane.f32.xlu0 %v138
      %v140 = vpop.xlane.xlu0 %139
      %v141 = vmul.f32 %v93, %v93
      %v142 = vmul.f32 %v96, %v96
      %v143 = vmul.f32 %v99, %v99
      %v144 = vmul.f32 %v102, %v102
      %v145 = vmul.f32 %v105, %v105
      %v146 = vmul.f32 %v108, %v108
      %v147 = vmul.f32 %v111, %v111
      %v148 = vmul.f32 %v114, %v114
      %v149 = vsel %vm116, %v141, 0.0
      %150 = vadd.xlane.f32.xlu0 %v149
      %v151 = vpop.xlane.xlu0 %150
      %v152 = vsel %vm116, %v142, 0.0
      %153 = vadd.xlane.f32.xlu0 %v152
      %v154 = vpop.xlane.xlu0 %153
      %v155 = vsel %vm116, %v143, 0.0
      %156 = vadd.xlane.f32.xlu0 %v155
      %v157 = vpop.xlane.xlu0 %156
      %v158 = vsel %vm116, %v144, 0.0
      %159 = vadd.xlane.f32.xlu0 %v158
      %v160 = vpop.xlane.xlu0 %159
      %v161 = vsel %vm116, %v145, 0.0
      %162 = vadd.xlane.f32.xlu0 %v161
      %v163 = vpop.xlane.xlu0 %162
      %v164 = vsel %vm116, %v146, 0.0
      %165 = vadd.xlane.f32.xlu0 %v164
      %v166 = vpop.xlane.xlu0 %165
      %v167 = vsel %vm116, %v147, 0.0
      %168 = vadd.xlane.f32.xlu0 %v167
      %v169 = vpop.xlane.xlu0 %168
      %v170 = vsel %vm116, %v148, 0.0
      %171 = vadd.xlane.f32.xlu0 %v170
      %v172 = vpop.xlane.xlu0 %171
      %v173 = vmul.f32 %v119, 0.03125
      %v174 = vmul.f32 %v122, 0.03125
      %v175 = vmul.f32 %v125, 0.03125
      %v176 = vmul.f32 %v128, 0.03125
      %v177 = vmul.f32 %v131, 0.03125
      %v178 = vmul.f32 %v134, 0.03125
      %v179 = vmul.f32 %v137, 0.03125
      %v180 = vmul.f32 %v140, 0.03125
      %v181 = vmul.f32 %v151, 0.03125
      %v182 = vmul.f32 %v154, 0.03125
      %v183 = vmul.f32 %v157, 0.03125
      %v184 = vmul.f32 %v160, 0.03125
      %v185 = vmul.f32 %v163, 0.03125
      %v186 = vmul.f32 %v166, 0.03125
      %v187 = vmul.f32 %v169, 0.03125
      %v188 = vmul.f32 %v172, 0.03125
      %v189 = vmul.f32 %v173, %v173
      %v190 = vmul.f32 %v174, %v174
      %v191 = vmul.f32 %v175, %v175
      %v192 = vmul.f32 %v176, %v176
      %v193 = vmul.f32 %v177, %v177
      %v194 = vmul.f32 %v178, %v178
      %v195 = vmul.f32 %v179, %v179
      %v196 = vmul.f32 %v180, %v180
      %v197 = vsub.f32 %v181, %v189
      %v198 = vsub.f32 %v182, %v190
      %v199 = vsub.f32 %v183, %v191
      %v200 = vsub.f32 %v184, %v192
      %v201 = vsub.f32 %v185, %v193
      %v202 = vsub.f32 %v186, %v194
      %v203 = vsub.f32 %v187, %v195
      %v204 = vsub.f32 %v188, %v196
      %v205 = vsub.f32 %v93, %v173
      %v206 = vsub.f32 %v96, %v174
      %v207 = vsub.f32 %v99, %v175
      %v208 = vsub.f32 %v102, %v176
      %v209 = vsub.f32 %v105, %v177
      %v210 = vsub.f32 %v108, %v178
      %v211 = vsub.f32 %v111, %v179
      %v212 = vsub.f32 %v114, %v180
      %v213 = vadd.f32 %v197, 1e-05
      %v214 = vadd.f32 %v198, 1e-05
      %v215 = vadd.f32 %v199, 1e-05
      %v216 = vadd.f32 %v200, 1e-05
      %v217 = vadd.f32 %v201, 1e-05
      %v218 = vadd.f32 %v202, 1e-05
      %v219 = vadd.f32 %v203, 1e-05
      %v220 = vadd.f32 %v204, 1e-05
      %v221 = vrsqrt.pop %v213
      %v222 = vmul.f32 %v221, %v213
      %v223 = vmul.f32 %v222, %v221
      %v224 = vmul.f32 0.5, %v223
      %v225 = vsub.f32 1.5, %v224
      %v226 = vmul.f32 %v221, %v225
      %vm227 = vweird.f32 %v213
      %vm228 = vweird.f32 %v221
      %vm229 = vmor %vm227, %vm228
      %v230 = vsel %vm229, %v221, %v226
      %v231 = vrsqrt.pop %v214
      %v232 = vmul.f32 %v231, %v214
      %v233 = vmul.f32 %v232, %v231
      %v234 = vmul.f32 0.5, %v233
      %v235 = vsub.f32 1.5, %v234
      %v236 = vmul.f32 %v231, %v235
      %vm237 = vweird.f32 %v214
      %vm238 = vweird.f32 %v231
      %vm239 = vmor %vm237, %vm238
      %v240 = vsel %vm239, %v231, %v236
      %v241 = vrsqrt.pop %v215
      %v242 = vmul.f32 %v241, %v215
      %v243 = vmul.f32 %v242, %v241
      %v244 = vmul.f32 0.5, %v243
      %v245 = vsub.f32 1.5, %v244
      %v246 = vmul.f32 %v241, %v245
      %vm247 = vweird.f32 %v215
      %vm248 = vweird.f32 %v241
      %vm249 = vmor %vm247, %vm248
      %v250 = vsel %vm249, %v241, %v246
      %v251 = vrsqrt.pop %v216
      %v252 = vmul.f32 %v251, %v216
      %v253 = vmul.f32 %v252, %v251
      %v254 = vmul.f32 0.5, %v253
      %v255 = vsub.f32 1.5, %v254
      %v256 = vmul.f32 %v251, %v255
      %vm257 = vweird.f32 %v216
      %vm258 = vweird.f32 %v251
      %vm259 = vmor %vm257, %vm258
      %v260 = vsel %vm259, %v251, %v256
      %v261 = vrsqrt.pop %v217
      %v262 = vmul.f32 %v261, %v217
      %v263 = vmul.f32 %v262, %v261
      %v264 = vmul.f32 0.5, %v263
      %v265 = vsub.f32 1.5, %v264
      %v266 = vmul.f32 %v261, %v265
      %vm267 = vweird.f32 %v217
      %vm268 = vweird.f32 %v261
      %vm269 = vmor %vm267, %vm268
      %v270 = vsel %vm269, %v261, %v266
      %v271 = vrsqrt.pop %v218
      %v272 = vmul.f32 %v271, %v218
      %v273 = vmul.f32 %v272, %v271
      %v274 = vmul.f32 0.5, %v273
      %v275 = vsub.f32 1.5, %v274
      %v276 = vmul.f32 %v271, %v275
      %vm277 = vweird.f32 %v218
      %vm278 = vweird.f32 %v271
      %vm279 = vmor %vm277, %vm278
      %v280 = vsel %vm279, %v271, %v276
      %v281 = vrsqrt.pop %v219
      %v282 = vmul.f32 %v281, %v219
      %v283 = vmul.f32 %v282, %v281
      %v284 = vmul.f32 0.5, %v283
      %v285 = vsub.f32 1.5, %v284
      %v286 = vmul.f32 %v281, %v285
      %vm287 = vweird.f32 %v219
      %vm288 = vweird.f32 %v281
      %vm289 = vmor %vm287, %vm288
      %v290 = vsel %vm289, %v281, %v286
      %v291 = vrsqrt.pop %v220
      %v292 = vmul.f32 %v291, %v220
      %v293 = vmul.f32 %v292, %v291
      %v294 = vmul.f32 0.5, %v293
      %v295 = vsub.f32 1.5, %v294
      %v296 = vmul.f32 %v291, %v295
      %vm297 = vweird.f32 %v220
      %vm298 = vweird.f32 %v291
      %vm299 = vmor %vm297, %vm298
      %v300 = vsel %vm299, %v291, %v296
      %v301 = vmul.f32 %v205, %v230
      %v302 = vmul.f32 %v206, %v240
      %v303 = vmul.f32 %v207, %v250
      %v304 = vmul.f32 %v208, %v260
      %v305 = vmul.f32 %v209, %v270
      %v306 = vmul.f32 %v210, %v280
      %v307 = vmul.f32 %v211, %v290
      %v308 = vmul.f32 %v212, %v300
      %v309 = vperm.slane %v33, 1
      %v310 = vmul.f32 %v301, %v309
      %v311 = vmul.f32 %v302, %v309
      %v312 = vmul.f32 %v303, %v309
      %v313 = vmul.f32 %v304, %v309
      %v314 = vmul.f32 %v305, %v309
      %v315 = vmul.f32 %v306, %v309
      %v316 = vmul.f32 %v307, %v309
      %v317 = vmul.f32 %v308, %v309
      %v318 = vperm.slane %v33, 2
      %v319 = vadd.f32 %v310, %v318
      %v320 = vadd.f32 %v311, %v318
      %v321 = vadd.f32 %v312, %v318
      %v322 = vadd.f32 %v313, %v318
      %v323 = vadd.f32 %v314, %v318
      %v324 = vadd.f32 %v315, %v318
      %v325 = vadd.f32 %v316, %v318
      %v326 = vadd.f32 %v317, %v318
      %v327 = vmax.f32 %v319, 0.0
      %v328 = vmax.f32 %v320, 0.0
      %v329 = vmax.f32 %v321, 0.0
      %v330 = vmax.f32 %v322, 0.0
      %v331 = vmax.f32 %v323, 0.0
      %v332 = vmax.f32 %v324, 0.0
      %v333 = vmax.f32 %v325, 0.0
      %v334 = vmax.f32 %v326, 0.0
      %v335 = vperm.slane %v33, 3
      %v336 = vadd.f32 %v327, %v335
      %v337 = vadd.f32 %v328, %v335
      %v338 = vadd.f32 %v329, %v335
      %v339 = vadd.f32 %v330, %v335
      %v340 = vadd.f32 %v331, %v335
      %v341 = vadd.f32 %v332, %v335
      %v342 = vadd.f32 %v333, %v335
      %v343 = vadd.f32 %v334, %v335
      %344 = vst.msk [vmem:[#allocation2] sm:$0xff] %vm116, %v336
      %345 = vst.msk [vmem:[#allocation2 + $0x8] sm:$0xff] %vm116, %v337
      %346 = vst.msk [vmem:[#allocation2 + $0x10] sm:$0xff] %vm116, %v338
      %347 = vst.msk [vmem:[#allocation2 + $0x18] sm:$0xff] %vm116, %v339
      %348 = vst.msk [vmem:[#allocation2 + $0x20] sm:$0xff] %vm116, %v340
      %349 = vst.msk [vmem:[#allocation2 + $0x28] sm:$0xff] %vm116, %v341
      %350 = vst.msk [vmem:[#allocation2 + $0x30] sm:$0xff] %vm116, %v342
      %351 = vst.msk [vmem:[#allocation2 + $0x38] sm:$0xff] %vm116, %v343
    $region41: #{tpu_custom_call.1} parent=1 // pred_fallthru
      _
    %v352 = vld [vmem:[#allocation2] sm:$0xff]
    %v353 = vld [vmem:[#allocation2 + $0x8] sm:$0xff]
    %v354 = vld [vmem:[#allocation2 + $0x10] sm:$0xff]
    %v355 = vld [vmem:[#allocation2 + $0x18] sm:$0xff]
    %v356 = vld [vmem:[#allocation2 + $0x20] sm:$0xff]
    %v357 = vld [vmem:[#allocation2 + $0x28] sm:$0xff]
    %v358 = vld [vmem:[#allocation2 + $0x30] sm:$0xff]
    %v359 = vld [vmem:[#allocation2 + $0x38] sm:$0xff]
    %v360 = vld [vmem:[%s3] sm:$0xff]
    %v361 = vld [vmem:[%s3 + $0x8] sm:$0xff]
    %v362 = vld [vmem:[%s3 + $0x10] sm:$0xff]
    %v363 = vld [vmem:[%s3 + $0x18] sm:$0xff]
    %v364 = vld [vmem:[%s4] sm:$0xff]
    %v365 = vld [vmem:[%s4 + $0x8] sm:$0xff]
    %v366 = vld [vmem:[%s4 + $0x10] sm:$0xff]
    %v367 = vld [vmem:[%s4 + $0x18] sm:$0xff]
    %v368 = vld [vmem:[%s5] sm:$0xff]
    %v369 = vld [vmem:[%s5 + $0x8] sm:$0xff]
    %v370 = vld [vmem:[%s5 + $0x10] sm:$0xff]
    %v371 = vld [vmem:[%s5 + $0x18] sm:$0xff]
    %v372 = vld [vmem:[%s5 + $0x20] sm:$0xff]
    %v373 = vld [vmem:[%s5 + $0x28] sm:$0xff]
    %v374 = vld [vmem:[%s5 + $0x30] sm:$0xff]
    %v375 = vld [vmem:[%s5 + $0x38] sm:$0xff]
    %v376 = vld [vmem:[%s5 + $0x40] sm:$0xff]
    %v377 = vld [vmem:[%s5 + $0x48] sm:$0xff]
    %v378 = vld [vmem:[%s5 + $0x50] sm:$0xff]
    %v379 = vld [vmem:[%s5 + $0x58] sm:$0xff]
    %v380 = vld [vmem:[%s5 + $0x60] sm:$0xff]
    %v381 = vld [vmem:[%s5 + $0x68] sm:$0xff]
    %v382 = vld [vmem:[%s5 + $0x70] sm:$0xff]
    %v383 = vld [vmem:[%s5 + $0x78] sm:$0xff]
    %v384 = vld [vmem:[%s6] sm:$0x7]
    %vm385 = vcmask 261120
    %v386 = vsel %vm385, %v352, 0.0
    %387 = vadd.xlane.f32.xlu0 %v386
    %v388 = vpop.xlane.xlu0 %387
    %v389 = vsel %vm385, %v353, 0.0
    %390 = vadd.xlane.f32.xlu0 %v389
    %v391 = vpop.xlane.xlu0 %390
    %v392 = vsel %vm385, %v354, 0.0
    %393 = vadd.xlane.f32.xlu0 %v392
    %v394 = vpop.xlane.xlu0 %393
    %v395 = vsel %vm385, %v355, 0.0
    %396 = vadd.xlane.f32.xlu0 %v395
    %v397 = vpop.xlane.xlu0 %396
    %v398 = vsel %vm385, %v356, 0.0
    %399 = vadd.xlane.f32.xlu0 %v398
    %v400 = vpop.xlane.xlu0 %399
    %v401 = vsel %vm385, %v357, 0.0
    %402 = vadd.xlane.f32.xlu0 %v401
    %v403 = vpop.xlane.xlu0 %402
    %v404 = vsel %vm385, %v358, 0.0
    %405 = vadd.xlane.f32.xlu0 %v404
    %v406 = vpop.xlane.xlu0 %405
    %v407 = vsel %vm385, %v359, 0.0
    %408 = vadd.xlane.f32.xlu0 %v407
    %v409 = vpop.xlane.xlu0 %408
    %v410 = vmul.f32 %v352, %v352
    %v411 = vmul.f32 %v353, %v353
    %v412 = vmul.f32 %v354, %v354
    %v413 = vmul.f32 %v355, %v355
    %v414 = vmul.f32 %v356, %v356
    %v415 = vmul.f32 %v357, %v357
    %v416 = vmul.f32 %v358, %v358
    %v417 = vmul.f32 %v359, %v359
    %v418 = vsel %vm385, %v410, 0.0
    %419 = vadd.xlane.f32.xlu0 %v418
    %v420 = vpop.xlane.xlu0 %419
    %v421 = vsel %vm385, %v411, 0.0
    %422 = vadd.xlane.f32.xlu0 %v421
    %v423 = vpop.xlane.xlu0 %422
    %v424 = vsel %vm385, %v412, 0.0
    %425 = vadd.xlane.f32.xlu0 %v424
    %v426 = vpop.xlane.xlu0 %425
    %v427 = vsel %vm385, %v413, 0.0
    %428 = vadd.xlane.f32.xlu0 %v427
    %v429 = vpop.xlane.xlu0 %428
    %v430 = vsel %vm385, %v414, 0.0
    %431 = vadd.xlane.f32.xlu0 %v430
    %v432 = vpop.xlane.xlu0 %431
    %v433 = vsel %vm385, %v415, 0.0
    %434 = vadd.xlane.f32.xlu0 %v433
    %v435 = vpop.xlane.xlu0 %434
    %v436 = vsel %vm385, %v416, 0.0
    %437 = vadd.xlane.f32.xlu0 %v436
    %v438 = vpop.xlane.xlu0 %437
    %v439 = vsel %vm385, %v417, 0.0
    %440 = vadd.xlane.f32.xlu0 %v439
    %v441 = vpop.xlane.xlu0 %440
    %v442 = vmul.f32 %v388, 0.03125
    %v443 = vmul.f32 %v391, 0.03125
    %v444 = vmul.f32 %v394, 0.03125
    %v445 = vmul.f32 %v397, 0.03125
    %v446 = vmul.f32 %v400, 0.03125
    %v447 = vmul.f32 %v403, 0.03125
    %v448 = vmul.f32 %v406, 0.03125
    %v449 = vmul.f32 %v409, 0.03125
    %v450 = vmul.f32 %v420, 0.03125
    %v451 = vmul.f32 %v423, 0.03125
    %v452 = vmul.f32 %v426, 0.03125
    %v453 = vmul.f32 %v429, 0.03125
    %v454 = vmul.f32 %v432, 0.03125
    %v455 = vmul.f32 %v435, 0.03125
    %v456 = vmul.f32 %v438, 0.03125
    %v457 = vmul.f32 %v441, 0.03125
    %v458 = vmul.f32 %v442, %v442
    %v459 = vmul.f32 %v443, %v443
    %v460 = vmul.f32 %v444, %v444
    %v461 = vmul.f32 %v445, %v445
    %v462 = vmul.f32 %v446, %v446
    %v463 = vmul.f32 %v447, %v447
    %v464 = vmul.f32 %v448, %v448
    %v465 = vmul.f32 %v449, %v449
    %v466 = vsub.f32 %v450, %v458
    %v467 = vsub.f32 %v451, %v459
    %v468 = vsub.f32 %v452, %v460
    %v469 = vsub.f32 %v453, %v461
    %v470 = vsub.f32 %v454, %v462
    %v471 = vsub.f32 %v455, %v463
    %v472 = vsub.f32 %v456, %v464
    %v473 = vsub.f32 %v457, %v465
    %v474 = vsub.f32 %v352, %v442
    %v475 = vsub.f32 %v353, %v443
    %v476 = vsub.f32 %v354, %v444
    %v477 = vsub.f32 %v355, %v445
    %v478 = vsub.f32 %v356, %v446
    %v479 = vsub.f32 %v357, %v447
    %v480 = vsub.f32 %v358, %v448
    %v481 = vsub.f32 %v359, %v449
    %v482 = vadd.f32 %v466, 1e-05
    %v483 = vadd.f32 %v467, 1e-05
    %v484 = vadd.f32 %v468, 1e-05
    %v485 = vadd.f32 %v469, 1e-05
    %v486 = vadd.f32 %v470, 1e-05
    %v487 = vadd.f32 %v471, 1e-05
    %v488 = vadd.f32 %v472, 1e-05
    %v489 = vadd.f32 %v473, 1e-05
    %v490 = vrsqrt.pop %v482
    %v491 = vmul.f32 %v490, %v482
    %v492 = vmul.f32 %v491, %v490
    %v493 = vmul.f32 0.5, %v492
    %v494 = vsub.f32 1.5, %v493
    %v495 = vmul.f32 %v490, %v494
    %vm496 = vweird.f32 %v482
    %vm497 = vweird.f32 %v490
    %vm498 = vmor %vm496, %vm497
    %v499 = vsel %vm498, %v490, %v495
    %v500 = vrsqrt.pop %v483
    %v501 = vmul.f32 %v500, %v483
    %v502 = vmul.f32 %v501, %v500
    %v503 = vmul.f32 0.5, %v502
    %v504 = vsub.f32 1.5, %v503
    %v505 = vmul.f32 %v500, %v504
    %vm506 = vweird.f32 %v483
    %vm507 = vweird.f32 %v500
    %vm508 = vmor %vm506, %vm507
    %v509 = vsel %vm508, %v500, %v505
    %v510 = vrsqrt.pop %v484
    %v511 = vmul.f32 %v510, %v484
    %v512 = vmul.f32 %v511, %v510
    %v513 = vmul.f32 0.5, %v512
    %v514 = vsub.f32 1.5, %v513
    %v515 = vmul.f32 %v510, %v514
    %vm516 = vweird.f32 %v484
    %vm517 = vweird.f32 %v510
    %vm518 = vmor %vm516, %vm517
    %v519 = vsel %vm518, %v510, %v515
    %v520 = vrsqrt.pop %v485
    %v521 = vmul.f32 %v520, %v485
    %v522 = vmul.f32 %v521, %v520
    %v523 = vmul.f32 0.5, %v522
    %v524 = vsub.f32 1.5, %v523
    %v525 = vmul.f32 %v520, %v524
    %vm526 = vweird.f32 %v485
    %vm527 = vweird.f32 %v520
    %vm528 = vmor %vm526, %vm527
    %v529 = vsel %vm528, %v520, %v525
    %v530 = vrsqrt.pop %v486
    %v531 = vmul.f32 %v530, %v486
    %v532 = vmul.f32 %v531, %v530
    %v533 = vmul.f32 0.5, %v532
    %v534 = vsub.f32 1.5, %v533
    %v535 = vmul.f32 %v530, %v534
    %vm536 = vweird.f32 %v486
    %vm537 = vweird.f32 %v530
    %vm538 = vmor %vm536, %vm537
    %v539 = vsel %vm538, %v530, %v535
    %v540 = vrsqrt.pop %v487
    %v541 = vmul.f32 %v540, %v487
    %v542 = vmul.f32 %v541, %v540
    %v543 = vmul.f32 0.5, %v542
    %v544 = vsub.f32 1.5, %v543
    %v545 = vmul.f32 %v540, %v544
    %vm546 = vweird.f32 %v487
    %vm547 = vweird.f32 %v540
    %vm548 = vmor %vm546, %vm547
    %v549 = vsel %vm548, %v540, %v545
    %v550 = vrsqrt.pop %v488
    %v551 = vmul.f32 %v550, %v488
    %v552 = vmul.f32 %v551, %v550
    %v553 = vmul.f32 0.5, %v552
    %v554 = vsub.f32 1.5, %v553
    %v555 = vmul.f32 %v550, %v554
    %vm556 = vweird.f32 %v488
    %vm557 = vweird.f32 %v550
    %vm558 = vmor %vm556, %vm557
    %v559 = vsel %vm558, %v550, %v555
    %v560 = vrsqrt.pop %v489
    %v561 = vmul.f32 %v560, %v489
    %v562 = vmul.f32 %v561, %v560
    %v563 = vmul.f32 0.5, %v562
    %v564 = vsub.f32 1.5, %v563
    %v565 = vmul.f32 %v560, %v564
    %vm566 = vweird.f32 %v489
    %vm567 = vweird.f32 %v560
    %vm568 = vmor %vm566, %vm567
    %v569 = vsel %vm568, %v560, %v565
    %v570 = vmul.f32 %v474, %v499
    %v571 = vmul.f32 %v475, %v509
    %v572 = vmul.f32 %v476, %v519
    %v573 = vmul.f32 %v477, %v529
    %v574 = vmul.f32 %v478, %v539
    %v575 = vmul.f32 %v479, %v549
    %v576 = vmul.f32 %v480, %v559
    %v577 = vmul.f32 %v481, %v569
    %v578 = vperm.slane %v384, 0
    %v580 = vsel %vm385, %v570, 0
    %v583 = vsel %vm385, %v571, 0
    %v586 = vsel %vm385, %v572, 0
    %v589 = vsel %vm385, %v573, 0
    %v592 = vsel %vm385, %v574, 0
    %v595 = vsel %vm385, %v575, 0
    %v598 = vsel %vm385, %v576, 0
    %v601 = vsel %vm385, %v577, 0
    %603 = vmatpush.msra.mxu0 0.0
    %604 = vmatpush.msra.mxu0 0.0
    %605 = vmatpush.msra.mxu0 0.0
    %606 = vmatpush.msra.mxu0 0.0
    %607 = vmatpush.msra.mxu0 0.0
    %608 = vmatpush.msra.mxu0 0.0
    %609 = vmatpush.msra.mxu0 0.0
    %610 = vmatpush.msra.mxu0 0.0
    %611 = vmatpush.msra.mxu0 0.0
    %612 = vmatpush.msra.mxu0 0.0
    %613 = vmatpush.msra.mxu0 0.0
    %614 = vmatpush.msra.mxu0 0.0
    %615 = vmatpush.msra.mxu0 %v363
    %616 = vmatpush.msra.mxu0 %v362
    %617 = vmatpush.msra.mxu0 %v361
    %618 = vmatpush.msra.mxu0 %v360
    %619 = vmatmul.f32.gmra.mxu0 %v580
    %v620 = vpop.f32.mrf.mxu0
    %v621 = vadd.f32 %v578, %v620
    %622 = vmatmul.f32.gmra.mxu0 %v583
    %v623 = vpop.f32.mrf.mxu0
    %v624 = vadd.f32 %v578, %v623
    %625 = vmatmul.f32.gmra.mxu0 %v586
    %v626 = vpop.f32.mrf.mxu0
    %v627 = vadd.f32 %v578, %v626
    %628 = vmatmul.f32.gmra.mxu0 %v589
    %v629 = vpop.f32.mrf.mxu0
    %v630 = vadd.f32 %v578, %v629
    %631 = vmatmul.f32.gmra.mxu0 %v592
    %v632 = vpop.f32.mrf.mxu0
    %v633 = vadd.f32 %v578, %v632
    %634 = vmatmul.f32.gmra.mxu0 %v595
    %v635 = vpop.f32.mrf.mxu0
    %v636 = vadd.f32 %v578, %v635
    %637 = vmatmul.f32.gmra.mxu0 %v598
    %v638 = vpop.f32.mrf.mxu0
    %v639 = vadd.f32 %v578, %v638
    %640 = vmatmul.f32.gmra.mxu0 %v601
    %v641 = vpop.f32.mrf.mxu0
    %v642 = vadd.f32 %v578, %v641
    %643 = vdwg.mxu0
    %v644 = vadd.f32 %v352, %v621
    %v645 = vadd.f32 %v353, %v624
    %v646 = vadd.f32 %v354, %v627
    %v647 = vadd.f32 %v355, %v630
    %v648 = vadd.f32 %v356, %v633
    %v649 = vadd.f32 %v357, %v636
    %v650 = vadd.f32 %v358, %v639
    %v651 = vadd.f32 %v359, %v642
    %v652 = vsel %vm385, %v644, 0.0
    %653 = vadd.xlane.f32.xlu0 %v652
    %v654 = vpop.xlane.xlu0 %653
    %v655 = vsel %vm385, %v645, 0.0
    %656 = vadd.xlane.f32.xlu0 %v655
    %v657 = vpop.xlane.xlu0 %656
    %v658 = vsel %vm385, %v646, 0.0
    %659 = vadd.xlane.f32.xlu0 %v658
    %v660 = vpop.xlane.xlu0 %659
    %v661 = vsel %vm385, %v647, 0.0
    %662 = vadd.xlane.f32.xlu0 %v661
    %v663 = vpop.xlane.xlu0 %662
    %v664 = vsel %vm385, %v648, 0.0
    %665 = vadd.xlane.f32.xlu0 %v664
    %v666 = vpop.xlane.xlu0 %665
    %v667 = vsel %vm385, %v649, 0.0
    %668 = vadd.xlane.f32.xlu0 %v667
    %v669 = vpop.xlane.xlu0 %668
    %v670 = vsel %vm385, %v650, 0.0
    %671 = vadd.xlane.f32.xlu0 %v670
    %v672 = vpop.xlane.xlu0 %671
    %v673 = vsel %vm385, %v651, 0.0
    %674 = vadd.xlane.f32.xlu0 %v673
    %v675 = vpop.xlane.xlu0 %674
    %v676 = vmul.f32 %v644, %v644
    %v677 = vmul.f32 %v645, %v645
    %v678 = vmul.f32 %v646, %v646
    %v679 = vmul.f32 %v647, %v647
    %v680 = vmul.f32 %v648, %v648
    %v681 = vmul.f32 %v649, %v649
    %v682 = vmul.f32 %v650, %v650
    %v683 = vmul.f32 %v651, %v651
    %v684 = vsel %vm385, %v676, 0.0
    %685 = vadd.xlane.f32.xlu0 %v684
    %v686 = vpop.xlane.xlu0 %685
    %v687 = vsel %vm385, %v677, 0.0
    %688 = vadd.xlane.f32.xlu0 %v687
    %v689 = vpop.xlane.xlu0 %688
    %v690 = vsel %vm385, %v678, 0.0
    %691 = vadd.xlane.f32.xlu0 %v690
    %v692 = vpop.xlane.xlu0 %691
    %v693 = vsel %vm385, %v679, 0.0
    %694 = vadd.xlane.f32.xlu0 %v693
    %v695 = vpop.xlane.xlu0 %694
    %v696 = vsel %vm385, %v680, 0.0
    %697 = vadd.xlane.f32.xlu0 %v696
    %v698 = vpop.xlane.xlu0 %697
    %v699 = vsel %vm385, %v681, 0.0
    %700 = vadd.xlane.f32.xlu0 %v699
    %v701 = vpop.xlane.xlu0 %700
    %v702 = vsel %vm385, %v682, 0.0
    %703 = vadd.xlane.f32.xlu0 %v702
    %v704 = vpop.xlane.xlu0 %703
    %v705 = vsel %vm385, %v683, 0.0
    %706 = vadd.xlane.f32.xlu0 %v705
    %v707 = vpop.xlane.xlu0 %706
    %v708 = vmul.f32 %v654, 0.03125
    %v709 = vmul.f32 %v657, 0.03125
    %v710 = vmul.f32 %v660, 0.03125
    %v711 = vmul.f32 %v663, 0.03125
    %v712 = vmul.f32 %v666, 0.03125
    %v713 = vmul.f32 %v669, 0.03125
    %v714 = vmul.f32 %v672, 0.03125
    %v715 = vmul.f32 %v675, 0.03125
    %v716 = vmul.f32 %v686, 0.03125
    %v717 = vmul.f32 %v689, 0.03125
    %v718 = vmul.f32 %v692, 0.03125
    %v719 = vmul.f32 %v695, 0.03125
    %v720 = vmul.f32 %v698, 0.03125
    %v721 = vmul.f32 %v701, 0.03125
    %v722 = vmul.f32 %v704, 0.03125
    %v723 = vmul.f32 %v707, 0.03125
    %v724 = vmul.f32 %v708, %v708
    %v725 = vmul.f32 %v709, %v709
    %v726 = vmul.f32 %v710, %v710
    %v727 = vmul.f32 %v711, %v711
    %v728 = vmul.f32 %v712, %v712
    %v729 = vmul.f32 %v713, %v713
    %v730 = vmul.f32 %v714, %v714
    %v731 = vmul.f32 %v715, %v715
    %v732 = vsub.f32 %v716, %v724
    %v733 = vsub.f32 %v717, %v725
    %v734 = vsub.f32 %v718, %v726
    %v735 = vsub.f32 %v719, %v727
    %v736 = vsub.f32 %v720, %v728
    %v737 = vsub.f32 %v721, %v729
    %v738 = vsub.f32 %v722, %v730
    %v739 = vsub.f32 %v723, %v731
    %v740 = vsub.f32 %v644, %v708
    %v741 = vsub.f32 %v645, %v709
    %v742 = vsub.f32 %v646, %v710
    %v743 = vsub.f32 %v647, %v711
    %v744 = vsub.f32 %v648, %v712
    %v745 = vsub.f32 %v649, %v713
    %v746 = vsub.f32 %v650, %v714
    %v747 = vsub.f32 %v651, %v715
    %v748 = vadd.f32 %v732, 1e-05
    %v749 = vadd.f32 %v733, 1e-05
    %v750 = vadd.f32 %v734, 1e-05
    %v751 = vadd.f32 %v735, 1e-05
    %v752 = vadd.f32 %v736, 1e-05
    %v753 = vadd.f32 %v737, 1e-05
    %v754 = vadd.f32 %v738, 1e-05
    %v755 = vadd.f32 %v739, 1e-05
    %v756 = vrsqrt.pop %v748
    %v757 = vmul.f32 %v756, %v748
    %v758 = vmul.f32 %v757, %v756
    %v759 = vmul.f32 0.5, %v758
    %v760 = vsub.f32 1.5, %v759
    %v761 = vmul.f32 %v756, %v760
    %vm762 = vweird.f32 %v748
    %vm763 = vweird.f32 %v756
    %vm764 = vmor %vm762, %vm763
    %v765 = vsel %vm764, %v756, %v761
    %v766 = vrsqrt.pop %v749
    %v767 = vmul.f32 %v766, %v749
    %v768 = vmul.f32 %v767, %v766
    %v769 = vmul.f32 0.5, %v768
    %v770 = vsub.f32 1.5, %v769
    %v771 = vmul.f32 %v766, %v770
    %vm772 = vweird.f32 %v749
    %vm773 = vweird.f32 %v766
    %vm774 = vmor %vm772, %vm773
    %v775 = vsel %vm774, %v766, %v771
    %v776 = vrsqrt.pop %v750
    %v777 = vmul.f32 %v776, %v750
    %v778 = vmul.f32 %v777, %v776
    %v779 = vmul.f32 0.5, %v778
    %v780 = vsub.f32 1.5, %v779
    %v781 = vmul.f32 %v776, %v780
    %vm782 = vweird.f32 %v750
    %vm783 = vweird.f32 %v776
    %vm784 = vmor %vm782, %vm783
    %v785 = vsel %vm784, %v776, %v781
    %v786 = vrsqrt.pop %v751
    %v787 = vmul.f32 %v786, %v751
    %v788 = vmul.f32 %v787, %v786
    %v789 = vmul.f32 0.5, %v788
    %v790 = vsub.f32 1.5, %v789
    %v791 = vmul.f32 %v786, %v790
    %vm792 = vweird.f32 %v751
    %vm793 = vweird.f32 %v786
    %vm794 = vmor %vm792, %vm793
    %v795 = vsel %vm794, %v786, %v791
    %v796 = vrsqrt.pop %v752
    %v797 = vmul.f32 %v796, %v752
    %v798 = vmul.f32 %v797, %v796
    %v799 = vmul.f32 0.5, %v798
    %v800 = vsub.f32 1.5, %v799
    %v801 = vmul.f32 %v796, %v800
    %vm802 = vweird.f32 %v752
    %vm803 = vweird.f32 %v796
    %vm804 = vmor %vm802, %vm803
    %v805 = vsel %vm804, %v796, %v801
    %v806 = vrsqrt.pop %v753
    %v807 = vmul.f32 %v806, %v753
    %v808 = vmul.f32 %v807, %v806
    %v809 = vmul.f32 0.5, %v808
    %v810 = vsub.f32 1.5, %v809
    %v811 = vmul.f32 %v806, %v810
    %vm812 = vweird.f32 %v753
    %vm813 = vweird.f32 %v806
    %vm814 = vmor %vm812, %vm813
    %v815 = vsel %vm814, %v806, %v811
    %v816 = vrsqrt.pop %v754
    %v817 = vmul.f32 %v816, %v754
    %v818 = vmul.f32 %v817, %v816
    %v819 = vmul.f32 0.5, %v818
    %v820 = vsub.f32 1.5, %v819
    %v821 = vmul.f32 %v816, %v820
    %vm822 = vweird.f32 %v754
    %vm823 = vweird.f32 %v816
    %vm824 = vmor %vm822, %vm823
    %v825 = vsel %vm824, %v816, %v821
    %v826 = vrsqrt.pop %v755
    %v827 = vmul.f32 %v826, %v755
    %v828 = vmul.f32 %v827, %v826
    %v829 = vmul.f32 0.5, %v828
    %v830 = vsub.f32 1.5, %v829
    %v831 = vmul.f32 %v826, %v830
    %vm832 = vweird.f32 %v755
    %vm833 = vweird.f32 %v826
    %vm834 = vmor %vm832, %vm833
    %v835 = vsel %vm834, %v826, %v831
    %v836 = vmul.f32 %v740, %v765
    %v837 = vmul.f32 %v741, %v775
    %v838 = vmul.f32 %v742, %v785
    %v839 = vmul.f32 %v743, %v795
    %v840 = vmul.f32 %v744, %v805
    %v841 = vmul.f32 %v745, %v815
    %v842 = vmul.f32 %v746, %v825
    %v843 = vmul.f32 %v747, %v835
    %v844 = vperm.slane %v384, 2
    %v846 = vsel %vm385, %v836, 0
    %v849 = vsel %vm385, %v837, 0
    %v852 = vsel %vm385, %v838, 0
    %v855 = vsel %vm385, %v839, 0
    %v858 = vsel %vm385, %v840, 0
    %v861 = vsel %vm385, %v841, 0
    %v864 = vsel %vm385, %v842, 0
    %v867 = vsel %vm385, %v843, 0
    %869 = vmatpush.msra.mxu0 0.0
    %870 = vmatpush.msra.mxu0 0.0
    %871 = vmatpush.msra.mxu0 0.0
    %872 = vmatpush.msra.mxu0 0.0
    %873 = vmatpush.msra.mxu0 0.0
    %874 = vmatpush.msra.mxu0 0.0
    %875 = vmatpush.msra.mxu0 0.0
    %876 = vmatpush.msra.mxu0 0.0
    %877 = vmatpush.msra.mxu0 0.0
    %878 = vmatpush.msra.mxu0 0.0
    %879 = vmatpush.msra.mxu0 0.0
    %880 = vmatpush.msra.mxu0 0.0
    %881 = vmatpush.msra.mxu0 %v367
    %882 = vmatpush.msra.mxu0 %v366
    %883 = vmatpush.msra.mxu0 %v365
    %884 = vmatpush.msra.mxu0 %v364
    %885 = vmatmul.f32.gmra.mxu0 %v846
    %v886 = vpop.f32.mrf.mxu0
    %v887 = vadd.f32 %v844, %v886
    %888 = vmatmul.f32.gmra.mxu0 %v849
    %v889 = vpop.f32.mrf.mxu0
    %v890 = vadd.f32 %v844, %v889
    %891 = vmatmul.f32.gmra.mxu0 %v852
    %v892 = vpop.f32.mrf.mxu0
    %v893 = vadd.f32 %v844, %v892
    %894 = vmatmul.f32.gmra.mxu0 %v855
    %v895 = vpop.f32.mrf.mxu0
    %v896 = vadd.f32 %v844, %v895
    %897 = vmatmul.f32.gmra.mxu0 %v858
    %v898 = vpop.f32.mrf.mxu0
    %v899 = vadd.f32 %v844, %v898
    %900 = vmatmul.f32.gmra.mxu0 %v861
    %v901 = vpop.f32.mrf.mxu0
    %v902 = vadd.f32 %v844, %v901
    %903 = vmatmul.f32.gmra.mxu0 %v864
    %v904 = vpop.f32.mrf.mxu0
    %v905 = vadd.f32 %v844, %v904
    %906 = vmatmul.f32.gmra.mxu0 %v867
    %v907 = vpop.f32.mrf.mxu0
    %v908 = vadd.f32 %v844, %v907
    %909 = vdwg.mxu0
    %v910 = vmax.f32 %v887, 0.0
    %v911 = vmax.f32 %v890, 0.0
    %v912 = vmax.f32 %v893, 0.0
    %v913 = vmax.f32 %v896, 0.0
    %v914 = vmax.f32 %v899, 0.0
    %v915 = vmax.f32 %v902, 0.0
    %v916 = vmax.f32 %v905, 0.0
    %v917 = vmax.f32 %v908, 0.0
    %v918 = vperm.slane %v384, 1
    %919 = vmatpush.msra.mxu0 %v383
    %920 = vmatpush.msra.mxu0 %v382
    %921 = vmatpush.msra.mxu0 %v381
    %922 = vmatpush.msra.mxu0 %v380
    %923 = vmatpush.msra.mxu0 %v379
    %924 = vmatpush.msra.mxu0 %v378
    %925 = vmatpush.msra.mxu0 %v377
    %926 = vmatpush.msra.mxu0 %v376
    %927 = vmatpush.msra.mxu0 %v375
    %928 = vmatpush.msra.mxu0 %v374
    %929 = vmatpush.msra.mxu0 %v373
    %930 = vmatpush.msra.mxu0 %v372
    %931 = vmatpush.msra.mxu0 %v371
    %932 = vmatpush.msra.mxu0 %v370
    %933 = vmatpush.msra.mxu0 %v369
    %934 = vmatpush.msra.mxu0 %v368
    %935 = vmatmul.f32.gmra.mxu0 %v910
    %v936 = vpop.f32.mrf.mxu0
    %v937 = vadd.f32 %v918, %v936
    %938 = vmatmul.f32.gmra.mxu0 %v911
    %v939 = vpop.f32.mrf.mxu0
    %v940 = vadd.f32 %v918, %v939
    %941 = vmatmul.f32.gmra.mxu0 %v912
    %v942 = vpop.f32.mrf.mxu0
    %v943 = vadd.f32 %v918, %v942
    %944 = vmatmul.f32.gmra.mxu0 %v913
    %v945 = vpop.f32.mrf.mxu0
    %v946 = vadd.f32 %v918, %v945
    %947 = vmatmul.f32.gmra.mxu0 %v914
    %v948 = vpop.f32.mrf.mxu0
    %v949 = vadd.f32 %v918, %v948
    %950 = vmatmul.f32.gmra.mxu0 %v915
    %v951 = vpop.f32.mrf.mxu0
    %v952 = vadd.f32 %v918, %v951
    %953 = vmatmul.f32.gmra.mxu0 %v916
    %v954 = vpop.f32.mrf.mxu0
    %v955 = vadd.f32 %v918, %v954
    %956 = vmatmul.f32.gmra.mxu0 %v917
    %v957 = vpop.f32.mrf.mxu0
    %v958 = vadd.f32 %v918, %v957
    %959 = vdwg.mxu0
    %v960 = vadd.f32 %v644, %v937
    %v961 = vadd.f32 %v645, %v940
    %v962 = vadd.f32 %v646, %v943
    %v963 = vadd.f32 %v647, %v946
    %v964 = vadd.f32 %v648, %v949
    %v965 = vadd.f32 %v649, %v952
    %v966 = vadd.f32 %v650, %v955
    %v967 = vadd.f32 %v651, %v958
    %s968 = scalar_lea.vmem %s3, 32
    %v969 = vld [vmem:[%s968] sm:$0xff]
    %v970 = vld [vmem:[%s968 + $0x8] sm:$0xff]
    %v971 = vld [vmem:[%s968 + $0x10] sm:$0xff]
    %v972 = vld [vmem:[%s968 + $0x18] sm:$0xff]
    %s973 = scalar_lea.vmem %s4, 32
    %v974 = vld [vmem:[%s973] sm:$0xff]
    %v975 = vld [vmem:[%s973 + $0x8] sm:$0xff]
    %v976 = vld [vmem:[%s973 + $0x10] sm:$0xff]
    %v977 = vld [vmem:[%s973 + $0x18] sm:$0xff]
    %s978 = scalar_lea.vmem %s5, 128
    %v979 = vld [vmem:[%s978] sm:$0xff]
    %v980 = vld [vmem:[%s978 + $0x8] sm:$0xff]
    %v981 = vld [vmem:[%s978 + $0x10] sm:$0xff]
    %v982 = vld [vmem:[%s978 + $0x18] sm:$0xff]
    %v983 = vld [vmem:[%s978 + $0x20] sm:$0xff]
    %v984 = vld [vmem:[%s978 + $0x28] sm:$0xff]
    %v985 = vld [vmem:[%s978 + $0x30] sm:$0xff]
    %v986 = vld [vmem:[%s978 + $0x38] sm:$0xff]
    %v987 = vld [vmem:[%s978 + $0x40] sm:$0xff]
    %v988 = vld [vmem:[%s978 + $0x48] sm:$0xff]
    %v989 = vld [vmem:[%s978 + $0x50] sm:$0xff]
    %v990 = vld [vmem:[%s978 + $0x58] sm:$0xff]
    %v991 = vld [vmem:[%s978 + $0x60] sm:$0xff]
    %v992 = vld [vmem:[%s978 + $0x68] sm:$0xff]
    %v993 = vld [vmem:[%s978 + $0x70] sm:$0xff]
    %v994 = vld [vmem:[%s978 + $0x78] sm:$0xff]
    %s995 = scalar_lea.vmem %s6, 4
    %v996 = vld [vmem:[%s995] sm:$0x7]
    %v997 = vsel %vm385, %v960, 0.0
    %998 = vadd.xlane.f32.xlu0 %v997
    %v999 = vpop.xlane.xlu0 %998
    %v1000 = vsel %vm385, %v961, 0.0
    %1001 = vadd.xlane.f32.xlu0 %v1000
    %v1002 = vpop.xlane.xlu0 %1001
    %v1003 = vsel %vm385, %v962, 0.0
    %1004 = vadd.xlane.f32.xlu0 %v1003
    %v1005 = vpop.xlane.xlu0 %1004
    %v1006 = vsel %vm385, %v963, 0.0
    %1007 = vadd.xlane.f32.xlu0 %v1006
    %v1008 = vpop.xlane.xlu0 %1007
    %v1009 = vsel %vm385, %v964, 0.0
    %1010 = vadd.xlane.f32.xlu0 %v1009
    %v1011 = vpop.xlane.xlu0 %1010
    %v1012 = vsel %vm385, %v965, 0.0
    %1013 = vadd.xlane.f32.xlu0 %v1012
    %v1014 = vpop.xlane.xlu0 %1013
    %v1015 = vsel %vm385, %v966, 0.0
    %1016 = vadd.xlane.f32.xlu0 %v1015
    %v1017 = vpop.xlane.xlu0 %1016
    %v1018 = vsel %vm385, %v967, 0.0
    %1019 = vadd.xlane.f32.xlu0 %v1018
    %v1020 = vpop.xlane.xlu0 %1019
    %v1021 = vmul.f32 %v960, %v960
    %v1022 = vmul.f32 %v961, %v961
    %v1023 = vmul.f32 %v962, %v962
    %v1024 = vmul.f32 %v963, %v963
    %v1025 = vmul.f32 %v964, %v964
    %v1026 = vmul.f32 %v965, %v965
    %v1027 = vmul.f32 %v966, %v966
    %v1028 = vmul.f32 %v967, %v967
    %v1029 = vsel %vm385, %v1021, 0.0
    %1030 = vadd.xlane.f32.xlu0 %v1029
    %v1031 = vpop.xlane.xlu0 %1030
    %v1032 = vsel %vm385, %v1022, 0.0
    %1033 = vadd.xlane.f32.xlu0 %v1032
    %v1034 = vpop.xlane.xlu0 %1033
    %v1035 = vsel %vm385, %v1023, 0.0
    %1036 = vadd.xlane.f32.xlu0 %v1035
    %v1037 = vpop.xlane.xlu0 %1036
    %v1038 = vsel %vm385, %v1024, 0.0
    %1039 = vadd.xlane.f32.xlu0 %v1038
    %v1040 = vpop.xlane.xlu0 %1039
    %v1041 = vsel %vm385, %v1025, 0.0
    %1042 = vadd.xlane.f32.xlu0 %v1041
    %v1043 = vpop.xlane.xlu0 %1042
    %v1044 = vsel %vm385, %v1026, 0.0
    %1045 = vadd.xlane.f32.xlu0 %v1044
    %v1046 = vpop.xlane.xlu0 %1045
    %v1047 = vsel %vm385, %v1027, 0.0
    %1048 = vadd.xlane.f32.xlu0 %v1047
    %v1049 = vpop.xlane.xlu0 %1048
    %v1050 = vsel %vm385, %v1028, 0.0
    %1051 = vadd.xlane.f32.xlu0 %v1050
    %v1052 = vpop.xlane.xlu0 %1051
    %v1053 = vmul.f32 %v999, 0.03125
    %v1054 = vmul.f32 %v1002, 0.03125
    %v1055 = vmul.f32 %v1005, 0.03125
    %v1056 = vmul.f32 %v1008, 0.03125
    %v1057 = vmul.f32 %v1011, 0.03125
    %v1058 = vmul.f32 %v1014, 0.03125
    %v1059 = vmul.f32 %v1017, 0.03125
    %v1060 = vmul.f32 %v1020, 0.03125
    %v1061 = vmul.f32 %v1031, 0.03125
    %v1062 = vmul.f32 %v1034, 0.03125
    %v1063 = vmul.f32 %v1037, 0.03125
    %v1064 = vmul.f32 %v1040, 0.03125
    %v1065 = vmul.f32 %v1043, 0.03125
    %v1066 = vmul.f32 %v1046, 0.03125
    %v1067 = vmul.f32 %v1049, 0.03125
    %v1068 = vmul.f32 %v1052, 0.03125
    %v1069 = vmul.f32 %v1053, %v1053
    %v1070 = vmul.f32 %v1054, %v1054
    %v1071 = vmul.f32 %v1055, %v1055
    %v1072 = vmul.f32 %v1056, %v1056
    %v1073 = vmul.f32 %v1057, %v1057
    %v1074 = vmul.f32 %v1058, %v1058
    %v1075 = vmul.f32 %v1059, %v1059
    %v1076 = vmul.f32 %v1060, %v1060
    %v1077 = vsub.f32 %v1061, %v1069
    %v1078 = vsub.f32 %v1062, %v1070
    %v1079 = vsub.f32 %v1063, %v1071
    %v1080 = vsub.f32 %v1064, %v1072
    %v1081 = vsub.f32 %v1065, %v1073
    %v1082 = vsub.f32 %v1066, %v1074
    %v1083 = vsub.f32 %v1067, %v1075
    %v1084 = vsub.f32 %v1068, %v1076
    %v1085 = vsub.f32 %v960, %v1053
    %v1086 = vsub.f32 %v961, %v1054
    %v1087 = vsub.f32 %v962, %v1055
    %v1088 = vsub.f32 %v963, %v1056
    %v1089 = vsub.f32 %v964, %v1057
    %v1090 = vsub.f32 %v965, %v1058
    %v1091 = vsub.f32 %v966, %v1059
    %v1092 = vsub.f32 %v967, %v1060
    %v1093 = vadd.f32 %v1077, 1e-05
    %v1094 = vadd.f32 %v1078, 1e-05
    %v1095 = vadd.f32 %v1079, 1e-05
    %v1096 = vadd.f32 %v1080, 1e-05
    %v1097 = vadd.f32 %v1081, 1e-05
    %v1098 = vadd.f32 %v1082, 1e-05
    %v1099 = vadd.f32 %v1083, 1e-05
    %v1100 = vadd.f32 %v1084, 1e-05
    %v1101 = vrsqrt.pop %v1093
    %v1102 = vmul.f32 %v1101, %v1093
    %v1103 = vmul.f32 %v1102, %v1101
    %v1104 = vmul.f32 0.5, %v1103
    %v1105 = vsub.f32 1.5, %v1104
    %v1106 = vmul.f32 %v1101, %v1105
    %vm1107 = vweird.f32 %v1093
    %vm1108 = vweird.f32 %v1101
    %vm1109 = vmor %vm1107, %vm1108
    %v1110 = vsel %vm1109, %v1101, %v1106
    %v1111 = vrsqrt.pop %v1094
    %v1112 = vmul.f32 %v1111, %v1094
    %v1113 = vmul.f32 %v1112, %v1111
    %v1114 = vmul.f32 0.5, %v1113
    %v1115 = vsub.f32 1.5, %v1114
    %v1116 = vmul.f32 %v1111, %v1115
    %vm1117 = vweird.f32 %v1094
    %vm1118 = vweird.f32 %v1111
    %vm1119 = vmor %vm1117, %vm1118
    %v1120 = vsel %vm1119, %v1111, %v1116
    %v1121 = vrsqrt.pop %v1095
    %v1122 = vmul.f32 %v1121, %v1095
    %v1123 = vmul.f32 %v1122, %v1121
    %v1124 = vmul.f32 0.5, %v1123
    %v1125 = vsub.f32 1.5, %v1124
    %v1126 = vmul.f32 %v1121, %v1125
    %vm1127 = vweird.f32 %v1095
    %vm1128 = vweird.f32 %v1121
    %vm1129 = vmor %vm1127, %vm1128
    %v1130 = vsel %vm1129, %v1121, %v1126
    %v1131 = vrsqrt.pop %v1096
    %v1132 = vmul.f32 %v1131, %v1096
    %v1133 = vmul.f32 %v1132, %v1131
    %v1134 = vmul.f32 0.5, %v1133
    %v1135 = vsub.f32 1.5, %v1134
    %v1136 = vmul.f32 %v1131, %v1135
    %vm1137 = vweird.f32 %v1096
    %vm1138 = vweird.f32 %v1131
    %vm1139 = vmor %vm1137, %vm1138
    %v1140 = vsel %vm1139, %v1131, %v1136
    %v1141 = vrsqrt.pop %v1097
    %v1142 = vmul.f32 %v1141, %v1097
    %v1143 = vmul.f32 %v1142, %v1141
    %v1144 = vmul.f32 0.5, %v1143
    %v1145 = vsub.f32 1.5, %v1144
    %v1146 = vmul.f32 %v1141, %v1145
    %vm1147 = vweird.f32 %v1097
    %vm1148 = vweird.f32 %v1141
    %vm1149 = vmor %vm1147, %vm1148
    %v1150 = vsel %vm1149, %v1141, %v1146
    %v1151 = vrsqrt.pop %v1098
    %v1152 = vmul.f32 %v1151, %v1098
    %v1153 = vmul.f32 %v1152, %v1151
    %v1154 = vmul.f32 0.5, %v1153
    %v1155 = vsub.f32 1.5, %v1154
    %v1156 = vmul.f32 %v1151, %v1155
    %vm1157 = vweird.f32 %v1098
    %vm1158 = vweird.f32 %v1151
    %vm1159 = vmor %vm1157, %vm1158
    %v1160 = vsel %vm1159, %v1151, %v1156
    %v1161 = vrsqrt.pop %v1099
    %v1162 = vmul.f32 %v1161, %v1099
    %v1163 = vmul.f32 %v1162, %v1161
    %v1164 = vmul.f32 0.5, %v1163
    %v1165 = vsub.f32 1.5, %v1164
    %v1166 = vmul.f32 %v1161, %v1165
    %vm1167 = vweird.f32 %v1099
    %vm1168 = vweird.f32 %v1161
    %vm1169 = vmor %vm1167, %vm1168
    %v1170 = vsel %vm1169, %v1161, %v1166
    %v1171 = vrsqrt.pop %v1100
    %v1172 = vmul.f32 %v1171, %v1100
    %v1173 = vmul.f32 %v1172, %v1171
    %v1174 = vmul.f32 0.5, %v1173
    %v1175 = vsub.f32 1.5, %v1174
    %v1176 = vmul.f32 %v1171, %v1175
    %vm1177 = vweird.f32 %v1100
    %vm1178 = vweird.f32 %v1171
    %vm1179 = vmor %vm1177, %vm1178
    %v1180 = vsel %vm1179, %v1171, %v1176
    %v1181 = vmul.f32 %v1085, %v1110
    %v1182 = vmul.f32 %v1086, %v1120
    %v1183 = vmul.f32 %v1087, %v1130
    %v1184 = vmul.f32 %v1088, %v1140
    %v1185 = vmul.f32 %v1089, %v1150
    %v1186 = vmul.f32 %v1090, %v1160
    %v1187 = vmul.f32 %v1091, %v1170
    %v1188 = vmul.f32 %v1092, %v1180
    %v1189 = vperm.slane %v996, 0
    %v1191 = vsel %vm385, %v1181, 0
    %v1194 = vsel %vm385, %v1182, 0
    %v1197 = vsel %vm385, %v1183, 0
    %v1200 = vsel %vm385, %v1184, 0
    %v1203 = vsel %vm385, %v1185, 0
    %v1206 = vsel %vm385, %v1186, 0
    %v1209 = vsel %vm385, %v1187, 0
    %v1212 = vsel %vm385, %v1188, 0
    %1214 = vmatpush.msra.mxu0 0.0
    %1215 = vmatpush.msra.mxu0 0.0
    %1216 = vmatpush.msra.mxu0 0.0
    %1217 = vmatpush.msra.mxu0 0.0
    %1218 = vmatpush.msra.mxu0 0.0
    %1219 = vmatpush.msra.mxu0 0.0
    %1220 = vmatpush.msra.mxu0 0.0
    %1221 = vmatpush.msra.mxu0 0.0
    %1222 = vmatpush.msra.mxu0 0.0
    %1223 = vmatpush.msra.mxu0 0.0
    %1224 = vmatpush.msra.mxu0 0.0
    %1225 = vmatpush.msra.mxu0 0.0
    %1226 = vmatpush.msra.mxu0 %v972
    %1227 = vmatpush.msra.mxu0 %v971
    %1228 = vmatpush.msra.mxu0 %v970
    %1229 = vmatpush.msra.mxu0 %v969
    %1230 = vmatmul.f32.gmra.mxu0 %v1191
    %v1231 = vpop.f32.mrf.mxu0
    %v1232 = vadd.f32 %v1189, %v1231
    %1233 = vmatmul.f32.gmra.mxu0 %v1194
    %v1234 = vpop.f32.mrf.mxu0
    %v1235 = vadd.f32 %v1189, %v1234
    %1236 = vmatmul.f32.gmra.mxu0 %v1197
    %v1237 = vpop.f32.mrf.mxu0
    %v1238 = vadd.f32 %v1189, %v1237
    %1239 = vmatmul.f32.gmra.mxu0 %v1200
    %v1240 = vpop.f32.mrf.mxu0
    %v1241 = vadd.f32 %v1189, %v1240
    %1242 = vmatmul.f32.gmra.mxu0 %v1203
    %v1243 = vpop.f32.mrf.mxu0
    %v1244 = vadd.f32 %v1189, %v1243
    %1245 = vmatmul.f32.gmra.mxu0 %v1206
    %v1246 = vpop.f32.mrf.mxu0
    %v1247 = vadd.f32 %v1189, %v1246
    %1248 = vmatmul.f32.gmra.mxu0 %v1209
    %v1249 = vpop.f32.mrf.mxu0
    %v1250 = vadd.f32 %v1189, %v1249
    %1251 = vmatmul.f32.gmra.mxu0 %v1212
    %v1252 = vpop.f32.mrf.mxu0
    %v1253 = vadd.f32 %v1189, %v1252
    %1254 = vdwg.mxu0
    %v1255 = vadd.f32 %v960, %v1232
    %v1256 = vadd.f32 %v961, %v1235
    %v1257 = vadd.f32 %v962, %v1238
    %v1258 = vadd.f32 %v963, %v1241
    %v1259 = vadd.f32 %v964, %v1244
    %v1260 = vadd.f32 %v965, %v1247
    %v1261 = vadd.f32 %v966, %v1250
    %v1262 = vadd.f32 %v967, %v1253
    %v1263 = vsel %vm385, %v1255, 0.0
    %1264 = vadd.xlane.f32.xlu0 %v1263
    %v1265 = vpop.xlane.xlu0 %1264
    %v1266 = vsel %vm385, %v1256, 0.0
    %1267 = vadd.xlane.f32.xlu0 %v1266
    %v1268 = vpop.xlane.xlu0 %1267
    %v1269 = vsel %vm385, %v1257, 0.0
    %1270 = vadd.xlane.f32.xlu0 %v1269
    %v1271 = vpop.xlane.xlu0 %1270
    %v1272 = vsel %vm385, %v1258, 0.0
    %1273 = vadd.xlane.f32.xlu0 %v1272
    %v1274 = vpop.xlane.xlu0 %1273
    %v1275 = vsel %vm385, %v1259, 0.0
    %1276 = vadd.xlane.f32.xlu0 %v1275
    %v1277 = vpop.xlane.xlu0 %1276
    %v1278 = vsel %vm385, %v1260, 0.0
    %1279 = vadd.xlane.f32.xlu0 %v1278
    %v1280 = vpop.xlane.xlu0 %1279
    %v1281 = vsel %vm385, %v1261, 0.0
    %1282 = vadd.xlane.f32.xlu0 %v1281
    %v1283 = vpop.xlane.xlu0 %1282
    %v1284 = vsel %vm385, %v1262, 0.0
    %1285 = vadd.xlane.f32.xlu0 %v1284
    %v1286 = vpop.xlane.xlu0 %1285
    %v1287 = vmul.f32 %v1255, %v1255
    %v1288 = vmul.f32 %v1256, %v1256
    %v1289 = vmul.f32 %v1257, %v1257
    %v1290 = vmul.f32 %v1258, %v1258
    %v1291 = vmul.f32 %v1259, %v1259
    %v1292 = vmul.f32 %v1260, %v1260
    %v1293 = vmul.f32 %v1261, %v1261
    %v1294 = vmul.f32 %v1262, %v1262
    %v1295 = vsel %vm385, %v1287, 0.0
    %1296 = vadd.xlane.f32.xlu0 %v1295
    %v1297 = vpop.xlane.xlu0 %1296
    %v1298 = vsel %vm385, %v1288, 0.0
    %1299 = vadd.xlane.f32.xlu0 %v1298
    %v1300 = vpop.xlane.xlu0 %1299
    %v1301 = vsel %vm385, %v1289, 0.0
    %1302 = vadd.xlane.f32.xlu0 %v1301
    %v1303 = vpop.xlane.xlu0 %1302
    %v1304 = vsel %vm385, %v1290, 0.0
    %1305 = vadd.xlane.f32.xlu0 %v1304
    %v1306 = vpop.xlane.xlu0 %1305
    %v1307 = vsel %vm385, %v1291, 0.0
    %1308 = vadd.xlane.f32.xlu0 %v1307
    %v1309 = vpop.xlane.xlu0 %1308
    %v1310 = vsel %vm385, %v1292, 0.0
    %1311 = vadd.xlane.f32.xlu0 %v1310
    %v1312 = vpop.xlane.xlu0 %1311
    %v1313 = vsel %vm385, %v1293, 0.0
    %1314 = vadd.xlane.f32.xlu0 %v1313
    %v1315 = vpop.xlane.xlu0 %1314
    %v1316 = vsel %vm385, %v1294, 0.0
    %1317 = vadd.xlane.f32.xlu0 %v1316
    %v1318 = vpop.xlane.xlu0 %1317
    %v1319 = vmul.f32 %v1265, 0.03125
    %v1320 = vmul.f32 %v1268, 0.03125
    %v1321 = vmul.f32 %v1271, 0.03125
    %v1322 = vmul.f32 %v1274, 0.03125
    %v1323 = vmul.f32 %v1277, 0.03125
    %v1324 = vmul.f32 %v1280, 0.03125
    %v1325 = vmul.f32 %v1283, 0.03125
    %v1326 = vmul.f32 %v1286, 0.03125
    %v1327 = vmul.f32 %v1297, 0.03125
    %v1328 = vmul.f32 %v1300, 0.03125
    %v1329 = vmul.f32 %v1303, 0.03125
    %v1330 = vmul.f32 %v1306, 0.03125
    %v1331 = vmul.f32 %v1309, 0.03125
    %v1332 = vmul.f32 %v1312, 0.03125
    %v1333 = vmul.f32 %v1315, 0.03125
    %v1334 = vmul.f32 %v1318, 0.03125
    %v1335 = vmul.f32 %v1319, %v1319
    %v1336 = vmul.f32 %v1320, %v1320
    %v1337 = vmul.f32 %v1321, %v1321
    %v1338 = vmul.f32 %v1322, %v1322
    %v1339 = vmul.f32 %v1323, %v1323
    %v1340 = vmul.f32 %v1324, %v1324
    %v1341 = vmul.f32 %v1325, %v1325
    %v1342 = vmul.f32 %v1326, %v1326
    %v1343 = vsub.f32 %v1327, %v1335
    %v1344 = vsub.f32 %v1328, %v1336
    %v1345 = vsub.f32 %v1329, %v1337
    %v1346 = vsub.f32 %v1330, %v1338
    %v1347 = vsub.f32 %v1331, %v1339
    %v1348 = vsub.f32 %v1332, %v1340
    %v1349 = vsub.f32 %v1333, %v1341
    %v1350 = vsub.f32 %v1334, %v1342
    %v1351 = vsub.f32 %v1255, %v1319
    %v1352 = vsub.f32 %v1256, %v1320
    %v1353 = vsub.f32 %v1257, %v1321
    %v1354 = vsub.f32 %v1258, %v1322
    %v1355 = vsub.f32 %v1259, %v1323
    %v1356 = vsub.f32 %v1260, %v1324
    %v1357 = vsub.f32 %v1261, %v1325
    %v1358 = vsub.f32 %v1262, %v1326
    %v1359 = vadd.f32 %v1343, 1e-05
    %v1360 = vadd.f32 %v1344, 1e-05
    %v1361 = vadd.f32 %v1345, 1e-05
    %v1362 = vadd.f32 %v1346, 1e-05
    %v1363 = vadd.f32 %v1347, 1e-05
    %v1364 = vadd.f32 %v1348, 1e-05
    %v1365 = vadd.f32 %v1349, 1e-05
    %v1366 = vadd.f32 %v1350, 1e-05
    %v1367 = vrsqrt.pop %v1359
    %v1368 = vmul.f32 %v1367, %v1359
    %v1369 = vmul.f32 %v1368, %v1367
    %v1370 = vmul.f32 0.5, %v1369
    %v1371 = vsub.f32 1.5, %v1370
    %v1372 = vmul.f32 %v1367, %v1371
    %vm1373 = vweird.f32 %v1359
    %vm1374 = vweird.f32 %v1367
    %vm1375 = vmor %vm1373, %vm1374
    %v1376 = vsel %vm1375, %v1367, %v1372
    %v1377 = vrsqrt.pop %v1360
    %v1378 = vmul.f32 %v1377, %v1360
    %v1379 = vmul.f32 %v1378, %v1377
    %v1380 = vmul.f32 0.5, %v1379
    %v1381 = vsub.f32 1.5, %v1380
    %v1382 = vmul.f32 %v1377, %v1381
    %vm1383 = vweird.f32 %v1360
    %vm1384 = vweird.f32 %v1377
    %vm1385 = vmor %vm1383, %vm1384
    %v1386 = vsel %vm1385, %v1377, %v1382
    %v1387 = vrsqrt.pop %v1361
    %v1388 = vmul.f32 %v1387, %v1361
    %v1389 = vmul.f32 %v1388, %v1387
    %v1390 = vmul.f32 0.5, %v1389
    %v1391 = vsub.f32 1.5, %v1390
    %v1392 = vmul.f32 %v1387, %v1391
    %vm1393 = vweird.f32 %v1361
    %vm1394 = vweird.f32 %v1387
    %vm1395 = vmor %vm1393, %vm1394
    %v1396 = vsel %vm1395, %v1387, %v1392
    %v1397 = vrsqrt.pop %v1362
    %v1398 = vmul.f32 %v1397, %v1362
    %v1399 = vmul.f32 %v1398, %v1397
    %v1400 = vmul.f32 0.5, %v1399
    %v1401 = vsub.f32 1.5, %v1400
    %v1402 = vmul.f32 %v1397, %v1401
    %vm1403 = vweird.f32 %v1362
    %vm1404 = vweird.f32 %v1397
    %vm1405 = vmor %vm1403, %vm1404
    %v1406 = vsel %vm1405, %v1397, %v1402
    %v1407 = vrsqrt.pop %v1363
    %v1408 = vmul.f32 %v1407, %v1363
    %v1409 = vmul.f32 %v1408, %v1407
    %v1410 = vmul.f32 0.5, %v1409
    %v1411 = vsub.f32 1.5, %v1410
    %v1412 = vmul.f32 %v1407, %v1411
    %vm1413 = vweird.f32 %v1363
    %vm1414 = vweird.f32 %v1407
    %vm1415 = vmor %vm1413, %vm1414
    %v1416 = vsel %vm1415, %v1407, %v1412
    %v1417 = vrsqrt.pop %v1364
    %v1418 = vmul.f32 %v1417, %v1364
    %v1419 = vmul.f32 %v1418, %v1417
    %v1420 = vmul.f32 0.5, %v1419
    %v1421 = vsub.f32 1.5, %v1420
    %v1422 = vmul.f32 %v1417, %v1421
    %vm1423 = vweird.f32 %v1364
    %vm1424 = vweird.f32 %v1417
    %vm1425 = vmor %vm1423, %vm1424
    %v1426 = vsel %vm1425, %v1417, %v1422
    %v1427 = vrsqrt.pop %v1365
    %v1428 = vmul.f32 %v1427, %v1365
    %v1429 = vmul.f32 %v1428, %v1427
    %v1430 = vmul.f32 0.5, %v1429
    %v1431 = vsub.f32 1.5, %v1430
    %v1432 = vmul.f32 %v1427, %v1431
    %vm1433 = vweird.f32 %v1365
    %vm1434 = vweird.f32 %v1427
    %vm1435 = vmor %vm1433, %vm1434
    %v1436 = vsel %vm1435, %v1427, %v1432
    %v1437 = vrsqrt.pop %v1366
    %v1438 = vmul.f32 %v1437, %v1366
    %v1439 = vmul.f32 %v1438, %v1437
    %v1440 = vmul.f32 0.5, %v1439
    %v1441 = vsub.f32 1.5, %v1440
    %v1442 = vmul.f32 %v1437, %v1441
    %vm1443 = vweird.f32 %v1366
    %vm1444 = vweird.f32 %v1437
    %vm1445 = vmor %vm1443, %vm1444
    %v1446 = vsel %vm1445, %v1437, %v1442
    %v1447 = vmul.f32 %v1351, %v1376
    %v1448 = vmul.f32 %v1352, %v1386
    %v1449 = vmul.f32 %v1353, %v1396
    %v1450 = vmul.f32 %v1354, %v1406
    %v1451 = vmul.f32 %v1355, %v1416
    %v1452 = vmul.f32 %v1356, %v1426
    %v1453 = vmul.f32 %v1357, %v1436
    %v1454 = vmul.f32 %v1358, %v1446
    %v1455 = vperm.slane %v996, 2
    %v1457 = vsel %vm385, %v1447, 0
    %v1460 = vsel %vm385, %v1448, 0
    %v1463 = vsel %vm385, %v1449, 0
    %v1466 = vsel %vm385, %v1450, 0
    %v1469 = vsel %vm385, %v1451, 0
    %v1472 = vsel %vm385, %v1452, 0
    %v1475 = vsel %vm385, %v1453, 0
    %v1478 = vsel %vm385, %v1454, 0
    %1480 = vmatpush.msra.mxu0 0.0
    %1481 = vmatpush.msra.mxu0 0.0
    %1482 = vmatpush.msra.mxu0 0.0
    %1483 = vmatpush.msra.mxu0 0.0
    %1484 = vmatpush.msra.mxu0 0.0
    %1485 = vmatpush.msra.mxu0 0.0
    %1486 = vmatpush.msra.mxu0 0.0
    %1487 = vmatpush.msra.mxu0 0.0
    %1488 = vmatpush.msra.mxu0 0.0
    %1489 = vmatpush.msra.mxu0 0.0
    %1490 = vmatpush.msra.mxu0 0.0
    %1491 = vmatpush.msra.mxu0 0.0
    %1492 = vmatpush.msra.mxu0 %v977
    %1493 = vmatpush.msra.mxu0 %v976
    %1494 = vmatpush.msra.mxu0 %v975
    %1495 = vmatpush.msra.mxu0 %v974
    %1496 = vmatmul.f32.gmra.mxu0 %v1457
    %v1497 = vpop.f32.mrf.mxu0
    %v1498 = vadd.f32 %v1455, %v1497
    %1499 = vmatmul.f32.gmra.mxu0 %v1460
    %v1500 = vpop.f32.mrf.mxu0
    %v1501 = vadd.f32 %v1455, %v1500
    %1502 = vmatmul.f32.gmra.mxu0 %v1463
    %v1503 = vpop.f32.mrf.mxu0
    %v1504 = vadd.f32 %v1455, %v1503
    %1505 = vmatmul.f32.gmra.mxu0 %v1466
    %v1506 = vpop.f32.mrf.mxu0
    %v1507 = vadd.f32 %v1455, %v1506
    %1508 = vmatmul.f32.gmra.mxu0 %v1469
    %v1509 = vpop.f32.mrf.mxu0
    %v1510 = vadd.f32 %v1455, %v1509
    %1511 = vmatmul.f32.gmra.mxu0 %v1472
    %v1512 = vpop.f32.mrf.mxu0
    %v1513 = vadd.f32 %v1455, %v1512
    %1514 = vmatmul.f32.gmra.mxu0 %v1475
    %v1515 = vpop.f32.mrf.mxu0
    %v1516 = vadd.f32 %v1455, %v1515
    %1517 = vmatmul.f32.gmra.mxu0 %v1478
    %v1518 = vpop.f32.mrf.mxu0
    %v1519 = vadd.f32 %v1455, %v1518
    %1520 = vdwg.mxu0
    %v1521 = vmax.f32 %v1498, 0.0
    %v1522 = vmax.f32 %v1501, 0.0
    %v1523 = vmax.f32 %v1504, 0.0
    %v1524 = vmax.f32 %v1507, 0.0
    %v1525 = vmax.f32 %v1510, 0.0
    %v1526 = vmax.f32 %v1513, 0.0
    %v1527 = vmax.f32 %v1516, 0.0
    %v1528 = vmax.f32 %v1519, 0.0
    %v1529 = vperm.slane %v996, 1
    %1530 = vmatpush.msra.mxu0 %v994
    %1531 = vmatpush.msra.mxu0 %v993
    %1532 = vmatpush.msra.mxu0 %v992
    %1533 = vmatpush.msra.mxu0 %v991
    %1534 = vmatpush.msra.mxu0 %v990
    %1535 = vmatpush.msra.mxu0 %v989
    %1536 = vmatpush.msra.mxu0 %v988
    %1537 = vmatpush.msra.mxu0 %v987
    %1538 = vmatpush.msra.mxu0 %v986
    %1539 = vmatpush.msra.mxu0 %v985
    %1540 = vmatpush.msra.mxu0 %v984
    %1541 = vmatpush.msra.mxu0 %v983
    %1542 = vmatpush.msra.mxu0 %v982
    %1543 = vmatpush.msra.mxu0 %v981
    %1544 = vmatpush.msra.mxu0 %v980
    %1545 = vmatpush.msra.mxu0 %v979
    %1546 = vmatmul.f32.gmra.mxu0 %v1521
    %v1547 = vpop.f32.mrf.mxu0
    %v1548 = vadd.f32 %v1529, %v1547
    %1549 = vmatmul.f32.gmra.mxu0 %v1522
    %v1550 = vpop.f32.mrf.mxu0
    %v1551 = vadd.f32 %v1529, %v1550
    %1552 = vmatmul.f32.gmra.mxu0 %v1523
    %v1553 = vpop.f32.mrf.mxu0
    %v1554 = vadd.f32 %v1529, %v1553
    %1555 = vmatmul.f32.gmra.mxu0 %v1524
    %v1556 = vpop.f32.mrf.mxu0
    %v1557 = vadd.f32 %v1529, %v1556
    %1558 = vmatmul.f32.gmra.mxu0 %v1525
    %v1559 = vpop.f32.mrf.mxu0
    %v1560 = vadd.f32 %v1529, %v1559
    %1561 = vmatmul.f32.gmra.mxu0 %v1526
    %v1562 = vpop.f32.mrf.mxu0
    %v1563 = vadd.f32 %v1529, %v1562
    %1564 = vmatmul.f32.gmra.mxu0 %v1527
    %v1565 = vpop.f32.mrf.mxu0
    %v1566 = vadd.f32 %v1529, %v1565
    %1567 = vmatmul.f32.gmra.mxu0 %v1528
    %v1568 = vpop.f32.mrf.mxu0
    %v1569 = vadd.f32 %v1529, %v1568
    %1570 = vdwg.mxu0
    %v1571 = vadd.f32 %v1255, %v1548
    %v1572 = vadd.f32 %v1256, %v1551
    %v1573 = vadd.f32 %v1257, %v1554
    %v1574 = vadd.f32 %v1258, %v1557
    %v1575 = vadd.f32 %v1259, %v1560
    %v1576 = vadd.f32 %v1260, %v1563
    %v1577 = vadd.f32 %v1261, %v1566
    %v1578 = vadd.f32 %v1262, %v1569
    %s1579 = scalar_lea.vmem %s3, 64
    %v1580 = vld [vmem:[%s1579] sm:$0xff]
    %v1581 = vld [vmem:[%s1579 + $0x8] sm:$0xff]
    %v1582 = vld [vmem:[%s1579 + $0x10] sm:$0xff]
    %v1583 = vld [vmem:[%s1579 + $0x18] sm:$0xff]
    %s1584 = scalar_lea.vmem %s4, 64
    %v1585 = vld [vmem:[%s1584] sm:$0xff]
    %v1586 = vld [vmem:[%s1584 + $0x8] sm:$0xff]
    %v1587 = vld [vmem:[%s1584 + $0x10] sm:$0xff]
    %v1588 = vld [vmem:[%s1584 + $0x18] sm:$0xff]
    %s1589 = scalar_lea.vmem %s5, 256
    %v1590 = vld [vmem:[%s1589] sm:$0xff]
    %v1591 = vld [vmem:[%s1589 + $0x8] sm:$0xff]
    %v1592 = vld [vmem:[%s1589 + $0x10] sm:$0xff]
    %v1593 = vld [vmem:[%s1589 + $0x18] sm:$0xff]
    %v1594 = vld [vmem:[%s1589 + $0x20] sm:$0xff]
    %v1595 = vld [vmem:[%s1589 + $0x28] sm:$0xff]
    %v1596 = vld [vmem:[%s1589 + $0x30] sm:$0xff]
    %v1597 = vld [vmem:[%s1589 + $0x38] sm:$0xff]
    %v1598 = vld [vmem:[%s1589 + $0x40] sm:$0xff]
    %v1599 = vld [vmem:[%s1589 + $0x48] sm:$0xff]
    %v1600 = vld [vmem:[%s1589 + $0x50] sm:$0xff]
    %v1601 = vld [vmem:[%s1589 + $0x58] sm:$0xff]
    %v1602 = vld [vmem:[%s1589 + $0x60] sm:$0xff]
    %v1603 = vld [vmem:[%s1589 + $0x68] sm:$0xff]
    %v1604 = vld [vmem:[%s1589 + $0x70] sm:$0xff]
    %v1605 = vld [vmem:[%s1589 + $0x78] sm:$0xff]
    %s1606 = scalar_lea.vmem %s6, 8
    %v1607 = vld [vmem:[%s1606] sm:$0x7]
    %v1608 = vsel %vm385, %v1571, 0.0
    %1609 = vadd.xlane.f32.xlu0 %v1608
    %v1610 = vpop.xlane.xlu0 %1609
    %v1611 = vsel %vm385, %v1572, 0.0
    %1612 = vadd.xlane.f32.xlu0 %v1611
    %v1613 = vpop.xlane.xlu0 %1612
    %v1614 = vsel %vm385, %v1573, 0.0
    %1615 = vadd.xlane.f32.xlu0 %v1614
    %v1616 = vpop.xlane.xlu0 %1615
    %v1617 = vsel %vm385, %v1574, 0.0
    %1618 = vadd.xlane.f32.xlu0 %v1617
    %v1619 = vpop.xlane.xlu0 %1618
    %v1620 = vsel %vm385, %v1575, 0.0
    %1621 = vadd.xlane.f32.xlu0 %v1620
    %v1622 = vpop.xlane.xlu0 %1621
    %v1623 = vsel %vm385, %v1576, 0.0
    %1624 = vadd.xlane.f32.xlu0 %v1623
    %v1625 = vpop.xlane.xlu0 %1624
    %v1626 = vsel %vm385, %v1577, 0.0
    %1627 = vadd.xlane.f32.xlu0 %v1626
    %v1628 = vpop.xlane.xlu0 %1627
    %v1629 = vsel %vm385, %v1578, 0.0
    %1630 = vadd.xlane.f32.xlu0 %v1629
    %v1631 = vpop.xlane.xlu0 %1630
    %v1632 = vmul.f32 %v1571, %v1571
    %v1633 = vmul.f32 %v1572, %v1572
    %v1634 = vmul.f32 %v1573, %v1573
    %v1635 = vmul.f32 %v1574, %v1574
    %v1636 = vmul.f32 %v1575, %v1575
    %v1637 = vmul.f32 %v1576, %v1576
    %v1638 = vmul.f32 %v1577, %v1577
    %v1639 = vmul.f32 %v1578, %v1578
    %v1640 = vsel %vm385, %v1632, 0.0
    %1641 = vadd.xlane.f32.xlu0 %v1640
    %v1642 = vpop.xlane.xlu0 %1641
    %v1643 = vsel %vm385, %v1633, 0.0
    %1644 = vadd.xlane.f32.xlu0 %v1643
    %v1645 = vpop.xlane.xlu0 %1644
    %v1646 = vsel %vm385, %v1634, 0.0
    %1647 = vadd.xlane.f32.xlu0 %v1646
    %v1648 = vpop.xlane.xlu0 %1647
    %v1649 = vsel %vm385, %v1635, 0.0
    %1650 = vadd.xlane.f32.xlu0 %v1649
    %v1651 = vpop.xlane.xlu0 %1650
    %v1652 = vsel %vm385, %v1636, 0.0
    %1653 = vadd.xlane.f32.xlu0 %v1652
    %v1654 = vpop.xlane.xlu0 %1653
    %v1655 = vsel %vm385, %v1637, 0.0
    %1656 = vadd.xlane.f32.xlu0 %v1655
    %v1657 = vpop.xlane.xlu0 %1656
    %v1658 = vsel %vm385, %v1638, 0.0
    %1659 = vadd.xlane.f32.xlu0 %v1658
    %v1660 = vpop.xlane.xlu0 %1659
    %v1661 = vsel %vm385, %v1639, 0.0
    %1662 = vadd.xlane.f32.xlu0 %v1661
    %v1663 = vpop.xlane.xlu0 %1662
    %v1664 = vmul.f32 %v1610, 0.03125
    %v1665 = vmul.f32 %v1613, 0.03125
    %v1666 = vmul.f32 %v1616, 0.03125
    %v1667 = vmul.f32 %v1619, 0.03125
    %v1668 = vmul.f32 %v1622, 0.03125
    %v1669 = vmul.f32 %v1625, 0.03125
    %v1670 = vmul.f32 %v1628, 0.03125
    %v1671 = vmul.f32 %v1631, 0.03125
    %v1672 = vmul.f32 %v1642, 0.03125
    %v1673 = vmul.f32 %v1645, 0.03125
    %v1674 = vmul.f32 %v1648, 0.03125
    %v1675 = vmul.f32 %v1651, 0.03125
    %v1676 = vmul.f32 %v1654, 0.03125
    %v1677 = vmul.f32 %v1657, 0.03125
    %v1678 = vmul.f32 %v1660, 0.03125
    %v1679 = vmul.f32 %v1663, 0.03125
    %v1680 = vmul.f32 %v1664, %v1664
    %v1681 = vmul.f32 %v1665, %v1665
    %v1682 = vmul.f32 %v1666, %v1666
    %v1683 = vmul.f32 %v1667, %v1667
    %v1684 = vmul.f32 %v1668, %v1668
    %v1685 = vmul.f32 %v1669, %v1669
    %v1686 = vmul.f32 %v1670, %v1670
    %v1687 = vmul.f32 %v1671, %v1671
    %v1688 = vsub.f32 %v1672, %v1680
    %v1689 = vsub.f32 %v1673, %v1681
    %v1690 = vsub.f32 %v1674, %v1682
    %v1691 = vsub.f32 %v1675, %v1683
    %v1692 = vsub.f32 %v1676, %v1684
    %v1693 = vsub.f32 %v1677, %v1685
    %v1694 = vsub.f32 %v1678, %v1686
    %v1695 = vsub.f32 %v1679, %v1687
    %v1696 = vsub.f32 %v1571, %v1664
    %v1697 = vsub.f32 %v1572, %v1665
    %v1698 = vsub.f32 %v1573, %v1666
    %v1699 = vsub.f32 %v1574, %v1667
    %v1700 = vsub.f32 %v1575, %v1668
    %v1701 = vsub.f32 %v1576, %v1669
    %v1702 = vsub.f32 %v1577, %v1670
    %v1703 = vsub.f32 %v1578, %v1671
    %v1704 = vadd.f32 %v1688, 1e-05
    %v1705 = vadd.f32 %v1689, 1e-05
    %v1706 = vadd.f32 %v1690, 1e-05
    %v1707 = vadd.f32 %v1691, 1e-05
    %v1708 = vadd.f32 %v1692, 1e-05
    %v1709 = vadd.f32 %v1693, 1e-05
    %v1710 = vadd.f32 %v1694, 1e-05
    %v1711 = vadd.f32 %v1695, 1e-05
    %v1712 = vrsqrt.pop %v1704
    %v1713 = vmul.f32 %v1712, %v1704
    %v1714 = vmul.f32 %v1713, %v1712
    %v1715 = vmul.f32 0.5, %v1714
    %v1716 = vsub.f32 1.5, %v1715
    %v1717 = vmul.f32 %v1712, %v1716
    %vm1718 = vweird.f32 %v1704
    %vm1719 = vweird.f32 %v1712
    %vm1720 = vmor %vm1718, %vm1719
    %v1721 = vsel %vm1720, %v1712, %v1717
    %v1722 = vrsqrt.pop %v1705
    %v1723 = vmul.f32 %v1722, %v1705
    %v1724 = vmul.f32 %v1723, %v1722
    %v1725 = vmul.f32 0.5, %v1724
    %v1726 = vsub.f32 1.5, %v1725
    %v1727 = vmul.f32 %v1722, %v1726
    %vm1728 = vweird.f32 %v1705
    %vm1729 = vweird.f32 %v1722
    %vm1730 = vmor %vm1728, %vm1729
    %v1731 = vsel %vm1730, %v1722, %v1727
    %v1732 = vrsqrt.pop %v1706
    %v1733 = vmul.f32 %v1732, %v1706
    %v1734 = vmul.f32 %v1733, %v1732
    %v1735 = vmul.f32 0.5, %v1734
    %v1736 = vsub.f32 1.5, %v1735
    %v1737 = vmul.f32 %v1732, %v1736
    %vm1738 = vweird.f32 %v1706
    %vm1739 = vweird.f32 %v1732
    %vm1740 = vmor %vm1738, %vm1739
    %v1741 = vsel %vm1740, %v1732, %v1737
    %v1742 = vrsqrt.pop %v1707
    %v1743 = vmul.f32 %v1742, %v1707
    %v1744 = vmul.f32 %v1743, %v1742
    %v1745 = vmul.f32 0.5, %v1744
    %v1746 = vsub.f32 1.5, %v1745
    %v1747 = vmul.f32 %v1742, %v1746
    %vm1748 = vweird.f32 %v1707
    %vm1749 = vweird.f32 %v1742
    %vm1750 = vmor %vm1748, %vm1749
    %v1751 = vsel %vm1750, %v1742, %v1747
    %v1752 = vrsqrt.pop %v1708
    %v1753 = vmul.f32 %v1752, %v1708
    %v1754 = vmul.f32 %v1753, %v1752
    %v1755 = vmul.f32 0.5, %v1754
    %v1756 = vsub.f32 1.5, %v1755
    %v1757 = vmul.f32 %v1752, %v1756
    %vm1758 = vweird.f32 %v1708
    %vm1759 = vweird.f32 %v1752
    %vm1760 = vmor %vm1758, %vm1759
    %v1761 = vsel %vm1760, %v1752, %v1757
    %v1762 = vrsqrt.pop %v1709
    %v1763 = vmul.f32 %v1762, %v1709
    %v1764 = vmul.f32 %v1763, %v1762
    %v1765 = vmul.f32 0.5, %v1764
    %v1766 = vsub.f32 1.5, %v1765
    %v1767 = vmul.f32 %v1762, %v1766
    %vm1768 = vweird.f32 %v1709
    %vm1769 = vweird.f32 %v1762
    %vm1770 = vmor %vm1768, %vm1769
    %v1771 = vsel %vm1770, %v1762, %v1767
    %v1772 = vrsqrt.pop %v1710
    %v1773 = vmul.f32 %v1772, %v1710
    %v1774 = vmul.f32 %v1773, %v1772
    %v1775 = vmul.f32 0.5, %v1774
    %v1776 = vsub.f32 1.5, %v1775
    %v1777 = vmul.f32 %v1772, %v1776
    %vm1778 = vweird.f32 %v1710
    %vm1779 = vweird.f32 %v1772
    %vm1780 = vmor %vm1778, %vm1779
    %v1781 = vsel %vm1780, %v1772, %v1777
    %v1782 = vrsqrt.pop %v1711
    %v1783 = vmul.f32 %v1782, %v1711
    %v1784 = vmul.f32 %v1783, %v1782
    %v1785 = vmul.f32 0.5, %v1784
    %v1786 = vsub.f32 1.5, %v1785
    %v1787 = vmul.f32 %v1782, %v1786
    %vm1788 = vweird.f32 %v1711
    %vm1789 = vweird.f32 %v1782
    %vm1790 = vmor %vm1788, %vm1789
    %v1791 = vsel %vm1790, %v1782, %v1787
    %v1792 = vmul.f32 %v1696, %v1721
    %v1793 = vmul.f32 %v1697, %v1731
    %v1794 = vmul.f32 %v1698, %v1741
    %v1795 = vmul.f32 %v1699, %v1751
    %v1796 = vmul.f32 %v1700, %v1761
    %v1797 = vmul.f32 %v1701, %v1771
    %v1798 = vmul.f32 %v1702, %v1781
    %v1799 = vmul.f32 %v1703, %v1791
    %v1800 = vperm.slane %v1607, 0
    %v1802 = vsel %vm385, %v1792, 0
    %v1805 = vsel %vm385, %v1793, 0
    %v1808 = vsel %vm385, %v1794, 0
    %v1811 = vsel %vm385, %v1795, 0
    %v1814 = vsel %vm385, %v1796, 0
    %v1817 = vsel %vm385, %v1797, 0
    %v1820 = vsel %vm385, %v1798, 0
    %v1823 = vsel %vm385, %v1799, 0
    %1825 = vmatpush.msra.mxu0 0.0
    %1826 = vmatpush.msra.mxu0 0.0
    %1827 = vmatpush.msra.mxu0 0.0
    %1828 = vmatpush.msra.mxu0 0.0
    %1829 = vmatpush.msra.mxu0 0.0
    %1830 = vmatpush.msra.mxu0 0.0
    %1831 = vmatpush.msra.mxu0 0.0
    %1832 = vmatpush.msra.mxu0 0.0
    %1833 = vmatpush.msra.mxu0 0.0
    %1834 = vmatpush.msra.mxu0 0.0
    %1835 = vmatpush.msra.mxu0 0.0
    %1836 = vmatpush.msra.mxu0 0.0
    %1837 = vmatpush.msra.mxu0 %v1583
    %1838 = vmatpush.msra.mxu0 %v1582
    %1839 = vmatpush.msra.mxu0 %v1581
    %1840 = vmatpush.msra.mxu0 %v1580
    %1841 = vmatmul.f32.gmra.mxu0 %v1802
    %v1842 = vpop.f32.mrf.mxu0
    %v1843 = vadd.f32 %v1800, %v1842
    %1844 = vmatmul.f32.gmra.mxu0 %v1805
    %v1845 = vpop.f32.mrf.mxu0
    %v1846 = vadd.f32 %v1800, %v1845
    %1847 = vmatmul.f32.gmra.mxu0 %v1808
    %v1848 = vpop.f32.mrf.mxu0
    %v1849 = vadd.f32 %v1800, %v1848
    %1850 = vmatmul.f32.gmra.mxu0 %v1811
    %v1851 = vpop.f32.mrf.mxu0
    %v1852 = vadd.f32 %v1800, %v1851
    %1853 = vmatmul.f32.gmra.mxu0 %v1814
    %v1854 = vpop.f32.mrf.mxu0
    %v1855 = vadd.f32 %v1800, %v1854
    %1856 = vmatmul.f32.gmra.mxu0 %v1817
    %v1857 = vpop.f32.mrf.mxu0
    %v1858 = vadd.f32 %v1800, %v1857
    %1859 = vmatmul.f32.gmra.mxu0 %v1820
    %v1860 = vpop.f32.mrf.mxu0
    %v1861 = vadd.f32 %v1800, %v1860
    %1862 = vmatmul.f32.gmra.mxu0 %v1823
    %v1863 = vpop.f32.mrf.mxu0
    %v1864 = vadd.f32 %v1800, %v1863
    %1865 = vdwg.mxu0
    %v1866 = vadd.f32 %v1571, %v1843
    %v1867 = vadd.f32 %v1572, %v1846
    %v1868 = vadd.f32 %v1573, %v1849
    %v1869 = vadd.f32 %v1574, %v1852
    %v1870 = vadd.f32 %v1575, %v1855
    %v1871 = vadd.f32 %v1576, %v1858
    %v1872 = vadd.f32 %v1577, %v1861
    %v1873 = vadd.f32 %v1578, %v1864
    %v1874 = vsel %vm385, %v1866, 0.0
    %1875 = vadd.xlane.f32.xlu0 %v1874
    %v1876 = vpop.xlane.xlu0 %1875
    %v1877 = vsel %vm385, %v1867, 0.0
    %1878 = vadd.xlane.f32.xlu0 %v1877
    %v1879 = vpop.xlane.xlu0 %1878
    %v1880 = vsel %vm385, %v1868, 0.0
    %1881 = vadd.xlane.f32.xlu0 %v1880
    %v1882 = vpop.xlane.xlu0 %1881
    %v1883 = vsel %vm385, %v1869, 0.0
    %1884 = vadd.xlane.f32.xlu0 %v1883
    %v1885 = vpop.xlane.xlu0 %1884
    %v1886 = vsel %vm385, %v1870, 0.0
    %1887 = vadd.xlane.f32.xlu0 %v1886
    %v1888 = vpop.xlane.xlu0 %1887
    %v1889 = vsel %vm385, %v1871, 0.0
    %1890 = vadd.xlane.f32.xlu0 %v1889
    %v1891 = vpop.xlane.xlu0 %1890
    %v1892 = vsel %vm385, %v1872, 0.0
    %1893 = vadd.xlane.f32.xlu0 %v1892
    %v1894 = vpop.xlane.xlu0 %1893
    %v1895 = vsel %vm385, %v1873, 0.0
    %1896 = vadd.xlane.f32.xlu0 %v1895
    %v1897 = vpop.xlane.xlu0 %1896
    %v1898 = vmul.f32 %v1866, %v1866
    %v1899 = vmul.f32 %v1867, %v1867
    %v1900 = vmul.f32 %v1868, %v1868
    %v1901 = vmul.f32 %v1869, %v1869
    %v1902 = vmul.f32 %v1870, %v1870
    %v1903 = vmul.f32 %v1871, %v1871
    %v1904 = vmul.f32 %v1872, %v1872
    %v1905 = vmul.f32 %v1873, %v1873
    %v1906 = vsel %vm385, %v1898, 0.0
    %1907 = vadd.xlane.f32.xlu0 %v1906
    %v1908 = vpop.xlane.xlu0 %1907
    %v1909 = vsel %vm385, %v1899, 0.0
    %1910 = vadd.xlane.f32.xlu0 %v1909
    %v1911 = vpop.xlane.xlu0 %1910
    %v1912 = vsel %vm385, %v1900, 0.0
    %1913 = vadd.xlane.f32.xlu0 %v1912
    %v1914 = vpop.xlane.xlu0 %1913
    %v1915 = vsel %vm385, %v1901, 0.0
    %1916 = vadd.xlane.f32.xlu0 %v1915
    %v1917 = vpop.xlane.xlu0 %1916
    %v1918 = vsel %vm385, %v1902, 0.0
    %1919 = vadd.xlane.f32.xlu0 %v1918
    %v1920 = vpop.xlane.xlu0 %1919
    %v1921 = vsel %vm385, %v1903, 0.0
    %1922 = vadd.xlane.f32.xlu0 %v1921
    %v1923 = vpop.xlane.xlu0 %1922
    %v1924 = vsel %vm385, %v1904, 0.0
    %1925 = vadd.xlane.f32.xlu0 %v1924
    %v1926 = vpop.xlane.xlu0 %1925
    %v1927 = vsel %vm385, %v1905, 0.0
    %1928 = vadd.xlane.f32.xlu0 %v1927
    %v1929 = vpop.xlane.xlu0 %1928
    %v1930 = vmul.f32 %v1876, 0.03125
    %v1931 = vmul.f32 %v1879, 0.03125
    %v1932 = vmul.f32 %v1882, 0.03125
    %v1933 = vmul.f32 %v1885, 0.03125
    %v1934 = vmul.f32 %v1888, 0.03125
    %v1935 = vmul.f32 %v1891, 0.03125
    %v1936 = vmul.f32 %v1894, 0.03125
    %v1937 = vmul.f32 %v1897, 0.03125
    %v1938 = vmul.f32 %v1908, 0.03125
    %v1939 = vmul.f32 %v1911, 0.03125
    %v1940 = vmul.f32 %v1914, 0.03125
    %v1941 = vmul.f32 %v1917, 0.03125
    %v1942 = vmul.f32 %v1920, 0.03125
    %v1943 = vmul.f32 %v1923, 0.03125
    %v1944 = vmul.f32 %v1926, 0.03125
    %v1945 = vmul.f32 %v1929, 0.03125
    %v1946 = vmul.f32 %v1930, %v1930
    %v1947 = vmul.f32 %v1931, %v1931
    %v1948 = vmul.f32 %v1932, %v1932
    %v1949 = vmul.f32 %v1933, %v1933
    %v1950 = vmul.f32 %v1934, %v1934
    %v1951 = vmul.f32 %v1935, %v1935
    %v1952 = vmul.f32 %v1936, %v1936
    %v1953 = vmul.f32 %v1937, %v1937
    %v1954 = vsub.f32 %v1938, %v1946
    %v1955 = vsub.f32 %v1939, %v1947
    %v1956 = vsub.f32 %v1940, %v1948
    %v1957 = vsub.f32 %v1941, %v1949
    %v1958 = vsub.f32 %v1942, %v1950
    %v1959 = vsub.f32 %v1943, %v1951
    %v1960 = vsub.f32 %v1944, %v1952
    %v1961 = vsub.f32 %v1945, %v1953
    %v1962 = vsub.f32 %v1866, %v1930
    %v1963 = vsub.f32 %v1867, %v1931
    %v1964 = vsub.f32 %v1868, %v1932
    %v1965 = vsub.f32 %v1869, %v1933
    %v1966 = vsub.f32 %v1870, %v1934
    %v1967 = vsub.f32 %v1871, %v1935
    %v1968 = vsub.f32 %v1872, %v1936
    %v1969 = vsub.f32 %v1873, %v1937
    %v1970 = vadd.f32 %v1954, 1e-05
    %v1971 = vadd.f32 %v1955, 1e-05
    %v1972 = vadd.f32 %v1956, 1e-05
    %v1973 = vadd.f32 %v1957, 1e-05
    %v1974 = vadd.f32 %v1958, 1e-05
    %v1975 = vadd.f32 %v1959, 1e-05
    %v1976 = vadd.f32 %v1960, 1e-05
    %v1977 = vadd.f32 %v1961, 1e-05
    %v1978 = vrsqrt.pop %v1970
    %v1979 = vmul.f32 %v1978, %v1970
    %v1980 = vmul.f32 %v1979, %v1978
    %v1981 = vmul.f32 0.5, %v1980
    %v1982 = vsub.f32 1.5, %v1981
    %v1983 = vmul.f32 %v1978, %v1982
    %vm1984 = vweird.f32 %v1970
    %vm1985 = vweird.f32 %v1978
    %vm1986 = vmor %vm1984, %vm1985
    %v1987 = vsel %vm1986, %v1978, %v1983
    %v1988 = vrsqrt.pop %v1971
    %v1989 = vmul.f32 %v1988, %v1971
    %v1990 = vmul.f32 %v1989, %v1988
    %v1991 = vmul.f32 0.5, %v1990
    %v1992 = vsub.f32 1.5, %v1991
    %v1993 = vmul.f32 %v1988, %v1992
    %vm1994 = vweird.f32 %v1971
    %vm1995 = vweird.f32 %v1988
    %vm1996 = vmor %vm1994, %vm1995
    %v1997 = vsel %vm1996, %v1988, %v1993
    %v1998 = vrsqrt.pop %v1972
    %v1999 = vmul.f32 %v1998, %v1972
    %v2000 = vmul.f32 %v1999, %v1998
    %v2001 = vmul.f32 0.5, %v2000
    %v2002 = vsub.f32 1.5, %v2001
    %v2003 = vmul.f32 %v1998, %v2002
    %vm2004 = vweird.f32 %v1972
    %vm2005 = vweird.f32 %v1998
    %vm2006 = vmor %vm2004, %vm2005
    %v2007 = vsel %vm2006, %v1998, %v2003
    %v2008 = vrsqrt.pop %v1973
    %v2009 = vmul.f32 %v2008, %v1973
    %v2010 = vmul.f32 %v2009, %v2008
    %v2011 = vmul.f32 0.5, %v2010
    %v2012 = vsub.f32 1.5, %v2011
    %v2013 = vmul.f32 %v2008, %v2012
    %vm2014 = vweird.f32 %v1973
    %vm2015 = vweird.f32 %v2008
    %vm2016 = vmor %vm2014, %vm2015
    %v2017 = vsel %vm2016, %v2008, %v2013
    %v2018 = vrsqrt.pop %v1974
    %v2019 = vmul.f32 %v2018, %v1974
    %v2020 = vmul.f32 %v2019, %v2018
    %v2021 = vmul.f32 0.5, %v2020
    %v2022 = vsub.f32 1.5, %v2021
    %v2023 = vmul.f32 %v2018, %v2022
    %vm2024 = vweird.f32 %v1974
    %vm2025 = vweird.f32 %v2018
    %vm2026 = vmor %vm2024, %vm2025
    %v2027 = vsel %vm2026, %v2018, %v2023
    %v2028 = vrsqrt.pop %v1975
    %v2029 = vmul.f32 %v2028, %v1975
    %v2030 = vmul.f32 %v2029, %v2028
    %v2031 = vmul.f32 0.5, %v2030
    %v2032 = vsub.f32 1.5, %v2031
    %v2033 = vmul.f32 %v2028, %v2032
    %vm2034 = vweird.f32 %v1975
    %vm2035 = vweird.f32 %v2028
    %vm2036 = vmor %vm2034, %vm2035
    %v2037 = vsel %vm2036, %v2028, %v2033
    %v2038 = vrsqrt.pop %v1976
    %v2039 = vmul.f32 %v2038, %v1976
    %v2040 = vmul.f32 %v2039, %v2038
    %v2041 = vmul.f32 0.5, %v2040
    %v2042 = vsub.f32 1.5, %v2041
    %v2043 = vmul.f32 %v2038, %v2042
    %vm2044 = vweird.f32 %v1976
    %vm2045 = vweird.f32 %v2038
    %vm2046 = vmor %vm2044, %vm2045
    %v2047 = vsel %vm2046, %v2038, %v2043
    %v2048 = vrsqrt.pop %v1977
    %v2049 = vmul.f32 %v2048, %v1977
    %v2050 = vmul.f32 %v2049, %v2048
    %v2051 = vmul.f32 0.5, %v2050
    %v2052 = vsub.f32 1.5, %v2051
    %v2053 = vmul.f32 %v2048, %v2052
    %vm2054 = vweird.f32 %v1977
    %vm2055 = vweird.f32 %v2048
    %vm2056 = vmor %vm2054, %vm2055
    %v2057 = vsel %vm2056, %v2048, %v2053
    %v2058 = vmul.f32 %v1962, %v1987
    %v2059 = vmul.f32 %v1963, %v1997
    %v2060 = vmul.f32 %v1964, %v2007
    %v2061 = vmul.f32 %v1965, %v2017
    %v2062 = vmul.f32 %v1966, %v2027
    %v2063 = vmul.f32 %v1967, %v2037
    %v2064 = vmul.f32 %v1968, %v2047
    %v2065 = vmul.f32 %v1969, %v2057
    %v2066 = vperm.slane %v1607, 2
    %v2068 = vsel %vm385, %v2058, 0
    %v2071 = vsel %vm385, %v2059, 0
    %v2074 = vsel %vm385, %v2060, 0
    %v2077 = vsel %vm385, %v2061, 0
    %v2080 = vsel %vm385, %v2062, 0
    %v2083 = vsel %vm385, %v2063, 0
    %v2086 = vsel %vm385, %v2064, 0
    %v2089 = vsel %vm385, %v2065, 0
    %2091 = vmatpush.msra.mxu0 0.0
    %2092 = vmatpush.msra.mxu0 0.0
    %2093 = vmatpush.msra.mxu0 0.0
    %2094 = vmatpush.msra.mxu0 0.0
    %2095 = vmatpush.msra.mxu0 0.0
    %2096 = vmatpush.msra.mxu0 0.0
    %2097 = vmatpush.msra.mxu0 0.0
    %2098 = vmatpush.msra.mxu0 0.0
    %2099 = vmatpush.msra.mxu0 0.0
    %2100 = vmatpush.msra.mxu0 0.0
    %2101 = vmatpush.msra.mxu0 0.0
    %2102 = vmatpush.msra.mxu0 0.0
    %2103 = vmatpush.msra.mxu0 %v1588
    %2104 = vmatpush.msra.mxu0 %v1587
    %2105 = vmatpush.msra.mxu0 %v1586
    %2106 = vmatpush.msra.mxu0 %v1585
    %2107 = vmatmul.f32.gmra.mxu0 %v2068
    %v2108 = vpop.f32.mrf.mxu0
    %v2109 = vadd.f32 %v2066, %v2108
    %2110 = vmatmul.f32.gmra.mxu0 %v2071
    %v2111 = vpop.f32.mrf.mxu0
    %v2112 = vadd.f32 %v2066, %v2111
    %2113 = vmatmul.f32.gmra.mxu0 %v2074
    %v2114 = vpop.f32.mrf.mxu0
    %v2115 = vadd.f32 %v2066, %v2114
    %2116 = vmatmul.f32.gmra.mxu0 %v2077
    %v2117 = vpop.f32.mrf.mxu0
    %v2118 = vadd.f32 %v2066, %v2117
    %2119 = vmatmul.f32.gmra.mxu0 %v2080
    %v2120 = vpop.f32.mrf.mxu0
    %v2121 = vadd.f32 %v2066, %v2120
    %2122 = vmatmul.f32.gmra.mxu0 %v2083
    %v2123 = vpop.f32.mrf.mxu0
    %v2124 = vadd.f32 %v2066, %v2123
    %2125 = vmatmul.f32.gmra.mxu0 %v2086
    %v2126 = vpop.f32.mrf.mxu0
    %v2127 = vadd.f32 %v2066, %v2126
    %2128 = vmatmul.f32.gmra.mxu0 %v2089
    %v2129 = vpop.f32.mrf.mxu0
    %v2130 = vadd.f32 %v2066, %v2129
    %2131 = vdwg.mxu0
    %v2132 = vmax.f32 %v2109, 0.0
    %v2133 = vmax.f32 %v2112, 0.0
    %v2134 = vmax.f32 %v2115, 0.0
    %v2135 = vmax.f32 %v2118, 0.0
    %v2136 = vmax.f32 %v2121, 0.0
    %v2137 = vmax.f32 %v2124, 0.0
    %v2138 = vmax.f32 %v2127, 0.0
    %v2139 = vmax.f32 %v2130, 0.0
    %v2140 = vperm.slane %v1607, 1
    %2141 = vmatpush.msra.mxu0 %v1605
    %2142 = vmatpush.msra.mxu0 %v1604
    %2143 = vmatpush.msra.mxu0 %v1603
    %2144 = vmatpush.msra.mxu0 %v1602
    %2145 = vmatpush.msra.mxu0 %v1601
    %2146 = vmatpush.msra.mxu0 %v1600
    %2147 = vmatpush.msra.mxu0 %v1599
    %2148 = vmatpush.msra.mxu0 %v1598
    %2149 = vmatpush.msra.mxu0 %v1597
    %2150 = vmatpush.msra.mxu0 %v1596
    %2151 = vmatpush.msra.mxu0 %v1595
    %2152 = vmatpush.msra.mxu0 %v1594
    %2153 = vmatpush.msra.mxu0 %v1593
    %2154 = vmatpush.msra.mxu0 %v1592
    %2155 = vmatpush.msra.mxu0 %v1591
    %2156 = vmatpush.msra.mxu0 %v1590
    %2157 = vmatmul.f32.gmra.mxu0 %v2132
    %v2158 = vpop.f32.mrf.mxu0
    %v2159 = vadd.f32 %v2140, %v2158
    %2160 = vmatmul.f32.gmra.mxu0 %v2133
    %v2161 = vpop.f32.mrf.mxu0
    %v2162 = vadd.f32 %v2140, %v2161
    %2163 = vmatmul.f32.gmra.mxu0 %v2134
    %v2164 = vpop.f32.mrf.mxu0
    %v2165 = vadd.f32 %v2140, %v2164
    %2166 = vmatmul.f32.gmra.mxu0 %v2135
    %v2167 = vpop.f32.mrf.mxu0
    %v2168 = vadd.f32 %v2140, %v2167
    %2169 = vmatmul.f32.gmra.mxu0 %v2136
    %v2170 = vpop.f32.mrf.mxu0
    %v2171 = vadd.f32 %v2140, %v2170
    %2172 = vmatmul.f32.gmra.mxu0 %v2137
    %v2173 = vpop.f32.mrf.mxu0
    %v2174 = vadd.f32 %v2140, %v2173
    %2175 = vmatmul.f32.gmra.mxu0 %v2138
    %v2176 = vpop.f32.mrf.mxu0
    %v2177 = vadd.f32 %v2140, %v2176
    %2178 = vmatmul.f32.gmra.mxu0 %v2139
    %v2179 = vpop.f32.mrf.mxu0
    %v2180 = vadd.f32 %v2140, %v2179
    %2181 = vdwg.mxu0
    %v2182 = vadd.f32 %v1866, %v2159
    %v2183 = vadd.f32 %v1867, %v2162
    %v2184 = vadd.f32 %v1868, %v2165
    %v2185 = vadd.f32 %v1869, %v2168
    %v2186 = vadd.f32 %v1870, %v2171
    %v2187 = vadd.f32 %v1871, %v2174
    %v2188 = vadd.f32 %v1872, %v2177
    %v2189 = vadd.f32 %v1873, %v2180
    %s2190 = scalar_lea.vmem %s3, 96
    %v2191 = vld [vmem:[%s2190] sm:$0xff]
    %v2192 = vld [vmem:[%s2190 + $0x8] sm:$0xff]
    %v2193 = vld [vmem:[%s2190 + $0x10] sm:$0xff]
    %v2194 = vld [vmem:[%s2190 + $0x18] sm:$0xff]
    %s2195 = scalar_lea.vmem %s4, 96
    %v2196 = vld [vmem:[%s2195] sm:$0xff]
    %v2197 = vld [vmem:[%s2195 + $0x8] sm:$0xff]
    %v2198 = vld [vmem:[%s2195 + $0x10] sm:$0xff]
    %v2199 = vld [vmem:[%s2195 + $0x18] sm:$0xff]
    %s2200 = scalar_lea.vmem %s5, 384
    %v2201 = vld [vmem:[%s2200] sm:$0xff]
    %v2202 = vld [vmem:[%s2200 + $0x8] sm:$0xff]
    %v2203 = vld [vmem:[%s2200 + $0x10] sm:$0xff]
    %v2204 = vld [vmem:[%s2200 + $0x18] sm:$0xff]
    %v2205 = vld [vmem:[%s2200 + $0x20] sm:$0xff]
    %v2206 = vld [vmem:[%s2200 + $0x28] sm:$0xff]
    %v2207 = vld [vmem:[%s2200 + $0x30] sm:$0xff]
    %v2208 = vld [vmem:[%s2200 + $0x38] sm:$0xff]
    %v2209 = vld [vmem:[%s2200 + $0x40] sm:$0xff]
    %v2210 = vld [vmem:[%s2200 + $0x48] sm:$0xff]
    %v2211 = vld [vmem:[%s2200 + $0x50] sm:$0xff]
    %v2212 = vld [vmem:[%s2200 + $0x58] sm:$0xff]
    %v2213 = vld [vmem:[%s2200 + $0x60] sm:$0xff]
    %v2214 = vld [vmem:[%s2200 + $0x68] sm:$0xff]
    %v2215 = vld [vmem:[%s2200 + $0x70] sm:$0xff]
    %v2216 = vld [vmem:[%s2200 + $0x78] sm:$0xff]
    %s2217 = scalar_lea.vmem %s6, 12
    %v2218 = vld [vmem:[%s2217] sm:$0x7]
    %v2219 = vsel %vm385, %v2182, 0.0
    %2220 = vadd.xlane.f32.xlu0 %v2219
    %v2221 = vpop.xlane.xlu0 %2220
    %v2222 = vsel %vm385, %v2183, 0.0
    %2223 = vadd.xlane.f32.xlu0 %v2222
    %v2224 = vpop.xlane.xlu0 %2223
    %v2225 = vsel %vm385, %v2184, 0.0
    %2226 = vadd.xlane.f32.xlu0 %v2225
    %v2227 = vpop.xlane.xlu0 %2226
    %v2228 = vsel %vm385, %v2185, 0.0
    %2229 = vadd.xlane.f32.xlu0 %v2228
    %v2230 = vpop.xlane.xlu0 %2229
    %v2231 = vsel %vm385, %v2186, 0.0
    %2232 = vadd.xlane.f32.xlu0 %v2231
    %v2233 = vpop.xlane.xlu0 %2232
    %v2234 = vsel %vm385, %v2187, 0.0
    %2235 = vadd.xlane.f32.xlu0 %v2234
    %v2236 = vpop.xlane.xlu0 %2235
    %v2237 = vsel %vm385, %v2188, 0.0
    %2238 = vadd.xlane.f32.xlu0 %v2237
    %v2239 = vpop.xlane.xlu0 %2238
    %v2240 = vsel %vm385, %v2189, 0.0
    %2241 = vadd.xlane.f32.xlu0 %v2240
    %v2242 = vpop.xlane.xlu0 %2241
    %v2243 = vmul.f32 %v2182, %v2182
    %v2244 = vmul.f32 %v2183, %v2183
    %v2245 = vmul.f32 %v2184, %v2184
    %v2246 = vmul.f32 %v2185, %v2185
    %v2247 = vmul.f32 %v2186, %v2186
    %v2248 = vmul.f32 %v2187, %v2187
    %v2249 = vmul.f32 %v2188, %v2188
    %v2250 = vmul.f32 %v2189, %v2189
    %v2251 = vsel %vm385, %v2243, 0.0
    %2252 = vadd.xlane.f32.xlu0 %v2251
    %v2253 = vpop.xlane.xlu0 %2252
    %v2254 = vsel %vm385, %v2244, 0.0
    %2255 = vadd.xlane.f32.xlu0 %v2254
    %v2256 = vpop.xlane.xlu0 %2255
    %v2257 = vsel %vm385, %v2245, 0.0
    %2258 = vadd.xlane.f32.xlu0 %v2257
    %v2259 = vpop.xlane.xlu0 %2258
    %v2260 = vsel %vm385, %v2246, 0.0
    %2261 = vadd.xlane.f32.xlu0 %v2260
    %v2262 = vpop.xlane.xlu0 %2261
    %v2263 = vsel %vm385, %v2247, 0.0
    %2264 = vadd.xlane.f32.xlu0 %v2263
    %v2265 = vpop.xlane.xlu0 %2264
    %v2266 = vsel %vm385, %v2248, 0.0
    %2267 = vadd.xlane.f32.xlu0 %v2266
    %v2268 = vpop.xlane.xlu0 %2267
    %v2269 = vsel %vm385, %v2249, 0.0
    %2270 = vadd.xlane.f32.xlu0 %v2269
    %v2271 = vpop.xlane.xlu0 %2270
    %v2272 = vsel %vm385, %v2250, 0.0
    %2273 = vadd.xlane.f32.xlu0 %v2272
    %v2274 = vpop.xlane.xlu0 %2273
    %v2275 = vmul.f32 %v2221, 0.03125
    %v2276 = vmul.f32 %v2224, 0.03125
    %v2277 = vmul.f32 %v2227, 0.03125
    %v2278 = vmul.f32 %v2230, 0.03125
    %v2279 = vmul.f32 %v2233, 0.03125
    %v2280 = vmul.f32 %v2236, 0.03125
    %v2281 = vmul.f32 %v2239, 0.03125
    %v2282 = vmul.f32 %v2242, 0.03125
    %v2283 = vmul.f32 %v2253, 0.03125
    %v2284 = vmul.f32 %v2256, 0.03125
    %v2285 = vmul.f32 %v2259, 0.03125
    %v2286 = vmul.f32 %v2262, 0.03125
    %v2287 = vmul.f32 %v2265, 0.03125
    %v2288 = vmul.f32 %v2268, 0.03125
    %v2289 = vmul.f32 %v2271, 0.03125
    %v2290 = vmul.f32 %v2274, 0.03125
    %v2291 = vmul.f32 %v2275, %v2275
    %v2292 = vmul.f32 %v2276, %v2276
    %v2293 = vmul.f32 %v2277, %v2277
    %v2294 = vmul.f32 %v2278, %v2278
    %v2295 = vmul.f32 %v2279, %v2279
    %v2296 = vmul.f32 %v2280, %v2280
    %v2297 = vmul.f32 %v2281, %v2281
    %v2298 = vmul.f32 %v2282, %v2282
    %v2299 = vsub.f32 %v2283, %v2291
    %v2300 = vsub.f32 %v2284, %v2292
    %v2301 = vsub.f32 %v2285, %v2293
    %v2302 = vsub.f32 %v2286, %v2294
    %v2303 = vsub.f32 %v2287, %v2295
    %v2304 = vsub.f32 %v2288, %v2296
    %v2305 = vsub.f32 %v2289, %v2297
    %v2306 = vsub.f32 %v2290, %v2298
    %v2307 = vsub.f32 %v2182, %v2275
    %v2308 = vsub.f32 %v2183, %v2276
    %v2309 = vsub.f32 %v2184, %v2277
    %v2310 = vsub.f32 %v2185, %v2278
    %v2311 = vsub.f32 %v2186, %v2279
    %v2312 = vsub.f32 %v2187, %v2280
    %v2313 = vsub.f32 %v2188, %v2281
    %v2314 = vsub.f32 %v2189, %v2282
    %v2315 = vadd.f32 %v2299, 1e-05
    %v2316 = vadd.f32 %v2300, 1e-05
    %v2317 = vadd.f32 %v2301, 1e-05
    %v2318 = vadd.f32 %v2302, 1e-05
    %v2319 = vadd.f32 %v2303, 1e-05
    %v2320 = vadd.f32 %v2304, 1e-05
    %v2321 = vadd.f32 %v2305, 1e-05
    %v2322 = vadd.f32 %v2306, 1e-05
    %v2323 = vrsqrt.pop %v2315
    %v2324 = vmul.f32 %v2323, %v2315
    %v2325 = vmul.f32 %v2324, %v2323
    %v2326 = vmul.f32 0.5, %v2325
    %v2327 = vsub.f32 1.5, %v2326
    %v2328 = vmul.f32 %v2323, %v2327
    %vm2329 = vweird.f32 %v2315
    %vm2330 = vweird.f32 %v2323
    %vm2331 = vmor %vm2329, %vm2330
    %v2332 = vsel %vm2331, %v2323, %v2328
    %v2333 = vrsqrt.pop %v2316
    %v2334 = vmul.f32 %v2333, %v2316
    %v2335 = vmul.f32 %v2334, %v2333
    %v2336 = vmul.f32 0.5, %v2335
    %v2337 = vsub.f32 1.5, %v2336
    %v2338 = vmul.f32 %v2333, %v2337
    %vm2339 = vweird.f32 %v2316
    %vm2340 = vweird.f32 %v2333
    %vm2341 = vmor %vm2339, %vm2340
    %v2342 = vsel %vm2341, %v2333, %v2338
    %v2343 = vrsqrt.pop %v2317
    %v2344 = vmul.f32 %v2343, %v2317
    %v2345 = vmul.f32 %v2344, %v2343
    %v2346 = vmul.f32 0.5, %v2345
    %v2347 = vsub.f32 1.5, %v2346
    %v2348 = vmul.f32 %v2343, %v2347
    %vm2349 = vweird.f32 %v2317
    %vm2350 = vweird.f32 %v2343
    %vm2351 = vmor %vm2349, %vm2350
    %v2352 = vsel %vm2351, %v2343, %v2348
    %v2353 = vrsqrt.pop %v2318
    %v2354 = vmul.f32 %v2353, %v2318
    %v2355 = vmul.f32 %v2354, %v2353
    %v2356 = vmul.f32 0.5, %v2355
    %v2357 = vsub.f32 1.5, %v2356
    %v2358 = vmul.f32 %v2353, %v2357
    %vm2359 = vweird.f32 %v2318
    %vm2360 = vweird.f32 %v2353
    %vm2361 = vmor %vm2359, %vm2360
    %v2362 = vsel %vm2361, %v2353, %v2358
    %v2363 = vrsqrt.pop %v2319
    %v2364 = vmul.f32 %v2363, %v2319
    %v2365 = vmul.f32 %v2364, %v2363
    %v2366 = vmul.f32 0.5, %v2365
    %v2367 = vsub.f32 1.5, %v2366
    %v2368 = vmul.f32 %v2363, %v2367
    %vm2369 = vweird.f32 %v2319
    %vm2370 = vweird.f32 %v2363
    %vm2371 = vmor %vm2369, %vm2370
    %v2372 = vsel %vm2371, %v2363, %v2368
    %v2373 = vrsqrt.pop %v2320
    %v2374 = vmul.f32 %v2373, %v2320
    %v2375 = vmul.f32 %v2374, %v2373
    %v2376 = vmul.f32 0.5, %v2375
    %v2377 = vsub.f32 1.5, %v2376
    %v2378 = vmul.f32 %v2373, %v2377
    %vm2379 = vweird.f32 %v2320
    %vm2380 = vweird.f32 %v2373
    %vm2381 = vmor %vm2379, %vm2380
    %v2382 = vsel %vm2381, %v2373, %v2378
    %v2383 = vrsqrt.pop %v2321
    %v2384 = vmul.f32 %v2383, %v2321
    %v2385 = vmul.f32 %v2384, %v2383
    %v2386 = vmul.f32 0.5, %v2385
    %v2387 = vsub.f32 1.5, %v2386
    %v2388 = vmul.f32 %v2383, %v2387
    %vm2389 = vweird.f32 %v2321
    %vm2390 = vweird.f32 %v2383
    %vm2391 = vmor %vm2389, %vm2390
    %v2392 = vsel %vm2391, %v2383, %v2388
    %v2393 = vrsqrt.pop %v2322
    %v2394 = vmul.f32 %v2393, %v2322
    %v2395 = vmul.f32 %v2394, %v2393
    %v2396 = vmul.f32 0.5, %v2395
    %v2397 = vsub.f32 1.5, %v2396
    %v2398 = vmul.f32 %v2393, %v2397
    %vm2399 = vweird.f32 %v2322
    %vm2400 = vweird.f32 %v2393
    %vm2401 = vmor %vm2399, %vm2400
    %v2402 = vsel %vm2401, %v2393, %v2398
    %v2403 = vmul.f32 %v2307, %v2332
    %v2404 = vmul.f32 %v2308, %v2342
    %v2405 = vmul.f32 %v2309, %v2352
    %v2406 = vmul.f32 %v2310, %v2362
    %v2407 = vmul.f32 %v2311, %v2372
    %v2408 = vmul.f32 %v2312, %v2382
    %v2409 = vmul.f32 %v2313, %v2392
    %v2410 = vmul.f32 %v2314, %v2402
    %v2411 = vperm.slane %v2218, 0
    %v2413 = vsel %vm385, %v2403, 0
    %v2416 = vsel %vm385, %v2404, 0
    %v2419 = vsel %vm385, %v2405, 0
    %v2422 = vsel %vm385, %v2406, 0
    %v2425 = vsel %vm385, %v2407, 0
    %v2428 = vsel %vm385, %v2408, 0
    %v2431 = vsel %vm385, %v2409, 0
    %v2434 = vsel %vm385, %v2410, 0
    %2436 = vmatpush.msra.mxu0 0.0
    %2437 = vmatpush.msra.mxu0 0.0
    %2438 = vmatpush.msra.mxu0 0.0
    %2439 = vmatpush.msra.mxu0 0.0
    %2440 = vmatpush.msra.mxu0 0.0
    %2441 = vmatpush.msra.mxu0 0.0
    %2442 = vmatpush.msra.mxu0 0.0
    %2443 = vmatpush.msra.mxu0 0.0
    %2444 = vmatpush.msra.mxu0 0.0
    %2445 = vmatpush.msra.mxu0 0.0
    %2446 = vmatpush.msra.mxu0 0.0
    %2447 = vmatpush.msra.mxu0 0.0
    %2448 = vmatpush.msra.mxu0 %v2194
    %2449 = vmatpush.msra.mxu0 %v2193
    %2450 = vmatpush.msra.mxu0 %v2192
    %2451 = vmatpush.msra.mxu0 %v2191
    %2452 = vmatmul.f32.gmra.mxu0 %v2413
    %v2453 = vpop.f32.mrf.mxu0
    %v2454 = vadd.f32 %v2411, %v2453
    %2455 = vmatmul.f32.gmra.mxu0 %v2416
    %v2456 = vpop.f32.mrf.mxu0
    %v2457 = vadd.f32 %v2411, %v2456
    %2458 = vmatmul.f32.gmra.mxu0 %v2419
    %v2459 = vpop.f32.mrf.mxu0
    %v2460 = vadd.f32 %v2411, %v2459
    %2461 = vmatmul.f32.gmra.mxu0 %v2422
    %v2462 = vpop.f32.mrf.mxu0
    %v2463 = vadd.f32 %v2411, %v2462
    %2464 = vmatmul.f32.gmra.mxu0 %v2425
    %v2465 = vpop.f32.mrf.mxu0
    %v2466 = vadd.f32 %v2411, %v2465
    %2467 = vmatmul.f32.gmra.mxu0 %v2428
    %v2468 = vpop.f32.mrf.mxu0
    %v2469 = vadd.f32 %v2411, %v2468
    %2470 = vmatmul.f32.gmra.mxu0 %v2431
    %v2471 = vpop.f32.mrf.mxu0
    %v2472 = vadd.f32 %v2411, %v2471
    %2473 = vmatmul.f32.gmra.mxu0 %v2434
    %v2474 = vpop.f32.mrf.mxu0
    %v2475 = vadd.f32 %v2411, %v2474
    %2476 = vdwg.mxu0
    %v2477 = vadd.f32 %v2182, %v2454
    %v2478 = vadd.f32 %v2183, %v2457
    %v2479 = vadd.f32 %v2184, %v2460
    %v2480 = vadd.f32 %v2185, %v2463
    %v2481 = vadd.f32 %v2186, %v2466
    %v2482 = vadd.f32 %v2187, %v2469
    %v2483 = vadd.f32 %v2188, %v2472
    %v2484 = vadd.f32 %v2189, %v2475
    %v2485 = vsel %vm385, %v2477, 0.0
    %2486 = vadd.xlane.f32.xlu0 %v2485
    %v2487 = vpop.xlane.xlu0 %2486
    %v2488 = vsel %vm385, %v2478, 0.0
    %2489 = vadd.xlane.f32.xlu0 %v2488
    %v2490 = vpop.xlane.xlu0 %2489
    %v2491 = vsel %vm385, %v2479, 0.0
    %2492 = vadd.xlane.f32.xlu0 %v2491
    %v2493 = vpop.xlane.xlu0 %2492
    %v2494 = vsel %vm385, %v2480, 0.0
    %2495 = vadd.xlane.f32.xlu0 %v2494
    %v2496 = vpop.xlane.xlu0 %2495
    %v2497 = vsel %vm385, %v2481, 0.0
    %2498 = vadd.xlane.f32.xlu0 %v2497
    %v2499 = vpop.xlane.xlu0 %2498
    %v2500 = vsel %vm385, %v2482, 0.0
    %2501 = vadd.xlane.f32.xlu0 %v2500
    %v2502 = vpop.xlane.xlu0 %2501
    %v2503 = vsel %vm385, %v2483, 0.0
    %2504 = vadd.xlane.f32.xlu0 %v2503
    %v2505 = vpop.xlane.xlu0 %2504
    %v2506 = vsel %vm385, %v2484, 0.0
    %2507 = vadd.xlane.f32.xlu0 %v2506
    %v2508 = vpop.xlane.xlu0 %2507
    %v2509 = vmul.f32 %v2477, %v2477
    %v2510 = vmul.f32 %v2478, %v2478
    %v2511 = vmul.f32 %v2479, %v2479
    %v2512 = vmul.f32 %v2480, %v2480
    %v2513 = vmul.f32 %v2481, %v2481
    %v2514 = vmul.f32 %v2482, %v2482
    %v2515 = vmul.f32 %v2483, %v2483
    %v2516 = vmul.f32 %v2484, %v2484
    %v2517 = vsel %vm385, %v2509, 0.0
    %2518 = vadd.xlane.f32.xlu0 %v2517
    %v2519 = vpop.xlane.xlu0 %2518
    %v2520 = vsel %vm385, %v2510, 0.0
    %2521 = vadd.xlane.f32.xlu0 %v2520
    %v2522 = vpop.xlane.xlu0 %2521
    %v2523 = vsel %vm385, %v2511, 0.0
    %2524 = vadd.xlane.f32.xlu0 %v2523
    %v2525 = vpop.xlane.xlu0 %2524
    %v2526 = vsel %vm385, %v2512, 0.0
    %2527 = vadd.xlane.f32.xlu0 %v2526
    %v2528 = vpop.xlane.xlu0 %2527
    %v2529 = vsel %vm385, %v2513, 0.0
    %2530 = vadd.xlane.f32.xlu0 %v2529
    %v2531 = vpop.xlane.xlu0 %2530
    %v2532 = vsel %vm385, %v2514, 0.0
    %2533 = vadd.xlane.f32.xlu0 %v2532
    %v2534 = vpop.xlane.xlu0 %2533
    %v2535 = vsel %vm385, %v2515, 0.0
    %2536 = vadd.xlane.f32.xlu0 %v2535
    %v2537 = vpop.xlane.xlu0 %2536
    %v2538 = vsel %vm385, %v2516, 0.0
    %2539 = vadd.xlane.f32.xlu0 %v2538
    %v2540 = vpop.xlane.xlu0 %2539
    %v2541 = vmul.f32 %v2487, 0.03125
    %v2542 = vmul.f32 %v2490, 0.03125
    %v2543 = vmul.f32 %v2493, 0.03125
    %v2544 = vmul.f32 %v2496, 0.03125
    %v2545 = vmul.f32 %v2499, 0.03125
    %v2546 = vmul.f32 %v2502, 0.03125
    %v2547 = vmul.f32 %v2505, 0.03125
    %v2548 = vmul.f32 %v2508, 0.03125
    %v2549 = vmul.f32 %v2519, 0.03125
    %v2550 = vmul.f32 %v2522, 0.03125
    %v2551 = vmul.f32 %v2525, 0.03125
    %v2552 = vmul.f32 %v2528, 0.03125
    %v2553 = vmul.f32 %v2531, 0.03125
    %v2554 = vmul.f32 %v2534, 0.03125
    %v2555 = vmul.f32 %v2537, 0.03125
    %v2556 = vmul.f32 %v2540, 0.03125
    %v2557 = vmul.f32 %v2541, %v2541
    %v2558 = vmul.f32 %v2542, %v2542
    %v2559 = vmul.f32 %v2543, %v2543
    %v2560 = vmul.f32 %v2544, %v2544
    %v2561 = vmul.f32 %v2545, %v2545
    %v2562 = vmul.f32 %v2546, %v2546
    %v2563 = vmul.f32 %v2547, %v2547
    %v2564 = vmul.f32 %v2548, %v2548
    %v2565 = vsub.f32 %v2549, %v2557
    %v2566 = vsub.f32 %v2550, %v2558
    %v2567 = vsub.f32 %v2551, %v2559
    %v2568 = vsub.f32 %v2552, %v2560
    %v2569 = vsub.f32 %v2553, %v2561
    %v2570 = vsub.f32 %v2554, %v2562
    %v2571 = vsub.f32 %v2555, %v2563
    %v2572 = vsub.f32 %v2556, %v2564
    %v2573 = vsub.f32 %v2477, %v2541
    %v2574 = vsub.f32 %v2478, %v2542
    %v2575 = vsub.f32 %v2479, %v2543
    %v2576 = vsub.f32 %v2480, %v2544
    %v2577 = vsub.f32 %v2481, %v2545
    %v2578 = vsub.f32 %v2482, %v2546
    %v2579 = vsub.f32 %v2483, %v2547
    %v2580 = vsub.f32 %v2484, %v2548
    %v2581 = vadd.f32 %v2565, 1e-05
    %v2582 = vadd.f32 %v2566, 1e-05
    %v2583 = vadd.f32 %v2567, 1e-05
    %v2584 = vadd.f32 %v2568, 1e-05
    %v2585 = vadd.f32 %v2569, 1e-05
    %v2586 = vadd.f32 %v2570, 1e-05
    %v2587 = vadd.f32 %v2571, 1e-05
    %v2588 = vadd.f32 %v2572, 1e-05
    %v2589 = vrsqrt.pop %v2581
    %v2590 = vmul.f32 %v2589, %v2581
    %v2591 = vmul.f32 %v2590, %v2589
    %v2592 = vmul.f32 0.5, %v2591
    %v2593 = vsub.f32 1.5, %v2592
    %v2594 = vmul.f32 %v2589, %v2593
    %vm2595 = vweird.f32 %v2581
    %vm2596 = vweird.f32 %v2589
    %vm2597 = vmor %vm2595, %vm2596
    %v2598 = vsel %vm2597, %v2589, %v2594
    %v2599 = vrsqrt.pop %v2582
    %v2600 = vmul.f32 %v2599, %v2582
    %v2601 = vmul.f32 %v2600, %v2599
    %v2602 = vmul.f32 0.5, %v2601
    %v2603 = vsub.f32 1.5, %v2602
    %v2604 = vmul.f32 %v2599, %v2603
    %vm2605 = vweird.f32 %v2582
    %vm2606 = vweird.f32 %v2599
    %vm2607 = vmor %vm2605, %vm2606
    %v2608 = vsel %vm2607, %v2599, %v2604
    %v2609 = vrsqrt.pop %v2583
    %v2610 = vmul.f32 %v2609, %v2583
    %v2611 = vmul.f32 %v2610, %v2609
    %v2612 = vmul.f32 0.5, %v2611
    %v2613 = vsub.f32 1.5, %v2612
    %v2614 = vmul.f32 %v2609, %v2613
    %vm2615 = vweird.f32 %v2583
    %vm2616 = vweird.f32 %v2609
    %vm2617 = vmor %vm2615, %vm2616
    %v2618 = vsel %vm2617, %v2609, %v2614
    %v2619 = vrsqrt.pop %v2584
    %v2620 = vmul.f32 %v2619, %v2584
    %v2621 = vmul.f32 %v2620, %v2619
    %v2622 = vmul.f32 0.5, %v2621
    %v2623 = vsub.f32 1.5, %v2622
    %v2624 = vmul.f32 %v2619, %v2623
    %vm2625 = vweird.f32 %v2584
    %vm2626 = vweird.f32 %v2619
    %vm2627 = vmor %vm2625, %vm2626
    %v2628 = vsel %vm2627, %v2619, %v2624
    %v2629 = vrsqrt.pop %v2585
    %v2630 = vmul.f32 %v2629, %v2585
    %v2631 = vmul.f32 %v2630, %v2629
    %v2632 = vmul.f32 0.5, %v2631
    %v2633 = vsub.f32 1.5, %v2632
    %v2634 = vmul.f32 %v2629, %v2633
    %vm2635 = vweird.f32 %v2585
    %vm2636 = vweird.f32 %v2629
    %vm2637 = vmor %vm2635, %vm2636
    %v2638 = vsel %vm2637, %v2629, %v2634
    %v2639 = vrsqrt.pop %v2586
    %v2640 = vmul.f32 %v2639, %v2586
    %v2641 = vmul.f32 %v2640, %v2639
    %v2642 = vmul.f32 0.5, %v2641
    %v2643 = vsub.f32 1.5, %v2642
    %v2644 = vmul.f32 %v2639, %v2643
    %vm2645 = vweird.f32 %v2586
    %vm2646 = vweird.f32 %v2639
    %vm2647 = vmor %vm2645, %vm2646
    %v2648 = vsel %vm2647, %v2639, %v2644
    %v2649 = vrsqrt.pop %v2587
    %v2650 = vmul.f32 %v2649, %v2587
    %v2651 = vmul.f32 %v2650, %v2649
    %v2652 = vmul.f32 0.5, %v2651
    %v2653 = vsub.f32 1.5, %v2652
    %v2654 = vmul.f32 %v2649, %v2653
    %vm2655 = vweird.f32 %v2587
    %vm2656 = vweird.f32 %v2649
    %vm2657 = vmor %vm2655, %vm2656
    %v2658 = vsel %vm2657, %v2649, %v2654
    %v2659 = vrsqrt.pop %v2588
    %v2660 = vmul.f32 %v2659, %v2588
    %v2661 = vmul.f32 %v2660, %v2659
    %v2662 = vmul.f32 0.5, %v2661
    %v2663 = vsub.f32 1.5, %v2662
    %v2664 = vmul.f32 %v2659, %v2663
    %vm2665 = vweird.f32 %v2588
    %vm2666 = vweird.f32 %v2659
    %vm2667 = vmor %vm2665, %vm2666
    %v2668 = vsel %vm2667, %v2659, %v2664
    %v2669 = vmul.f32 %v2573, %v2598
    %v2670 = vmul.f32 %v2574, %v2608
    %v2671 = vmul.f32 %v2575, %v2618
    %v2672 = vmul.f32 %v2576, %v2628
    %v2673 = vmul.f32 %v2577, %v2638
    %v2674 = vmul.f32 %v2578, %v2648
    %v2675 = vmul.f32 %v2579, %v2658
    %v2676 = vmul.f32 %v2580, %v2668
    %v2677 = vperm.slane %v2218, 2
    %v2679 = vsel %vm385, %v2669, 0
    %v2682 = vsel %vm385, %v2670, 0
    %v2685 = vsel %vm385, %v2671, 0
    %v2688 = vsel %vm385, %v2672, 0
    %v2691 = vsel %vm385, %v2673, 0
    %v2694 = vsel %vm385, %v2674, 0
    %v2697 = vsel %vm385, %v2675, 0
    %v2700 = vsel %vm385, %v2676, 0
    %2702 = vmatpush.msra.mxu0 0.0
    %2703 = vmatpush.msra.mxu0 0.0
    %2704 = vmatpush.msra.mxu0 0.0
    %2705 = vmatpush.msra.mxu0 0.0
    %2706 = vmatpush.msra.mxu0 0.0
    %2707 = vmatpush.msra.mxu0 0.0
    %2708 = vmatpush.msra.mxu0 0.0
    %2709 = vmatpush.msra.mxu0 0.0
    %2710 = vmatpush.msra.mxu0 0.0
    %2711 = vmatpush.msra.mxu0 0.0
    %2712 = vmatpush.msra.mxu0 0.0
    %2713 = vmatpush.msra.mxu0 0.0
    %2714 = vmatpush.msra.mxu0 %v2199
    %2715 = vmatpush.msra.mxu0 %v2198
    %2716 = vmatpush.msra.mxu0 %v2197
    %2717 = vmatpush.msra.mxu0 %v2196
    %2718 = vmatmul.f32.gmra.mxu0 %v2679
    %v2719 = vpop.f32.mrf.mxu0
    %v2720 = vadd.f32 %v2677, %v2719
    %2721 = vmatmul.f32.gmra.mxu0 %v2682
    %v2722 = vpop.f32.mrf.mxu0
    %v2723 = vadd.f32 %v2677, %v2722
    %2724 = vmatmul.f32.gmra.mxu0 %v2685
    %v2725 = vpop.f32.mrf.mxu0
    %v2726 = vadd.f32 %v2677, %v2725
    %2727 = vmatmul.f32.gmra.mxu0 %v2688
    %v2728 = vpop.f32.mrf.mxu0
    %v2729 = vadd.f32 %v2677, %v2728
    %2730 = vmatmul.f32.gmra.mxu0 %v2691
    %v2731 = vpop.f32.mrf.mxu0
    %v2732 = vadd.f32 %v2677, %v2731
    %2733 = vmatmul.f32.gmra.mxu0 %v2694
    %v2734 = vpop.f32.mrf.mxu0
    %v2735 = vadd.f32 %v2677, %v2734
    %2736 = vmatmul.f32.gmra.mxu0 %v2697
    %v2737 = vpop.f32.mrf.mxu0
    %v2738 = vadd.f32 %v2677, %v2737
    %2739 = vmatmul.f32.gmra.mxu0 %v2700
    %v2740 = vpop.f32.mrf.mxu0
    %v2741 = vadd.f32 %v2677, %v2740
    %2742 = vdwg.mxu0
    %v2743 = vmax.f32 %v2720, 0.0
    %v2744 = vmax.f32 %v2723, 0.0
    %v2745 = vmax.f32 %v2726, 0.0
    %v2746 = vmax.f32 %v2729, 0.0
    %v2747 = vmax.f32 %v2732, 0.0
    %v2748 = vmax.f32 %v2735, 0.0
    %v2749 = vmax.f32 %v2738, 0.0
    %v2750 = vmax.f32 %v2741, 0.0
    %v2751 = vperm.slane %v2218, 1
    %2752 = vmatpush.msra.mxu0 %v2216
    %2753 = vmatpush.msra.mxu0 %v2215
    %2754 = vmatpush.msra.mxu0 %v2214
    %2755 = vmatpush.msra.mxu0 %v2213
    %2756 = vmatpush.msra.mxu0 %v2212
    %2757 = vmatpush.msra.mxu0 %v2211
    %2758 = vmatpush.msra.mxu0 %v2210
    %2759 = vmatpush.msra.mxu0 %v2209
    %2760 = vmatpush.msra.mxu0 %v2208
    %2761 = vmatpush.msra.mxu0 %v2207
    %2762 = vmatpush.msra.mxu0 %v2206
    %2763 = vmatpush.msra.mxu0 %v2205
    %2764 = vmatpush.msra.mxu0 %v2204
    %2765 = vmatpush.msra.mxu0 %v2203
    %2766 = vmatpush.msra.mxu0 %v2202
    %2767 = vmatpush.msra.mxu0 %v2201
    %2768 = vmatmul.f32.gmra.mxu0 %v2743
    %v2769 = vpop.f32.mrf.mxu0
    %v2770 = vadd.f32 %v2751, %v2769
    %2771 = vmatmul.f32.gmra.mxu0 %v2744
    %v2772 = vpop.f32.mrf.mxu0
    %v2773 = vadd.f32 %v2751, %v2772
    %2774 = vmatmul.f32.gmra.mxu0 %v2745
    %v2775 = vpop.f32.mrf.mxu0
    %v2776 = vadd.f32 %v2751, %v2775
    %2777 = vmatmul.f32.gmra.mxu0 %v2746
    %v2778 = vpop.f32.mrf.mxu0
    %v2779 = vadd.f32 %v2751, %v2778
    %2780 = vmatmul.f32.gmra.mxu0 %v2747
    %v2781 = vpop.f32.mrf.mxu0
    %v2782 = vadd.f32 %v2751, %v2781
    %2783 = vmatmul.f32.gmra.mxu0 %v2748
    %v2784 = vpop.f32.mrf.mxu0
    %v2785 = vadd.f32 %v2751, %v2784
    %2786 = vmatmul.f32.gmra.mxu0 %v2749
    %v2787 = vpop.f32.mrf.mxu0
    %v2788 = vadd.f32 %v2751, %v2787
    %2789 = vmatmul.f32.gmra.mxu0 %v2750
    %v2790 = vpop.f32.mrf.mxu0
    %v2791 = vadd.f32 %v2751, %v2790
    %2792 = vdwg.mxu0
    %v2793 = vadd.f32 %v2477, %v2770
    %v2794 = vadd.f32 %v2478, %v2773
    %v2795 = vadd.f32 %v2479, %v2776
    %v2796 = vadd.f32 %v2480, %v2779
    %v2797 = vadd.f32 %v2481, %v2782
    %v2798 = vadd.f32 %v2482, %v2785
    %v2799 = vadd.f32 %v2483, %v2788
    %v2800 = vadd.f32 %v2484, %v2791
    %2801 = vst.msk [vmem:[#allocation2] sm:$0xff] %vm385, %v2793
    %2802 = vst.msk [vmem:[#allocation2 + $0x8] sm:$0xff] %vm385, %v2794
    %2803 = vst.msk [vmem:[#allocation2 + $0x10] sm:$0xff] %vm385, %v2795
    %2804 = vst.msk [vmem:[#allocation2 + $0x18] sm:$0xff] %vm385, %v2796
    %2805 = vst.msk [vmem:[#allocation2 + $0x20] sm:$0xff] %vm385, %v2797
    %2806 = vst.msk [vmem:[#allocation2 + $0x28] sm:$0xff] %vm385, %v2798
    %2807 = vst.msk [vmem:[#allocation2 + $0x30] sm:$0xff] %vm385, %v2799
    %2808 = vst.msk [vmem:[#allocation2 + $0x38] sm:$0xff] %vm385, %v2800
    // Predicated region
    $region42: #{tpu_custom_call.1} parent=1 // pred_check
      %p2809 = pneg %p35
    $region43: #{tpu_custom_call.1} parent=1 // pred_check_branch
      %2811 = sbr.rel (%p2809) target = $region45
    $region44: #{tpu_custom_call.1} parent=1 // pred_region
      %v2812 = vld [vmem:[%s7] sm:$0xff]
      %v2813 = vld [vmem:[%s7 + $0x8] sm:$0xff]
      %v2814 = vld [vmem:[%s7 + $0x10] sm:$0xff]
      %v2815 = vld [vmem:[%s7 + $0x18] sm:$0xff]
      %v2816 = vperm.slane %v33, 4
      %v2818 = vsel %vm385, %v2793, 0
      %v2821 = vsel %vm385, %v2794, 0
      %v2824 = vsel %vm385, %v2795, 0
      %v2827 = vsel %vm385, %v2796, 0
      %v2830 = vsel %vm385, %v2797, 0
      %v2833 = vsel %vm385, %v2798, 0
      %v2836 = vsel %vm385, %v2799, 0
      %v2839 = vsel %vm385, %v2800, 0
      %2841 = vmatpush.msra.mxu0 0.0
      %2842 = vmatpush.msra.mxu0 0.0
      %2843 = vmatpush.msra.mxu0 0.0
      %2844 = vmatpush.msra.mxu0 0.0
      %2845 = vmatpush.msra.mxu0 0.0
      %2846 = vmatpush.msra.mxu0 0.0
      %2847 = vmatpush.msra.mxu0 0.0
      %2848 = vmatpush.msra.mxu0 0.0
      %2849 = vmatpush.msra.mxu0 0.0
      %2850 = vmatpush.msra.mxu0 0.0
      %2851 = vmatpush.msra.mxu0 0.0
      %2852 = vmatpush.msra.mxu0 0.0
      %2853 = vmatpush.msra.mxu0 %v2815
      %2854 = vmatpush.msra.mxu0 %v2814
      %2855 = vmatpush.msra.mxu0 %v2813
      %2856 = vmatpush.msra.mxu0 %v2812
      %2857 = vmatmul.f32.gmra.mxu0 %v2818
      %v2858 = vpop.f32.mrf.mxu0
      %v2859 = vadd.f32 %v2816, %v2858
      %2860 = vmatmul.f32.gmra.mxu0 %v2821
      %v2861 = vpop.f32.mrf.mxu0
      %v2862 = vadd.f32 %v2816, %v2861
      %2863 = vmatmul.f32.gmra.mxu0 %v2824
      %v2864 = vpop.f32.mrf.mxu0
      %v2865 = vadd.f32 %v2816, %v2864
      %2866 = vmatmul.f32.gmra.mxu0 %v2827
      %v2867 = vpop.f32.mrf.mxu0
      %v2868 = vadd.f32 %v2816, %v2867
      %2869 = vmatmul.f32.gmra.mxu0 %v2830
      %v2870 = vpop.f32.mrf.mxu0
      %v2871 = vadd.f32 %v2816, %v2870
      %2872 = vmatmul.f32.gmra.mxu0 %v2833
      %v2873 = vpop.f32.mrf.mxu0
      %v2874 = vadd.f32 %v2816, %v2873
      %2875 = vmatmul.f32.gmra.mxu0 %v2836
      %v2876 = vpop.f32.mrf.mxu0
      %v2877 = vadd.f32 %v2816, %v2876
      %2878 = vmatmul.f32.gmra.mxu0 %v2839
      %v2879 = vpop.f32.mrf.mxu0
      %v2880 = vadd.f32 %v2816, %v2879
      %2881 = vdwg.mxu0
      %vm2882 = vcmask 130048
      %v2883 = vsel %vm2882, %v2859, 0.0
      %2884 = vadd.xlane.f32.xlu0 %v2883
      %v2885 = vpop.xlane.xlu0 %2884
      %v2886 = vsel %vm2882, %v2862, 0.0
      %2887 = vadd.xlane.f32.xlu0 %v2886
      %v2888 = vpop.xlane.xlu0 %2887
      %v2889 = vsel %vm2882, %v2865, 0.0
      %2890 = vadd.xlane.f32.xlu0 %v2889
      %v2891 = vpop.xlane.xlu0 %2890
      %v2892 = vsel %vm2882, %v2868, 0.0
      %2893 = vadd.xlane.f32.xlu0 %v2892
      %v2894 = vpop.xlane.xlu0 %2893
      %v2895 = vsel %vm2882, %v2871, 0.0
      %2896 = vadd.xlane.f32.xlu0 %v2895
      %v2897 = vpop.xlane.xlu0 %2896
      %v2898 = vsel %vm2882, %v2874, 0.0
      %2899 = vadd.xlane.f32.xlu0 %v2898
      %v2900 = vpop.xlane.xlu0 %2899
      %v2901 = vsel %vm2882, %v2877, 0.0
      %2902 = vadd.xlane.f32.xlu0 %v2901
      %v2903 = vpop.xlane.xlu0 %2902
      %v2904 = vsel %vm2882, %v2880, 0.0
      %2905 = vadd.xlane.f32.xlu0 %v2904
      %v2906 = vpop.xlane.xlu0 %2905
      %v2907 = vmul.f32 %v2859, %v2859
      %v2908 = vmul.f32 %v2862, %v2862
      %v2909 = vmul.f32 %v2865, %v2865
      %v2910 = vmul.f32 %v2868, %v2868
      %v2911 = vmul.f32 %v2871, %v2871
      %v2912 = vmul.f32 %v2874, %v2874
      %v2913 = vmul.f32 %v2877, %v2877
      %v2914 = vmul.f32 %v2880, %v2880
      %v2915 = vsel %vm2882, %v2907, 0.0
      %2916 = vadd.xlane.f32.xlu0 %v2915
      %v2917 = vpop.xlane.xlu0 %2916
      %v2918 = vsel %vm2882, %v2908, 0.0
      %2919 = vadd.xlane.f32.xlu0 %v2918
      %v2920 = vpop.xlane.xlu0 %2919
      %v2921 = vsel %vm2882, %v2909, 0.0
      %2922 = vadd.xlane.f32.xlu0 %v2921
      %v2923 = vpop.xlane.xlu0 %2922
      %v2924 = vsel %vm2882, %v2910, 0.0
      %2925 = vadd.xlane.f32.xlu0 %v2924
      %v2926 = vpop.xlane.xlu0 %2925
      %v2927 = vsel %vm2882, %v2911, 0.0
      %2928 = vadd.xlane.f32.xlu0 %v2927
      %v2929 = vpop.xlane.xlu0 %2928
      %v2930 = vsel %vm2882, %v2912, 0.0
      %2931 = vadd.xlane.f32.xlu0 %v2930
      %v2932 = vpop.xlane.xlu0 %2931
      %v2933 = vsel %vm2882, %v2913, 0.0
      %2934 = vadd.xlane.f32.xlu0 %v2933
      %v2935 = vpop.xlane.xlu0 %2934
      %v2936 = vsel %vm2882, %v2914, 0.0
      %2937 = vadd.xlane.f32.xlu0 %v2936
      %v2938 = vpop.xlane.xlu0 %2937
      %v2939 = vmul.f32 %v2885, 0.0625
      %v2940 = vmul.f32 %v2888, 0.0625
      %v2941 = vmul.f32 %v2891, 0.0625
      %v2942 = vmul.f32 %v2894, 0.0625
      %v2943 = vmul.f32 %v2897, 0.0625
      %v2944 = vmul.f32 %v2900, 0.0625
      %v2945 = vmul.f32 %v2903, 0.0625
      %v2946 = vmul.f32 %v2906, 0.0625
      %v2947 = vmul.f32 %v2917, 0.0625
      %v2948 = vmul.f32 %v2920, 0.0625
      %v2949 = vmul.f32 %v2923, 0.0625
      %v2950 = vmul.f32 %v2926, 0.0625
      %v2951 = vmul.f32 %v2929, 0.0625
      %v2952 = vmul.f32 %v2932, 0.0625
      %v2953 = vmul.f32 %v2935, 0.0625
      %v2954 = vmul.f32 %v2938, 0.0625
      %v2955 = vmul.f32 %v2939, %v2939
      %v2956 = vmul.f32 %v2940, %v2940
      %v2957 = vmul.f32 %v2941, %v2941
      %v2958 = vmul.f32 %v2942, %v2942
      %v2959 = vmul.f32 %v2943, %v2943
      %v2960 = vmul.f32 %v2944, %v2944
      %v2961 = vmul.f32 %v2945, %v2945
      %v2962 = vmul.f32 %v2946, %v2946
      %v2963 = vsub.f32 %v2947, %v2955
      %v2964 = vsub.f32 %v2948, %v2956
      %v2965 = vsub.f32 %v2949, %v2957
      %v2966 = vsub.f32 %v2950, %v2958
      %v2967 = vsub.f32 %v2951, %v2959
      %v2968 = vsub.f32 %v2952, %v2960
      %v2969 = vsub.f32 %v2953, %v2961
      %v2970 = vsub.f32 %v2954, %v2962
      %v2971 = vsub.f32 %v2859, %v2939
      %v2972 = vsub.f32 %v2862, %v2940
      %v2973 = vsub.f32 %v2865, %v2941
      %v2974 = vsub.f32 %v2868, %v2942
      %v2975 = vsub.f32 %v2871, %v2943
      %v2976 = vsub.f32 %v2874, %v2944
      %v2977 = vsub.f32 %v2877, %v2945
      %v2978 = vsub.f32 %v2880, %v2946
      %v2979 = vadd.f32 %v2963, 1e-05
      %v2980 = vadd.f32 %v2964, 1e-05
      %v2981 = vadd.f32 %v2965, 1e-05
      %v2982 = vadd.f32 %v2966, 1e-05
      %v2983 = vadd.f32 %v2967, 1e-05
      %v2984 = vadd.f32 %v2968, 1e-05
      %v2985 = vadd.f32 %v2969, 1e-05
      %v2986 = vadd.f32 %v2970, 1e-05
      %v2987 = vrsqrt.pop %v2979
      %v2988 = vmul.f32 %v2987, %v2979
      %v2989 = vmul.f32 %v2988, %v2987
      %v2990 = vmul.f32 0.5, %v2989
      %v2991 = vsub.f32 1.5, %v2990
      %v2992 = vmul.f32 %v2987, %v2991
      %vm2993 = vweird.f32 %v2979
      %vm2994 = vweird.f32 %v2987
      %vm2995 = vmor %vm2993, %vm2994
      %v2996 = vsel %vm2995, %v2987, %v2992
      %v2997 = vrsqrt.pop %v2980
      %v2998 = vmul.f32 %v2997, %v2980
      %v2999 = vmul.f32 %v2998, %v2997
      %v3000 = vmul.f32 0.5, %v2999
      %v3001 = vsub.f32 1.5, %v3000
      %v3002 = vmul.f32 %v2997, %v3001
      %vm3003 = vweird.f32 %v2980
      %vm3004 = vweird.f32 %v2997
      %vm3005 = vmor %vm3003, %vm3004
      %v3006 = vsel %vm3005, %v2997, %v3002
      %v3007 = vrsqrt.pop %v2981
      %v3008 = vmul.f32 %v3007, %v2981
      %v3009 = vmul.f32 %v3008, %v3007
      %v3010 = vmul.f32 0.5, %v3009
      %v3011 = vsub.f32 1.5, %v3010
      %v3012 = vmul.f32 %v3007, %v3011
      %vm3013 = vweird.f32 %v2981
      %vm3014 = vweird.f32 %v3007
      %vm3015 = vmor %vm3013, %vm3014
      %v3016 = vsel %vm3015, %v3007, %v3012
      %v3017 = vrsqrt.pop %v2982
      %v3018 = vmul.f32 %v3017, %v2982
      %v3019 = vmul.f32 %v3018, %v3017
      %v3020 = vmul.f32 0.5, %v3019
      %v3021 = vsub.f32 1.5, %v3020
      %v3022 = vmul.f32 %v3017, %v3021
      %vm3023 = vweird.f32 %v2982
      %vm3024 = vweird.f32 %v3017
      %vm3025 = vmor %vm3023, %vm3024
      %v3026 = vsel %vm3025, %v3017, %v3022
      %v3027 = vrsqrt.pop %v2983
      %v3028 = vmul.f32 %v3027, %v2983
      %v3029 = vmul.f32 %v3028, %v3027
      %v3030 = vmul.f32 0.5, %v3029
      %v3031 = vsub.f32 1.5, %v3030
      %v3032 = vmul.f32 %v3027, %v3031
      %vm3033 = vweird.f32 %v2983
      %vm3034 = vweird.f32 %v3027
      %vm3035 = vmor %vm3033, %vm3034
      %v3036 = vsel %vm3035, %v3027, %v3032
      %v3037 = vrsqrt.pop %v2984
      %v3038 = vmul.f32 %v3037, %v2984
      %v3039 = vmul.f32 %v3038, %v3037
      %v3040 = vmul.f32 0.5, %v3039
      %v3041 = vsub.f32 1.5, %v3040
      %v3042 = vmul.f32 %v3037, %v3041
      %vm3043 = vweird.f32 %v2984
      %vm3044 = vweird.f32 %v3037
      %vm3045 = vmor %vm3043, %vm3044
      %v3046 = vsel %vm3045, %v3037, %v3042
      %v3047 = vrsqrt.pop %v2985
      %v3048 = vmul.f32 %v3047, %v2985
      %v3049 = vmul.f32 %v3048, %v3047
      %v3050 = vmul.f32 0.5, %v3049
      %v3051 = vsub.f32 1.5, %v3050
      %v3052 = vmul.f32 %v3047, %v3051
      %vm3053 = vweird.f32 %v2985
      %vm3054 = vweird.f32 %v3047
      %vm3055 = vmor %vm3053, %vm3054
      %v3056 = vsel %vm3055, %v3047, %v3052
      %v3057 = vrsqrt.pop %v2986
      %v3058 = vmul.f32 %v3057, %v2986
      %v3059 = vmul.f32 %v3058, %v3057
      %v3060 = vmul.f32 0.5, %v3059
      %v3061 = vsub.f32 1.5, %v3060
      %v3062 = vmul.f32 %v3057, %v3061
      %vm3063 = vweird.f32 %v2986
      %vm3064 = vweird.f32 %v3057
      %vm3065 = vmor %vm3063, %vm3064
      %v3066 = vsel %vm3065, %v3057, %v3062
      %v3067 = vmul.f32 %v2971, %v2996
      %v3068 = vmul.f32 %v2972, %v3006
      %v3069 = vmul.f32 %v2973, %v3016
      %v3070 = vmul.f32 %v2974, %v3026
      %v3071 = vmul.f32 %v2975, %v3036
      %v3072 = vmul.f32 %v2976, %v3046
      %v3073 = vmul.f32 %v2977, %v3056
      %v3074 = vmul.f32 %v2978, %v3066
      %v3075 = vperm.slane %v33, 5
      %v3076 = vmul.f32 %v3067, %v3075
      %v3077 = vmul.f32 %v3068, %v3075
      %v3078 = vmul.f32 %v3069, %v3075
      %v3079 = vmul.f32 %v3070, %v3075
      %v3080 = vmul.f32 %v3071, %v3075
      %v3081 = vmul.f32 %v3072, %v3075
      %v3082 = vmul.f32 %v3073, %v3075
      %v3083 = vmul.f32 %v3074, %v3075
      %v3084 = vperm.slane %v33, 6
      %v3085 = vadd.f32 %v3076, %v3084
      %v3086 = vadd.f32 %v3077, %v3084
      %v3087 = vadd.f32 %v3078, %v3084
      %v3088 = vadd.f32 %v3079, %v3084
      %v3089 = vadd.f32 %v3080, %v3084
      %v3090 = vadd.f32 %v3081, %v3084
      %v3091 = vadd.f32 %v3082, %v3084
      %v3092 = vadd.f32 %v3083, %v3084
      %v3093 = vmax.f32 %v3085, 0.0
      %v3094 = vmax.f32 %v3086, 0.0
      %v3095 = vmax.f32 %v3087, 0.0
      %v3096 = vmax.f32 %v3088, 0.0
      %v3097 = vmax.f32 %v3089, 0.0
      %v3098 = vmax.f32 %v3090, 0.0
      %v3099 = vmax.f32 %v3091, 0.0
      %v3100 = vmax.f32 %v3092, 0.0
      %v3101 = vld [vmem:[%s8] sm:$0xff]
      %v3102 = vld [vmem:[%s8 + $0x8] sm:$0xff]
      %v3103 = vperm.slane %v33, 7
      %v3105 = vsel %vm2882, %v3093, 0
      %v3108 = vsel %vm2882, %v3094, 0
      %v3111 = vsel %vm2882, %v3095, 0
      %v3114 = vsel %vm2882, %v3096, 0
      %v3117 = vsel %vm2882, %v3097, 0
      %v3120 = vsel %vm2882, %v3098, 0
      %v3123 = vsel %vm2882, %v3099, 0
      %v3126 = vsel %vm2882, %v3100, 0
      %3128 = vmatpush.msra.mxu0 0.0
      %3129 = vmatpush.msra.mxu0 0.0
      %3130 = vmatpush.msra.mxu0 0.0
      %3131 = vmatpush.msra.mxu0 0.0
      %3132 = vmatpush.msra.mxu0 0.0
      %3133 = vmatpush.msra.mxu0 0.0
      %3134 = vmatpush.msra.mxu0 0.0
      %3135 = vmatpush.msra.mxu0 0.0
      %3136 = vmatpush.msra.mxu0 0.0
      %3137 = vmatpush.msra.mxu0 0.0
      %3138 = vmatpush.msra.mxu0 0.0
      %3139 = vmatpush.msra.mxu0 0.0
      %3140 = vmatpush.msra.mxu0 0.0
      %3141 = vmatpush.msra.mxu0 0.0
      %3142 = vmatpush.msra.mxu0 %v3102
      %3143 = vmatpush.msra.mxu0 %v3101
      %3144 = vmatmul.f32.gmra.mxu0 %v3105
      %v3145 = vpop.f32.mrf.mxu0
      %v3146 = vadd.f32 %v3103, %v3145
      %3147 = vmatmul.f32.gmra.mxu0 %v3108
      %v3148 = vpop.f32.mrf.mxu0
      %v3149 = vadd.f32 %v3103, %v3148
      %3150 = vmatmul.f32.gmra.mxu0 %v3111
      %v3151 = vpop.f32.mrf.mxu0
      %v3152 = vadd.f32 %v3103, %v3151
      %3153 = vmatmul.f32.gmra.mxu0 %v3114
      %v3154 = vpop.f32.mrf.mxu0
      %v3155 = vadd.f32 %v3103, %v3154
      %3156 = vmatmul.f32.gmra.mxu0 %v3117
      %v3157 = vpop.f32.mrf.mxu0
      %v3158 = vadd.f32 %v3103, %v3157
      %3159 = vmatmul.f32.gmra.mxu0 %v3120
      %v3160 = vpop.f32.mrf.mxu0
      %v3161 = vadd.f32 %v3103, %v3160
      %3162 = vmatmul.f32.gmra.mxu0 %v3123
      %v3163 = vpop.f32.mrf.mxu0
      %v3164 = vadd.f32 %v3103, %v3163
      %3165 = vmatmul.f32.gmra.mxu0 %v3126
      %v3166 = vpop.f32.mrf.mxu0
      %v3167 = vadd.f32 %v3103, %v3166
      %3168 = vdwg.mxu0
      %v3169 = vmax.f32 %v3146, 0.0
      %v3170 = vmax.f32 %v3149, 0.0
      %v3171 = vmax.f32 %v3152, 0.0
      %v3172 = vmax.f32 %v3155, 0.0
      %v3173 = vmax.f32 %v3158, 0.0
      %v3174 = vmax.f32 %v3161, 0.0
      %v3175 = vmax.f32 %v3164, 0.0
      %v3176 = vmax.f32 %v3167, 0.0
      %v3177 = vperm.slane %v34, 0
      %v3178 = vmul.f32 %v3169, %v3177
      %v3179 = vmul.f32 %v3170, %v3177
      %v3180 = vmul.f32 %v3171, %v3177
      %v3181 = vmul.f32 %v3172, %v3177
      %v3182 = vmul.f32 %v3173, %v3177
      %v3183 = vmul.f32 %v3174, %v3177
      %v3184 = vmul.f32 %v3175, %v3177
      %v3185 = vmul.f32 %v3176, %v3177
      %vm3186 = vcmask 64512
      %v3187 = vsel %vm3186, %v3178, 0.0
      %3188 = vadd.xlane.f32.xlu0 %v3187
      %v3189 = vpop.xlane.xlu0 %3188
      %v3190 = vsel %vm3186, %v3179, 0.0
      %3191 = vadd.xlane.f32.xlu0 %v3190
      %v3192 = vpop.xlane.xlu0 %3191
      %v3193 = vsel %vm3186, %v3180, 0.0
      %3194 = vadd.xlane.f32.xlu0 %v3193
      %v3195 = vpop.xlane.xlu0 %3194
      %v3196 = vsel %vm3186, %v3181, 0.0
      %3197 = vadd.xlane.f32.xlu0 %v3196
      %v3198 = vpop.xlane.xlu0 %3197
      %v3199 = vsel %vm3186, %v3182, 0.0
      %3200 = vadd.xlane.f32.xlu0 %v3199
      %v3201 = vpop.xlane.xlu0 %3200
      %v3202 = vsel %vm3186, %v3183, 0.0
      %3203 = vadd.xlane.f32.xlu0 %v3202
      %v3204 = vpop.xlane.xlu0 %3203
      %v3205 = vsel %vm3186, %v3184, 0.0
      %3206 = vadd.xlane.f32.xlu0 %v3205
      %v3207 = vpop.xlane.xlu0 %3206
      %v3208 = vsel %vm3186, %v3185, 0.0
      %3209 = vadd.xlane.f32.xlu0 %v3208
      %v3210 = vpop.xlane.xlu0 %3209
      %v3211 = vperm.slane %v34, 2
      %v3212 = vadd.f32 %v3189, %v3211
      %v3213 = vadd.f32 %v3192, %v3211
      %v3214 = vadd.f32 %v3195, %v3211
      %v3215 = vadd.f32 %v3198, %v3211
      %v3216 = vadd.f32 %v3201, %v3211
      %v3217 = vadd.f32 %v3204, %v3211
      %v3218 = vadd.f32 %v3207, %v3211
      %v3219 = vadd.f32 %v3210, %v3211
      %v3220 = vld [vmem:[%s0] sm:$0xff]
      %v3221 = vld [vmem:[%s0 + $0x8] sm:$0xff]
      %v3222 = vld [vmem:[%s0 + $0x10] sm:$0xff]
      %v3223 = vld [vmem:[%s0 + $0x18] sm:$0xff]
      %v3224 = vld [vmem:[%s0 + $0x20] sm:$0xff]
      %v3225 = vld [vmem:[%s0 + $0x28] sm:$0xff]
      %v3226 = vld [vmem:[%s0 + $0x30] sm:$0xff]
      %v3227 = vld [vmem:[%s0 + $0x38] sm:$0xff]
      %v3228 = vperm.slane %v34, 1
      %v3229 = vmul.f32 %v3220, %v3228
      %v3230 = vmul.f32 %v3221, %v3228
      %v3231 = vmul.f32 %v3222, %v3228
      %v3232 = vmul.f32 %v3223, %v3228
      %v3233 = vmul.f32 %v3224, %v3228
      %v3234 = vmul.f32 %v3225, %v3228
      %v3235 = vmul.f32 %v3226, %v3228
      %v3236 = vmul.f32 %v3227, %v3228
      %v3237 = vsel %vm2882, %v3229, 0.0
      %3238 = vadd.xlane.f32.xlu0 %v3237
      %v3239 = vpop.xlane.xlu0 %3238
      %v3240 = vsel %vm2882, %v3230, 0.0
      %3241 = vadd.xlane.f32.xlu0 %v3240
      %v3242 = vpop.xlane.xlu0 %3241
      %v3243 = vsel %vm2882, %v3231, 0.0
      %3244 = vadd.xlane.f32.xlu0 %v3243
      %v3245 = vpop.xlane.xlu0 %3244
      %v3246 = vsel %vm2882, %v3232, 0.0
      %3247 = vadd.xlane.f32.xlu0 %v3246
      %v3248 = vpop.xlane.xlu0 %3247
      %v3249 = vsel %vm2882, %v3233, 0.0
      %3250 = vadd.xlane.f32.xlu0 %v3249
      %v3251 = vpop.xlane.xlu0 %3250
      %v3252 = vsel %vm2882, %v3234, 0.0
      %3253 = vadd.xlane.f32.xlu0 %v3252
      %v3254 = vpop.xlane.xlu0 %3253
      %v3255 = vsel %vm2882, %v3235, 0.0
      %3256 = vadd.xlane.f32.xlu0 %v3255
      %v3257 = vpop.xlane.xlu0 %3256
      %v3258 = vsel %vm2882, %v3236, 0.0
      %3259 = vadd.xlane.f32.xlu0 %v3258
      %v3260 = vpop.xlane.xlu0 %3259
      %v3261 = vadd.f32 %v3239, %v3211
      %v3262 = vadd.f32 %v3242, %v3211
      %v3263 = vadd.f32 %v3245, %v3211
      %v3264 = vadd.f32 %v3248, %v3211
      %v3265 = vadd.f32 %v3251, %v3211
      %v3266 = vadd.f32 %v3254, %v3211
      %v3267 = vadd.f32 %v3257, %v3211
      %v3268 = vadd.f32 %v3260, %v3211
      %3277 = vrot.lane.b32.xlu0 %v3261, 127
      %v3278 = vpop.permute.xlu0 %3277
      %3279 = vrot.lane.b32.xlu0 %v3262, 127
      %v3280 = vpop.permute.xlu0 %3279
      %3281 = vrot.lane.b32.xlu0 %v3263, 127
      %v3282 = vpop.permute.xlu0 %3281
      %3283 = vrot.lane.b32.xlu0 %v3264, 127
      %v3284 = vpop.permute.xlu0 %3283
      %3285 = vrot.lane.b32.xlu0 %v3265, 127
      %v3286 = vpop.permute.xlu0 %3285
      %3287 = vrot.lane.b32.xlu0 %v3266, 127
      %v3288 = vpop.permute.xlu0 %3287
      %3289 = vrot.lane.b32.xlu0 %v3267, 127
      %v3290 = vpop.permute.xlu0 %3289
      %3291 = vrot.lane.b32.xlu0 %v3268, 127
      %v3292 = vpop.permute.xlu0 %3291
      %v3301 = vadd.f32 %v3212, %v3278
      %v3302 = vadd.f32 %v3213, %v3280
      %v3303 = vadd.f32 %v3214, %v3282
      %v3304 = vadd.f32 %v3215, %v3284
      %v3305 = vadd.f32 %v3216, %v3286
      %v3306 = vadd.f32 %v3217, %v3288
      %v3307 = vadd.f32 %v3218, %v3290
      %v3308 = vadd.f32 %v3219, %v3292
      %3317 = vset.pattern.permute.xlu0 0
      %3318 = vperm.xlu0 %3317, %v3301
      %v3319 = vpop.permute.xlu0 %3318
      %3320 = vset.pattern.permute.xlu0 0
      %3321 = vperm.xlu0 %3320, %v3302
      %v3322 = vpop.permute.xlu0 %3321
      %3323 = vset.pattern.permute.xlu0 0
      %3324 = vperm.xlu0 %3323, %v3303
      %v3325 = vpop.permute.xlu0 %3324
      %3326 = vset.pattern.permute.xlu0 0
      %3327 = vperm.xlu0 %3326, %v3304
      %v3328 = vpop.permute.xlu0 %3327
      %3329 = vset.pattern.permute.xlu0 0
      %3330 = vperm.xlu0 %3329, %v3305
      %v3331 = vpop.permute.xlu0 %3330
      %3332 = vset.pattern.permute.xlu0 0
      %3333 = vperm.xlu0 %3332, %v3306
      %v3334 = vpop.permute.xlu0 %3333
      %3335 = vset.pattern.permute.xlu0 0
      %3336 = vperm.xlu0 %3335, %v3307
      %v3337 = vpop.permute.xlu0 %3336
      %3338 = vset.pattern.permute.xlu0 0
      %3339 = vperm.xlu0 %3338, %v3308
      %v3340 = vpop.permute.xlu0 %3339
      %v3341 = vlaneseq
      %v3342 = vand.u32 %v3341, 127
      %v3343 = vperm.slane %v3319, %v3342
      %v3344 = vadd.s32 %v3342, 4294967288
      %v3345 = vperm.slane %v3322, %v3344
      %vm3346 = vcmask 130112
      %v3347 = vsel %vm3346, %v3345, %v3343
      %v3348 = vadd.s32 %v3342, 4294967280
      %v3349 = vperm.slane %v3325, %v3348
      %vm3350 = vcmask 195712
      %v3351 = vsel %vm3350, %v3349, %v3347
      %v3352 = vadd.s32 %v3342, 4294967272
      %v3353 = vperm.slane %v3328, %v3352
      %vm3354 = vcmask 261312
      %v3355 = vsel %vm3354, %v3353, %v3351
      %v3356 = vadd.s32 %v3342, 4294967264
      %v3357 = vperm.slane %v3331, %v3356
      %vm3358 = vcmask 326912
      %v3359 = vsel %vm3358, %v3357, %v3355
      %v3360 = vadd.s32 %v3342, 4294967256
      %v3361 = vperm.slane %v3334, %v3360
      %vm3362 = vcmask 392512
      %v3363 = vsel %vm3362, %v3361, %v3359
      %v3364 = vadd.s32 %v3342, 4294967248
      %v3365 = vperm.slane %v3337, %v3364
      %vm3366 = vcmask 458112
      %v3367 = vsel %vm3366, %v3365, %v3363
      %v3368 = vadd.s32 %v3342, 4294967240
      %v3369 = vperm.slane %v3340, %v3368
      %vm3370 = vcmask 523712
      %v3371 = vsel %vm3370, %v3369, %v3367
      %vm3373 = vcmask 516096
      %3374 = vst.msk [vmem:[#allocation3] sm:$0x1] %vm3373, %v3371
    $region45: #{tpu_custom_call.1} parent=1 // pred_fallthru
      _
    // Predicated region
    $region46: #{tpu_custom_call.1} parent=1 // pred_check
      _
    $region47: #{tpu_custom_call.1} parent=1 // pred_check_branch
      %3376 = sbr.rel (0) target = $region49
    $region48: #{tpu_custom_call.1} parent=1 // pred_region
      %3378 = vsyncadd [#allocation4], 0
      %s3380 = sshll.u32 [#allocation3], 4
      %s3381 = int_to_ptr.vmem [resolvable:$true] %s3380
      %s3382 = sshll.u32 %s9, 4
      %s3383 = int_to_ptr.hbm [resolvable:$true] %s3382
      %3385 = dma.vmem_to_hbm [thread:$0]  %s3381, 16, %s3383, [#allocation4]
    $region49: #{tpu_custom_call.1} parent=1 // pred_fallthru
      _
    // Predicated region
    $region50: #{tpu_custom_call.1} parent=1 // pred_check
      _
    $region51: #{tpu_custom_call.1} parent=1 // pred_check_branch
      %3387 = sbr.rel (0) target = $region53
    $region52: #{tpu_custom_call.1} parent=1 // pred_region
      %3389 = dma.done [#allocation4], 16
    $region53: #{tpu_custom_call.1} parent=1 // pred_fallthru
      _
    %3390 = vsyncpa [#allocation4], 1

// kernel: tpu_custom_call.1
$region0: #{tpu_custom_call.1}
  #allocation0 [shape = 'u32[]', space=smem, size = 0x4, offset = 0x4, fixed_abs, tag = 'smem constant byte address 0x4 - core index']
  #allocation1 [shape = 'u32[72,128]{1,0:T(1,128)}', space=vmem, size = 0x9000, scoped, tag = 'internal scratch']
  #allocation2 [shape = 'f32[64,32]{1,0:T(8,128)}', space=vmem, size = 0x8000, scoped, tag = 'scratch operand']
  %s0 = inlined_call_operand.vmem [shape: f32[64,16], index: 0, kind: input, shape index: {}]
  %s1 = inlined_call_operand.vmem [shape: f32[11,32], index: 1, kind: input, shape index: {}]
  %s2 = inlined_call_operand.vmem [shape: f32[16,32], index: 2, kind: input, shape index: {}]
  %s3 = inlined_call_operand.vmem [shape: f32[4,32,32], index: 3, kind: input, shape index: {}]
  %s4 = inlined_call_operand.vmem [shape: f32[4,32,128], index: 4, kind: input, shape index: {}]
  %s5 = inlined_call_operand.vmem [shape: f32[4,128,32], index: 5, kind: input, shape index: {}]
  %s6 = inlined_call_operand.vmem [shape: f32[4,3,128], index: 6, kind: input, shape index: {}]
  %s7 = inlined_call_operand.vmem [shape: f32[32,16], index: 7, kind: input, shape index: {}]
  %s8 = inlined_call_operand.vmem [shape: f32[16,8], index: 8, kind: input, shape index: {}]
  %s9 = inlined_call_operand.vmem [shape: f32[64,1], index: 9, kind: output, shape index: {}]
  %s10 = sld [smem:[#allocation0]]
  $region54: #{tpu_custom_call.1} parent=0
    _
  %s12 = ssub.s32 1, %s10
  %s13 = scalar_select 0, %s12, %s10
  // Predicated region
  $region2: #{tpu_custom_call.1} parent=0 // pred_check
    _
  $region3: #{tpu_custom_call.1} parent=0 // pred_check_branch
    %15 = sbr.rel (0) target = $region5
  $region4: #{tpu_custom_call.1} parent=0 // pred_region
    _
  $region5: #{tpu_custom_call.1} parent=0 // pred_fallthru
    _
  // Predicated region
  $region6: #{tpu_custom_call.1} parent=0 // pred_check
    _
  $region7: #{tpu_custom_call.1} parent=0 // pred_check_branch
    %17 = sbr.rel (0) target = $region9
  $region8: #{tpu_custom_call.1} parent=0 // pred_region
    _
  $region9: #{tpu_custom_call.1} parent=0 // pred_fallthru
    _
  // Predicated region
  $region10: #{tpu_custom_call.1} parent=0 // pred_check
    _
  $region11: #{tpu_custom_call.1} parent=0 // pred_check_branch
    %19 = sbr.rel (0) target = $region13
  $region12: #{tpu_custom_call.1} parent=0 // pred_region
    _
  $region13: #{tpu_custom_call.1} parent=0 // pred_fallthru
    _
  // Predicated region
  $region14: #{tpu_custom_call.1} parent=0 // pred_check
    _
  $region15: #{tpu_custom_call.1} parent=0 // pred_check_branch
    %21 = sbr.rel (0) target = $region17
  $region16: #{tpu_custom_call.1} parent=0 // pred_region
    _
  $region17: #{tpu_custom_call.1} parent=0 // pred_fallthru
    _
  // Predicated region
  $region18: #{tpu_custom_call.1} parent=0 // pred_check
    _
  $region19: #{tpu_custom_call.1} parent=0 // pred_check_branch
    %23 = sbr.rel (0) target = $region21
  $region20: #{tpu_custom_call.1} parent=0 // pred_region
    _
  $region21: #{tpu_custom_call.1} parent=0 // pred_fallthru
    _
  // Predicated region
  $region22: #{tpu_custom_call.1} parent=0 // pred_check
    _
  $region23: #{tpu_custom_call.1} parent=0 // pred_check_branch
    %25 = sbr.rel (0) target = $region25
  $region24: #{tpu_custom_call.1} parent=0 // pred_region
    _
  $region25: #{tpu_custom_call.1} parent=0 // pred_fallthru
    _
  // Predicated region
  $region26: #{tpu_custom_call.1} parent=0 // pred_check
    _
  $region27: #{tpu_custom_call.1} parent=0 // pred_check_branch
    %27 = sbr.rel (0) target = $region29
  $region28: #{tpu_custom_call.1} parent=0 // pred_region
    _
  $region29: #{tpu_custom_call.1} parent=0 // pred_fallthru
    _
  // Predicated region
  $region30: #{tpu_custom_call.1} parent=0 // pred_check
    _
  $region31: #{tpu_custom_call.1} parent=0 // pred_check_branch
    %29 = sbr.rel (0) target = $region33
  $region32: #{tpu_custom_call.1} parent=0 // pred_region
    _
  $region33: #{tpu_custom_call.1} parent=0 // pred_fallthru
    _
  // Predicated region
  $region34: #{tpu_custom_call.1} parent=0 // pred_check
    _
  $region35: #{tpu_custom_call.1} parent=0 // pred_check_branch
    %31 = sbr.rel (0) target = $region37
  $region36: #{tpu_custom_call.1} parent=0 // pred_region
    _
  $region37: #{tpu_custom_call.1} parent=0 // pred_fallthru
    _
  %v32 = vld [vmem:[%s1] sm:$0xff]
  %v33 = vld [vmem:[%s1 + $0x8] sm:$0x7]
  %p34 = scmp.eq.s32.totalorder 0, 0
  // Predicated region
  $region38: #{tpu_custom_call.1} parent=0 // pred_check
    %p35 = pneg %p34
  $region39: #{tpu_custom_call.1} parent=0 // pred_check_branch
    %37 = sbr.rel (%p35) target = $region41
  $region40: #{tpu_custom_call.1} parent=0 // pred_region
    %v38 = vld [vmem:[%s0] sm:$0xff]
    %v39 = vld [vmem:[%s0 + $0x8] sm:$0xff]
    %v40 = vld [vmem:[%s0 + $0x10] sm:$0xff]
    %v41 = vld [vmem:[%s0 + $0x18] sm:$0xff]
    %v42 = vld [vmem:[%s0 + $0x20] sm:$0xff]
    %v43 = vld [vmem:[%s0 + $0x28] sm:$0xff]
    %v44 = vld [vmem:[%s0 + $0x30] sm:$0xff]
    %v45 = vld [vmem:[%s0 + $0x38] sm:$0xff]
    %v46 = vld [vmem:[%s2] sm:$0xff]
    %v47 = vld [vmem:[%s2 + $0x8] sm:$0xff]
    %v48 = vperm.slane %v32, 0
    %vm49 = vcmask 130048
    %v51 = vsel %vm49, %v38, 0
    %v54 = vsel %vm49, %v39, 0
    %v57 = vsel %vm49, %v40, 0
    %v60 = vsel %vm49, %v41, 0
    %v63 = vsel %vm49, %v42, 0
    %v66 = vsel %vm49, %v43, 0
    %v69 = vsel %vm49, %v44, 0
    %v72 = vsel %vm49, %v45, 0
    %74 = vmatpush.msra.mxu0 0.0
    %75 = vmatpush.msra.mxu0 0.0
    %76 = vmatpush.msra.mxu0 0.0
    %77 = vmatpush.msra.mxu0 0.0
    %78 = vmatpush.msra.mxu0 0.0
    %79 = vmatpush.msra.mxu0 0.0
    %80 = vmatpush.msra.mxu0 0.0
    %81 = vmatpush.msra.mxu0 0.0
    %82 = vmatpush.msra.mxu0 0.0
    %83 = vmatpush.msra.mxu0 0.0
    %84 = vmatpush.msra.mxu0 0.0
    %85 = vmatpush.msra.mxu0 0.0
    %86 = vmatpush.msra.mxu0 0.0
    %87 = vmatpush.msra.mxu0 0.0
    %88 = vmatpush.msra.mxu0 %v47
    %89 = vmatpush.msra.mxu0 %v46
    %90 = vmatmul.f32.gmra.mxu0 %v51
    %v91 = vpop.f32.mrf.mxu0
    %v92 = vadd.f32 %v48, %v91
    %93 = vmatmul.f32.gmra.mxu0 %v54
    %v94 = vpop.f32.mrf.mxu0
    %v95 = vadd.f32 %v48, %v94
    %96 = vmatmul.f32.gmra.mxu0 %v57
    %v97 = vpop.f32.mrf.mxu0
    %v98 = vadd.f32 %v48, %v97
    %99 = vmatmul.f32.gmra.mxu0 %v60
    %v100 = vpop.f32.mrf.mxu0
    %v101 = vadd.f32 %v48, %v100
    %102 = vmatmul.f32.gmra.mxu0 %v63
    %v103 = vpop.f32.mrf.mxu0
    %v104 = vadd.f32 %v48, %v103
    %105 = vmatmul.f32.gmra.mxu0 %v66
    %v106 = vpop.f32.mrf.mxu0
    %v107 = vadd.f32 %v48, %v106
    %108 = vmatmul.f32.gmra.mxu0 %v69
    %v109 = vpop.f32.mrf.mxu0
    %v110 = vadd.f32 %v48, %v109
    %111 = vmatmul.f32.gmra.mxu0 %v72
    %v112 = vpop.f32.mrf.mxu0
    %v113 = vadd.f32 %v48, %v112
    %114 = vdwg.mxu0
    %vm115 = vcmask 261120
    %v116 = vsel %vm115, %v92, 0.0
    %117 = vadd.xlane.f32.xlu0 %v116
    %v118 = vpop.xlane.xlu0 %117
    %v119 = vsel %vm115, %v95, 0.0
    %120 = vadd.xlane.f32.xlu0 %v119
    %v121 = vpop.xlane.xlu0 %120
    %v122 = vsel %vm115, %v98, 0.0
    %123 = vadd.xlane.f32.xlu0 %v122
    %v124 = vpop.xlane.xlu0 %123
    %v125 = vsel %vm115, %v101, 0.0
    %126 = vadd.xlane.f32.xlu0 %v125
    %v127 = vpop.xlane.xlu0 %126
    %v128 = vsel %vm115, %v104, 0.0
    %129 = vadd.xlane.f32.xlu0 %v128
    %v130 = vpop.xlane.xlu0 %129
    %v131 = vsel %vm115, %v107, 0.0
    %132 = vadd.xlane.f32.xlu0 %v131
    %v133 = vpop.xlane.xlu0 %132
    %v134 = vsel %vm115, %v110, 0.0
    %135 = vadd.xlane.f32.xlu0 %v134
    %v136 = vpop.xlane.xlu0 %135
    %v137 = vsel %vm115, %v113, 0.0
    %138 = vadd.xlane.f32.xlu0 %v137
    %v139 = vpop.xlane.xlu0 %138
    %v140 = vmul.f32 %v92, %v92
    %v141 = vmul.f32 %v95, %v95
    %v142 = vmul.f32 %v98, %v98
    %v143 = vmul.f32 %v101, %v101
    %v144 = vmul.f32 %v104, %v104
    %v145 = vmul.f32 %v107, %v107
    %v146 = vmul.f32 %v110, %v110
    %v147 = vmul.f32 %v113, %v113
    %v148 = vsel %vm115, %v140, 0.0
    %149 = vadd.xlane.f32.xlu0 %v148
    %v150 = vpop.xlane.xlu0 %149
    %v151 = vsel %vm115, %v141, 0.0
    %152 = vadd.xlane.f32.xlu0 %v151
    %v153 = vpop.xlane.xlu0 %152
    %v154 = vsel %vm115, %v142, 0.0
    %155 = vadd.xlane.f32.xlu0 %v154
    %v156 = vpop.xlane.xlu0 %155
    %v157 = vsel %vm115, %v143, 0.0
    %158 = vadd.xlane.f32.xlu0 %v157
    %v159 = vpop.xlane.xlu0 %158
    %v160 = vsel %vm115, %v144, 0.0
    %161 = vadd.xlane.f32.xlu0 %v160
    %v162 = vpop.xlane.xlu0 %161
    %v163 = vsel %vm115, %v145, 0.0
    %164 = vadd.xlane.f32.xlu0 %v163
    %v165 = vpop.xlane.xlu0 %164
    %v166 = vsel %vm115, %v146, 0.0
    %167 = vadd.xlane.f32.xlu0 %v166
    %v168 = vpop.xlane.xlu0 %167
    %v169 = vsel %vm115, %v147, 0.0
    %170 = vadd.xlane.f32.xlu0 %v169
    %v171 = vpop.xlane.xlu0 %170
    %v172 = vmul.f32 %v118, 0.03125
    %v173 = vmul.f32 %v121, 0.03125
    %v174 = vmul.f32 %v124, 0.03125
    %v175 = vmul.f32 %v127, 0.03125
    %v176 = vmul.f32 %v130, 0.03125
    %v177 = vmul.f32 %v133, 0.03125
    %v178 = vmul.f32 %v136, 0.03125
    %v179 = vmul.f32 %v139, 0.03125
    %v180 = vmul.f32 %v150, 0.03125
    %v181 = vmul.f32 %v153, 0.03125
    %v182 = vmul.f32 %v156, 0.03125
    %v183 = vmul.f32 %v159, 0.03125
    %v184 = vmul.f32 %v162, 0.03125
    %v185 = vmul.f32 %v165, 0.03125
    %v186 = vmul.f32 %v168, 0.03125
    %v187 = vmul.f32 %v171, 0.03125
    %v188 = vmul.f32 %v172, %v172
    %v189 = vmul.f32 %v173, %v173
    %v190 = vmul.f32 %v174, %v174
    %v191 = vmul.f32 %v175, %v175
    %v192 = vmul.f32 %v176, %v176
    %v193 = vmul.f32 %v177, %v177
    %v194 = vmul.f32 %v178, %v178
    %v195 = vmul.f32 %v179, %v179
    %v196 = vsub.f32 %v180, %v188
    %v197 = vsub.f32 %v181, %v189
    %v198 = vsub.f32 %v182, %v190
    %v199 = vsub.f32 %v183, %v191
    %v200 = vsub.f32 %v184, %v192
    %v201 = vsub.f32 %v185, %v193
    %v202 = vsub.f32 %v186, %v194
    %v203 = vsub.f32 %v187, %v195
    %v204 = vsub.f32 %v92, %v172
    %v205 = vsub.f32 %v95, %v173
    %v206 = vsub.f32 %v98, %v174
    %v207 = vsub.f32 %v101, %v175
    %v208 = vsub.f32 %v104, %v176
    %v209 = vsub.f32 %v107, %v177
    %v210 = vsub.f32 %v110, %v178
    %v211 = vsub.f32 %v113, %v179
    %v212 = vadd.f32 %v196, 1e-05
    %v213 = vadd.f32 %v197, 1e-05
    %v214 = vadd.f32 %v198, 1e-05
    %v215 = vadd.f32 %v199, 1e-05
    %v216 = vadd.f32 %v200, 1e-05
    %v217 = vadd.f32 %v201, 1e-05
    %v218 = vadd.f32 %v202, 1e-05
    %v219 = vadd.f32 %v203, 1e-05
    %v220 = vrsqrt.pop %v212
    %v221 = vmul.f32 %v220, %v212
    %v222 = vmul.f32 %v221, %v220
    %v223 = vmul.f32 0.5, %v222
    %v224 = vsub.f32 1.5, %v223
    %v225 = vmul.f32 %v220, %v224
    %vm226 = vweird.f32 %v212
    %vm227 = vweird.f32 %v220
    %vm228 = vmor %vm226, %vm227
    %v229 = vsel %vm228, %v220, %v225
    %v230 = vrsqrt.pop %v213
    %v231 = vmul.f32 %v230, %v213
    %v232 = vmul.f32 %v231, %v230
    %v233 = vmul.f32 0.5, %v232
    %v234 = vsub.f32 1.5, %v233
    %v235 = vmul.f32 %v230, %v234
    %vm236 = vweird.f32 %v213
    %vm237 = vweird.f32 %v230
    %vm238 = vmor %vm236, %vm237
    %v239 = vsel %vm238, %v230, %v235
    %v240 = vrsqrt.pop %v214
    %v241 = vmul.f32 %v240, %v214
    %v242 = vmul.f32 %v241, %v240
    %v243 = vmul.f32 0.5, %v242
    %v244 = vsub.f32 1.5, %v243
    %v245 = vmul.f32 %v240, %v244
    %vm246 = vweird.f32 %v214
    %vm247 = vweird.f32 %v240
    %vm248 = vmor %vm246, %vm247
    %v249 = vsel %vm248, %v240, %v245
    %v250 = vrsqrt.pop %v215
    %v251 = vmul.f32 %v250, %v215
    %v252 = vmul.f32 %v251, %v250
    %v253 = vmul.f32 0.5, %v252
    %v254 = vsub.f32 1.5, %v253
    %v255 = vmul.f32 %v250, %v254
    %vm256 = vweird.f32 %v215
    %vm257 = vweird.f32 %v250
    %vm258 = vmor %vm256, %vm257
    %v259 = vsel %vm258, %v250, %v255
    %v260 = vrsqrt.pop %v216
    %v261 = vmul.f32 %v260, %v216
    %v262 = vmul.f32 %v261, %v260
    %v263 = vmul.f32 0.5, %v262
    %v264 = vsub.f32 1.5, %v263
    %v265 = vmul.f32 %v260, %v264
    %vm266 = vweird.f32 %v216
    %vm267 = vweird.f32 %v260
    %vm268 = vmor %vm266, %vm267
    %v269 = vsel %vm268, %v260, %v265
    %v270 = vrsqrt.pop %v217
    %v271 = vmul.f32 %v270, %v217
    %v272 = vmul.f32 %v271, %v270
    %v273 = vmul.f32 0.5, %v272
    %v274 = vsub.f32 1.5, %v273
    %v275 = vmul.f32 %v270, %v274
    %vm276 = vweird.f32 %v217
    %vm277 = vweird.f32 %v270
    %vm278 = vmor %vm276, %vm277
    %v279 = vsel %vm278, %v270, %v275
    %v280 = vrsqrt.pop %v218
    %v281 = vmul.f32 %v280, %v218
    %v282 = vmul.f32 %v281, %v280
    %v283 = vmul.f32 0.5, %v282
    %v284 = vsub.f32 1.5, %v283
    %v285 = vmul.f32 %v280, %v284
    %vm286 = vweird.f32 %v218
    %vm287 = vweird.f32 %v280
    %vm288 = vmor %vm286, %vm287
    %v289 = vsel %vm288, %v280, %v285
    %v290 = vrsqrt.pop %v219
    %v291 = vmul.f32 %v290, %v219
    %v292 = vmul.f32 %v291, %v290
    %v293 = vmul.f32 0.5, %v292
    %v294 = vsub.f32 1.5, %v293
    %v295 = vmul.f32 %v290, %v294
    %vm296 = vweird.f32 %v219
    %vm297 = vweird.f32 %v290
    %vm298 = vmor %vm296, %vm297
    %v299 = vsel %vm298, %v290, %v295
    %v300 = vmul.f32 %v204, %v229
    %v301 = vmul.f32 %v205, %v239
    %v302 = vmul.f32 %v206, %v249
    %v303 = vmul.f32 %v207, %v259
    %v304 = vmul.f32 %v208, %v269
    %v305 = vmul.f32 %v209, %v279
    %v306 = vmul.f32 %v210, %v289
    %v307 = vmul.f32 %v211, %v299
    %v308 = vperm.slane %v32, 1
    %v309 = vmul.f32 %v300, %v308
    %v310 = vmul.f32 %v301, %v308
    %v311 = vmul.f32 %v302, %v308
    %v312 = vmul.f32 %v303, %v308
    %v313 = vmul.f32 %v304, %v308
    %v314 = vmul.f32 %v305, %v308
    %v315 = vmul.f32 %v306, %v308
    %v316 = vmul.f32 %v307, %v308
    %v317 = vperm.slane %v32, 2
    %v318 = vadd.f32 %v309, %v317
    %v319 = vadd.f32 %v310, %v317
    %v320 = vadd.f32 %v311, %v317
    %v321 = vadd.f32 %v312, %v317
    %v322 = vadd.f32 %v313, %v317
    %v323 = vadd.f32 %v314, %v317
    %v324 = vadd.f32 %v315, %v317
    %v325 = vadd.f32 %v316, %v317
    %v326 = vmax.f32 %v318, 0.0
    %v327 = vmax.f32 %v319, 0.0
    %v328 = vmax.f32 %v320, 0.0
    %v329 = vmax.f32 %v321, 0.0
    %v330 = vmax.f32 %v322, 0.0
    %v331 = vmax.f32 %v323, 0.0
    %v332 = vmax.f32 %v324, 0.0
    %v333 = vmax.f32 %v325, 0.0
    %v334 = vperm.slane %v32, 3
    %v335 = vadd.f32 %v326, %v334
    %v336 = vadd.f32 %v327, %v334
    %v337 = vadd.f32 %v328, %v334
    %v338 = vadd.f32 %v329, %v334
    %v339 = vadd.f32 %v330, %v334
    %v340 = vadd.f32 %v331, %v334
    %v341 = vadd.f32 %v332, %v334
    %v342 = vadd.f32 %v333, %v334
    %343 = vst.msk [vmem:[#allocation2] sm:$0xff] %vm115, %v335
    %344 = vst.msk [vmem:[#allocation2 + $0x8] sm:$0xff] %vm115, %v336
    %345 = vst.msk [vmem:[#allocation2 + $0x10] sm:$0xff] %vm115, %v337
    %346 = vst.msk [vmem:[#allocation2 + $0x18] sm:$0xff] %vm115, %v338
    %347 = vst.msk [vmem:[#allocation2 + $0x20] sm:$0xff] %vm115, %v339
    %348 = vst.msk [vmem:[#allocation2 + $0x28] sm:$0xff] %vm115, %v340
    %349 = vst.msk [vmem:[#allocation2 + $0x30] sm:$0xff] %vm115, %v341
    %350 = vst.msk [vmem:[#allocation2 + $0x38] sm:$0xff] %vm115, %v342
  $region41: #{tpu_custom_call.1} parent=0 // pred_fallthru
    _
  %v351 = vld [vmem:[#allocation2] sm:$0xff]
  %v352 = vld [vmem:[#allocation2 + $0x8] sm:$0xff]
  %v353 = vld [vmem:[#allocation2 + $0x10] sm:$0xff]
  %v354 = vld [vmem:[#allocation2 + $0x18] sm:$0xff]
  %v355 = vld [vmem:[#allocation2 + $0x20] sm:$0xff]
  %v356 = vld [vmem:[#allocation2 + $0x28] sm:$0xff]
  %v357 = vld [vmem:[#allocation2 + $0x30] sm:$0xff]
  %v358 = vld [vmem:[#allocation2 + $0x38] sm:$0xff]
  %v359 = vld [vmem:[%s3] sm:$0xff]
  %v360 = vld [vmem:[%s3 + $0x8] sm:$0xff]
  %v361 = vld [vmem:[%s3 + $0x10] sm:$0xff]
  %v362 = vld [vmem:[%s3 + $0x18] sm:$0xff]
  %v363 = vld [vmem:[%s4] sm:$0xff]
  %v364 = vld [vmem:[%s4 + $0x8] sm:$0xff]
  %v365 = vld [vmem:[%s4 + $0x10] sm:$0xff]
  %v366 = vld [vmem:[%s4 + $0x18] sm:$0xff]
  %v367 = vld [vmem:[%s5] sm:$0xff]
  %v368 = vld [vmem:[%s5 + $0x8] sm:$0xff]
  %v369 = vld [vmem:[%s5 + $0x10] sm:$0xff]
  %v370 = vld [vmem:[%s5 + $0x18] sm:$0xff]
  %v371 = vld [vmem:[%s5 + $0x20] sm:$0xff]
  %v372 = vld [vmem:[%s5 + $0x28] sm:$0xff]
  %v373 = vld [vmem:[%s5 + $0x30] sm:$0xff]
  %v374 = vld [vmem:[%s5 + $0x38] sm:$0xff]
  %v375 = vld [vmem:[%s5 + $0x40] sm:$0xff]
  %v376 = vld [vmem:[%s5 + $0x48] sm:$0xff]
  %v377 = vld [vmem:[%s5 + $0x50] sm:$0xff]
  %v378 = vld [vmem:[%s5 + $0x58] sm:$0xff]
  %v379 = vld [vmem:[%s5 + $0x60] sm:$0xff]
  %v380 = vld [vmem:[%s5 + $0x68] sm:$0xff]
  %v381 = vld [vmem:[%s5 + $0x70] sm:$0xff]
  %v382 = vld [vmem:[%s5 + $0x78] sm:$0xff]
  %v383 = vld [vmem:[%s6] sm:$0x7]
  %vm384 = vcmask 261120
  %v385 = vsel %vm384, %v351, 0.0
  %386 = vadd.xlane.f32.xlu0 %v385
  %v387 = vpop.xlane.xlu0 %386
  %v388 = vsel %vm384, %v352, 0.0
  %389 = vadd.xlane.f32.xlu0 %v388
  %v390 = vpop.xlane.xlu0 %389
  %v391 = vsel %vm384, %v353, 0.0
  %392 = vadd.xlane.f32.xlu0 %v391
  %v393 = vpop.xlane.xlu0 %392
  %v394 = vsel %vm384, %v354, 0.0
  %395 = vadd.xlane.f32.xlu0 %v394
  %v396 = vpop.xlane.xlu0 %395
  %v397 = vsel %vm384, %v355, 0.0
  %398 = vadd.xlane.f32.xlu0 %v397
  %v399 = vpop.xlane.xlu0 %398
  %v400 = vsel %vm384, %v356, 0.0
  %401 = vadd.xlane.f32.xlu0 %v400
  %v402 = vpop.xlane.xlu0 %401
  %v403 = vsel %vm384, %v357, 0.0
  %404 = vadd.xlane.f32.xlu0 %v403
  %v405 = vpop.xlane.xlu0 %404
  %v406 = vsel %vm384, %v358, 0.0
  %407 = vadd.xlane.f32.xlu0 %v406
  %v408 = vpop.xlane.xlu0 %407
  %v409 = vmul.f32 %v351, %v351
  %v410 = vmul.f32 %v352, %v352
  %v411 = vmul.f32 %v353, %v353
  %v412 = vmul.f32 %v354, %v354
  %v413 = vmul.f32 %v355, %v355
  %v414 = vmul.f32 %v356, %v356
  %v415 = vmul.f32 %v357, %v357
  %v416 = vmul.f32 %v358, %v358
  %v417 = vsel %vm384, %v409, 0.0
  %418 = vadd.xlane.f32.xlu0 %v417
  %v419 = vpop.xlane.xlu0 %418
  %v420 = vsel %vm384, %v410, 0.0
  %421 = vadd.xlane.f32.xlu0 %v420
  %v422 = vpop.xlane.xlu0 %421
  %v423 = vsel %vm384, %v411, 0.0
  %424 = vadd.xlane.f32.xlu0 %v423
  %v425 = vpop.xlane.xlu0 %424
  %v426 = vsel %vm384, %v412, 0.0
  %427 = vadd.xlane.f32.xlu0 %v426
  %v428 = vpop.xlane.xlu0 %427
  %v429 = vsel %vm384, %v413, 0.0
  %430 = vadd.xlane.f32.xlu0 %v429
  %v431 = vpop.xlane.xlu0 %430
  %v432 = vsel %vm384, %v414, 0.0
  %433 = vadd.xlane.f32.xlu0 %v432
  %v434 = vpop.xlane.xlu0 %433
  %v435 = vsel %vm384, %v415, 0.0
  %436 = vadd.xlane.f32.xlu0 %v435
  %v437 = vpop.xlane.xlu0 %436
  %v438 = vsel %vm384, %v416, 0.0
  %439 = vadd.xlane.f32.xlu0 %v438
  %v440 = vpop.xlane.xlu0 %439
  %v441 = vmul.f32 %v387, 0.03125
  %v442 = vmul.f32 %v390, 0.03125
  %v443 = vmul.f32 %v393, 0.03125
  %v444 = vmul.f32 %v396, 0.03125
  %v445 = vmul.f32 %v399, 0.03125
  %v446 = vmul.f32 %v402, 0.03125
  %v447 = vmul.f32 %v405, 0.03125
  %v448 = vmul.f32 %v408, 0.03125
  %v449 = vmul.f32 %v419, 0.03125
  %v450 = vmul.f32 %v422, 0.03125
  %v451 = vmul.f32 %v425, 0.03125
  %v452 = vmul.f32 %v428, 0.03125
  %v453 = vmul.f32 %v431, 0.03125
  %v454 = vmul.f32 %v434, 0.03125
  %v455 = vmul.f32 %v437, 0.03125
  %v456 = vmul.f32 %v440, 0.03125
  %v457 = vmul.f32 %v441, %v441
  %v458 = vmul.f32 %v442, %v442
  %v459 = vmul.f32 %v443, %v443
  %v460 = vmul.f32 %v444, %v444
  %v461 = vmul.f32 %v445, %v445
  %v462 = vmul.f32 %v446, %v446
  %v463 = vmul.f32 %v447, %v447
  %v464 = vmul.f32 %v448, %v448
  %v465 = vsub.f32 %v449, %v457
  %v466 = vsub.f32 %v450, %v458
  %v467 = vsub.f32 %v451, %v459
  %v468 = vsub.f32 %v452, %v460
  %v469 = vsub.f32 %v453, %v461
  %v470 = vsub.f32 %v454, %v462
  %v471 = vsub.f32 %v455, %v463
  %v472 = vsub.f32 %v456, %v464
  %v473 = vsub.f32 %v351, %v441
  %v474 = vsub.f32 %v352, %v442
  %v475 = vsub.f32 %v353, %v443
  %v476 = vsub.f32 %v354, %v444
  %v477 = vsub.f32 %v355, %v445
  %v478 = vsub.f32 %v356, %v446
  %v479 = vsub.f32 %v357, %v447
  %v480 = vsub.f32 %v358, %v448
  %v481 = vadd.f32 %v465, 1e-05
  %v482 = vadd.f32 %v466, 1e-05
  %v483 = vadd.f32 %v467, 1e-05
  %v484 = vadd.f32 %v468, 1e-05
  %v485 = vadd.f32 %v469, 1e-05
  %v486 = vadd.f32 %v470, 1e-05
  %v487 = vadd.f32 %v471, 1e-05
  %v488 = vadd.f32 %v472, 1e-05
  %v489 = vrsqrt.pop %v481
  %v490 = vmul.f32 %v489, %v481
  %v491 = vmul.f32 %v490, %v489
  %v492 = vmul.f32 0.5, %v491
  %v493 = vsub.f32 1.5, %v492
  %v494 = vmul.f32 %v489, %v493
  %vm495 = vweird.f32 %v481
  %vm496 = vweird.f32 %v489
  %vm497 = vmor %vm495, %vm496
  %v498 = vsel %vm497, %v489, %v494
  %v499 = vrsqrt.pop %v482
  %v500 = vmul.f32 %v499, %v482
  %v501 = vmul.f32 %v500, %v499
  %v502 = vmul.f32 0.5, %v501
  %v503 = vsub.f32 1.5, %v502
  %v504 = vmul.f32 %v499, %v503
  %vm505 = vweird.f32 %v482
  %vm506 = vweird.f32 %v499
  %vm507 = vmor %vm505, %vm506
  %v508 = vsel %vm507, %v499, %v504
  %v509 = vrsqrt.pop %v483
  %v510 = vmul.f32 %v509, %v483
  %v511 = vmul.f32 %v510, %v509
  %v512 = vmul.f32 0.5, %v511
  %v513 = vsub.f32 1.5, %v512
  %v514 = vmul.f32 %v509, %v513
  %vm515 = vweird.f32 %v483
  %vm516 = vweird.f32 %v509
  %vm517 = vmor %vm515, %vm516
  %v518 = vsel %vm517, %v509, %v514
  %v519 = vrsqrt.pop %v484
  %v520 = vmul.f32 %v519, %v484
  %v521 = vmul.f32 %v520, %v519
  %v522 = vmul.f32 0.5, %v521
  %v523 = vsub.f32 1.5, %v522
  %v524 = vmul.f32 %v519, %v523
  %vm525 = vweird.f32 %v484
  %vm526 = vweird.f32 %v519
  %vm527 = vmor %vm525, %vm526
  %v528 = vsel %vm527, %v519, %v524
  %v529 = vrsqrt.pop %v485
  %v530 = vmul.f32 %v529, %v485
  %v531 = vmul.f32 %v530, %v529
  %v532 = vmul.f32 0.5, %v531
  %v533 = vsub.f32 1.5, %v532
  %v534 = vmul.f32 %v529, %v533
  %vm535 = vweird.f32 %v485
  %vm536 = vweird.f32 %v529
  %vm537 = vmor %vm535, %vm536
  %v538 = vsel %vm537, %v529, %v534
  %v539 = vrsqrt.pop %v486
  %v540 = vmul.f32 %v539, %v486
  %v541 = vmul.f32 %v540, %v539
  %v542 = vmul.f32 0.5, %v541
  %v543 = vsub.f32 1.5, %v542
  %v544 = vmul.f32 %v539, %v543
  %vm545 = vweird.f32 %v486
  %vm546 = vweird.f32 %v539
  %vm547 = vmor %vm545, %vm546
  %v548 = vsel %vm547, %v539, %v544
  %v549 = vrsqrt.pop %v487
  %v550 = vmul.f32 %v549, %v487
  %v551 = vmul.f32 %v550, %v549
  %v552 = vmul.f32 0.5, %v551
  %v553 = vsub.f32 1.5, %v552
  %v554 = vmul.f32 %v549, %v553
  %vm555 = vweird.f32 %v487
  %vm556 = vweird.f32 %v549
  %vm557 = vmor %vm555, %vm556
  %v558 = vsel %vm557, %v549, %v554
  %v559 = vrsqrt.pop %v488
  %v560 = vmul.f32 %v559, %v488
  %v561 = vmul.f32 %v560, %v559
  %v562 = vmul.f32 0.5, %v561
  %v563 = vsub.f32 1.5, %v562
  %v564 = vmul.f32 %v559, %v563
  %vm565 = vweird.f32 %v488
  %vm566 = vweird.f32 %v559
  %vm567 = vmor %vm565, %vm566
  %v568 = vsel %vm567, %v559, %v564
  %v569 = vmul.f32 %v473, %v498
  %v570 = vmul.f32 %v474, %v508
  %v571 = vmul.f32 %v475, %v518
  %v572 = vmul.f32 %v476, %v528
  %v573 = vmul.f32 %v477, %v538
  %v574 = vmul.f32 %v478, %v548
  %v575 = vmul.f32 %v479, %v558
  %v576 = vmul.f32 %v480, %v568
  %v577 = vperm.slane %v383, 0
  %v579 = vsel %vm384, %v569, 0
  %v582 = vsel %vm384, %v570, 0
  %v585 = vsel %vm384, %v571, 0
  %v588 = vsel %vm384, %v572, 0
  %v591 = vsel %vm384, %v573, 0
  %v594 = vsel %vm384, %v574, 0
  %v597 = vsel %vm384, %v575, 0
  %v600 = vsel %vm384, %v576, 0
  %602 = vmatpush.msra.mxu0 0.0
  %603 = vmatpush.msra.mxu0 0.0
  %604 = vmatpush.msra.mxu0 0.0
  %605 = vmatpush.msra.mxu0 0.0
  %606 = vmatpush.msra.mxu0 0.0
  %607 = vmatpush.msra.mxu0 0.0
  %608 = vmatpush.msra.mxu0 0.0
  %609 = vmatpush.msra.mxu0 0.0
  %610 = vmatpush.msra.mxu0 0.0
  %611 = vmatpush.msra.mxu0 0.0
  %612 = vmatpush.msra.mxu0 0.0
  %613 = vmatpush.msra.mxu0 0.0
  %614 = vmatpush.msra.mxu0 %v362
  %615 = vmatpush.msra.mxu0 %v361
  %616 = vmatpush.msra.mxu0 %v360
  %617 = vmatpush.msra.mxu0 %v359
  %618 = vmatmul.f32.gmra.mxu0 %v579
  %v619 = vpop.f32.mrf.mxu0
  %v620 = vadd.f32 %v577, %v619
  %621 = vmatmul.f32.gmra.mxu0 %v582
  %v622 = vpop.f32.mrf.mxu0
  %v623 = vadd.f32 %v577, %v622
  %624 = vmatmul.f32.gmra.mxu0 %v585
  %v625 = vpop.f32.mrf.mxu0
  %v626 = vadd.f32 %v577, %v625
  %627 = vmatmul.f32.gmra.mxu0 %v588
  %v628 = vpop.f32.mrf.mxu0
  %v629 = vadd.f32 %v577, %v628
  %630 = vmatmul.f32.gmra.mxu0 %v591
  %v631 = vpop.f32.mrf.mxu0
  %v632 = vadd.f32 %v577, %v631
  %633 = vmatmul.f32.gmra.mxu0 %v594
  %v634 = vpop.f32.mrf.mxu0
  %v635 = vadd.f32 %v577, %v634
  %636 = vmatmul.f32.gmra.mxu0 %v597
  %v637 = vpop.f32.mrf.mxu0
  %v638 = vadd.f32 %v577, %v637
  %639 = vmatmul.f32.gmra.mxu0 %v600
  %v640 = vpop.f32.mrf.mxu0
  %v641 = vadd.f32 %v577, %v640
  %642 = vdwg.mxu0
  %v643 = vadd.f32 %v351, %v620
  %v644 = vadd.f32 %v352, %v623
  %v645 = vadd.f32 %v353, %v626
  %v646 = vadd.f32 %v354, %v629
  %v647 = vadd.f32 %v355, %v632
  %v648 = vadd.f32 %v356, %v635
  %v649 = vadd.f32 %v357, %v638
  %v650 = vadd.f32 %v358, %v641
  %v651 = vsel %vm384, %v643, 0.0
  %652 = vadd.xlane.f32.xlu0 %v651
  %v653 = vpop.xlane.xlu0 %652
  %v654 = vsel %vm384, %v644, 0.0
  %655 = vadd.xlane.f32.xlu0 %v654
  %v656 = vpop.xlane.xlu0 %655
  %v657 = vsel %vm384, %v645, 0.0
  %658 = vadd.xlane.f32.xlu0 %v657
  %v659 = vpop.xlane.xlu0 %658
  %v660 = vsel %vm384, %v646, 0.0
  %661 = vadd.xlane.f32.xlu0 %v660
  %v662 = vpop.xlane.xlu0 %661
  %v663 = vsel %vm384, %v647, 0.0
  %664 = vadd.xlane.f32.xlu0 %v663
  %v665 = vpop.xlane.xlu0 %664
  %v666 = vsel %vm384, %v648, 0.0
  %667 = vadd.xlane.f32.xlu0 %v666
  %v668 = vpop.xlane.xlu0 %667
  %v669 = vsel %vm384, %v649, 0.0
  %670 = vadd.xlane.f32.xlu0 %v669
  %v671 = vpop.xlane.xlu0 %670
  %v672 = vsel %vm384, %v650, 0.0
  %673 = vadd.xlane.f32.xlu0 %v672
  %v674 = vpop.xlane.xlu0 %673
  %v675 = vmul.f32 %v643, %v643
  %v676 = vmul.f32 %v644, %v644
  %v677 = vmul.f32 %v645, %v645
  %v678 = vmul.f32 %v646, %v646
  %v679 = vmul.f32 %v647, %v647
  %v680 = vmul.f32 %v648, %v648
  %v681 = vmul.f32 %v649, %v649
  %v682 = vmul.f32 %v650, %v650
  %v683 = vsel %vm384, %v675, 0.0
  %684 = vadd.xlane.f32.xlu0 %v683
  %v685 = vpop.xlane.xlu0 %684
  %v686 = vsel %vm384, %v676, 0.0
  %687 = vadd.xlane.f32.xlu0 %v686
  %v688 = vpop.xlane.xlu0 %687
  %v689 = vsel %vm384, %v677, 0.0
  %690 = vadd.xlane.f32.xlu0 %v689
  %v691 = vpop.xlane.xlu0 %690
  %v692 = vsel %vm384, %v678, 0.0
  %693 = vadd.xlane.f32.xlu0 %v692
  %v694 = vpop.xlane.xlu0 %693
  %v695 = vsel %vm384, %v679, 0.0
  %696 = vadd.xlane.f32.xlu0 %v695
  %v697 = vpop.xlane.xlu0 %696
  %v698 = vsel %vm384, %v680, 0.0
  %699 = vadd.xlane.f32.xlu0 %v698
  %v700 = vpop.xlane.xlu0 %699
  %v701 = vsel %vm384, %v681, 0.0
  %702 = vadd.xlane.f32.xlu0 %v701
  %v703 = vpop.xlane.xlu0 %702
  %v704 = vsel %vm384, %v682, 0.0
  %705 = vadd.xlane.f32.xlu0 %v704
  %v706 = vpop.xlane.xlu0 %705
  %v707 = vmul.f32 %v653, 0.03125
  %v708 = vmul.f32 %v656, 0.03125
  %v709 = vmul.f32 %v659, 0.03125
  %v710 = vmul.f32 %v662, 0.03125
  %v711 = vmul.f32 %v665, 0.03125
  %v712 = vmul.f32 %v668, 0.03125
  %v713 = vmul.f32 %v671, 0.03125
  %v714 = vmul.f32 %v674, 0.03125
  %v715 = vmul.f32 %v685, 0.03125
  %v716 = vmul.f32 %v688, 0.03125
  %v717 = vmul.f32 %v691, 0.03125
  %v718 = vmul.f32 %v694, 0.03125
  %v719 = vmul.f32 %v697, 0.03125
  %v720 = vmul.f32 %v700, 0.03125
  %v721 = vmul.f32 %v703, 0.03125
  %v722 = vmul.f32 %v706, 0.03125
  %v723 = vmul.f32 %v707, %v707
  %v724 = vmul.f32 %v708, %v708
  %v725 = vmul.f32 %v709, %v709
  %v726 = vmul.f32 %v710, %v710
  %v727 = vmul.f32 %v711, %v711
  %v728 = vmul.f32 %v712, %v712
  %v729 = vmul.f32 %v713, %v713
  %v730 = vmul.f32 %v714, %v714
  %v731 = vsub.f32 %v715, %v723
  %v732 = vsub.f32 %v716, %v724
  %v733 = vsub.f32 %v717, %v725
  %v734 = vsub.f32 %v718, %v726
  %v735 = vsub.f32 %v719, %v727
  %v736 = vsub.f32 %v720, %v728
  %v737 = vsub.f32 %v721, %v729
  %v738 = vsub.f32 %v722, %v730
  %v739 = vsub.f32 %v643, %v707
  %v740 = vsub.f32 %v644, %v708
  %v741 = vsub.f32 %v645, %v709
  %v742 = vsub.f32 %v646, %v710
  %v743 = vsub.f32 %v647, %v711
  %v744 = vsub.f32 %v648, %v712
  %v745 = vsub.f32 %v649, %v713
  %v746 = vsub.f32 %v650, %v714
  %v747 = vadd.f32 %v731, 1e-05
  %v748 = vadd.f32 %v732, 1e-05
  %v749 = vadd.f32 %v733, 1e-05
  %v750 = vadd.f32 %v734, 1e-05
  %v751 = vadd.f32 %v735, 1e-05
  %v752 = vadd.f32 %v736, 1e-05
  %v753 = vadd.f32 %v737, 1e-05
  %v754 = vadd.f32 %v738, 1e-05
  %v755 = vrsqrt.pop %v747
  %v756 = vmul.f32 %v755, %v747
  %v757 = vmul.f32 %v756, %v755
  %v758 = vmul.f32 0.5, %v757
  %v759 = vsub.f32 1.5, %v758
  %v760 = vmul.f32 %v755, %v759
  %vm761 = vweird.f32 %v747
  %vm762 = vweird.f32 %v755
  %vm763 = vmor %vm761, %vm762
  %v764 = vsel %vm763, %v755, %v760
  %v765 = vrsqrt.pop %v748
  %v766 = vmul.f32 %v765, %v748
  %v767 = vmul.f32 %v766, %v765
  %v768 = vmul.f32 0.5, %v767
  %v769 = vsub.f32 1.5, %v768
  %v770 = vmul.f32 %v765, %v769
  %vm771 = vweird.f32 %v748
  %vm772 = vweird.f32 %v765
  %vm773 = vmor %vm771, %vm772
  %v774 = vsel %vm773, %v765, %v770
  %v775 = vrsqrt.pop %v749
  %v776 = vmul.f32 %v775, %v749
  %v777 = vmul.f32 %v776, %v775
  %v778 = vmul.f32 0.5, %v777
  %v779 = vsub.f32 1.5, %v778
  %v780 = vmul.f32 %v775, %v779
  %vm781 = vweird.f32 %v749
  %vm782 = vweird.f32 %v775
  %vm783 = vmor %vm781, %vm782
  %v784 = vsel %vm783, %v775, %v780
  %v785 = vrsqrt.pop %v750
  %v786 = vmul.f32 %v785, %v750
  %v787 = vmul.f32 %v786, %v785
  %v788 = vmul.f32 0.5, %v787
  %v789 = vsub.f32 1.5, %v788
  %v790 = vmul.f32 %v785, %v789
  %vm791 = vweird.f32 %v750
  %vm792 = vweird.f32 %v785
  %vm793 = vmor %vm791, %vm792
  %v794 = vsel %vm793, %v785, %v790
  %v795 = vrsqrt.pop %v751
  %v796 = vmul.f32 %v795, %v751
  %v797 = vmul.f32 %v796, %v795
  %v798 = vmul.f32 0.5, %v797
  %v799 = vsub.f32 1.5, %v798
  %v800 = vmul.f32 %v795, %v799
  %vm801 = vweird.f32 %v751
  %vm802 = vweird.f32 %v795
  %vm803 = vmor %vm801, %vm802
  %v804 = vsel %vm803, %v795, %v800
  %v805 = vrsqrt.pop %v752
  %v806 = vmul.f32 %v805, %v752
  %v807 = vmul.f32 %v806, %v805
  %v808 = vmul.f32 0.5, %v807
  %v809 = vsub.f32 1.5, %v808
  %v810 = vmul.f32 %v805, %v809
  %vm811 = vweird.f32 %v752
  %vm812 = vweird.f32 %v805
  %vm813 = vmor %vm811, %vm812
  %v814 = vsel %vm813, %v805, %v810
  %v815 = vrsqrt.pop %v753
  %v816 = vmul.f32 %v815, %v753
  %v817 = vmul.f32 %v816, %v815
  %v818 = vmul.f32 0.5, %v817
  %v819 = vsub.f32 1.5, %v818
  %v820 = vmul.f32 %v815, %v819
  %vm821 = vweird.f32 %v753
  %vm822 = vweird.f32 %v815
  %vm823 = vmor %vm821, %vm822
  %v824 = vsel %vm823, %v815, %v820
  %v825 = vrsqrt.pop %v754
  %v826 = vmul.f32 %v825, %v754
  %v827 = vmul.f32 %v826, %v825
  %v828 = vmul.f32 0.5, %v827
  %v829 = vsub.f32 1.5, %v828
  %v830 = vmul.f32 %v825, %v829
  %vm831 = vweird.f32 %v754
  %vm832 = vweird.f32 %v825
  %vm833 = vmor %vm831, %vm832
  %v834 = vsel %vm833, %v825, %v830
  %v835 = vmul.f32 %v739, %v764
  %v836 = vmul.f32 %v740, %v774
  %v837 = vmul.f32 %v741, %v784
  %v838 = vmul.f32 %v742, %v794
  %v839 = vmul.f32 %v743, %v804
  %v840 = vmul.f32 %v744, %v814
  %v841 = vmul.f32 %v745, %v824
  %v842 = vmul.f32 %v746, %v834
  %v843 = vperm.slane %v383, 2
  %v845 = vsel %vm384, %v835, 0
  %v848 = vsel %vm384, %v836, 0
  %v851 = vsel %vm384, %v837, 0
  %v854 = vsel %vm384, %v838, 0
  %v857 = vsel %vm384, %v839, 0
  %v860 = vsel %vm384, %v840, 0
  %v863 = vsel %vm384, %v841, 0
  %v866 = vsel %vm384, %v842, 0
  %868 = vmatpush.msra.mxu0 0.0
  %869 = vmatpush.msra.mxu0 0.0
  %870 = vmatpush.msra.mxu0 0.0
  %871 = vmatpush.msra.mxu0 0.0
  %872 = vmatpush.msra.mxu0 0.0
  %873 = vmatpush.msra.mxu0 0.0
  %874 = vmatpush.msra.mxu0 0.0
  %875 = vmatpush.msra.mxu0 0.0
  %876 = vmatpush.msra.mxu0 0.0
  %877 = vmatpush.msra.mxu0 0.0
  %878 = vmatpush.msra.mxu0 0.0
  %879 = vmatpush.msra.mxu0 0.0
  %880 = vmatpush.msra.mxu0 %v366
  %881 = vmatpush.msra.mxu0 %v365
  %882 = vmatpush.msra.mxu0 %v364
  %883 = vmatpush.msra.mxu0 %v363
  %884 = vmatmul.f32.gmra.mxu0 %v845
  %v885 = vpop.f32.mrf.mxu0
  %v886 = vadd.f32 %v843, %v885
  %887 = vmatmul.f32.gmra.mxu0 %v848
  %v888 = vpop.f32.mrf.mxu0
  %v889 = vadd.f32 %v843, %v888
  %890 = vmatmul.f32.gmra.mxu0 %v851
  %v891 = vpop.f32.mrf.mxu0
  %v892 = vadd.f32 %v843, %v891
  %893 = vmatmul.f32.gmra.mxu0 %v854
  %v894 = vpop.f32.mrf.mxu0
  %v895 = vadd.f32 %v843, %v894
  %896 = vmatmul.f32.gmra.mxu0 %v857
  %v897 = vpop.f32.mrf.mxu0
  %v898 = vadd.f32 %v843, %v897
  %899 = vmatmul.f32.gmra.mxu0 %v860
  %v900 = vpop.f32.mrf.mxu0
  %v901 = vadd.f32 %v843, %v900
  %902 = vmatmul.f32.gmra.mxu0 %v863
  %v903 = vpop.f32.mrf.mxu0
  %v904 = vadd.f32 %v843, %v903
  %905 = vmatmul.f32.gmra.mxu0 %v866
  %v906 = vpop.f32.mrf.mxu0
  %v907 = vadd.f32 %v843, %v906
  %908 = vdwg.mxu0
  %v909 = vmax.f32 %v886, 0.0
  %v910 = vmax.f32 %v889, 0.0
  %v911 = vmax.f32 %v892, 0.0
  %v912 = vmax.f32 %v895, 0.0
  %v913 = vmax.f32 %v898, 0.0
  %v914 = vmax.f32 %v901, 0.0
  %v915 = vmax.f32 %v904, 0.0
  %v916 = vmax.f32 %v907, 0.0
  %v917 = vperm.slane %v383, 1
  %918 = vmatpush.msra.mxu0 %v382
  %919 = vmatpush.msra.mxu0 %v381
  %920 = vmatpush.msra.mxu0 %v380
  %921 = vmatpush.msra.mxu0 %v379
  %922 = vmatpush.msra.mxu0 %v378
  %923 = vmatpush.msra.mxu0 %v377
  %924 = vmatpush.msra.mxu0 %v376
  %925 = vmatpush.msra.mxu0 %v375
  %926 = vmatpush.msra.mxu0 %v374
  %927 = vmatpush.msra.mxu0 %v373
  %928 = vmatpush.msra.mxu0 %v372
  %929 = vmatpush.msra.mxu0 %v371
  %930 = vmatpush.msra.mxu0 %v370
  %931 = vmatpush.msra.mxu0 %v369
  %932 = vmatpush.msra.mxu0 %v368
  %933 = vmatpush.msra.mxu0 %v367
  %934 = vmatmul.f32.gmra.mxu0 %v909
  %v935 = vpop.f32.mrf.mxu0
  %v936 = vadd.f32 %v917, %v935
  %937 = vmatmul.f32.gmra.mxu0 %v910
  %v938 = vpop.f32.mrf.mxu0
  %v939 = vadd.f32 %v917, %v938
  %940 = vmatmul.f32.gmra.mxu0 %v911
  %v941 = vpop.f32.mrf.mxu0
  %v942 = vadd.f32 %v917, %v941
  %943 = vmatmul.f32.gmra.mxu0 %v912
  %v944 = vpop.f32.mrf.mxu0
  %v945 = vadd.f32 %v917, %v944
  %946 = vmatmul.f32.gmra.mxu0 %v913
  %v947 = vpop.f32.mrf.mxu0
  %v948 = vadd.f32 %v917, %v947
  %949 = vmatmul.f32.gmra.mxu0 %v914
  %v950 = vpop.f32.mrf.mxu0
  %v951 = vadd.f32 %v917, %v950
  %952 = vmatmul.f32.gmra.mxu0 %v915
  %v953 = vpop.f32.mrf.mxu0
  %v954 = vadd.f32 %v917, %v953
  %955 = vmatmul.f32.gmra.mxu0 %v916
  %v956 = vpop.f32.mrf.mxu0
  %v957 = vadd.f32 %v917, %v956
  %958 = vdwg.mxu0
  %v959 = vadd.f32 %v643, %v936
  %v960 = vadd.f32 %v644, %v939
  %v961 = vadd.f32 %v645, %v942
  %v962 = vadd.f32 %v646, %v945
  %v963 = vadd.f32 %v647, %v948
  %v964 = vadd.f32 %v648, %v951
  %v965 = vadd.f32 %v649, %v954
  %v966 = vadd.f32 %v650, %v957
  %s967 = scalar_lea.vmem %s3, 32
  %v968 = vld [vmem:[%s967] sm:$0xff]
  %v969 = vld [vmem:[%s967 + $0x8] sm:$0xff]
  %v970 = vld [vmem:[%s967 + $0x10] sm:$0xff]
  %v971 = vld [vmem:[%s967 + $0x18] sm:$0xff]
  %s972 = scalar_lea.vmem %s4, 32
  %v973 = vld [vmem:[%s972] sm:$0xff]
  %v974 = vld [vmem:[%s972 + $0x8] sm:$0xff]
  %v975 = vld [vmem:[%s972 + $0x10] sm:$0xff]
  %v976 = vld [vmem:[%s972 + $0x18] sm:$0xff]
  %s977 = scalar_lea.vmem %s5, 128
  %v978 = vld [vmem:[%s977] sm:$0xff]
  %v979 = vld [vmem:[%s977 + $0x8] sm:$0xff]
  %v980 = vld [vmem:[%s977 + $0x10] sm:$0xff]
  %v981 = vld [vmem:[%s977 + $0x18] sm:$0xff]
  %v982 = vld [vmem:[%s977 + $0x20] sm:$0xff]
  %v983 = vld [vmem:[%s977 + $0x28] sm:$0xff]
  %v984 = vld [vmem:[%s977 + $0x30] sm:$0xff]
  %v985 = vld [vmem:[%s977 + $0x38] sm:$0xff]
  %v986 = vld [vmem:[%s977 + $0x40] sm:$0xff]
  %v987 = vld [vmem:[%s977 + $0x48] sm:$0xff]
  %v988 = vld [vmem:[%s977 + $0x50] sm:$0xff]
  %v989 = vld [vmem:[%s977 + $0x58] sm:$0xff]
  %v990 = vld [vmem:[%s977 + $0x60] sm:$0xff]
  %v991 = vld [vmem:[%s977 + $0x68] sm:$0xff]
  %v992 = vld [vmem:[%s977 + $0x70] sm:$0xff]
  %v993 = vld [vmem:[%s977 + $0x78] sm:$0xff]
  %s994 = scalar_lea.vmem %s6, 4
  %v995 = vld [vmem:[%s994] sm:$0x7]
  %v996 = vsel %vm384, %v959, 0.0
  %997 = vadd.xlane.f32.xlu0 %v996
  %v998 = vpop.xlane.xlu0 %997
  %v999 = vsel %vm384, %v960, 0.0
  %1000 = vadd.xlane.f32.xlu0 %v999
  %v1001 = vpop.xlane.xlu0 %1000
  %v1002 = vsel %vm384, %v961, 0.0
  %1003 = vadd.xlane.f32.xlu0 %v1002
  %v1004 = vpop.xlane.xlu0 %1003
  %v1005 = vsel %vm384, %v962, 0.0
  %1006 = vadd.xlane.f32.xlu0 %v1005
  %v1007 = vpop.xlane.xlu0 %1006
  %v1008 = vsel %vm384, %v963, 0.0
  %1009 = vadd.xlane.f32.xlu0 %v1008
  %v1010 = vpop.xlane.xlu0 %1009
  %v1011 = vsel %vm384, %v964, 0.0
  %1012 = vadd.xlane.f32.xlu0 %v1011
  %v1013 = vpop.xlane.xlu0 %1012
  %v1014 = vsel %vm384, %v965, 0.0
  %1015 = vadd.xlane.f32.xlu0 %v1014
  %v1016 = vpop.xlane.xlu0 %1015
  %v1017 = vsel %vm384, %v966, 0.0
  %1018 = vadd.xlane.f32.xlu0 %v1017
  %v1019 = vpop.xlane.xlu0 %1018
  %v1020 = vmul.f32 %v959, %v959
  %v1021 = vmul.f32 %v960, %v960
  %v1022 = vmul.f32 %v961, %v961
  %v1023 = vmul.f32 %v962, %v962
  %v1024 = vmul.f32 %v963, %v963
  %v1025 = vmul.f32 %v964, %v964
  %v1026 = vmul.f32 %v965, %v965
  %v1027 = vmul.f32 %v966, %v966
  %v1028 = vsel %vm384, %v1020, 0.0
  %1029 = vadd.xlane.f32.xlu0 %v1028
  %v1030 = vpop.xlane.xlu0 %1029
  %v1031 = vsel %vm384, %v1021, 0.0
  %1032 = vadd.xlane.f32.xlu0 %v1031
  %v1033 = vpop.xlane.xlu0 %1032
  %v1034 = vsel %vm384, %v1022, 0.0
  %1035 = vadd.xlane.f32.xlu0 %v1034
  %v1036 = vpop.xlane.xlu0 %1035
  %v1037 = vsel %vm384, %v1023, 0.0
  %1038 = vadd.xlane.f32.xlu0 %v1037
  %v1039 = vpop.xlane.xlu0 %1038
  %v1040 = vsel %vm384, %v1024, 0.0
  %1041 = vadd.xlane.f32.xlu0 %v1040
  %v1042 = vpop.xlane.xlu0 %1041
  %v1043 = vsel %vm384, %v1025, 0.0
  %1044 = vadd.xlane.f32.xlu0 %v1043
  %v1045 = vpop.xlane.xlu0 %1044
  %v1046 = vsel %vm384, %v1026, 0.0
  %1047 = vadd.xlane.f32.xlu0 %v1046
  %v1048 = vpop.xlane.xlu0 %1047
  %v1049 = vsel %vm384, %v1027, 0.0
  %1050 = vadd.xlane.f32.xlu0 %v1049
  %v1051 = vpop.xlane.xlu0 %1050
  %v1052 = vmul.f32 %v998, 0.03125
  %v1053 = vmul.f32 %v1001, 0.03125
  %v1054 = vmul.f32 %v1004, 0.03125
  %v1055 = vmul.f32 %v1007, 0.03125
  %v1056 = vmul.f32 %v1010, 0.03125
  %v1057 = vmul.f32 %v1013, 0.03125
  %v1058 = vmul.f32 %v1016, 0.03125
  %v1059 = vmul.f32 %v1019, 0.03125
  %v1060 = vmul.f32 %v1030, 0.03125
  %v1061 = vmul.f32 %v1033, 0.03125
  %v1062 = vmul.f32 %v1036, 0.03125
  %v1063 = vmul.f32 %v1039, 0.03125
  %v1064 = vmul.f32 %v1042, 0.03125
  %v1065 = vmul.f32 %v1045, 0.03125
  %v1066 = vmul.f32 %v1048, 0.03125
  %v1067 = vmul.f32 %v1051, 0.03125
  %v1068 = vmul.f32 %v1052, %v1052
  %v1069 = vmul.f32 %v1053, %v1053
  %v1070 = vmul.f32 %v1054, %v1054
  %v1071 = vmul.f32 %v1055, %v1055
  %v1072 = vmul.f32 %v1056, %v1056
  %v1073 = vmul.f32 %v1057, %v1057
  %v1074 = vmul.f32 %v1058, %v1058
  %v1075 = vmul.f32 %v1059, %v1059
  %v1076 = vsub.f32 %v1060, %v1068
  %v1077 = vsub.f32 %v1061, %v1069
  %v1078 = vsub.f32 %v1062, %v1070
  %v1079 = vsub.f32 %v1063, %v1071
  %v1080 = vsub.f32 %v1064, %v1072
  %v1081 = vsub.f32 %v1065, %v1073
  %v1082 = vsub.f32 %v1066, %v1074
  %v1083 = vsub.f32 %v1067, %v1075
  %v1084 = vsub.f32 %v959, %v1052
  %v1085 = vsub.f32 %v960, %v1053
  %v1086 = vsub.f32 %v961, %v1054
  %v1087 = vsub.f32 %v962, %v1055
  %v1088 = vsub.f32 %v963, %v1056
  %v1089 = vsub.f32 %v964, %v1057
  %v1090 = vsub.f32 %v965, %v1058
  %v1091 = vsub.f32 %v966, %v1059
  %v1092 = vadd.f32 %v1076, 1e-05
  %v1093 = vadd.f32 %v1077, 1e-05
  %v1094 = vadd.f32 %v1078, 1e-05
  %v1095 = vadd.f32 %v1079, 1e-05
  %v1096 = vadd.f32 %v1080, 1e-05
  %v1097 = vadd.f32 %v1081, 1e-05
  %v1098 = vadd.f32 %v1082, 1e-05
  %v1099 = vadd.f32 %v1083, 1e-05
  %v1100 = vrsqrt.pop %v1092
  %v1101 = vmul.f32 %v1100, %v1092
  %v1102 = vmul.f32 %v1101, %v1100
  %v1103 = vmul.f32 0.5, %v1102
  %v1104 = vsub.f32 1.5, %v1103
  %v1105 = vmul.f32 %v1100, %v1104
  %vm1106 = vweird.f32 %v1092
  %vm1107 = vweird.f32 %v1100
  %vm1108 = vmor %vm1106, %vm1107
  %v1109 = vsel %vm1108, %v1100, %v1105
  %v1110 = vrsqrt.pop %v1093
  %v1111 = vmul.f32 %v1110, %v1093
  %v1112 = vmul.f32 %v1111, %v1110
  %v1113 = vmul.f32 0.5, %v1112
  %v1114 = vsub.f32 1.5, %v1113
  %v1115 = vmul.f32 %v1110, %v1114
  %vm1116 = vweird.f32 %v1093
  %vm1117 = vweird.f32 %v1110
  %vm1118 = vmor %vm1116, %vm1117
  %v1119 = vsel %vm1118, %v1110, %v1115
  %v1120 = vrsqrt.pop %v1094
  %v1121 = vmul.f32 %v1120, %v1094
  %v1122 = vmul.f32 %v1121, %v1120
  %v1123 = vmul.f32 0.5, %v1122
  %v1124 = vsub.f32 1.5, %v1123
  %v1125 = vmul.f32 %v1120, %v1124
  %vm1126 = vweird.f32 %v1094
  %vm1127 = vweird.f32 %v1120
  %vm1128 = vmor %vm1126, %vm1127
  %v1129 = vsel %vm1128, %v1120, %v1125
  %v1130 = vrsqrt.pop %v1095
  %v1131 = vmul.f32 %v1130, %v1095
  %v1132 = vmul.f32 %v1131, %v1130
  %v1133 = vmul.f32 0.5, %v1132
  %v1134 = vsub.f32 1.5, %v1133
  %v1135 = vmul.f32 %v1130, %v1134
  %vm1136 = vweird.f32 %v1095
  %vm1137 = vweird.f32 %v1130
  %vm1138 = vmor %vm1136, %vm1137
  %v1139 = vsel %vm1138, %v1130, %v1135
  %v1140 = vrsqrt.pop %v1096
  %v1141 = vmul.f32 %v1140, %v1096
  %v1142 = vmul.f32 %v1141, %v1140
  %v1143 = vmul.f32 0.5, %v1142
  %v1144 = vsub.f32 1.5, %v1143
  %v1145 = vmul.f32 %v1140, %v1144
  %vm1146 = vweird.f32 %v1096
  %vm1147 = vweird.f32 %v1140
  %vm1148 = vmor %vm1146, %vm1147
  %v1149 = vsel %vm1148, %v1140, %v1145
  %v1150 = vrsqrt.pop %v1097
  %v1151 = vmul.f32 %v1150, %v1097
  %v1152 = vmul.f32 %v1151, %v1150
  %v1153 = vmul.f32 0.5, %v1152
  %v1154 = vsub.f32 1.5, %v1153
  %v1155 = vmul.f32 %v1150, %v1154
  %vm1156 = vweird.f32 %v1097
  %vm1157 = vweird.f32 %v1150
  %vm1158 = vmor %vm1156, %vm1157
  %v1159 = vsel %vm1158, %v1150, %v1155
  %v1160 = vrsqrt.pop %v1098
  %v1161 = vmul.f32 %v1160, %v1098
  %v1162 = vmul.f32 %v1161, %v1160
  %v1163 = vmul.f32 0.5, %v1162
  %v1164 = vsub.f32 1.5, %v1163
  %v1165 = vmul.f32 %v1160, %v1164
  %vm1166 = vweird.f32 %v1098
  %vm1167 = vweird.f32 %v1160
  %vm1168 = vmor %vm1166, %vm1167
  %v1169 = vsel %vm1168, %v1160, %v1165
  %v1170 = vrsqrt.pop %v1099
  %v1171 = vmul.f32 %v1170, %v1099
  %v1172 = vmul.f32 %v1171, %v1170
  %v1173 = vmul.f32 0.5, %v1172
  %v1174 = vsub.f32 1.5, %v1173
  %v1175 = vmul.f32 %v1170, %v1174
  %vm1176 = vweird.f32 %v1099
  %vm1177 = vweird.f32 %v1170
  %vm1178 = vmor %vm1176, %vm1177
  %v1179 = vsel %vm1178, %v1170, %v1175
  %v1180 = vmul.f32 %v1084, %v1109
  %v1181 = vmul.f32 %v1085, %v1119
  %v1182 = vmul.f32 %v1086, %v1129
  %v1183 = vmul.f32 %v1087, %v1139
  %v1184 = vmul.f32 %v1088, %v1149
  %v1185 = vmul.f32 %v1089, %v1159
  %v1186 = vmul.f32 %v1090, %v1169
  %v1187 = vmul.f32 %v1091, %v1179
  %v1188 = vperm.slane %v995, 0
  %v1190 = vsel %vm384, %v1180, 0
  %v1193 = vsel %vm384, %v1181, 0
  %v1196 = vsel %vm384, %v1182, 0
  %v1199 = vsel %vm384, %v1183, 0
  %v1202 = vsel %vm384, %v1184, 0
  %v1205 = vsel %vm384, %v1185, 0
  %v1208 = vsel %vm384, %v1186, 0
  %v1211 = vsel %vm384, %v1187, 0
  %1213 = vmatpush.msra.mxu0 0.0
  %1214 = vmatpush.msra.mxu0 0.0
  %1215 = vmatpush.msra.mxu0 0.0
  %1216 = vmatpush.msra.mxu0 0.0
  %1217 = vmatpush.msra.mxu0 0.0
  %1218 = vmatpush.msra.mxu0 0.0
  %1219 = vmatpush.msra.mxu0 0.0
  %1220 = vmatpush.msra.mxu0 0.0
  %1221 = vmatpush.msra.mxu0 0.0
  %1222 = vmatpush.msra.mxu0 0.0
  %1223 = vmatpush.msra.mxu0 0.0
  %1224 = vmatpush.msra.mxu0 0.0
  %1225 = vmatpush.msra.mxu0 %v971
  %1226 = vmatpush.msra.mxu0 %v970
  %1227 = vmatpush.msra.mxu0 %v969
  %1228 = vmatpush.msra.mxu0 %v968
  %1229 = vmatmul.f32.gmra.mxu0 %v1190
  %v1230 = vpop.f32.mrf.mxu0
  %v1231 = vadd.f32 %v1188, %v1230
  %1232 = vmatmul.f32.gmra.mxu0 %v1193
  %v1233 = vpop.f32.mrf.mxu0
  %v1234 = vadd.f32 %v1188, %v1233
  %1235 = vmatmul.f32.gmra.mxu0 %v1196
  %v1236 = vpop.f32.mrf.mxu0
  %v1237 = vadd.f32 %v1188, %v1236
  %1238 = vmatmul.f32.gmra.mxu0 %v1199
  %v1239 = vpop.f32.mrf.mxu0
  %v1240 = vadd.f32 %v1188, %v1239
  %1241 = vmatmul.f32.gmra.mxu0 %v1202
  %v1242 = vpop.f32.mrf.mxu0
  %v1243 = vadd.f32 %v1188, %v1242
  %1244 = vmatmul.f32.gmra.mxu0 %v1205
  %v1245 = vpop.f32.mrf.mxu0
  %v1246 = vadd.f32 %v1188, %v1245
  %1247 = vmatmul.f32.gmra.mxu0 %v1208
  %v1248 = vpop.f32.mrf.mxu0
  %v1249 = vadd.f32 %v1188, %v1248
  %1250 = vmatmul.f32.gmra.mxu0 %v1211
  %v1251 = vpop.f32.mrf.mxu0
  %v1252 = vadd.f32 %v1188, %v1251
  %1253 = vdwg.mxu0
  %v1254 = vadd.f32 %v959, %v1231
  %v1255 = vadd.f32 %v960, %v1234
  %v1256 = vadd.f32 %v961, %v1237
  %v1257 = vadd.f32 %v962, %v1240
  %v1258 = vadd.f32 %v963, %v1243
  %v1259 = vadd.f32 %v964, %v1246
  %v1260 = vadd.f32 %v965, %v1249
  %v1261 = vadd.f32 %v966, %v1252
  %v1262 = vsel %vm384, %v1254, 0.0
  %1263 = vadd.xlane.f32.xlu0 %v1262
  %v1264 = vpop.xlane.xlu0 %1263
  %v1265 = vsel %vm384, %v1255, 0.0
  %1266 = vadd.xlane.f32.xlu0 %v1265
  %v1267 = vpop.xlane.xlu0 %1266
  %v1268 = vsel %vm384, %v1256, 0.0
  %1269 = vadd.xlane.f32.xlu0 %v1268
  %v1270 = vpop.xlane.xlu0 %1269
  %v1271 = vsel %vm384, %v1257, 0.0
  %1272 = vadd.xlane.f32.xlu0 %v1271
  %v1273 = vpop.xlane.xlu0 %1272
  %v1274 = vsel %vm384, %v1258, 0.0
  %1275 = vadd.xlane.f32.xlu0 %v1274
  %v1276 = vpop.xlane.xlu0 %1275
  %v1277 = vsel %vm384, %v1259, 0.0
  %1278 = vadd.xlane.f32.xlu0 %v1277
  %v1279 = vpop.xlane.xlu0 %1278
  %v1280 = vsel %vm384, %v1260, 0.0
  %1281 = vadd.xlane.f32.xlu0 %v1280
  %v1282 = vpop.xlane.xlu0 %1281
  %v1283 = vsel %vm384, %v1261, 0.0
  %1284 = vadd.xlane.f32.xlu0 %v1283
  %v1285 = vpop.xlane.xlu0 %1284
  %v1286 = vmul.f32 %v1254, %v1254
  %v1287 = vmul.f32 %v1255, %v1255
  %v1288 = vmul.f32 %v1256, %v1256
  %v1289 = vmul.f32 %v1257, %v1257
  %v1290 = vmul.f32 %v1258, %v1258
  %v1291 = vmul.f32 %v1259, %v1259
  %v1292 = vmul.f32 %v1260, %v1260
  %v1293 = vmul.f32 %v1261, %v1261
  %v1294 = vsel %vm384, %v1286, 0.0
  %1295 = vadd.xlane.f32.xlu0 %v1294
  %v1296 = vpop.xlane.xlu0 %1295
  %v1297 = vsel %vm384, %v1287, 0.0
  %1298 = vadd.xlane.f32.xlu0 %v1297
  %v1299 = vpop.xlane.xlu0 %1298
  %v1300 = vsel %vm384, %v1288, 0.0
  %1301 = vadd.xlane.f32.xlu0 %v1300
  %v1302 = vpop.xlane.xlu0 %1301
  %v1303 = vsel %vm384, %v1289, 0.0
  %1304 = vadd.xlane.f32.xlu0 %v1303
  %v1305 = vpop.xlane.xlu0 %1304
  %v1306 = vsel %vm384, %v1290, 0.0
  %1307 = vadd.xlane.f32.xlu0 %v1306
  %v1308 = vpop.xlane.xlu0 %1307
  %v1309 = vsel %vm384, %v1291, 0.0
  %1310 = vadd.xlane.f32.xlu0 %v1309
  %v1311 = vpop.xlane.xlu0 %1310
  %v1312 = vsel %vm384, %v1292, 0.0
  %1313 = vadd.xlane.f32.xlu0 %v1312
  %v1314 = vpop.xlane.xlu0 %1313
  %v1315 = vsel %vm384, %v1293, 0.0
  %1316 = vadd.xlane.f32.xlu0 %v1315
  %v1317 = vpop.xlane.xlu0 %1316
  %v1318 = vmul.f32 %v1264, 0.03125
  %v1319 = vmul.f32 %v1267, 0.03125
  %v1320 = vmul.f32 %v1270, 0.03125
  %v1321 = vmul.f32 %v1273, 0.03125
  %v1322 = vmul.f32 %v1276, 0.03125
  %v1323 = vmul.f32 %v1279, 0.03125
  %v1324 = vmul.f32 %v1282, 0.03125
  %v1325 = vmul.f32 %v1285, 0.03125
  %v1326 = vmul.f32 %v1296, 0.03125
  %v1327 = vmul.f32 %v1299, 0.03125
  %v1328 = vmul.f32 %v1302, 0.03125
  %v1329 = vmul.f32 %v1305, 0.03125
  %v1330 = vmul.f32 %v1308, 0.03125
  %v1331 = vmul.f32 %v1311, 0.03125
  %v1332 = vmul.f32 %v1314, 0.03125
  %v1333 = vmul.f32 %v1317, 0.03125
  %v1334 = vmul.f32 %v1318, %v1318
  %v1335 = vmul.f32 %v1319, %v1319
  %v1336 = vmul.f32 %v1320, %v1320
  %v1337 = vmul.f32 %v1321, %v1321
  %v1338 = vmul.f32 %v1322, %v1322
  %v1339 = vmul.f32 %v1323, %v1323
  %v1340 = vmul.f32 %v1324, %v1324
  %v1341 = vmul.f32 %v1325, %v1325
  %v1342 = vsub.f32 %v1326, %v1334
  %v1343 = vsub.f32 %v1327, %v1335
  %v1344 = vsub.f32 %v1328, %v1336
  %v1345 = vsub.f32 %v1329, %v1337
  %v1346 = vsub.f32 %v1330, %v1338
  %v1347 = vsub.f32 %v1331, %v1339
  %v1348 = vsub.f32 %v1332, %v1340
  %v1349 = vsub.f32 %v1333, %v1341
  %v1350 = vsub.f32 %v1254, %v1318
  %v1351 = vsub.f32 %v1255, %v1319
  %v1352 = vsub.f32 %v1256, %v1320
  %v1353 = vsub.f32 %v1257, %v1321
  %v1354 = vsub.f32 %v1258, %v1322
  %v1355 = vsub.f32 %v1259, %v1323
  %v1356 = vsub.f32 %v1260, %v1324
  %v1357 = vsub.f32 %v1261, %v1325
  %v1358 = vadd.f32 %v1342, 1e-05
  %v1359 = vadd.f32 %v1343, 1e-05
  %v1360 = vadd.f32 %v1344, 1e-05
  %v1361 = vadd.f32 %v1345, 1e-05
  %v1362 = vadd.f32 %v1346, 1e-05
  %v1363 = vadd.f32 %v1347, 1e-05
  %v1364 = vadd.f32 %v1348, 1e-05
  %v1365 = vadd.f32 %v1349, 1e-05
  %v1366 = vrsqrt.pop %v1358
  %v1367 = vmul.f32 %v1366, %v1358
  %v1368 = vmul.f32 %v1367, %v1366
  %v1369 = vmul.f32 0.5, %v1368
  %v1370 = vsub.f32 1.5, %v1369
  %v1371 = vmul.f32 %v1366, %v1370
  %vm1372 = vweird.f32 %v1358
  %vm1373 = vweird.f32 %v1366
  %vm1374 = vmor %vm1372, %vm1373
  %v1375 = vsel %vm1374, %v1366, %v1371
  %v1376 = vrsqrt.pop %v1359
  %v1377 = vmul.f32 %v1376, %v1359
  %v1378 = vmul.f32 %v1377, %v1376
  %v1379 = vmul.f32 0.5, %v1378
  %v1380 = vsub.f32 1.5, %v1379
  %v1381 = vmul.f32 %v1376, %v1380
  %vm1382 = vweird.f32 %v1359
  %vm1383 = vweird.f32 %v1376
  %vm1384 = vmor %vm1382, %vm1383
  %v1385 = vsel %vm1384, %v1376, %v1381
  %v1386 = vrsqrt.pop %v1360
  %v1387 = vmul.f32 %v1386, %v1360
  %v1388 = vmul.f32 %v1387, %v1386
  %v1389 = vmul.f32 0.5, %v1388
  %v1390 = vsub.f32 1.5, %v1389
  %v1391 = vmul.f32 %v1386, %v1390
  %vm1392 = vweird.f32 %v1360
  %vm1393 = vweird.f32 %v1386
  %vm1394 = vmor %vm1392, %vm1393
  %v1395 = vsel %vm1394, %v1386, %v1391
  %v1396 = vrsqrt.pop %v1361
  %v1397 = vmul.f32 %v1396, %v1361
  %v1398 = vmul.f32 %v1397, %v1396
  %v1399 = vmul.f32 0.5, %v1398
  %v1400 = vsub.f32 1.5, %v1399
  %v1401 = vmul.f32 %v1396, %v1400
  %vm1402 = vweird.f32 %v1361
  %vm1403 = vweird.f32 %v1396
  %vm1404 = vmor %vm1402, %vm1403
  %v1405 = vsel %vm1404, %v1396, %v1401
  %v1406 = vrsqrt.pop %v1362
  %v1407 = vmul.f32 %v1406, %v1362
  %v1408 = vmul.f32 %v1407, %v1406
  %v1409 = vmul.f32 0.5, %v1408
  %v1410 = vsub.f32 1.5, %v1409
  %v1411 = vmul.f32 %v1406, %v1410
  %vm1412 = vweird.f32 %v1362
  %vm1413 = vweird.f32 %v1406
  %vm1414 = vmor %vm1412, %vm1413
  %v1415 = vsel %vm1414, %v1406, %v1411
  %v1416 = vrsqrt.pop %v1363
  %v1417 = vmul.f32 %v1416, %v1363
  %v1418 = vmul.f32 %v1417, %v1416
  %v1419 = vmul.f32 0.5, %v1418
  %v1420 = vsub.f32 1.5, %v1419
  %v1421 = vmul.f32 %v1416, %v1420
  %vm1422 = vweird.f32 %v1363
  %vm1423 = vweird.f32 %v1416
  %vm1424 = vmor %vm1422, %vm1423
  %v1425 = vsel %vm1424, %v1416, %v1421
  %v1426 = vrsqrt.pop %v1364
  %v1427 = vmul.f32 %v1426, %v1364
  %v1428 = vmul.f32 %v1427, %v1426
  %v1429 = vmul.f32 0.5, %v1428
  %v1430 = vsub.f32 1.5, %v1429
  %v1431 = vmul.f32 %v1426, %v1430
  %vm1432 = vweird.f32 %v1364
  %vm1433 = vweird.f32 %v1426
  %vm1434 = vmor %vm1432, %vm1433
  %v1435 = vsel %vm1434, %v1426, %v1431
  %v1436 = vrsqrt.pop %v1365
  %v1437 = vmul.f32 %v1436, %v1365
  %v1438 = vmul.f32 %v1437, %v1436
  %v1439 = vmul.f32 0.5, %v1438
  %v1440 = vsub.f32 1.5, %v1439
  %v1441 = vmul.f32 %v1436, %v1440
  %vm1442 = vweird.f32 %v1365
  %vm1443 = vweird.f32 %v1436
  %vm1444 = vmor %vm1442, %vm1443
  %v1445 = vsel %vm1444, %v1436, %v1441
  %v1446 = vmul.f32 %v1350, %v1375
  %v1447 = vmul.f32 %v1351, %v1385
  %v1448 = vmul.f32 %v1352, %v1395
  %v1449 = vmul.f32 %v1353, %v1405
  %v1450 = vmul.f32 %v1354, %v1415
  %v1451 = vmul.f32 %v1355, %v1425
  %v1452 = vmul.f32 %v1356, %v1435
  %v1453 = vmul.f32 %v1357, %v1445
  %v1454 = vperm.slane %v995, 2
  %v1456 = vsel %vm384, %v1446, 0
  %v1459 = vsel %vm384, %v1447, 0
  %v1462 = vsel %vm384, %v1448, 0
  %v1465 = vsel %vm384, %v1449, 0
  %v1468 = vsel %vm384, %v1450, 0
  %v1471 = vsel %vm384, %v1451, 0
  %v1474 = vsel %vm384, %v1452, 0
  %v1477 = vsel %vm384, %v1453, 0
  %1479 = vmatpush.msra.mxu0 0.0
  %1480 = vmatpush.msra.mxu0 0.0
  %1481 = vmatpush.msra.mxu0 0.0
  %1482 = vmatpush.msra.mxu0 0.0
  %1483 = vmatpush.msra.mxu0 0.0
  %1484 = vmatpush.msra.mxu0 0.0
  %1485 = vmatpush.msra.mxu0 0.0
  %1486 = vmatpush.msra.mxu0 0.0
  %1487 = vmatpush.msra.mxu0 0.0
  %1488 = vmatpush.msra.mxu0 0.0
  %1489 = vmatpush.msra.mxu0 0.0
  %1490 = vmatpush.msra.mxu0 0.0
  %1491 = vmatpush.msra.mxu0 %v976
  %1492 = vmatpush.msra.mxu0 %v975
  %1493 = vmatpush.msra.mxu0 %v974
  %1494 = vmatpush.msra.mxu0 %v973
  %1495 = vmatmul.f32.gmra.mxu0 %v1456
  %v1496 = vpop.f32.mrf.mxu0
  %v1497 = vadd.f32 %v1454, %v1496
  %1498 = vmatmul.f32.gmra.mxu0 %v1459
  %v1499 = vpop.f32.mrf.mxu0
  %v1500 = vadd.f32 %v1454, %v1499
  %1501 = vmatmul.f32.gmra.mxu0 %v1462
  %v1502 = vpop.f32.mrf.mxu0
  %v1503 = vadd.f32 %v1454, %v1502
  %1504 = vmatmul.f32.gmra.mxu0 %v1465
  %v1505 = vpop.f32.mrf.mxu0
  %v1506 = vadd.f32 %v1454, %v1505
  %1507 = vmatmul.f32.gmra.mxu0 %v1468
  %v1508 = vpop.f32.mrf.mxu0
  %v1509 = vadd.f32 %v1454, %v1508
  %1510 = vmatmul.f32.gmra.mxu0 %v1471
  %v1511 = vpop.f32.mrf.mxu0
  %v1512 = vadd.f32 %v1454, %v1511
  %1513 = vmatmul.f32.gmra.mxu0 %v1474
  %v1514 = vpop.f32.mrf.mxu0
  %v1515 = vadd.f32 %v1454, %v1514
  %1516 = vmatmul.f32.gmra.mxu0 %v1477
  %v1517 = vpop.f32.mrf.mxu0
  %v1518 = vadd.f32 %v1454, %v1517
  %1519 = vdwg.mxu0
  %v1520 = vmax.f32 %v1497, 0.0
  %v1521 = vmax.f32 %v1500, 0.0
  %v1522 = vmax.f32 %v1503, 0.0
  %v1523 = vmax.f32 %v1506, 0.0
  %v1524 = vmax.f32 %v1509, 0.0
  %v1525 = vmax.f32 %v1512, 0.0
  %v1526 = vmax.f32 %v1515, 0.0
  %v1527 = vmax.f32 %v1518, 0.0
  %v1528 = vperm.slane %v995, 1
  %1529 = vmatpush.msra.mxu0 %v993
  %1530 = vmatpush.msra.mxu0 %v992
  %1531 = vmatpush.msra.mxu0 %v991
  %1532 = vmatpush.msra.mxu0 %v990
  %1533 = vmatpush.msra.mxu0 %v989
  %1534 = vmatpush.msra.mxu0 %v988
  %1535 = vmatpush.msra.mxu0 %v987
  %1536 = vmatpush.msra.mxu0 %v986
  %1537 = vmatpush.msra.mxu0 %v985
  %1538 = vmatpush.msra.mxu0 %v984
  %1539 = vmatpush.msra.mxu0 %v983
  %1540 = vmatpush.msra.mxu0 %v982
  %1541 = vmatpush.msra.mxu0 %v981
  %1542 = vmatpush.msra.mxu0 %v980
  %1543 = vmatpush.msra.mxu0 %v979
  %1544 = vmatpush.msra.mxu0 %v978
  %1545 = vmatmul.f32.gmra.mxu0 %v1520
  %v1546 = vpop.f32.mrf.mxu0
  %v1547 = vadd.f32 %v1528, %v1546
  %1548 = vmatmul.f32.gmra.mxu0 %v1521
  %v1549 = vpop.f32.mrf.mxu0
  %v1550 = vadd.f32 %v1528, %v1549
  %1551 = vmatmul.f32.gmra.mxu0 %v1522
  %v1552 = vpop.f32.mrf.mxu0
  %v1553 = vadd.f32 %v1528, %v1552
  %1554 = vmatmul.f32.gmra.mxu0 %v1523
  %v1555 = vpop.f32.mrf.mxu0
  %v1556 = vadd.f32 %v1528, %v1555
  %1557 = vmatmul.f32.gmra.mxu0 %v1524
  %v1558 = vpop.f32.mrf.mxu0
  %v1559 = vadd.f32 %v1528, %v1558
  %1560 = vmatmul.f32.gmra.mxu0 %v1525
  %v1561 = vpop.f32.mrf.mxu0
  %v1562 = vadd.f32 %v1528, %v1561
  %1563 = vmatmul.f32.gmra.mxu0 %v1526
  %v1564 = vpop.f32.mrf.mxu0
  %v1565 = vadd.f32 %v1528, %v1564
  %1566 = vmatmul.f32.gmra.mxu0 %v1527
  %v1567 = vpop.f32.mrf.mxu0
  %v1568 = vadd.f32 %v1528, %v1567
  %1569 = vdwg.mxu0
  %v1570 = vadd.f32 %v1254, %v1547
  %v1571 = vadd.f32 %v1255, %v1550
  %v1572 = vadd.f32 %v1256, %v1553
  %v1573 = vadd.f32 %v1257, %v1556
  %v1574 = vadd.f32 %v1258, %v1559
  %v1575 = vadd.f32 %v1259, %v1562
  %v1576 = vadd.f32 %v1260, %v1565
  %v1577 = vadd.f32 %v1261, %v1568
  %s1578 = scalar_lea.vmem %s3, 64
  %v1579 = vld [vmem:[%s1578] sm:$0xff]
  %v1580 = vld [vmem:[%s1578 + $0x8] sm:$0xff]
  %v1581 = vld [vmem:[%s1578 + $0x10] sm:$0xff]
  %v1582 = vld [vmem:[%s1578 + $0x18] sm:$0xff]
  %s1583 = scalar_lea.vmem %s4, 64
  %v1584 = vld [vmem:[%s1583] sm:$0xff]
  %v1585 = vld [vmem:[%s1583 + $0x8] sm:$0xff]
  %v1586 = vld [vmem:[%s1583 + $0x10] sm:$0xff]
  %v1587 = vld [vmem:[%s1583 + $0x18] sm:$0xff]
  %s1588 = scalar_lea.vmem %s5, 256
  %v1589 = vld [vmem:[%s1588] sm:$0xff]
  %v1590 = vld [vmem:[%s1588 + $0x8] sm:$0xff]
  %v1591 = vld [vmem:[%s1588 + $0x10] sm:$0xff]
  %v1592 = vld [vmem:[%s1588 + $0x18] sm:$0xff]
  %v1593 = vld [vmem:[%s1588 + $0x20] sm:$0xff]
  %v1594 = vld [vmem:[%s1588 + $0x28] sm:$0xff]
  %v1595 = vld [vmem:[%s1588 + $0x30] sm:$0xff]
  %v1596 = vld [vmem:[%s1588 + $0x38] sm:$0xff]
  %v1597 = vld [vmem:[%s1588 + $0x40] sm:$0xff]
  %v1598 = vld [vmem:[%s1588 + $0x48] sm:$0xff]
  %v1599 = vld [vmem:[%s1588 + $0x50] sm:$0xff]
  %v1600 = vld [vmem:[%s1588 + $0x58] sm:$0xff]
  %v1601 = vld [vmem:[%s1588 + $0x60] sm:$0xff]
  %v1602 = vld [vmem:[%s1588 + $0x68] sm:$0xff]
  %v1603 = vld [vmem:[%s1588 + $0x70] sm:$0xff]
  %v1604 = vld [vmem:[%s1588 + $0x78] sm:$0xff]
  %s1605 = scalar_lea.vmem %s6, 8
  %v1606 = vld [vmem:[%s1605] sm:$0x7]
  %v1607 = vsel %vm384, %v1570, 0.0
  %1608 = vadd.xlane.f32.xlu0 %v1607
  %v1609 = vpop.xlane.xlu0 %1608
  %v1610 = vsel %vm384, %v1571, 0.0
  %1611 = vadd.xlane.f32.xlu0 %v1610
  %v1612 = vpop.xlane.xlu0 %1611
  %v1613 = vsel %vm384, %v1572, 0.0
  %1614 = vadd.xlane.f32.xlu0 %v1613
  %v1615 = vpop.xlane.xlu0 %1614
  %v1616 = vsel %vm384, %v1573, 0.0
  %1617 = vadd.xlane.f32.xlu0 %v1616
  %v1618 = vpop.xlane.xlu0 %1617
  %v1619 = vsel %vm384, %v1574, 0.0
  %1620 = vadd.xlane.f32.xlu0 %v1619
  %v1621 = vpop.xlane.xlu0 %1620
  %v1622 = vsel %vm384, %v1575, 0.0
  %1623 = vadd.xlane.f32.xlu0 %v1622
  %v1624 = vpop.xlane.xlu0 %1623
  %v1625 = vsel %vm384, %v1576, 0.0
  %1626 = vadd.xlane.f32.xlu0 %v1625
  %v1627 = vpop.xlane.xlu0 %1626
  %v1628 = vsel %vm384, %v1577, 0.0
  %1629 = vadd.xlane.f32.xlu0 %v1628
  %v1630 = vpop.xlane.xlu0 %1629
  %v1631 = vmul.f32 %v1570, %v1570
  %v1632 = vmul.f32 %v1571, %v1571
  %v1633 = vmul.f32 %v1572, %v1572
  %v1634 = vmul.f32 %v1573, %v1573
  %v1635 = vmul.f32 %v1574, %v1574
  %v1636 = vmul.f32 %v1575, %v1575
  %v1637 = vmul.f32 %v1576, %v1576
  %v1638 = vmul.f32 %v1577, %v1577
  %v1639 = vsel %vm384, %v1631, 0.0
  %1640 = vadd.xlane.f32.xlu0 %v1639
  %v1641 = vpop.xlane.xlu0 %1640
  %v1642 = vsel %vm384, %v1632, 0.0
  %1643 = vadd.xlane.f32.xlu0 %v1642
  %v1644 = vpop.xlane.xlu0 %1643
  %v1645 = vsel %vm384, %v1633, 0.0
  %1646 = vadd.xlane.f32.xlu0 %v1645
  %v1647 = vpop.xlane.xlu0 %1646
  %v1648 = vsel %vm384, %v1634, 0.0
  %1649 = vadd.xlane.f32.xlu0 %v1648
  %v1650 = vpop.xlane.xlu0 %1649
  %v1651 = vsel %vm384, %v1635, 0.0
  %1652 = vadd.xlane.f32.xlu0 %v1651
  %v1653 = vpop.xlane.xlu0 %1652
  %v1654 = vsel %vm384, %v1636, 0.0
  %1655 = vadd.xlane.f32.xlu0 %v1654
  %v1656 = vpop.xlane.xlu0 %1655
  %v1657 = vsel %vm384, %v1637, 0.0
  %1658 = vadd.xlane.f32.xlu0 %v1657
  %v1659 = vpop.xlane.xlu0 %1658
  %v1660 = vsel %vm384, %v1638, 0.0
  %1661 = vadd.xlane.f32.xlu0 %v1660
  %v1662 = vpop.xlane.xlu0 %1661
  %v1663 = vmul.f32 %v1609, 0.03125
  %v1664 = vmul.f32 %v1612, 0.03125
  %v1665 = vmul.f32 %v1615, 0.03125
  %v1666 = vmul.f32 %v1618, 0.03125
  %v1667 = vmul.f32 %v1621, 0.03125
  %v1668 = vmul.f32 %v1624, 0.03125
  %v1669 = vmul.f32 %v1627, 0.03125
  %v1670 = vmul.f32 %v1630, 0.03125
  %v1671 = vmul.f32 %v1641, 0.03125
  %v1672 = vmul.f32 %v1644, 0.03125
  %v1673 = vmul.f32 %v1647, 0.03125
  %v1674 = vmul.f32 %v1650, 0.03125
  %v1675 = vmul.f32 %v1653, 0.03125
  %v1676 = vmul.f32 %v1656, 0.03125
  %v1677 = vmul.f32 %v1659, 0.03125
  %v1678 = vmul.f32 %v1662, 0.03125
  %v1679 = vmul.f32 %v1663, %v1663
  %v1680 = vmul.f32 %v1664, %v1664
  %v1681 = vmul.f32 %v1665, %v1665
  %v1682 = vmul.f32 %v1666, %v1666
  %v1683 = vmul.f32 %v1667, %v1667
  %v1684 = vmul.f32 %v1668, %v1668
  %v1685 = vmul.f32 %v1669, %v1669
  %v1686 = vmul.f32 %v1670, %v1670
  %v1687 = vsub.f32 %v1671, %v1679
  %v1688 = vsub.f32 %v1672, %v1680
  %v1689 = vsub.f32 %v1673, %v1681
  %v1690 = vsub.f32 %v1674, %v1682
  %v1691 = vsub.f32 %v1675, %v1683
  %v1692 = vsub.f32 %v1676, %v1684
  %v1693 = vsub.f32 %v1677, %v1685
  %v1694 = vsub.f32 %v1678, %v1686
  %v1695 = vsub.f32 %v1570, %v1663
  %v1696 = vsub.f32 %v1571, %v1664
  %v1697 = vsub.f32 %v1572, %v1665
  %v1698 = vsub.f32 %v1573, %v1666
  %v1699 = vsub.f32 %v1574, %v1667
  %v1700 = vsub.f32 %v1575, %v1668
  %v1701 = vsub.f32 %v1576, %v1669
  %v1702 = vsub.f32 %v1577, %v1670
  %v1703 = vadd.f32 %v1687, 1e-05
  %v1704 = vadd.f32 %v1688, 1e-05
  %v1705 = vadd.f32 %v1689, 1e-05
  %v1706 = vadd.f32 %v1690, 1e-05
  %v1707 = vadd.f32 %v1691, 1e-05
  %v1708 = vadd.f32 %v1692, 1e-05
  %v1709 = vadd.f32 %v1693, 1e-05
  %v1710 = vadd.f32 %v1694, 1e-05
  %v1711 = vrsqrt.pop %v1703
  %v1712 = vmul.f32 %v1711, %v1703
  %v1713 = vmul.f32 %v1712, %v1711
  %v1714 = vmul.f32 0.5, %v1713
  %v1715 = vsub.f32 1.5, %v1714
  %v1716 = vmul.f32 %v1711, %v1715
  %vm1717 = vweird.f32 %v1703
  %vm1718 = vweird.f32 %v1711
  %vm1719 = vmor %vm1717, %vm1718
  %v1720 = vsel %vm1719, %v1711, %v1716
  %v1721 = vrsqrt.pop %v1704
  %v1722 = vmul.f32 %v1721, %v1704
  %v1723 = vmul.f32 %v1722, %v1721
  %v1724 = vmul.f32 0.5, %v1723
  %v1725 = vsub.f32 1.5, %v1724
  %v1726 = vmul.f32 %v1721, %v1725
  %vm1727 = vweird.f32 %v1704
  %vm1728 = vweird.f32 %v1721
  %vm1729 = vmor %vm1727, %vm1728
  %v1730 = vsel %vm1729, %v1721, %v1726
  %v1731 = vrsqrt.pop %v1705
  %v1732 = vmul.f32 %v1731, %v1705
  %v1733 = vmul.f32 %v1732, %v1731
  %v1734 = vmul.f32 0.5, %v1733
  %v1735 = vsub.f32 1.5, %v1734
  %v1736 = vmul.f32 %v1731, %v1735
  %vm1737 = vweird.f32 %v1705
  %vm1738 = vweird.f32 %v1731
  %vm1739 = vmor %vm1737, %vm1738
  %v1740 = vsel %vm1739, %v1731, %v1736
  %v1741 = vrsqrt.pop %v1706
  %v1742 = vmul.f32 %v1741, %v1706
  %v1743 = vmul.f32 %v1742, %v1741
  %v1744 = vmul.f32 0.5, %v1743
  %v1745 = vsub.f32 1.5, %v1744
  %v1746 = vmul.f32 %v1741, %v1745
  %vm1747 = vweird.f32 %v1706
  %vm1748 = vweird.f32 %v1741
  %vm1749 = vmor %vm1747, %vm1748
  %v1750 = vsel %vm1749, %v1741, %v1746
  %v1751 = vrsqrt.pop %v1707
  %v1752 = vmul.f32 %v1751, %v1707
  %v1753 = vmul.f32 %v1752, %v1751
  %v1754 = vmul.f32 0.5, %v1753
  %v1755 = vsub.f32 1.5, %v1754
  %v1756 = vmul.f32 %v1751, %v1755
  %vm1757 = vweird.f32 %v1707
  %vm1758 = vweird.f32 %v1751
  %vm1759 = vmor %vm1757, %vm1758
  %v1760 = vsel %vm1759, %v1751, %v1756
  %v1761 = vrsqrt.pop %v1708
  %v1762 = vmul.f32 %v1761, %v1708
  %v1763 = vmul.f32 %v1762, %v1761
  %v1764 = vmul.f32 0.5, %v1763
  %v1765 = vsub.f32 1.5, %v1764
  %v1766 = vmul.f32 %v1761, %v1765
  %vm1767 = vweird.f32 %v1708
  %vm1768 = vweird.f32 %v1761
  %vm1769 = vmor %vm1767, %vm1768
  %v1770 = vsel %vm1769, %v1761, %v1766
  %v1771 = vrsqrt.pop %v1709
  %v1772 = vmul.f32 %v1771, %v1709
  %v1773 = vmul.f32 %v1772, %v1771
  %v1774 = vmul.f32 0.5, %v1773
  %v1775 = vsub.f32 1.5, %v1774
  %v1776 = vmul.f32 %v1771, %v1775
  %vm1777 = vweird.f32 %v1709
  %vm1778 = vweird.f32 %v1771
  %vm1779 = vmor %vm1777, %vm1778
  %v1780 = vsel %vm1779, %v1771, %v1776
  %v1781 = vrsqrt.pop %v1710
  %v1782 = vmul.f32 %v1781, %v1710
  %v1783 = vmul.f32 %v1782, %v1781
  %v1784 = vmul.f32 0.5, %v1783
  %v1785 = vsub.f32 1.5, %v1784
  %v1786 = vmul.f32 %v1781, %v1785
  %vm1787 = vweird.f32 %v1710
  %vm1788 = vweird.f32 %v1781
  %vm1789 = vmor %vm1787, %vm1788
  %v1790 = vsel %vm1789, %v1781, %v1786
  %v1791 = vmul.f32 %v1695, %v1720
  %v1792 = vmul.f32 %v1696, %v1730
  %v1793 = vmul.f32 %v1697, %v1740
  %v1794 = vmul.f32 %v1698, %v1750
  %v1795 = vmul.f32 %v1699, %v1760
  %v1796 = vmul.f32 %v1700, %v1770
  %v1797 = vmul.f32 %v1701, %v1780
  %v1798 = vmul.f32 %v1702, %v1790
  %v1799 = vperm.slane %v1606, 0
  %v1801 = vsel %vm384, %v1791, 0
  %v1804 = vsel %vm384, %v1792, 0
  %v1807 = vsel %vm384, %v1793, 0
  %v1810 = vsel %vm384, %v1794, 0
  %v1813 = vsel %vm384, %v1795, 0
  %v1816 = vsel %vm384, %v1796, 0
  %v1819 = vsel %vm384, %v1797, 0
  %v1822 = vsel %vm384, %v1798, 0
  %1824 = vmatpush.msra.mxu0 0.0
  %1825 = vmatpush.msra.mxu0 0.0
  %1826 = vmatpush.msra.mxu0 0.0
  %1827 = vmatpush.msra.mxu0 0.0
  %1828 = vmatpush.msra.mxu0 0.0
  %1829 = vmatpush.msra.mxu0 0.0
  %1830 = vmatpush.msra.mxu0 0.0
  %1831 = vmatpush.msra.mxu0 0.0
  %1832 = vmatpush.msra.mxu0 0.0
  %1833 = vmatpush.msra.mxu0 0.0
  %1834 = vmatpush.msra.mxu0 0.0
  %1835 = vmatpush.msra.mxu0 0.0
  %1836 = vmatpush.msra.mxu0 %v1582
  %1837 = vmatpush.msra.mxu0 %v1581
  %1838 = vmatpush.msra.mxu0 %v1580
  %1839 = vmatpush.msra.mxu0 %v1579
  %1840 = vmatmul.f32.gmra.mxu0 %v1801
  %v1841 = vpop.f32.mrf.mxu0
  %v1842 = vadd.f32 %v1799, %v1841
  %1843 = vmatmul.f32.gmra.mxu0 %v1804
  %v1844 = vpop.f32.mrf.mxu0
  %v1845 = vadd.f32 %v1799, %v1844
  %1846 = vmatmul.f32.gmra.mxu0 %v1807
  %v1847 = vpop.f32.mrf.mxu0
  %v1848 = vadd.f32 %v1799, %v1847
  %1849 = vmatmul.f32.gmra.mxu0 %v1810
  %v1850 = vpop.f32.mrf.mxu0
  %v1851 = vadd.f32 %v1799, %v1850
  %1852 = vmatmul.f32.gmra.mxu0 %v1813
  %v1853 = vpop.f32.mrf.mxu0
  %v1854 = vadd.f32 %v1799, %v1853
  %1855 = vmatmul.f32.gmra.mxu0 %v1816
  %v1856 = vpop.f32.mrf.mxu0
  %v1857 = vadd.f32 %v1799, %v1856
  %1858 = vmatmul.f32.gmra.mxu0 %v1819
  %v1859 = vpop.f32.mrf.mxu0
  %v1860 = vadd.f32 %v1799, %v1859
  %1861 = vmatmul.f32.gmra.mxu0 %v1822
  %v1862 = vpop.f32.mrf.mxu0
  %v1863 = vadd.f32 %v1799, %v1862
  %1864 = vdwg.mxu0
  %v1865 = vadd.f32 %v1570, %v1842
  %v1866 = vadd.f32 %v1571, %v1845
  %v1867 = vadd.f32 %v1572, %v1848
  %v1868 = vadd.f32 %v1573, %v1851
  %v1869 = vadd.f32 %v1574, %v1854
  %v1870 = vadd.f32 %v1575, %v1857
  %v1871 = vadd.f32 %v1576, %v1860
  %v1872 = vadd.f32 %v1577, %v1863
  %v1873 = vsel %vm384, %v1865, 0.0
  %1874 = vadd.xlane.f32.xlu0 %v1873
  %v1875 = vpop.xlane.xlu0 %1874
  %v1876 = vsel %vm384, %v1866, 0.0
  %1877 = vadd.xlane.f32.xlu0 %v1876
  %v1878 = vpop.xlane.xlu0 %1877
  %v1879 = vsel %vm384, %v1867, 0.0
  %1880 = vadd.xlane.f32.xlu0 %v1879
  %v1881 = vpop.xlane.xlu0 %1880
  %v1882 = vsel %vm384, %v1868, 0.0
  %1883 = vadd.xlane.f32.xlu0 %v1882
  %v1884 = vpop.xlane.xlu0 %1883
  %v1885 = vsel %vm384, %v1869, 0.0
  %1886 = vadd.xlane.f32.xlu0 %v1885
  %v1887 = vpop.xlane.xlu0 %1886
  %v1888 = vsel %vm384, %v1870, 0.0
  %1889 = vadd.xlane.f32.xlu0 %v1888
  %v1890 = vpop.xlane.xlu0 %1889
  %v1891 = vsel %vm384, %v1871, 0.0
  %1892 = vadd.xlane.f32.xlu0 %v1891
  %v1893 = vpop.xlane.xlu0 %1892
  %v1894 = vsel %vm384, %v1872, 0.0
  %1895 = vadd.xlane.f32.xlu0 %v1894
  %v1896 = vpop.xlane.xlu0 %1895
  %v1897 = vmul.f32 %v1865, %v1865
  %v1898 = vmul.f32 %v1866, %v1866
  %v1899 = vmul.f32 %v1867, %v1867
  %v1900 = vmul.f32 %v1868, %v1868
  %v1901 = vmul.f32 %v1869, %v1869
  %v1902 = vmul.f32 %v1870, %v1870
  %v1903 = vmul.f32 %v1871, %v1871
  %v1904 = vmul.f32 %v1872, %v1872
  %v1905 = vsel %vm384, %v1897, 0.0
  %1906 = vadd.xlane.f32.xlu0 %v1905
  %v1907 = vpop.xlane.xlu0 %1906
  %v1908 = vsel %vm384, %v1898, 0.0
  %1909 = vadd.xlane.f32.xlu0 %v1908
  %v1910 = vpop.xlane.xlu0 %1909
  %v1911 = vsel %vm384, %v1899, 0.0
  %1912 = vadd.xlane.f32.xlu0 %v1911
  %v1913 = vpop.xlane.xlu0 %1912
  %v1914 = vsel %vm384, %v1900, 0.0
  %1915 = vadd.xlane.f32.xlu0 %v1914
  %v1916 = vpop.xlane.xlu0 %1915
  %v1917 = vsel %vm384, %v1901, 0.0
  %1918 = vadd.xlane.f32.xlu0 %v1917
  %v1919 = vpop.xlane.xlu0 %1918
  %v1920 = vsel %vm384, %v1902, 0.0
  %1921 = vadd.xlane.f32.xlu0 %v1920
  %v1922 = vpop.xlane.xlu0 %1921
  %v1923 = vsel %vm384, %v1903, 0.0
  %1924 = vadd.xlane.f32.xlu0 %v1923
  %v1925 = vpop.xlane.xlu0 %1924
  %v1926 = vsel %vm384, %v1904, 0.0
  %1927 = vadd.xlane.f32.xlu0 %v1926
  %v1928 = vpop.xlane.xlu0 %1927
  %v1929 = vmul.f32 %v1875, 0.03125
  %v1930 = vmul.f32 %v1878, 0.03125
  %v1931 = vmul.f32 %v1881, 0.03125
  %v1932 = vmul.f32 %v1884, 0.03125
  %v1933 = vmul.f32 %v1887, 0.03125
  %v1934 = vmul.f32 %v1890, 0.03125
  %v1935 = vmul.f32 %v1893, 0.03125
  %v1936 = vmul.f32 %v1896, 0.03125
  %v1937 = vmul.f32 %v1907, 0.03125
  %v1938 = vmul.f32 %v1910, 0.03125
  %v1939 = vmul.f32 %v1913, 0.03125
  %v1940 = vmul.f32 %v1916, 0.03125
  %v1941 = vmul.f32 %v1919, 0.03125
  %v1942 = vmul.f32 %v1922, 0.03125
  %v1943 = vmul.f32 %v1925, 0.03125
  %v1944 = vmul.f32 %v1928, 0.03125
  %v1945 = vmul.f32 %v1929, %v1929
  %v1946 = vmul.f32 %v1930, %v1930
  %v1947 = vmul.f32 %v1931, %v1931
  %v1948 = vmul.f32 %v1932, %v1932
  %v1949 = vmul.f32 %v1933, %v1933
  %v1950 = vmul.f32 %v1934, %v1934
  %v1951 = vmul.f32 %v1935, %v1935
  %v1952 = vmul.f32 %v1936, %v1936
  %v1953 = vsub.f32 %v1937, %v1945
  %v1954 = vsub.f32 %v1938, %v1946
  %v1955 = vsub.f32 %v1939, %v1947
  %v1956 = vsub.f32 %v1940, %v1948
  %v1957 = vsub.f32 %v1941, %v1949
  %v1958 = vsub.f32 %v1942, %v1950
  %v1959 = vsub.f32 %v1943, %v1951
  %v1960 = vsub.f32 %v1944, %v1952
  %v1961 = vsub.f32 %v1865, %v1929
  %v1962 = vsub.f32 %v1866, %v1930
  %v1963 = vsub.f32 %v1867, %v1931
  %v1964 = vsub.f32 %v1868, %v1932
  %v1965 = vsub.f32 %v1869, %v1933
  %v1966 = vsub.f32 %v1870, %v1934
  %v1967 = vsub.f32 %v1871, %v1935
  %v1968 = vsub.f32 %v1872, %v1936
  %v1969 = vadd.f32 %v1953, 1e-05
  %v1970 = vadd.f32 %v1954, 1e-05
  %v1971 = vadd.f32 %v1955, 1e-05
  %v1972 = vadd.f32 %v1956, 1e-05
  %v1973 = vadd.f32 %v1957, 1e-05
  %v1974 = vadd.f32 %v1958, 1e-05
  %v1975 = vadd.f32 %v1959, 1e-05
  %v1976 = vadd.f32 %v1960, 1e-05
  %v1977 = vrsqrt.pop %v1969
  %v1978 = vmul.f32 %v1977, %v1969
  %v1979 = vmul.f32 %v1978, %v1977
  %v1980 = vmul.f32 0.5, %v1979
  %v1981 = vsub.f32 1.5, %v1980
  %v1982 = vmul.f32 %v1977, %v1981
  %vm1983 = vweird.f32 %v1969
  %vm1984 = vweird.f32 %v1977
  %vm1985 = vmor %vm1983, %vm1984
  %v1986 = vsel %vm1985, %v1977, %v1982
  %v1987 = vrsqrt.pop %v1970
  %v1988 = vmul.f32 %v1987, %v1970
  %v1989 = vmul.f32 %v1988, %v1987
  %v1990 = vmul.f32 0.5, %v1989
  %v1991 = vsub.f32 1.5, %v1990
  %v1992 = vmul.f32 %v1987, %v1991
  %vm1993 = vweird.f32 %v1970
  %vm1994 = vweird.f32 %v1987
  %vm1995 = vmor %vm1993, %vm1994
  %v1996 = vsel %vm1995, %v1987, %v1992
  %v1997 = vrsqrt.pop %v1971
  %v1998 = vmul.f32 %v1997, %v1971
  %v1999 = vmul.f32 %v1998, %v1997
  %v2000 = vmul.f32 0.5, %v1999
  %v2001 = vsub.f32 1.5, %v2000
  %v2002 = vmul.f32 %v1997, %v2001
  %vm2003 = vweird.f32 %v1971
  %vm2004 = vweird.f32 %v1997
  %vm2005 = vmor %vm2003, %vm2004
  %v2006 = vsel %vm2005, %v1997, %v2002
  %v2007 = vrsqrt.pop %v1972
  %v2008 = vmul.f32 %v2007, %v1972
  %v2009 = vmul.f32 %v2008, %v2007
  %v2010 = vmul.f32 0.5, %v2009
  %v2011 = vsub.f32 1.5, %v2010
  %v2012 = vmul.f32 %v2007, %v2011
  %vm2013 = vweird.f32 %v1972
  %vm2014 = vweird.f32 %v2007
  %vm2015 = vmor %vm2013, %vm2014
  %v2016 = vsel %vm2015, %v2007, %v2012
  %v2017 = vrsqrt.pop %v1973
  %v2018 = vmul.f32 %v2017, %v1973
  %v2019 = vmul.f32 %v2018, %v2017
  %v2020 = vmul.f32 0.5, %v2019
  %v2021 = vsub.f32 1.5, %v2020
  %v2022 = vmul.f32 %v2017, %v2021
  %vm2023 = vweird.f32 %v1973
  %vm2024 = vweird.f32 %v2017
  %vm2025 = vmor %vm2023, %vm2024
  %v2026 = vsel %vm2025, %v2017, %v2022
  %v2027 = vrsqrt.pop %v1974
  %v2028 = vmul.f32 %v2027, %v1974
  %v2029 = vmul.f32 %v2028, %v2027
  %v2030 = vmul.f32 0.5, %v2029
  %v2031 = vsub.f32 1.5, %v2030
  %v2032 = vmul.f32 %v2027, %v2031
  %vm2033 = vweird.f32 %v1974
  %vm2034 = vweird.f32 %v2027
  %vm2035 = vmor %vm2033, %vm2034
  %v2036 = vsel %vm2035, %v2027, %v2032
  %v2037 = vrsqrt.pop %v1975
  %v2038 = vmul.f32 %v2037, %v1975
  %v2039 = vmul.f32 %v2038, %v2037
  %v2040 = vmul.f32 0.5, %v2039
  %v2041 = vsub.f32 1.5, %v2040
  %v2042 = vmul.f32 %v2037, %v2041
  %vm2043 = vweird.f32 %v1975
  %vm2044 = vweird.f32 %v2037
  %vm2045 = vmor %vm2043, %vm2044
  %v2046 = vsel %vm2045, %v2037, %v2042
  %v2047 = vrsqrt.pop %v1976
  %v2048 = vmul.f32 %v2047, %v1976
  %v2049 = vmul.f32 %v2048, %v2047
  %v2050 = vmul.f32 0.5, %v2049
  %v2051 = vsub.f32 1.5, %v2050
  %v2052 = vmul.f32 %v2047, %v2051
  %vm2053 = vweird.f32 %v1976
  %vm2054 = vweird.f32 %v2047
  %vm2055 = vmor %vm2053, %vm2054
  %v2056 = vsel %vm2055, %v2047, %v2052
  %v2057 = vmul.f32 %v1961, %v1986
  %v2058 = vmul.f32 %v1962, %v1996
  %v2059 = vmul.f32 %v1963, %v2006
  %v2060 = vmul.f32 %v1964, %v2016
  %v2061 = vmul.f32 %v1965, %v2026
  %v2062 = vmul.f32 %v1966, %v2036
  %v2063 = vmul.f32 %v1967, %v2046
  %v2064 = vmul.f32 %v1968, %v2056
  %v2065 = vperm.slane %v1606, 2
  %v2067 = vsel %vm384, %v2057, 0
  %v2070 = vsel %vm384, %v2058, 0
  %v2073 = vsel %vm384, %v2059, 0
  %v2076 = vsel %vm384, %v2060, 0
  %v2079 = vsel %vm384, %v2061, 0
  %v2082 = vsel %vm384, %v2062, 0
  %v2085 = vsel %vm384, %v2063, 0
  %v2088 = vsel %vm384, %v2064, 0
  %2090 = vmatpush.msra.mxu0 0.0
  %2091 = vmatpush.msra.mxu0 0.0
  %2092 = vmatpush.msra.mxu0 0.0
  %2093 = vmatpush.msra.mxu0 0.0
  %2094 = vmatpush.msra.mxu0 0.0
  %2095 = vmatpush.msra.mxu0 0.0
  %2096 = vmatpush.msra.mxu0 0.0
  %2097 = vmatpush.msra.mxu0 0.0
  %2098 = vmatpush.msra.mxu0 0.0
  %2099 = vmatpush.msra.mxu0 0.0
  %2100 = vmatpush.msra.mxu0 0.0
  %2101 = vmatpush.msra.mxu0 0.0
  %2102 = vmatpush.msra.mxu0 %v1587
  %2103 = vmatpush.msra.mxu0 %v1586
  %2104 = vmatpush.msra.mxu0 %v1585
  %2105 = vmatpush.msra.mxu0 %v1584
  %2106 = vmatmul.f32.gmra.mxu0 %v2067
  %v2107 = vpop.f32.mrf.mxu0
  %v2108 = vadd.f32 %v2065, %v2107
  %2109 = vmatmul.f32.gmra.mxu0 %v2070
  %v2110 = vpop.f32.mrf.mxu0
  %v2111 = vadd.f32 %v2065, %v2110
  %2112 = vmatmul.f32.gmra.mxu0 %v2073
  %v2113 = vpop.f32.mrf.mxu0
  %v2114 = vadd.f32 %v2065, %v2113
  %2115 = vmatmul.f32.gmra.mxu0 %v2076
  %v2116 = vpop.f32.mrf.mxu0
  %v2117 = vadd.f32 %v2065, %v2116
  %2118 = vmatmul.f32.gmra.mxu0 %v2079
  %v2119 = vpop.f32.mrf.mxu0
  %v2120 = vadd.f32 %v2065, %v2119
  %2121 = vmatmul.f32.gmra.mxu0 %v2082
  %v2122 = vpop.f32.mrf.mxu0
  %v2123 = vadd.f32 %v2065, %v2122
  %2124 = vmatmul.f32.gmra.mxu0 %v2085
  %v2125 = vpop.f32.mrf.mxu0
  %v2126 = vadd.f32 %v2065, %v2125
  %2127 = vmatmul.f32.gmra.mxu0 %v2088
  %v2128 = vpop.f32.mrf.mxu0
  %v2129 = vadd.f32 %v2065, %v2128
  %2130 = vdwg.mxu0
  %v2131 = vmax.f32 %v2108, 0.0
  %v2132 = vmax.f32 %v2111, 0.0
  %v2133 = vmax.f32 %v2114, 0.0
  %v2134 = vmax.f32 %v2117, 0.0
  %v2135 = vmax.f32 %v2120, 0.0
  %v2136 = vmax.f32 %v2123, 0.0
  %v2137 = vmax.f32 %v2126, 0.0
  %v2138 = vmax.f32 %v2129, 0.0
  %v2139 = vperm.slane %v1606, 1
  %2140 = vmatpush.msra.mxu0 %v1604
  %2141 = vmatpush.msra.mxu0 %v1603
  %2142 = vmatpush.msra.mxu0 %v1602
  %2143 = vmatpush.msra.mxu0 %v1601
  %2144 = vmatpush.msra.mxu0 %v1600
  %2145 = vmatpush.msra.mxu0 %v1599
  %2146 = vmatpush.msra.mxu0 %v1598
  %2147 = vmatpush.msra.mxu0 %v1597
  %2148 = vmatpush.msra.mxu0 %v1596
  %2149 = vmatpush.msra.mxu0 %v1595
  %2150 = vmatpush.msra.mxu0 %v1594
  %2151 = vmatpush.msra.mxu0 %v1593
  %2152 = vmatpush.msra.mxu0 %v1592
  %2153 = vmatpush.msra.mxu0 %v1591
  %2154 = vmatpush.msra.mxu0 %v1590
  %2155 = vmatpush.msra.mxu0 %v1589
  %2156 = vmatmul.f32.gmra.mxu0 %v2131
  %v2157 = vpop.f32.mrf.mxu0
  %v2158 = vadd.f32 %v2139, %v2157
  %2159 = vmatmul.f32.gmra.mxu0 %v2132
  %v2160 = vpop.f32.mrf.mxu0
  %v2161 = vadd.f32 %v2139, %v2160
  %2162 = vmatmul.f32.gmra.mxu0 %v2133
  %v2163 = vpop.f32.mrf.mxu0
  %v2164 = vadd.f32 %v2139, %v2163
  %2165 = vmatmul.f32.gmra.mxu0 %v2134
  %v2166 = vpop.f32.mrf.mxu0
  %v2167 = vadd.f32 %v2139, %v2166
  %2168 = vmatmul.f32.gmra.mxu0 %v2135
  %v2169 = vpop.f32.mrf.mxu0
  %v2170 = vadd.f32 %v2139, %v2169
  %2171 = vmatmul.f32.gmra.mxu0 %v2136
  %v2172 = vpop.f32.mrf.mxu0
  %v2173 = vadd.f32 %v2139, %v2172
  %2174 = vmatmul.f32.gmra.mxu0 %v2137
  %v2175 = vpop.f32.mrf.mxu0
  %v2176 = vadd.f32 %v2139, %v2175
  %2177 = vmatmul.f32.gmra.mxu0 %v2138
  %v2178 = vpop.f32.mrf.mxu0
  %v2179 = vadd.f32 %v2139, %v2178
  %2180 = vdwg.mxu0
  %v2181 = vadd.f32 %v1865, %v2158
  %v2182 = vadd.f32 %v1866, %v2161
  %v2183 = vadd.f32 %v1867, %v2164
  %v2184 = vadd.f32 %v1868, %v2167
  %v2185 = vadd.f32 %v1869, %v2170
  %v2186 = vadd.f32 %v1870, %v2173
  %v2187 = vadd.f32 %v1871, %v2176
  %v2188 = vadd.f32 %v1872, %v2179
  %s2189 = scalar_lea.vmem %s3, 96
  %v2190 = vld [vmem:[%s2189] sm:$0xff]
  %v2191 = vld [vmem:[%s2189 + $0x8] sm:$0xff]
  %v2192 = vld [vmem:[%s2189 + $0x10] sm:$0xff]
  %v2193 = vld [vmem:[%s2189 + $0x18] sm:$0xff]
  %s2194 = scalar_lea.vmem %s4, 96
  %v2195 = vld [vmem:[%s2194] sm:$0xff]
  %v2196 = vld [vmem:[%s2194 + $0x8] sm:$0xff]
  %v2197 = vld [vmem:[%s2194 + $0x10] sm:$0xff]
  %v2198 = vld [vmem:[%s2194 + $0x18] sm:$0xff]
  %s2199 = scalar_lea.vmem %s5, 384
  %v2200 = vld [vmem:[%s2199] sm:$0xff]
  %v2201 = vld [vmem:[%s2199 + $0x8] sm:$0xff]
  %v2202 = vld [vmem:[%s2199 + $0x10] sm:$0xff]
  %v2203 = vld [vmem:[%s2199 + $0x18] sm:$0xff]
  %v2204 = vld [vmem:[%s2199 + $0x20] sm:$0xff]
  %v2205 = vld [vmem:[%s2199 + $0x28] sm:$0xff]
  %v2206 = vld [vmem:[%s2199 + $0x30] sm:$0xff]
  %v2207 = vld [vmem:[%s2199 + $0x38] sm:$0xff]
  %v2208 = vld [vmem:[%s2199 + $0x40] sm:$0xff]
  %v2209 = vld [vmem:[%s2199 + $0x48] sm:$0xff]
  %v2210 = vld [vmem:[%s2199 + $0x50] sm:$0xff]
  %v2211 = vld [vmem:[%s2199 + $0x58] sm:$0xff]
  %v2212 = vld [vmem:[%s2199 + $0x60] sm:$0xff]
  %v2213 = vld [vmem:[%s2199 + $0x68] sm:$0xff]
  %v2214 = vld [vmem:[%s2199 + $0x70] sm:$0xff]
  %v2215 = vld [vmem:[%s2199 + $0x78] sm:$0xff]
  %s2216 = scalar_lea.vmem %s6, 12
  %v2217 = vld [vmem:[%s2216] sm:$0x7]
  %v2218 = vsel %vm384, %v2181, 0.0
  %2219 = vadd.xlane.f32.xlu0 %v2218
  %v2220 = vpop.xlane.xlu0 %2219
  %v2221 = vsel %vm384, %v2182, 0.0
  %2222 = vadd.xlane.f32.xlu0 %v2221
  %v2223 = vpop.xlane.xlu0 %2222
  %v2224 = vsel %vm384, %v2183, 0.0
  %2225 = vadd.xlane.f32.xlu0 %v2224
  %v2226 = vpop.xlane.xlu0 %2225
  %v2227 = vsel %vm384, %v2184, 0.0
  %2228 = vadd.xlane.f32.xlu0 %v2227
  %v2229 = vpop.xlane.xlu0 %2228
  %v2230 = vsel %vm384, %v2185, 0.0
  %2231 = vadd.xlane.f32.xlu0 %v2230
  %v2232 = vpop.xlane.xlu0 %2231
  %v2233 = vsel %vm384, %v2186, 0.0
  %2234 = vadd.xlane.f32.xlu0 %v2233
  %v2235 = vpop.xlane.xlu0 %2234
  %v2236 = vsel %vm384, %v2187, 0.0
  %2237 = vadd.xlane.f32.xlu0 %v2236
  %v2238 = vpop.xlane.xlu0 %2237
  %v2239 = vsel %vm384, %v2188, 0.0
  %2240 = vadd.xlane.f32.xlu0 %v2239
  %v2241 = vpop.xlane.xlu0 %2240
  %v2242 = vmul.f32 %v2181, %v2181
  %v2243 = vmul.f32 %v2182, %v2182
  %v2244 = vmul.f32 %v2183, %v2183
  %v2245 = vmul.f32 %v2184, %v2184
  %v2246 = vmul.f32 %v2185, %v2185
  %v2247 = vmul.f32 %v2186, %v2186
  %v2248 = vmul.f32 %v2187, %v2187
  %v2249 = vmul.f32 %v2188, %v2188
  %v2250 = vsel %vm384, %v2242, 0.0
  %2251 = vadd.xlane.f32.xlu0 %v2250
  %v2252 = vpop.xlane.xlu0 %2251
  %v2253 = vsel %vm384, %v2243, 0.0
  %2254 = vadd.xlane.f32.xlu0 %v2253
  %v2255 = vpop.xlane.xlu0 %2254
  %v2256 = vsel %vm384, %v2244, 0.0
  %2257 = vadd.xlane.f32.xlu0 %v2256
  %v2258 = vpop.xlane.xlu0 %2257
  %v2259 = vsel %vm384, %v2245, 0.0
  %2260 = vadd.xlane.f32.xlu0 %v2259
  %v2261 = vpop.xlane.xlu0 %2260
  %v2262 = vsel %vm384, %v2246, 0.0
  %2263 = vadd.xlane.f32.xlu0 %v2262
  %v2264 = vpop.xlane.xlu0 %2263
  %v2265 = vsel %vm384, %v2247, 0.0
  %2266 = vadd.xlane.f32.xlu0 %v2265
  %v2267 = vpop.xlane.xlu0 %2266
  %v2268 = vsel %vm384, %v2248, 0.0
  %2269 = vadd.xlane.f32.xlu0 %v2268
  %v2270 = vpop.xlane.xlu0 %2269
  %v2271 = vsel %vm384, %v2249, 0.0
  %2272 = vadd.xlane.f32.xlu0 %v2271
  %v2273 = vpop.xlane.xlu0 %2272
  %v2274 = vmul.f32 %v2220, 0.03125
  %v2275 = vmul.f32 %v2223, 0.03125
  %v2276 = vmul.f32 %v2226, 0.03125
  %v2277 = vmul.f32 %v2229, 0.03125
  %v2278 = vmul.f32 %v2232, 0.03125
  %v2279 = vmul.f32 %v2235, 0.03125
  %v2280 = vmul.f32 %v2238, 0.03125
  %v2281 = vmul.f32 %v2241, 0.03125
  %v2282 = vmul.f32 %v2252, 0.03125
  %v2283 = vmul.f32 %v2255, 0.03125
  %v2284 = vmul.f32 %v2258, 0.03125
  %v2285 = vmul.f32 %v2261, 0.03125
  %v2286 = vmul.f32 %v2264, 0.03125
  %v2287 = vmul.f32 %v2267, 0.03125
  %v2288 = vmul.f32 %v2270, 0.03125
  %v2289 = vmul.f32 %v2273, 0.03125
  %v2290 = vmul.f32 %v2274, %v2274
  %v2291 = vmul.f32 %v2275, %v2275
  %v2292 = vmul.f32 %v2276, %v2276
  %v2293 = vmul.f32 %v2277, %v2277
  %v2294 = vmul.f32 %v2278, %v2278
  %v2295 = vmul.f32 %v2279, %v2279
  %v2296 = vmul.f32 %v2280, %v2280
  %v2297 = vmul.f32 %v2281, %v2281
  %v2298 = vsub.f32 %v2282, %v2290
  %v2299 = vsub.f32 %v2283, %v2291
  %v2300 = vsub.f32 %v2284, %v2292
  %v2301 = vsub.f32 %v2285, %v2293
  %v2302 = vsub.f32 %v2286, %v2294
  %v2303 = vsub.f32 %v2287, %v2295
  %v2304 = vsub.f32 %v2288, %v2296
  %v2305 = vsub.f32 %v2289, %v2297
  %v2306 = vsub.f32 %v2181, %v2274
  %v2307 = vsub.f32 %v2182, %v2275
  %v2308 = vsub.f32 %v2183, %v2276
  %v2309 = vsub.f32 %v2184, %v2277
  %v2310 = vsub.f32 %v2185, %v2278
  %v2311 = vsub.f32 %v2186, %v2279
  %v2312 = vsub.f32 %v2187, %v2280
  %v2313 = vsub.f32 %v2188, %v2281
  %v2314 = vadd.f32 %v2298, 1e-05
  %v2315 = vadd.f32 %v2299, 1e-05
  %v2316 = vadd.f32 %v2300, 1e-05
  %v2317 = vadd.f32 %v2301, 1e-05
  %v2318 = vadd.f32 %v2302, 1e-05
  %v2319 = vadd.f32 %v2303, 1e-05
  %v2320 = vadd.f32 %v2304, 1e-05
  %v2321 = vadd.f32 %v2305, 1e-05
  %v2322 = vrsqrt.pop %v2314
  %v2323 = vmul.f32 %v2322, %v2314
  %v2324 = vmul.f32 %v2323, %v2322
  %v2325 = vmul.f32 0.5, %v2324
  %v2326 = vsub.f32 1.5, %v2325
  %v2327 = vmul.f32 %v2322, %v2326
  %vm2328 = vweird.f32 %v2314
  %vm2329 = vweird.f32 %v2322
  %vm2330 = vmor %vm2328, %vm2329
  %v2331 = vsel %vm2330, %v2322, %v2327
  %v2332 = vrsqrt.pop %v2315
  %v2333 = vmul.f32 %v2332, %v2315
  %v2334 = vmul.f32 %v2333, %v2332
  %v2335 = vmul.f32 0.5, %v2334
  %v2336 = vsub.f32 1.5, %v2335
  %v2337 = vmul.f32 %v2332, %v2336
  %vm2338 = vweird.f32 %v2315
  %vm2339 = vweird.f32 %v2332
  %vm2340 = vmor %vm2338, %vm2339
  %v2341 = vsel %vm2340, %v2332, %v2337
  %v2342 = vrsqrt.pop %v2316
  %v2343 = vmul.f32 %v2342, %v2316
  %v2344 = vmul.f32 %v2343, %v2342
  %v2345 = vmul.f32 0.5, %v2344
  %v2346 = vsub.f32 1.5, %v2345
  %v2347 = vmul.f32 %v2342, %v2346
  %vm2348 = vweird.f32 %v2316
  %vm2349 = vweird.f32 %v2342
  %vm2350 = vmor %vm2348, %vm2349
  %v2351 = vsel %vm2350, %v2342, %v2347
  %v2352 = vrsqrt.pop %v2317
  %v2353 = vmul.f32 %v2352, %v2317
  %v2354 = vmul.f32 %v2353, %v2352
  %v2355 = vmul.f32 0.5, %v2354
  %v2356 = vsub.f32 1.5, %v2355
  %v2357 = vmul.f32 %v2352, %v2356
  %vm2358 = vweird.f32 %v2317
  %vm2359 = vweird.f32 %v2352
  %vm2360 = vmor %vm2358, %vm2359
  %v2361 = vsel %vm2360, %v2352, %v2357
  %v2362 = vrsqrt.pop %v2318
  %v2363 = vmul.f32 %v2362, %v2318
  %v2364 = vmul.f32 %v2363, %v2362
  %v2365 = vmul.f32 0.5, %v2364
  %v2366 = vsub.f32 1.5, %v2365
  %v2367 = vmul.f32 %v2362, %v2366
  %vm2368 = vweird.f32 %v2318
  %vm2369 = vweird.f32 %v2362
  %vm2370 = vmor %vm2368, %vm2369
  %v2371 = vsel %vm2370, %v2362, %v2367
  %v2372 = vrsqrt.pop %v2319
  %v2373 = vmul.f32 %v2372, %v2319
  %v2374 = vmul.f32 %v2373, %v2372
  %v2375 = vmul.f32 0.5, %v2374
  %v2376 = vsub.f32 1.5, %v2375
  %v2377 = vmul.f32 %v2372, %v2376
  %vm2378 = vweird.f32 %v2319
  %vm2379 = vweird.f32 %v2372
  %vm2380 = vmor %vm2378, %vm2379
  %v2381 = vsel %vm2380, %v2372, %v2377
  %v2382 = vrsqrt.pop %v2320
  %v2383 = vmul.f32 %v2382, %v2320
  %v2384 = vmul.f32 %v2383, %v2382
  %v2385 = vmul.f32 0.5, %v2384
  %v2386 = vsub.f32 1.5, %v2385
  %v2387 = vmul.f32 %v2382, %v2386
  %vm2388 = vweird.f32 %v2320
  %vm2389 = vweird.f32 %v2382
  %vm2390 = vmor %vm2388, %vm2389
  %v2391 = vsel %vm2390, %v2382, %v2387
  %v2392 = vrsqrt.pop %v2321
  %v2393 = vmul.f32 %v2392, %v2321
  %v2394 = vmul.f32 %v2393, %v2392
  %v2395 = vmul.f32 0.5, %v2394
  %v2396 = vsub.f32 1.5, %v2395
  %v2397 = vmul.f32 %v2392, %v2396
  %vm2398 = vweird.f32 %v2321
  %vm2399 = vweird.f32 %v2392
  %vm2400 = vmor %vm2398, %vm2399
  %v2401 = vsel %vm2400, %v2392, %v2397
  %v2402 = vmul.f32 %v2306, %v2331
  %v2403 = vmul.f32 %v2307, %v2341
  %v2404 = vmul.f32 %v2308, %v2351
  %v2405 = vmul.f32 %v2309, %v2361
  %v2406 = vmul.f32 %v2310, %v2371
  %v2407 = vmul.f32 %v2311, %v2381
  %v2408 = vmul.f32 %v2312, %v2391
  %v2409 = vmul.f32 %v2313, %v2401
  %v2410 = vperm.slane %v2217, 0
  %v2412 = vsel %vm384, %v2402, 0
  %v2415 = vsel %vm384, %v2403, 0
  %v2418 = vsel %vm384, %v2404, 0
  %v2421 = vsel %vm384, %v2405, 0
  %v2424 = vsel %vm384, %v2406, 0
  %v2427 = vsel %vm384, %v2407, 0
  %v2430 = vsel %vm384, %v2408, 0
  %v2433 = vsel %vm384, %v2409, 0
  %2435 = vmatpush.msra.mxu0 0.0
  %2436 = vmatpush.msra.mxu0 0.0
  %2437 = vmatpush.msra.mxu0 0.0
  %2438 = vmatpush.msra.mxu0 0.0
  %2439 = vmatpush.msra.mxu0 0.0
  %2440 = vmatpush.msra.mxu0 0.0
  %2441 = vmatpush.msra.mxu0 0.0
  %2442 = vmatpush.msra.mxu0 0.0
  %2443 = vmatpush.msra.mxu0 0.0
  %2444 = vmatpush.msra.mxu0 0.0
  %2445 = vmatpush.msra.mxu0 0.0
  %2446 = vmatpush.msra.mxu0 0.0
  %2447 = vmatpush.msra.mxu0 %v2193
  %2448 = vmatpush.msra.mxu0 %v2192
  %2449 = vmatpush.msra.mxu0 %v2191
  %2450 = vmatpush.msra.mxu0 %v2190
  %2451 = vmatmul.f32.gmra.mxu0 %v2412
  %v2452 = vpop.f32.mrf.mxu0
  %v2453 = vadd.f32 %v2410, %v2452
  %2454 = vmatmul.f32.gmra.mxu0 %v2415
  %v2455 = vpop.f32.mrf.mxu0
  %v2456 = vadd.f32 %v2410, %v2455
  %2457 = vmatmul.f32.gmra.mxu0 %v2418
  %v2458 = vpop.f32.mrf.mxu0
  %v2459 = vadd.f32 %v2410, %v2458
  %2460 = vmatmul.f32.gmra.mxu0 %v2421
  %v2461 = vpop.f32.mrf.mxu0
  %v2462 = vadd.f32 %v2410, %v2461
  %2463 = vmatmul.f32.gmra.mxu0 %v2424
  %v2464 = vpop.f32.mrf.mxu0
  %v2465 = vadd.f32 %v2410, %v2464
  %2466 = vmatmul.f32.gmra.mxu0 %v2427
  %v2467 = vpop.f32.mrf.mxu0
  %v2468 = vadd.f32 %v2410, %v2467
  %2469 = vmatmul.f32.gmra.mxu0 %v2430
  %v2470 = vpop.f32.mrf.mxu0
  %v2471 = vadd.f32 %v2410, %v2470
  %2472 = vmatmul.f32.gmra.mxu0 %v2433
  %v2473 = vpop.f32.mrf.mxu0
  %v2474 = vadd.f32 %v2410, %v2473
  %2475 = vdwg.mxu0
  %v2476 = vadd.f32 %v2181, %v2453
  %v2477 = vadd.f32 %v2182, %v2456
  %v2478 = vadd.f32 %v2183, %v2459
  %v2479 = vadd.f32 %v2184, %v2462
  %v2480 = vadd.f32 %v2185, %v2465
  %v2481 = vadd.f32 %v2186, %v2468
  %v2482 = vadd.f32 %v2187, %v2471
  %v2483 = vadd.f32 %v2188, %v2474
  %v2484 = vsel %vm384, %v2476, 0.0
  %2485 = vadd.xlane.f32.xlu0 %v2484
  %v2486 = vpop.xlane.xlu0 %2485
  %v2487 = vsel %vm384, %v2477, 0.0
  %2488 = vadd.xlane.f32.xlu0 %v2487
  %v2489 = vpop.xlane.xlu0 %2488
  %v2490 = vsel %vm384, %v2478, 0.0
  %2491 = vadd.xlane.f32.xlu0 %v2490
  %v2492 = vpop.xlane.xlu0 %2491
  %v2493 = vsel %vm384, %v2479, 0.0
  %2494 = vadd.xlane.f32.xlu0 %v2493
  %v2495 = vpop.xlane.xlu0 %2494
  %v2496 = vsel %vm384, %v2480, 0.0
  %2497 = vadd.xlane.f32.xlu0 %v2496
  %v2498 = vpop.xlane.xlu0 %2497
  %v2499 = vsel %vm384, %v2481, 0.0
  %2500 = vadd.xlane.f32.xlu0 %v2499
  %v2501 = vpop.xlane.xlu0 %2500
  %v2502 = vsel %vm384, %v2482, 0.0
  %2503 = vadd.xlane.f32.xlu0 %v2502
  %v2504 = vpop.xlane.xlu0 %2503
  %v2505 = vsel %vm384, %v2483, 0.0
  %2506 = vadd.xlane.f32.xlu0 %v2505
  %v2507 = vpop.xlane.xlu0 %2506
  %v2508 = vmul.f32 %v2476, %v2476
  %v2509 = vmul.f32 %v2477, %v2477
  %v2510 = vmul.f32 %v2478, %v2478
  %v2511 = vmul.f32 %v2479, %v2479
  %v2512 = vmul.f32 %v2480, %v2480
  %v2513 = vmul.f32 %v2481, %v2481
  %v2514 = vmul.f32 %v2482, %v2482
  %v2515 = vmul.f32 %v2483, %v2483
  %v2516 = vsel %vm384, %v2508, 0.0
  %2517 = vadd.xlane.f32.xlu0 %v2516
  %v2518 = vpop.xlane.xlu0 %2517
  %v2519 = vsel %vm384, %v2509, 0.0
  %2520 = vadd.xlane.f32.xlu0 %v2519
  %v2521 = vpop.xlane.xlu0 %2520
  %v2522 = vsel %vm384, %v2510, 0.0
  %2523 = vadd.xlane.f32.xlu0 %v2522
  %v2524 = vpop.xlane.xlu0 %2523
  %v2525 = vsel %vm384, %v2511, 0.0
  %2526 = vadd.xlane.f32.xlu0 %v2525
  %v2527 = vpop.xlane.xlu0 %2526
  %v2528 = vsel %vm384, %v2512, 0.0
  %2529 = vadd.xlane.f32.xlu0 %v2528
  %v2530 = vpop.xlane.xlu0 %2529
  %v2531 = vsel %vm384, %v2513, 0.0
  %2532 = vadd.xlane.f32.xlu0 %v2531
  %v2533 = vpop.xlane.xlu0 %2532
  %v2534 = vsel %vm384, %v2514, 0.0
  %2535 = vadd.xlane.f32.xlu0 %v2534
  %v2536 = vpop.xlane.xlu0 %2535
  %v2537 = vsel %vm384, %v2515, 0.0
  %2538 = vadd.xlane.f32.xlu0 %v2537
  %v2539 = vpop.xlane.xlu0 %2538
  %v2540 = vmul.f32 %v2486, 0.03125
  %v2541 = vmul.f32 %v2489, 0.03125
  %v2542 = vmul.f32 %v2492, 0.03125
  %v2543 = vmul.f32 %v2495, 0.03125
  %v2544 = vmul.f32 %v2498, 0.03125
  %v2545 = vmul.f32 %v2501, 0.03125
  %v2546 = vmul.f32 %v2504, 0.03125
  %v2547 = vmul.f32 %v2507, 0.03125
  %v2548 = vmul.f32 %v2518, 0.03125
  %v2549 = vmul.f32 %v2521, 0.03125
  %v2550 = vmul.f32 %v2524, 0.03125
  %v2551 = vmul.f32 %v2527, 0.03125
  %v2552 = vmul.f32 %v2530, 0.03125
  %v2553 = vmul.f32 %v2533, 0.03125
  %v2554 = vmul.f32 %v2536, 0.03125
  %v2555 = vmul.f32 %v2539, 0.03125
  %v2556 = vmul.f32 %v2540, %v2540
  %v2557 = vmul.f32 %v2541, %v2541
  %v2558 = vmul.f32 %v2542, %v2542
  %v2559 = vmul.f32 %v2543, %v2543
  %v2560 = vmul.f32 %v2544, %v2544
  %v2561 = vmul.f32 %v2545, %v2545
  %v2562 = vmul.f32 %v2546, %v2546
  %v2563 = vmul.f32 %v2547, %v2547
  %v2564 = vsub.f32 %v2548, %v2556
  %v2565 = vsub.f32 %v2549, %v2557
  %v2566 = vsub.f32 %v2550, %v2558
  %v2567 = vsub.f32 %v2551, %v2559
  %v2568 = vsub.f32 %v2552, %v2560
  %v2569 = vsub.f32 %v2553, %v2561
  %v2570 = vsub.f32 %v2554, %v2562
  %v2571 = vsub.f32 %v2555, %v2563
  %v2572 = vsub.f32 %v2476, %v2540
  %v2573 = vsub.f32 %v2477, %v2541
  %v2574 = vsub.f32 %v2478, %v2542
  %v2575 = vsub.f32 %v2479, %v2543
  %v2576 = vsub.f32 %v2480, %v2544
  %v2577 = vsub.f32 %v2481, %v2545
  %v2578 = vsub.f32 %v2482, %v2546
  %v2579 = vsub.f32 %v2483, %v2547
  %v2580 = vadd.f32 %v2564, 1e-05
  %v2581 = vadd.f32 %v2565, 1e-05
  %v2582 = vadd.f32 %v2566, 1e-05
  %v2583 = vadd.f32 %v2567, 1e-05
  %v2584 = vadd.f32 %v2568, 1e-05
  %v2585 = vadd.f32 %v2569, 1e-05
  %v2586 = vadd.f32 %v2570, 1e-05
  %v2587 = vadd.f32 %v2571, 1e-05
  %v2588 = vrsqrt.pop %v2580
  %v2589 = vmul.f32 %v2588, %v2580
  %v2590 = vmul.f32 %v2589, %v2588
  %v2591 = vmul.f32 0.5, %v2590
  %v2592 = vsub.f32 1.5, %v2591
  %v2593 = vmul.f32 %v2588, %v2592
  %vm2594 = vweird.f32 %v2580
  %vm2595 = vweird.f32 %v2588
  %vm2596 = vmor %vm2594, %vm2595
  %v2597 = vsel %vm2596, %v2588, %v2593
  %v2598 = vrsqrt.pop %v2581
  %v2599 = vmul.f32 %v2598, %v2581
  %v2600 = vmul.f32 %v2599, %v2598
  %v2601 = vmul.f32 0.5, %v2600
  %v2602 = vsub.f32 1.5, %v2601
  %v2603 = vmul.f32 %v2598, %v2602
  %vm2604 = vweird.f32 %v2581
  %vm2605 = vweird.f32 %v2598
  %vm2606 = vmor %vm2604, %vm2605
  %v2607 = vsel %vm2606, %v2598, %v2603
  %v2608 = vrsqrt.pop %v2582
  %v2609 = vmul.f32 %v2608, %v2582
  %v2610 = vmul.f32 %v2609, %v2608
  %v2611 = vmul.f32 0.5, %v2610
  %v2612 = vsub.f32 1.5, %v2611
  %v2613 = vmul.f32 %v2608, %v2612
  %vm2614 = vweird.f32 %v2582
  %vm2615 = vweird.f32 %v2608
  %vm2616 = vmor %vm2614, %vm2615
  %v2617 = vsel %vm2616, %v2608, %v2613
  %v2618 = vrsqrt.pop %v2583
  %v2619 = vmul.f32 %v2618, %v2583
  %v2620 = vmul.f32 %v2619, %v2618
  %v2621 = vmul.f32 0.5, %v2620
  %v2622 = vsub.f32 1.5, %v2621
  %v2623 = vmul.f32 %v2618, %v2622
  %vm2624 = vweird.f32 %v2583
  %vm2625 = vweird.f32 %v2618
  %vm2626 = vmor %vm2624, %vm2625
  %v2627 = vsel %vm2626, %v2618, %v2623
  %v2628 = vrsqrt.pop %v2584
  %v2629 = vmul.f32 %v2628, %v2584
  %v2630 = vmul.f32 %v2629, %v2628
  %v2631 = vmul.f32 0.5, %v2630
  %v2632 = vsub.f32 1.5, %v2631
  %v2633 = vmul.f32 %v2628, %v2632
  %vm2634 = vweird.f32 %v2584
  %vm2635 = vweird.f32 %v2628
  %vm2636 = vmor %vm2634, %vm2635
  %v2637 = vsel %vm2636, %v2628, %v2633
  %v2638 = vrsqrt.pop %v2585
  %v2639 = vmul.f32 %v2638, %v2585
  %v2640 = vmul.f32 %v2639, %v2638
  %v2641 = vmul.f32 0.5, %v2640
  %v2642 = vsub.f32 1.5, %v2641
  %v2643 = vmul.f32 %v2638, %v2642
  %vm2644 = vweird.f32 %v2585
  %vm2645 = vweird.f32 %v2638
  %vm2646 = vmor %vm2644, %vm2645
  %v2647 = vsel %vm2646, %v2638, %v2643
  %v2648 = vrsqrt.pop %v2586
  %v2649 = vmul.f32 %v2648, %v2586
  %v2650 = vmul.f32 %v2649, %v2648
  %v2651 = vmul.f32 0.5, %v2650
  %v2652 = vsub.f32 1.5, %v2651
  %v2653 = vmul.f32 %v2648, %v2652
  %vm2654 = vweird.f32 %v2586
  %vm2655 = vweird.f32 %v2648
  %vm2656 = vmor %vm2654, %vm2655
  %v2657 = vsel %vm2656, %v2648, %v2653
  %v2658 = vrsqrt.pop %v2587
  %v2659 = vmul.f32 %v2658, %v2587
  %v2660 = vmul.f32 %v2659, %v2658
  %v2661 = vmul.f32 0.5, %v2660
  %v2662 = vsub.f32 1.5, %v2661
  %v2663 = vmul.f32 %v2658, %v2662
  %vm2664 = vweird.f32 %v2587
  %vm2665 = vweird.f32 %v2658
  %vm2666 = vmor %vm2664, %vm2665
  %v2667 = vsel %vm2666, %v2658, %v2663
  %v2668 = vmul.f32 %v2572, %v2597
  %v2669 = vmul.f32 %v2573, %v2607
  %v2670 = vmul.f32 %v2574, %v2617
  %v2671 = vmul.f32 %v2575, %v2627
  %v2672 = vmul.f32 %v2576, %v2637
  %v2673 = vmul.f32 %v2577, %v2647
  %v2674 = vmul.f32 %v2578, %v2657
  %v2675 = vmul.f32 %v2579, %v2667
  %v2676 = vperm.slane %v2217, 2
  %v2678 = vsel %vm384, %v2668, 0
  %v2681 = vsel %vm384, %v2669, 0
  %v2684 = vsel %vm384, %v2670, 0
  %v2687 = vsel %vm384, %v2671, 0
  %v2690 = vsel %vm384, %v2672, 0
  %v2693 = vsel %vm384, %v2673, 0
  %v2696 = vsel %vm384, %v2674, 0
  %v2699 = vsel %vm384, %v2675, 0
  %2701 = vmatpush.msra.mxu0 0.0
  %2702 = vmatpush.msra.mxu0 0.0
  %2703 = vmatpush.msra.mxu0 0.0
  %2704 = vmatpush.msra.mxu0 0.0
  %2705 = vmatpush.msra.mxu0 0.0
  %2706 = vmatpush.msra.mxu0 0.0
  %2707 = vmatpush.msra.mxu0 0.0
  %2708 = vmatpush.msra.mxu0 0.0
  %2709 = vmatpush.msra.mxu0 0.0
  %2710 = vmatpush.msra.mxu0 0.0
  %2711 = vmatpush.msra.mxu0 0.0
  %2712 = vmatpush.msra.mxu0 0.0
  %2713 = vmatpush.msra.mxu0 %v2198
  %2714 = vmatpush.msra.mxu0 %v2197
  %2715 = vmatpush.msra.mxu0 %v2196
  %2716 = vmatpush.msra.mxu0 %v2195
  %2717 = vmatmul.f32.gmra.mxu0 %v2678
  %v2718 = vpop.f32.mrf.mxu0
  %v2719 = vadd.f32 %v2676, %v2718
  %2720 = vmatmul.f32.gmra.mxu0 %v2681
  %v2721 = vpop.f32.mrf.mxu0
  %v2722 = vadd.f32 %v2676, %v2721
  %2723 = vmatmul.f32.gmra.mxu0 %v2684
  %v2724 = vpop.f32.mrf.mxu0
  %v2725 = vadd.f32 %v2676, %v2724
  %2726 = vmatmul.f32.gmra.mxu0 %v2687
  %v2727 = vpop.f32.mrf.mxu0
  %v2728 = vadd.f32 %v2676, %v2727
  %2729 = vmatmul.f32.gmra.mxu0 %v2690
  %v2730 = vpop.f32.mrf.mxu0
  %v2731 = vadd.f32 %v2676, %v2730
  %2732 = vmatmul.f32.gmra.mxu0 %v2693
  %v2733 = vpop.f32.mrf.mxu0
  %v2734 = vadd.f32 %v2676, %v2733
  %2735 = vmatmul.f32.gmra.mxu0 %v2696
  %v2736 = vpop.f32.mrf.mxu0
  %v2737 = vadd.f32 %v2676, %v2736
  %2738 = vmatmul.f32.gmra.mxu0 %v2699
  %v2739 = vpop.f32.mrf.mxu0
  %v2740 = vadd.f32 %v2676, %v2739
  %2741 = vdwg.mxu0
  %v2742 = vmax.f32 %v2719, 0.0
  %v2743 = vmax.f32 %v2722, 0.0
  %v2744 = vmax.f32 %v2725, 0.0
  %v2745 = vmax.f32 %v2728, 0.0
  %v2746 = vmax.f32 %v2731, 0.0
  %v2747 = vmax.f32 %v2734, 0.0
  %v2748 = vmax.f32 %v2737, 0.0
  %v2749 = vmax.f32 %v2740, 0.0
  %v2750 = vperm.slane %v2217, 1
  %2751 = vmatpush.msra.mxu0 %v2215
  %2752 = vmatpush.msra.mxu0 %v2214
  %2753 = vmatpush.msra.mxu0 %v2213
  %2754 = vmatpush.msra.mxu0 %v2212
  %2755 = vmatpush.msra.mxu0 %v2211
  %2756 = vmatpush.msra.mxu0 %v2210
  %2757 = vmatpush.msra.mxu0 %v2209
  %2758 = vmatpush.msra.mxu0 %v2208
  %2759 = vmatpush.msra.mxu0 %v2207
  %2760 = vmatpush.msra.mxu0 %v2206
  %2761 = vmatpush.msra.mxu0 %v2205
  %2762 = vmatpush.msra.mxu0 %v2204
  %2763 = vmatpush.msra.mxu0 %v2203
  %2764 = vmatpush.msra.mxu0 %v2202
  %2765 = vmatpush.msra.mxu0 %v2201
  %2766 = vmatpush.msra.mxu0 %v2200
  %2767 = vmatmul.f32.gmra.mxu0 %v2742
  %v2768 = vpop.f32.mrf.mxu0
  %v2769 = vadd.f32 %v2750, %v2768
  %2770 = vmatmul.f32.gmra.mxu0 %v2743
  %v2771 = vpop.f32.mrf.mxu0
  %v2772 = vadd.f32 %v2750, %v2771
  %2773 = vmatmul.f32.gmra.mxu0 %v2744
  %v2774 = vpop.f32.mrf.mxu0
  %v2775 = vadd.f32 %v2750, %v2774
  %2776 = vmatmul.f32.gmra.mxu0 %v2745
  %v2777 = vpop.f32.mrf.mxu0
  %v2778 = vadd.f32 %v2750, %v2777
  %2779 = vmatmul.f32.gmra.mxu0 %v2746
  %v2780 = vpop.f32.mrf.mxu0
  %v2781 = vadd.f32 %v2750, %v2780
  %2782 = vmatmul.f32.gmra.mxu0 %v2747
  %v2783 = vpop.f32.mrf.mxu0
  %v2784 = vadd.f32 %v2750, %v2783
  %2785 = vmatmul.f32.gmra.mxu0 %v2748
  %v2786 = vpop.f32.mrf.mxu0
  %v2787 = vadd.f32 %v2750, %v2786
  %2788 = vmatmul.f32.gmra.mxu0 %v2749
  %v2789 = vpop.f32.mrf.mxu0
  %v2790 = vadd.f32 %v2750, %v2789
  %2791 = vdwg.mxu0
  %v2792 = vadd.f32 %v2476, %v2769
  %v2793 = vadd.f32 %v2477, %v2772
  %v2794 = vadd.f32 %v2478, %v2775
  %v2795 = vadd.f32 %v2479, %v2778
  %v2796 = vadd.f32 %v2480, %v2781
  %v2797 = vadd.f32 %v2481, %v2784
  %v2798 = vadd.f32 %v2482, %v2787
  %v2799 = vadd.f32 %v2483, %v2790
  %2800 = vst.msk [vmem:[#allocation2] sm:$0xff] %vm384, %v2792
  %2801 = vst.msk [vmem:[#allocation2 + $0x8] sm:$0xff] %vm384, %v2793
  %2802 = vst.msk [vmem:[#allocation2 + $0x10] sm:$0xff] %vm384, %v2794
  %2803 = vst.msk [vmem:[#allocation2 + $0x18] sm:$0xff] %vm384, %v2795
  %2804 = vst.msk [vmem:[#allocation2 + $0x20] sm:$0xff] %vm384, %v2796
  %2805 = vst.msk [vmem:[#allocation2 + $0x28] sm:$0xff] %vm384, %v2797
  %2806 = vst.msk [vmem:[#allocation2 + $0x30] sm:$0xff] %vm384, %v2798
  %2807 = vst.msk [vmem:[#allocation2 + $0x38] sm:$0xff] %vm384, %v2799
  // Predicated region
  $region42: #{tpu_custom_call.1} parent=0 // pred_check
    %p2808 = pneg %p34
  $region43: #{tpu_custom_call.1} parent=0 // pred_check_branch
    %2810 = sbr.rel (%p2808) target = $region45
  $region44: #{tpu_custom_call.1} parent=0 // pred_region
    %v2811 = vld [vmem:[%s7] sm:$0xff]
    %v2812 = vld [vmem:[%s7 + $0x8] sm:$0xff]
    %v2813 = vld [vmem:[%s7 + $0x10] sm:$0xff]
    %v2814 = vld [vmem:[%s7 + $0x18] sm:$0xff]
    %v2815 = vperm.slane %v32, 4
    %v2817 = vsel %vm384, %v2792, 0
    %v2820 = vsel %vm384, %v2793, 0
    %v2823 = vsel %vm384, %v2794, 0
    %v2826 = vsel %vm384, %v2795, 0
    %v2829 = vsel %vm384, %v2796, 0
    %v2832 = vsel %vm384, %v2797, 0
    %v2835 = vsel %vm384, %v2798, 0
    %v2838 = vsel %vm384, %v2799, 0
    %2840 = vmatpush.msra.mxu0 0.0
    %2841 = vmatpush.msra.mxu0 0.0
    %2842 = vmatpush.msra.mxu0 0.0
    %2843 = vmatpush.msra.mxu0 0.0
    %2844 = vmatpush.msra.mxu0 0.0
    %2845 = vmatpush.msra.mxu0 0.0
    %2846 = vmatpush.msra.mxu0 0.0
    %2847 = vmatpush.msra.mxu0 0.0
    %2848 = vmatpush.msra.mxu0 0.0
    %2849 = vmatpush.msra.mxu0 0.0
    %2850 = vmatpush.msra.mxu0 0.0
    %2851 = vmatpush.msra.mxu0 0.0
    %2852 = vmatpush.msra.mxu0 %v2814
    %2853 = vmatpush.msra.mxu0 %v2813
    %2854 = vmatpush.msra.mxu0 %v2812
    %2855 = vmatpush.msra.mxu0 %v2811
    %2856 = vmatmul.f32.gmra.mxu0 %v2817
    %v2857 = vpop.f32.mrf.mxu0
    %v2858 = vadd.f32 %v2815, %v2857
    %2859 = vmatmul.f32.gmra.mxu0 %v2820
    %v2860 = vpop.f32.mrf.mxu0
    %v2861 = vadd.f32 %v2815, %v2860
    %2862 = vmatmul.f32.gmra.mxu0 %v2823
    %v2863 = vpop.f32.mrf.mxu0
    %v2864 = vadd.f32 %v2815, %v2863
    %2865 = vmatmul.f32.gmra.mxu0 %v2826
    %v2866 = vpop.f32.mrf.mxu0
    %v2867 = vadd.f32 %v2815, %v2866
    %2868 = vmatmul.f32.gmra.mxu0 %v2829
    %v2869 = vpop.f32.mrf.mxu0
    %v2870 = vadd.f32 %v2815, %v2869
    %2871 = vmatmul.f32.gmra.mxu0 %v2832
    %v2872 = vpop.f32.mrf.mxu0
    %v2873 = vadd.f32 %v2815, %v2872
    %2874 = vmatmul.f32.gmra.mxu0 %v2835
    %v2875 = vpop.f32.mrf.mxu0
    %v2876 = vadd.f32 %v2815, %v2875
    %2877 = vmatmul.f32.gmra.mxu0 %v2838
    %v2878 = vpop.f32.mrf.mxu0
    %v2879 = vadd.f32 %v2815, %v2878
    %2880 = vdwg.mxu0
    %vm2881 = vcmask 130048
    %v2882 = vsel %vm2881, %v2858, 0.0
    %2883 = vadd.xlane.f32.xlu0 %v2882
    %v2884 = vpop.xlane.xlu0 %2883
    %v2885 = vsel %vm2881, %v2861, 0.0
    %2886 = vadd.xlane.f32.xlu0 %v2885
    %v2887 = vpop.xlane.xlu0 %2886
    %v2888 = vsel %vm2881, %v2864, 0.0
    %2889 = vadd.xlane.f32.xlu0 %v2888
    %v2890 = vpop.xlane.xlu0 %2889
    %v2891 = vsel %vm2881, %v2867, 0.0
    %2892 = vadd.xlane.f32.xlu0 %v2891
    %v2893 = vpop.xlane.xlu0 %2892
    %v2894 = vsel %vm2881, %v2870, 0.0
    %2895 = vadd.xlane.f32.xlu0 %v2894
    %v2896 = vpop.xlane.xlu0 %2895
    %v2897 = vsel %vm2881, %v2873, 0.0
    %2898 = vadd.xlane.f32.xlu0 %v2897
    %v2899 = vpop.xlane.xlu0 %2898
    %v2900 = vsel %vm2881, %v2876, 0.0
    %2901 = vadd.xlane.f32.xlu0 %v2900
    %v2902 = vpop.xlane.xlu0 %2901
    %v2903 = vsel %vm2881, %v2879, 0.0
    %2904 = vadd.xlane.f32.xlu0 %v2903
    %v2905 = vpop.xlane.xlu0 %2904
    %v2906 = vmul.f32 %v2858, %v2858
    %v2907 = vmul.f32 %v2861, %v2861
    %v2908 = vmul.f32 %v2864, %v2864
    %v2909 = vmul.f32 %v2867, %v2867
    %v2910 = vmul.f32 %v2870, %v2870
    %v2911 = vmul.f32 %v2873, %v2873
    %v2912 = vmul.f32 %v2876, %v2876
    %v2913 = vmul.f32 %v2879, %v2879
    %v2914 = vsel %vm2881, %v2906, 0.0
    %2915 = vadd.xlane.f32.xlu0 %v2914
    %v2916 = vpop.xlane.xlu0 %2915
    %v2917 = vsel %vm2881, %v2907, 0.0
    %2918 = vadd.xlane.f32.xlu0 %v2917
    %v2919 = vpop.xlane.xlu0 %2918
    %v2920 = vsel %vm2881, %v2908, 0.0
    %2921 = vadd.xlane.f32.xlu0 %v2920
    %v2922 = vpop.xlane.xlu0 %2921
    %v2923 = vsel %vm2881, %v2909, 0.0
    %2924 = vadd.xlane.f32.xlu0 %v2923
    %v2925 = vpop.xlane.xlu0 %2924
    %v2926 = vsel %vm2881, %v2910, 0.0
    %2927 = vadd.xlane.f32.xlu0 %v2926
    %v2928 = vpop.xlane.xlu0 %2927
    %v2929 = vsel %vm2881, %v2911, 0.0
    %2930 = vadd.xlane.f32.xlu0 %v2929
    %v2931 = vpop.xlane.xlu0 %2930
    %v2932 = vsel %vm2881, %v2912, 0.0
    %2933 = vadd.xlane.f32.xlu0 %v2932
    %v2934 = vpop.xlane.xlu0 %2933
    %v2935 = vsel %vm2881, %v2913, 0.0
    %2936 = vadd.xlane.f32.xlu0 %v2935
    %v2937 = vpop.xlane.xlu0 %2936
    %v2938 = vmul.f32 %v2884, 0.0625
    %v2939 = vmul.f32 %v2887, 0.0625
    %v2940 = vmul.f32 %v2890, 0.0625
    %v2941 = vmul.f32 %v2893, 0.0625
    %v2942 = vmul.f32 %v2896, 0.0625
    %v2943 = vmul.f32 %v2899, 0.0625
    %v2944 = vmul.f32 %v2902, 0.0625
    %v2945 = vmul.f32 %v2905, 0.0625
    %v2946 = vmul.f32 %v2916, 0.0625
    %v2947 = vmul.f32 %v2919, 0.0625
    %v2948 = vmul.f32 %v2922, 0.0625
    %v2949 = vmul.f32 %v2925, 0.0625
    %v2950 = vmul.f32 %v2928, 0.0625
    %v2951 = vmul.f32 %v2931, 0.0625
    %v2952 = vmul.f32 %v2934, 0.0625
    %v2953 = vmul.f32 %v2937, 0.0625
    %v2954 = vmul.f32 %v2938, %v2938
    %v2955 = vmul.f32 %v2939, %v2939
    %v2956 = vmul.f32 %v2940, %v2940
    %v2957 = vmul.f32 %v2941, %v2941
    %v2958 = vmul.f32 %v2942, %v2942
    %v2959 = vmul.f32 %v2943, %v2943
    %v2960 = vmul.f32 %v2944, %v2944
    %v2961 = vmul.f32 %v2945, %v2945
    %v2962 = vsub.f32 %v2946, %v2954
    %v2963 = vsub.f32 %v2947, %v2955
    %v2964 = vsub.f32 %v2948, %v2956
    %v2965 = vsub.f32 %v2949, %v2957
    %v2966 = vsub.f32 %v2950, %v2958
    %v2967 = vsub.f32 %v2951, %v2959
    %v2968 = vsub.f32 %v2952, %v2960
    %v2969 = vsub.f32 %v2953, %v2961
    %v2970 = vsub.f32 %v2858, %v2938
    %v2971 = vsub.f32 %v2861, %v2939
    %v2972 = vsub.f32 %v2864, %v2940
    %v2973 = vsub.f32 %v2867, %v2941
    %v2974 = vsub.f32 %v2870, %v2942
    %v2975 = vsub.f32 %v2873, %v2943
    %v2976 = vsub.f32 %v2876, %v2944
    %v2977 = vsub.f32 %v2879, %v2945
    %v2978 = vadd.f32 %v2962, 1e-05
    %v2979 = vadd.f32 %v2963, 1e-05
    %v2980 = vadd.f32 %v2964, 1e-05
    %v2981 = vadd.f32 %v2965, 1e-05
    %v2982 = vadd.f32 %v2966, 1e-05
    %v2983 = vadd.f32 %v2967, 1e-05
    %v2984 = vadd.f32 %v2968, 1e-05
    %v2985 = vadd.f32 %v2969, 1e-05
    %v2986 = vrsqrt.pop %v2978
    %v2987 = vmul.f32 %v2986, %v2978
    %v2988 = vmul.f32 %v2987, %v2986
    %v2989 = vmul.f32 0.5, %v2988
    %v2990 = vsub.f32 1.5, %v2989
    %v2991 = vmul.f32 %v2986, %v2990
    %vm2992 = vweird.f32 %v2978
    %vm2993 = vweird.f32 %v2986
    %vm2994 = vmor %vm2992, %vm2993
    %v2995 = vsel %vm2994, %v2986, %v2991
    %v2996 = vrsqrt.pop %v2979
    %v2997 = vmul.f32 %v2996, %v2979
    %v2998 = vmul.f32 %v2997, %v2996
    %v2999 = vmul.f32 0.5, %v2998
    %v3000 = vsub.f32 1.5, %v2999
    %v3001 = vmul.f32 %v2996, %v3000
    %vm3002 = vweird.f32 %v2979
    %vm3003 = vweird.f32 %v2996
    %vm3004 = vmor %vm3002, %vm3003
    %v3005 = vsel %vm3004, %v2996, %v3001
    %v3006 = vrsqrt.pop %v2980
    %v3007 = vmul.f32 %v3006, %v2980
    %v3008 = vmul.f32 %v3007, %v3006
    %v3009 = vmul.f32 0.5, %v3008
    %v3010 = vsub.f32 1.5, %v3009
    %v3011 = vmul.f32 %v3006, %v3010
    %vm3012 = vweird.f32 %v2980
    %vm3013 = vweird.f32 %v3006
    %vm3014 = vmor %vm3012, %vm3013
    %v3015 = vsel %vm3014, %v3006, %v3011
    %v3016 = vrsqrt.pop %v2981
    %v3017 = vmul.f32 %v3016, %v2981
    %v3018 = vmul.f32 %v3017, %v3016
    %v3019 = vmul.f32 0.5, %v3018
    %v3020 = vsub.f32 1.5, %v3019
    %v3021 = vmul.f32 %v3016, %v3020
    %vm3022 = vweird.f32 %v2981
    %vm3023 = vweird.f32 %v3016
    %vm3024 = vmor %vm3022, %vm3023
    %v3025 = vsel %vm3024, %v3016, %v3021
    %v3026 = vrsqrt.pop %v2982
    %v3027 = vmul.f32 %v3026, %v2982
    %v3028 = vmul.f32 %v3027, %v3026
    %v3029 = vmul.f32 0.5, %v3028
    %v3030 = vsub.f32 1.5, %v3029
    %v3031 = vmul.f32 %v3026, %v3030
    %vm3032 = vweird.f32 %v2982
    %vm3033 = vweird.f32 %v3026
    %vm3034 = vmor %vm3032, %vm3033
    %v3035 = vsel %vm3034, %v3026, %v3031
    %v3036 = vrsqrt.pop %v2983
    %v3037 = vmul.f32 %v3036, %v2983
    %v3038 = vmul.f32 %v3037, %v3036
    %v3039 = vmul.f32 0.5, %v3038
    %v3040 = vsub.f32 1.5, %v3039
    %v3041 = vmul.f32 %v3036, %v3040
    %vm3042 = vweird.f32 %v2983
    %vm3043 = vweird.f32 %v3036
    %vm3044 = vmor %vm3042, %vm3043
    %v3045 = vsel %vm3044, %v3036, %v3041
    %v3046 = vrsqrt.pop %v2984
    %v3047 = vmul.f32 %v3046, %v2984
    %v3048 = vmul.f32 %v3047, %v3046
    %v3049 = vmul.f32 0.5, %v3048
    %v3050 = vsub.f32 1.5, %v3049
    %v3051 = vmul.f32 %v3046, %v3050
    %vm3052 = vweird.f32 %v2984
    %vm3053 = vweird.f32 %v3046
    %vm3054 = vmor %vm3052, %vm3053
    %v3055 = vsel %vm3054, %v3046, %v3051
    %v3056 = vrsqrt.pop %v2985
    %v3057 = vmul.f32 %v3056, %v2985
    %v3058 = vmul.f32 %v3057, %v3056
    %v3059 = vmul.f32 0.5, %v3058
    %v3060 = vsub.f32 1.5, %v3059
    %v3061 = vmul.f32 %v3056, %v3060
    %vm3062 = vweird.f32 %v2985
    %vm3063 = vweird.f32 %v3056
    %vm3064 = vmor %vm3062, %vm3063
    %v3065 = vsel %vm3064, %v3056, %v3061
    %v3066 = vmul.f32 %v2970, %v2995
    %v3067 = vmul.f32 %v2971, %v3005
    %v3068 = vmul.f32 %v2972, %v3015
    %v3069 = vmul.f32 %v2973, %v3025
    %v3070 = vmul.f32 %v2974, %v3035
    %v3071 = vmul.f32 %v2975, %v3045
    %v3072 = vmul.f32 %v2976, %v3055
    %v3073 = vmul.f32 %v2977, %v3065
    %v3074 = vperm.slane %v32, 5
    %v3075 = vmul.f32 %v3066, %v3074
    %v3076 = vmul.f32 %v3067, %v3074
    %v3077 = vmul.f32 %v3068, %v3074
    %v3078 = vmul.f32 %v3069, %v3074
    %v3079 = vmul.f32 %v3070, %v3074
    %v3080 = vmul.f32 %v3071, %v3074
    %v3081 = vmul.f32 %v3072, %v3074
    %v3082 = vmul.f32 %v3073, %v3074
    %v3083 = vperm.slane %v32, 6
    %v3084 = vadd.f32 %v3075, %v3083
    %v3085 = vadd.f32 %v3076, %v3083
    %v3086 = vadd.f32 %v3077, %v3083
    %v3087 = vadd.f32 %v3078, %v3083
    %v3088 = vadd.f32 %v3079, %v3083
    %v3089 = vadd.f32 %v3080, %v3083
    %v3090 = vadd.f32 %v3081, %v3083
    %v3091 = vadd.f32 %v3082, %v3083
    %v3092 = vmax.f32 %v3084, 0.0
    %v3093 = vmax.f32 %v3085, 0.0
    %v3094 = vmax.f32 %v3086, 0.0
    %v3095 = vmax.f32 %v3087, 0.0
    %v3096 = vmax.f32 %v3088, 0.0
    %v3097 = vmax.f32 %v3089, 0.0
    %v3098 = vmax.f32 %v3090, 0.0
    %v3099 = vmax.f32 %v3091, 0.0
    %v3100 = vld [vmem:[%s8] sm:$0xff]
    %v3101 = vld [vmem:[%s8 + $0x8] sm:$0xff]
    %v3102 = vperm.slane %v32, 7
    %v3104 = vsel %vm2881, %v3092, 0
    %v3107 = vsel %vm2881, %v3093, 0
    %v3110 = vsel %vm2881, %v3094, 0
    %v3113 = vsel %vm2881, %v3095, 0
    %v3116 = vsel %vm2881, %v3096, 0
    %v3119 = vsel %vm2881, %v3097, 0
    %v3122 = vsel %vm2881, %v3098, 0
    %v3125 = vsel %vm2881, %v3099, 0
    %3127 = vmatpush.msra.mxu0 0.0
    %3128 = vmatpush.msra.mxu0 0.0
    %3129 = vmatpush.msra.mxu0 0.0
    %3130 = vmatpush.msra.mxu0 0.0
    %3131 = vmatpush.msra.mxu0 0.0
    %3132 = vmatpush.msra.mxu0 0.0
    %3133 = vmatpush.msra.mxu0 0.0
    %3134 = vmatpush.msra.mxu0 0.0
    %3135 = vmatpush.msra.mxu0 0.0
    %3136 = vmatpush.msra.mxu0 0.0
    %3137 = vmatpush.msra.mxu0 0.0
    %3138 = vmatpush.msra.mxu0 0.0
    %3139 = vmatpush.msra.mxu0 0.0
    %3140 = vmatpush.msra.mxu0 0.0
    %3141 = vmatpush.msra.mxu0 %v3101
    %3142 = vmatpush.msra.mxu0 %v3100
    %3143 = vmatmul.f32.gmra.mxu0 %v3104
    %v3144 = vpop.f32.mrf.mxu0
    %v3145 = vadd.f32 %v3102, %v3144
    %3146 = vmatmul.f32.gmra.mxu0 %v3107
    %v3147 = vpop.f32.mrf.mxu0
    %v3148 = vadd.f32 %v3102, %v3147
    %3149 = vmatmul.f32.gmra.mxu0 %v3110
    %v3150 = vpop.f32.mrf.mxu0
    %v3151 = vadd.f32 %v3102, %v3150
    %3152 = vmatmul.f32.gmra.mxu0 %v3113
    %v3153 = vpop.f32.mrf.mxu0
    %v3154 = vadd.f32 %v3102, %v3153
    %3155 = vmatmul.f32.gmra.mxu0 %v3116
    %v3156 = vpop.f32.mrf.mxu0
    %v3157 = vadd.f32 %v3102, %v3156
    %3158 = vmatmul.f32.gmra.mxu0 %v3119
    %v3159 = vpop.f32.mrf.mxu0
    %v3160 = vadd.f32 %v3102, %v3159
    %3161 = vmatmul.f32.gmra.mxu0 %v3122
    %v3162 = vpop.f32.mrf.mxu0
    %v3163 = vadd.f32 %v3102, %v3162
    %3164 = vmatmul.f32.gmra.mxu0 %v3125
    %v3165 = vpop.f32.mrf.mxu0
    %v3166 = vadd.f32 %v3102, %v3165
    %3167 = vdwg.mxu0
    %v3168 = vmax.f32 %v3145, 0.0
    %v3169 = vmax.f32 %v3148, 0.0
    %v3170 = vmax.f32 %v3151, 0.0
    %v3171 = vmax.f32 %v3154, 0.0
    %v3172 = vmax.f32 %v3157, 0.0
    %v3173 = vmax.f32 %v3160, 0.0
    %v3174 = vmax.f32 %v3163, 0.0
    %v3175 = vmax.f32 %v3166, 0.0
    %v3176 = vperm.slane %v33, 0
    %v3177 = vmul.f32 %v3168, %v3176
    %v3178 = vmul.f32 %v3169, %v3176
    %v3179 = vmul.f32 %v3170, %v3176
    %v3180 = vmul.f32 %v3171, %v3176
    %v3181 = vmul.f32 %v3172, %v3176
    %v3182 = vmul.f32 %v3173, %v3176
    %v3183 = vmul.f32 %v3174, %v3176
    %v3184 = vmul.f32 %v3175, %v3176
    %vm3185 = vcmask 64512
    %v3186 = vsel %vm3185, %v3177, 0.0
    %3187 = vadd.xlane.f32.xlu0 %v3186
    %v3188 = vpop.xlane.xlu0 %3187
    %v3189 = vsel %vm3185, %v3178, 0.0
    %3190 = vadd.xlane.f32.xlu0 %v3189
    %v3191 = vpop.xlane.xlu0 %3190
    %v3192 = vsel %vm3185, %v3179, 0.0
    %3193 = vadd.xlane.f32.xlu0 %v3192
    %v3194 = vpop.xlane.xlu0 %3193
    %v3195 = vsel %vm3185, %v3180, 0.0
    %3196 = vadd.xlane.f32.xlu0 %v3195
    %v3197 = vpop.xlane.xlu0 %3196
    %v3198 = vsel %vm3185, %v3181, 0.0
    %3199 = vadd.xlane.f32.xlu0 %v3198
    %v3200 = vpop.xlane.xlu0 %3199
    %v3201 = vsel %vm3185, %v3182, 0.0
    %3202 = vadd.xlane.f32.xlu0 %v3201
    %v3203 = vpop.xlane.xlu0 %3202
    %v3204 = vsel %vm3185, %v3183, 0.0
    %3205 = vadd.xlane.f32.xlu0 %v3204
    %v3206 = vpop.xlane.xlu0 %3205
    %v3207 = vsel %vm3185, %v3184, 0.0
    %3208 = vadd.xlane.f32.xlu0 %v3207
    %v3209 = vpop.xlane.xlu0 %3208
    %v3210 = vperm.slane %v33, 2
    %v3211 = vadd.f32 %v3188, %v3210
    %v3212 = vadd.f32 %v3191, %v3210
    %v3213 = vadd.f32 %v3194, %v3210
    %v3214 = vadd.f32 %v3197, %v3210
    %v3215 = vadd.f32 %v3200, %v3210
    %v3216 = vadd.f32 %v3203, %v3210
    %v3217 = vadd.f32 %v3206, %v3210
    %v3218 = vadd.f32 %v3209, %v3210
    %v3219 = vld [vmem:[%s0] sm:$0xff]
    %v3220 = vld [vmem:[%s0 + $0x8] sm:$0xff]
    %v3221 = vld [vmem:[%s0 + $0x10] sm:$0xff]
    %v3222 = vld [vmem:[%s0 + $0x18] sm:$0xff]
    %v3223 = vld [vmem:[%s0 + $0x20] sm:$0xff]
    %v3224 = vld [vmem:[%s0 + $0x28] sm:$0xff]
    %v3225 = vld [vmem:[%s0 + $0x30] sm:$0xff]
    %v3226 = vld [vmem:[%s0 + $0x38] sm:$0xff]
    %v3227 = vperm.slane %v33, 1
    %v3228 = vmul.f32 %v3219, %v3227
    %v3229 = vmul.f32 %v3220, %v3227
    %v3230 = vmul.f32 %v3221, %v3227
    %v3231 = vmul.f32 %v3222, %v3227
    %v3232 = vmul.f32 %v3223, %v3227
    %v3233 = vmul.f32 %v3224, %v3227
    %v3234 = vmul.f32 %v3225, %v3227
    %v3235 = vmul.f32 %v3226, %v3227
    %v3236 = vsel %vm2881, %v3228, 0.0
    %3237 = vadd.xlane.f32.xlu0 %v3236
    %v3238 = vpop.xlane.xlu0 %3237
    %v3239 = vsel %vm2881, %v3229, 0.0
    %3240 = vadd.xlane.f32.xlu0 %v3239
    %v3241 = vpop.xlane.xlu0 %3240
    %v3242 = vsel %vm2881, %v3230, 0.0
    %3243 = vadd.xlane.f32.xlu0 %v3242
    %v3244 = vpop.xlane.xlu0 %3243
    %v3245 = vsel %vm2881, %v3231, 0.0
    %3246 = vadd.xlane.f32.xlu0 %v3245
    %v3247 = vpop.xlane.xlu0 %3246
    %v3248 = vsel %vm2881, %v3232, 0.0
    %3249 = vadd.xlane.f32.xlu0 %v3248
    %v3250 = vpop.xlane.xlu0 %3249
    %v3251 = vsel %vm2881, %v3233, 0.0
    %3252 = vadd.xlane.f32.xlu0 %v3251
    %v3253 = vpop.xlane.xlu0 %3252
    %v3254 = vsel %vm2881, %v3234, 0.0
    %3255 = vadd.xlane.f32.xlu0 %v3254
    %v3256 = vpop.xlane.xlu0 %3255
    %v3257 = vsel %vm2881, %v3235, 0.0
    %3258 = vadd.xlane.f32.xlu0 %v3257
    %v3259 = vpop.xlane.xlu0 %3258
    %v3260 = vadd.f32 %v3238, %v3210
    %v3261 = vadd.f32 %v3241, %v3210
    %v3262 = vadd.f32 %v3244, %v3210
    %v3263 = vadd.f32 %v3247, %v3210
    %v3264 = vadd.f32 %v3250, %v3210
    %v3265 = vadd.f32 %v3253, %v3210
    %v3266 = vadd.f32 %v3256, %v3210
    %v3267 = vadd.f32 %v3259, %v3210
    %3276 = vrot.lane.b32.xlu0 %v3260, 127
    %v3277 = vpop.permute.xlu0 %3276
    %3278 = vrot.lane.b32.xlu0 %v3261, 127
    %v3279 = vpop.permute.xlu0 %3278
    %3280 = vrot.lane.b32.xlu0 %v3262, 127
    %v3281 = vpop.permute.xlu0 %3280
    %3282 = vrot.lane.b32.xlu0 %v3263, 127
    %v3283 = vpop.permute.xlu0 %3282
    %3284 = vrot.lane.b32.xlu0 %v3264, 127
    %v3285 = vpop.permute.xlu0 %3284
    %3286 = vrot.lane.b32.xlu0 %v3265, 127
    %v3287 = vpop.permute.xlu0 %3286
    %3288 = vrot.lane.b32.xlu0 %v3266, 127
    %v3289 = vpop.permute.xlu0 %3288
    %3290 = vrot.lane.b32.xlu0 %v3267, 127
    %v3291 = vpop.permute.xlu0 %3290
    %v3300 = vadd.f32 %v3211, %v3277
    %v3301 = vadd.f32 %v3212, %v3279
    %v3302 = vadd.f32 %v3213, %v3281
    %v3303 = vadd.f32 %v3214, %v3283
    %v3304 = vadd.f32 %v3215, %v3285
    %v3305 = vadd.f32 %v3216, %v3287
    %v3306 = vadd.f32 %v3217, %v3289
    %v3307 = vadd.f32 %v3218, %v3291
    %vm3308 = vcmask 7168
    %3309 = vst.msk [vmem:[%s9] sm:$0xff] %vm3308, %v3300
    %3310 = vst.msk [vmem:[%s9 + $0x8] sm:$0xff] %vm3308, %v3301
    %3311 = vst.msk [vmem:[%s9 + $0x10] sm:$0xff] %vm3308, %v3302
    %3312 = vst.msk [vmem:[%s9 + $0x18] sm:$0xff] %vm3308, %v3303
    %3313 = vst.msk [vmem:[%s9 + $0x20] sm:$0xff] %vm3308, %v3304
    %3314 = vst.msk [vmem:[%s9 + $0x28] sm:$0xff] %vm3308, %v3305
    %3315 = vst.msk [vmem:[%s9 + $0x30] sm:$0xff] %vm3308, %v3306
    %3316 = vst.msk [vmem:[%s9 + $0x38] sm:$0xff] %vm3308, %v3307
  $region45: #{tpu_custom_call.1} parent=0 // pred_fallthru
    _
  // Predicated region
  $region46: #{tpu_custom_call.1} parent=0 // pred_check
    _
  $region47: #{tpu_custom_call.1} parent=0 // pred_check_branch
    %3318 = sbr.rel (0) target = $region49
  $region48: #{tpu_custom_call.1} parent=0 // pred_region
    _
  $region49: #{tpu_custom_call.1} parent=0 // pred_fallthru
    _
  // Predicated region
  $region50: #{tpu_custom_call.1} parent=0 // pred_check
    _
  $region51: #{tpu_custom_call.1} parent=0 // pred_check_branch
    %3320 = sbr.rel (0) target = $region53
  $region52: #{tpu_custom_call.1} parent=0 // pred_region
    _
  $region53: #{tpu_custom_call.1} parent=0 // pred_fallthru
    _

</llo_original>
